<compile_context>
chip_gen: v7x
topology: tpu7x:2x2x1
jax: 0.10.0
libtpu: 0.0.40
codegen_flags: <defaults>
</compile_context>

<pallas_src>
import numpy as np

import jax
import jax.numpy as jnp
from jax import lax
from jax.experimental import pallas as pl
from jax.experimental.pallas import tpu as pltpu

_BN_EPS = 1e-5


# ---------------------------------------------------------------------- fused kernel ---
def _catnn_fused_kernel(x_ref,                         # [B*28, 28]        bf16
                        rs1_ref, m1_ref, b1_ref,       # conv1 (stacked rowsel)
                        rs2_ref, r2_ref, b2_ref,       # pool1 + conv2
                        rs3_ref, r3_ref, b3_ref,       # pool2 + conv3
                        wf1_ref, bf1_ref, wf2_ref, bf2_ref,
                        wf3_ref, bf3_ref, wf4_ref, bf4_ref,
                        out_ref):                      # [B, 128]          f32
    def mm(a, b):
        # bf16 x bf16 on the MXU, f32 accumulation.
        return jnp.dot(a.astype(jnp.bfloat16), b.astype(jnp.bfloat16),
                       preferred_element_type=jnp.float32)

    x = x_ref[...]                                     # rows (b, h), lanes w

    # conv1 (5x5 valid, 1->16) + bias + ReLU.  One stacked row-gather matmul, then
    # 5 sublane-aligned slices feeding the banded im2col right-matmuls.
    n1 = rs1_ref.shape[0] // 5                         # B*24
    xs = mm(rs1_ref[...], x)                           # [5*B*24, 28]
    a1 = mm(xs[:n1], m1_ref[0])                        # [(b,i1),(j1,c1)] = [B*24, 384]
    for ky in range(1, 5):
        a1 = a1 + mm(xs[ky * n1:(ky + 1) * n1], m1_ref[ky])
    a1 = jnp.maximum(a1 + b1_ref[...], 0.0)

    # avgpool 2x2 + conv2 (5x5, 16->16) + bias + ReLU.
    n2 = rs2_ref.shape[0] // 5                         # B*8
    ys = mm(rs2_ref[...], a1)                          # [5*B*8, 384]
    a2 = mm(ys[:n2], r2_ref[0])                        # [(b,i2),(j2,c2)] = [B*8, 128]
    for ky in range(1, 5):
        a2 = a2 + mm(ys[ky * n2:(ky + 1) * n2], r2_ref[ky])
    a2 = jnp.maximum(a2 + b2_ref[...], 0.0)

    # avgpool 2x2 + conv3 (4x4, 16->32): 1x1 spatial output == flatten -> [B, 32].
    n3 = rs3_ref.shape[0] // 4                         # B
    zs = mm(rs3_ref[...], a2)                          # [4*B, 128]
    h = mm(zs[:n3], r3_ref[0])
    for ky in range(1, 4):
        h = h + mm(zs[ky * n3:(ky + 1) * n3], r3_ref[ky])
    h = jnp.maximum(h + b3_ref[...], 0.0)              # [B, 32]

    # DeepNet: eval-mode BatchNorm1d folded into each Linear at prep time.
    h = jnp.maximum(mm(h, wf1_ref[...]) + bf1_ref[...], 0.0)
    h = jnp.maximum(mm(h, wf2_ref[...]) + bf2_ref[...], 0.0)
    h = jnp.maximum(mm(h, wf3_ref[...]) + bf3_ref[...], 0.0)
    out_ref[...] = mm(h, wf4_ref[...]) + bf4_ref[...]  # [B, 128] lane-dense store


def _resident_spec(arr):
    """Full-array block whose index never changes -> DMA'd once, VMEM-resident."""
    zeros = (0,) * arr.ndim
    return pl.BlockSpec(arr.shape, lambda i, _z=zeros: _z)


def cat_nn_conv_forward(x_nchw, ops, *, block=8, num_classes=10):
    """x_nchw: [N, 1, 28, 28].  ops: prepare_operands(params, block) output."""
    n = x_nchw.shape[0]
    assert x_nchw.shape[1:] == (1, 28, 28)
    assert ops[0].shape == (5 * block * 24, block * 28), \
        "ops were prepared for a different block size"
    out_pad = ops[-1].shape[-1]                        # padded class lanes (128)

    n_blocks = pl.cdiv(n, block)
    n_pad = n_blocks * block

    x = x_nchw.astype(jnp.bfloat16).reshape(n, 28, 28)  # C == 1: metadata-only
    if n_pad != n:
        x = jnp.pad(x, ((0, n_pad - n), (0, 0), (0, 0)))
    x2d = x.reshape(n_pad * 28, 28)                    # rows (b, h), lanes w

    in_specs = [pl.BlockSpec((block * 28, 28), lambda i: (i, 0))]
    in_specs += [_resident_spec(a) for a in ops]

    out = pl.pallas_call(
        _catnn_fused_kernel,
        out_shape=jax.ShapeDtypeStruct((n_pad, out_pad), jnp.float32),
        grid_spec=pltpu.PrefetchScalarGridSpec(
            num_scalar_prefetch=0,
            grid=(n_blocks,),
            in_specs=in_specs,
            out_specs=pl.BlockSpec((block, out_pad), lambda i: (i, 0)),
        ),
        compiler_params=pltpu.CompilerParams(
            dimension_semantics=("parallel",)),        # both TCs on v7x at real batches
    )(x2d, *ops)
    return out[:n, :num_classes]


# --------------------------------------------------- one-time parameter folding (prep) ---
def prepare_operands(params, block=8, out_pad=128):
    """Fold im2col, avg-pooling and eval-mode BatchNorm into constant bf16 matrices.

    The selection/averaging matrices are sized for one batch BLOCK (not the full batch),
    so the same ops work for any N.
    """
    f32 = np.float32
    B = block
    H0 = W0 = 28
    K1, C1 = 5, 16
    H1 = W1 = H0 - K1 + 1            # 24
    K2, C2 = 5, 16
    Hp1 = H1 // 2                    # 12
    H2 = W2 = Hp1 - K2 + 1           # 8
    K3, C3 = 4, 32

    w1 = np.asarray(params['conv1_w'], f32); b1 = np.asarray(params['conv1_b'], f32)
    w2 = np.asarray(params['conv2_w'], f32); b2 = np.asarray(params['conv2_b'], f32)
    w3 = np.asarray(params['conv3_w'], f32); b3 = np.asarray(params['conv3_b'], f32)

    # conv1: A1 = relu( sum_ky slice_ky(RS1 @ X) @ M1[ky] + b1 )
    rs1 = np.zeros((K1 * B * H1, B * H0), f32)
    for ky in range(K1):
        for b in range(B):
            for i in range(H1):
                rs1[ky * B * H1 + b * H1 + i, b * H0 + i + ky] = 1.0
    m1 = np.zeros((K1, W0, W1 * C1), f32)
    for ky in range(K1):
        for j in range(W1):
            for kx in range(K1):
                m1[ky, j + kx, j * C1:(j + 1) * C1] = w1[:, 0, ky, kx]
    b1t = np.tile(b1, W1).reshape(1, W1 * C1)

    # pool1 + conv2: A2 = relu( sum_ky slice_ky(RS2 @ A1) @ R2[ky] + b2 )
    rs2 = np.zeros((K2 * B * H2, B * H1), f32)
    for ky in range(K2):
        for b in range(B):
            for i2 in range(H2):
                for a in (0, 1):
                    rs2[ky * B * H2 + b * H2 + i2, b * H1 + 2 * (i2 + ky) + a] = 0.5
    r2 = np.zeros((K2, W1 * C1, W2 * C2), f32)
    for ky in range(K2):
        for j2 in range(W2):
            for kx in range(K2):
                wtap = w2[:, :, ky, kx].T                    # [c1, c2]
                for a in (0, 1):
                    j1 = 2 * (j2 + kx) + a
                    r2[ky, j1 * C1:(j1 + 1) * C1, j2 * C2:(j2 + 1) * C2] += 0.5 * wtap
    b2t = np.tile(b2, W2).reshape(1, W2 * C2)

    # pool2 + conv3 (1x1 spatial): h = relu( sum_ky slice_ky(RS3 @ A2) @ R3[ky] + b3 )
    rs3 = np.zeros((K3 * B, B * H2), f32)
    for ky in range(K3):
        for b in range(B):
            for a in (0, 1):
                rs3[ky * B + b, b * H2 + 2 * ky + a] = 0.5
    r3 = np.zeros((K3, W2 * C2, C3), f32)
    for ky in range(K3):
        for kx in range(K3):
            wtap = w3[:, :, ky, kx].T                        # [c2, c3]
            for a in (0, 1):
                j2 = 2 * kx + a
                r3[ky, j2 * C2:(j2 + 1) * C2, :] += 0.5 * wtap
    b3t = b3.reshape(1, C3)

    # DeepNet: fold eval-mode BatchNorm1d into each Linear (exact, in f32).
    def fold_bn(bn, w, b):
        mu, var, gamma, beta = (np.asarray(t, f32) for t in bn)
        s = gamma / np.sqrt(var + _BN_EPS)
        t = beta - mu * s
        w = np.asarray(w, f32)
        b = np.asarray(b, f32)
        return s[:, None] * w, (b + t @ w).reshape(1, -1)

    wf1, bf1 = fold_bn(params['bn1'], params['fc1_w'], params['fc1_b'])
    wf2, bf2 = fold_bn(params['bn2'], params['fc2_w'], params['fc2_b'])
    wf3, bf3 = fold_bn(params['bn3'], params['fc3_w'], params['fc3_b'])
    wf4, bf4 = fold_bn(params['bn4'], params['fc4_w'], params['fc4_b'])

    # Pad the final layer to 128 output lanes -> unmasked lane-dense store.
    k = wf4.shape[1]
    wf4p = np.zeros((wf4.shape[0], out_pad), f32); wf4p[:, :k] = wf4
    bf4p = np.zeros((1, out_pad), f32);            bf4p[:, :k] = bf4

    bf = lambda a: jnp.asarray(a, jnp.bfloat16)      # matmul operands -> bf16
    fj = lambda a: jnp.asarray(a, jnp.float32)       # biases stay f32 (added post-acc)
    return (bf(rs1), bf(m1), fj(b1t),
            bf(rs2), bf(r2), fj(b2t),
            bf(rs3), bf(r3), fj(b3t),
            bf(wf1), fj(bf1), bf(wf2), fj(bf2),
            bf(wf3), fj(bf3), bf(wf4p), fj(bf4p))


# ------------------------------------------------------------------------------ params ---
def init_params(key, k_classes=10):
    hs = [512, 256, 64]

    def u(k, shape, lo=-0.1, hi=0.1):
        return jax.random.uniform(k, shape, jnp.float32, lo, hi)

    keys = jax.random.split(key, 15)
    p = {
        'conv1_w': u(keys[0], (16, 1, 5, 5)),   'conv1_b': u(keys[1], (16,)),
        'conv2_w': u(keys[2], (16, 16, 5, 5)),  'conv2_b': u(keys[3], (16,)),
        'conv3_w': u(keys[4], (32, 16, 4, 4)),  'conv3_b': u(keys[5], (32,)),
        'fc1_w': u(keys[6],  (32, hs[0])),      'fc1_b': u(keys[7],  (hs[0],)),
        'fc2_w': u(keys[8],  (hs[0], hs[1])),   'fc2_b': u(keys[9],  (hs[1],)),
        'fc3_w': u(keys[10], (hs[1], hs[2])),   'fc3_b': u(keys[11], (hs[2],)),
        'fc4_w': u(keys[12], (hs[2], k_classes)), 'fc4_b': u(keys[13], (k_classes,)),
    }
    bn_keys = jax.random.split(keys[14], 16)
    for i, d in enumerate([32, hs[0], hs[1], hs[2]]):
        mean  = jax.random.uniform(bn_keys[4 * i],     (d,), jnp.float32, -0.5, 0.5)
        var   = jax.random.uniform(bn_keys[4 * i + 1], (d,), jnp.float32, 0.5, 1.5)
        gamma = jax.random.uniform(bn_keys[4 * i + 2], (d,), jnp.float32, 0.9, 1.1)
        beta  = jax.random.uniform(bn_keys[4 * i + 3], (d,), jnp.float32, -0.1, 0.1)
        p[f'bn{i + 1}'] = (mean, var, gamma, beta)     # running_mean, running_var, weight, bias
    return p


# ----------------------------------------------------------------- pure-JAX reference ---
def _ref_conv_relu(x, w_oihw, b):
    w_hwio = jnp.transpose(w_oihw, (2, 3, 1, 0))
    y = lax.conv_general_dilated(x, w_hwio, (1, 1), 'VALID',
                                 dimension_numbers=('NHWC', 'HWIO', 'NHWC'),
                                 precision=lax.Precision.HIGHEST)
    return jnp.maximum(y + b, 0.0)


def _ref_pool(x):
    n, h, w, c = x.shape
    return x.reshape(n, h // 2, 2, w // 2, 2, c).mean(axis=(2, 4))


def _ref_bn_linear(x, bn, w, b, relu):
    mu, var, g, beta = bn
    xn = (x - mu) / jnp.sqrt(var + _BN_EPS) * g + beta
    y = jnp.dot(xn, w, precision=lax.Precision.HIGHEST) + b
    return jnp.maximum(y, 0.0) if relu else y


def ref_forward(x_nchw, p):
    x = jnp.transpose(x_nchw, (0, 2, 3, 1)).astype(jnp.float32)
    x = _ref_conv_relu(x, p['conv1_w'], p['conv1_b'])
    # TODO(synk): Dropout2d/Dropout are identity in inference mode; training-mode masking skipped.
    x = _ref_pool(x)
    x = _ref_conv_relu(x, p['conv2_w'], p['conv2_b'])
    x = _ref_pool(x)
    x = _ref_conv_relu(x, p['conv3_w'], p['conv3_b'])
    h = x.reshape(x.shape[0], -1)
    h = _ref_bn_linear(h, p['bn1'], p['fc1_w'], p['fc1_b'], True)
    h = _ref_bn_linear(h, p['bn2'], p['fc2_w'], p['fc2_b'], True)
    h = _ref_bn_linear(h, p['bn3'], p['fc3_w'], p['fc3_b'], True)
    return _ref_bn_linear(h, p['bn4'], p['fc4_w'], p['fc4_b'], False)


# -------------------------------------------------------------------------------- main ---
if __name__ == "__main__":
    key = jax.random.PRNGKey(0)
    k_in, k_p, k_big = jax.random.split(key, 3)
    # ConvHelper geometry (5x5 valid -> /2 -> 5x5 valid -> /2 -> 4x4 valid -> 1x1, 32 ch)
    # requires a 28x28 single-channel input so DeepNet's D_in == 32.
    BLOCK = 8
    params = init_params(k_p, k_classes=10)
    ops = prepare_operands(params, block=BLOCK)        # batch-independent, bf16 constants

    fwd = jax.jit(cat_nn_conv_forward, static_argnames=("block", "num_classes"))

    # Primary check: batch 2 (single grid block, padded internally to BLOCK).
    x = jax.random.normal(k_in, (2, 1, 28, 28), jnp.float32)
    out = jax.block_until_ready(fwd(x, ops, block=BLOCK, num_classes=10))
    ref = jax.block_until_ready(ref_forward(x, params))
    assert out.shape == (2, 10), out.shape
    # bf16 matmul operands / f32 accumulation: slightly looser atol than pure-f32.
    assert jnp.allclose(out, ref, rtol=5e-2, atol=1e-2), (out, ref)

    # Secondary check: batch 20 -> 3 grid blocks (exercises the batch grid + padding
    # with the SAME ops, which are now batch-size independent).
    xb = jax.random.normal(k_big, (20, 1, 28, 28), jnp.float32)
    outb = jax.block_until_ready(fwd(xb, ops, block=BLOCK, num_classes=10))
    refb = jax.block_until_ready(ref_forward(xb, params))
    assert outb.shape == (20, 10), outb.shape
    assert jnp.allclose(outb, refb, rtol=5e-2, atol=1e-2), (outb, refb)

    print("KERNEL_OK")
</pallas_src>

<mosaic_0001>
module attributes {stable_mosaic.version = 11 : i64} {
  func.func @_catnn_fused_kernel(%arg0: i32, %arg1: memref<224x28xbf16, #tpu.memory_space<vmem>>, %arg2: memref<960x224xbf16, #tpu.memory_space<vmem>>, %arg3: memref<5x28x384xbf16, #tpu.memory_space<vmem>>, %arg4: memref<1x384xf32, #tpu.memory_space<vmem>>, %arg5: memref<320x192xbf16, #tpu.memory_space<vmem>>, %arg6: memref<5x384x128xbf16, #tpu.memory_space<vmem>>, %arg7: memref<1x128xf32, #tpu.memory_space<vmem>>, %arg8: memref<32x64xbf16, #tpu.memory_space<vmem>>, %arg9: memref<4x128x32xbf16, #tpu.memory_space<vmem>>, %arg10: memref<1x32xf32, #tpu.memory_space<vmem>>, %arg11: memref<32x512xbf16, #tpu.memory_space<vmem>>, %arg12: memref<1x512xf32, #tpu.memory_space<vmem>>, %arg13: memref<512x256xbf16, #tpu.memory_space<vmem>>, %arg14: memref<1x256xf32, #tpu.memory_space<vmem>>, %arg15: memref<256x64xbf16, #tpu.memory_space<vmem>>, %arg16: memref<1x64xf32, #tpu.memory_space<vmem>>, %arg17: memref<64x128xbf16, #tpu.memory_space<vmem>>, %arg18: memref<1x128xf32, #tpu.memory_space<vmem>>, %arg19: memref<8x128xf32, #tpu.memory_space<vmem>>) attributes {dimension_semantics = [#tpu.dimension_semantics<parallel>], iteration_bounds = array<i64: 1>, scalar_prefetch = 0 : i64, scratch_operands = 0 : i64, tpu.core_type = #tpu.core_type<tc>, window_params = [{transform_indices = @transform_0, window_bounds = array<i64: 224, 28>}, {pipeline_mode = #tpu.pipeline_mode<synchronous>, transform_indices = @transform_1, window_bounds = array<i64: 960, 224>}, {pipeline_mode = #tpu.pipeline_mode<synchronous>, transform_indices = @transform_2, window_bounds = array<i64: 5, 28, 384>}, {pipeline_mode = #tpu.pipeline_mode<synchronous>, transform_indices = @transform_3, window_bounds = array<i64: 1, 384>}, {pipeline_mode = #tpu.pipeline_mode<synchronous>, transform_indices = @transform_4, window_bounds = array<i64: 320, 192>}, {pipeline_mode = #tpu.pipeline_mode<synchronous>, transform_indices = @transform_5, window_bounds = array<i64: 5, 384, 128>}, {pipeline_mode = #tpu.pipeline_mode<synchronous>, transform_indices = @transform_6, window_bounds = array<i64: 1, 128>}, {pipeline_mode = #tpu.pipeline_mode<synchronous>, transform_indices = @transform_7, window_bounds = array<i64: 32, 64>}, {pipeline_mode = #tpu.pipeline_mode<synchronous>, transform_indices = @transform_8, window_bounds = array<i64: 4, 128, 32>}, {pipeline_mode = #tpu.pipeline_mode<synchronous>, transform_indices = @transform_9, window_bounds = array<i64: 1, 32>}, {pipeline_mode = #tpu.pipeline_mode<synchronous>, transform_indices = @transform_10, window_bounds = array<i64: 32, 512>}, {pipeline_mode = #tpu.pipeline_mode<synchronous>, transform_indices = @transform_11, window_bounds = array<i64: 1, 512>}, {pipeline_mode = #tpu.pipeline_mode<synchronous>, transform_indices = @transform_12, window_bounds = array<i64: 512, 256>}, {pipeline_mode = #tpu.pipeline_mode<synchronous>, transform_indices = @transform_13, window_bounds = array<i64: 1, 256>}, {pipeline_mode = #tpu.pipeline_mode<synchronous>, transform_indices = @transform_14, window_bounds = array<i64: 256, 64>}, {pipeline_mode = #tpu.pipeline_mode<synchronous>, transform_indices = @transform_15, window_bounds = array<i64: 1, 64>}, {pipeline_mode = #tpu.pipeline_mode<synchronous>, transform_indices = @transform_16, window_bounds = array<i64: 64, 128>}, {pipeline_mode = #tpu.pipeline_mode<synchronous>, transform_indices = @transform_17, window_bounds = array<i64: 1, 128>}, {transform_indices = @transform_18, window_bounds = array<i64: 8, 128>}]} {
    %c0 = arith.constant 0 : index
    %c0_0 = arith.constant 0 : index
    %0 = vector.load %arg1[%c0, %c0_0] : memref<224x28xbf16, #tpu.memory_space<vmem>>, vector<224x28xbf16>
    %c0_1 = arith.constant 0 : index
    %c0_2 = arith.constant 0 : index
    %1 = vector.load %arg2[%c0_1, %c0_2] : memref<960x224xbf16, #tpu.memory_space<vmem>>, vector<960x224xbf16>
    %cst = arith.constant dense<0.000000e+00> : vector<960x28xf32>
    %2 = tpu.matmul %1, %0, %cst {dimension_numbers = #tpu.dot_dimension_numbers<[1], [0], [0], [1], [0, 0, 1, 1], [], []>} : vector<960x224xbf16>, vector<224x28xbf16>, vector<960x28xf32> -> vector<960x28xf32>
    %3 = vector.extract_strided_slice %2 {offsets = [0, 0], sizes = [192, 28], strides = [1, 1]} : vector<960x28xf32> to vector<192x28xf32>
    %c0_3 = arith.constant 0 : index
    %c0_4 = arith.constant 0 : index
    %c0_5 = arith.constant 0 : index
    %4 = vector.load %arg3[%c0_3, %c0_4, %c0_5] : memref<5x28x384xbf16, #tpu.memory_space<vmem>>, vector<1x28x384xbf16>
    %5 = vector.shape_cast %4 : vector<1x28x384xbf16> to vector<28x384xbf16>
    %6 = arith.truncf %3 : vector<192x28xf32> to vector<192x28xbf16>
    %cst_6 = arith.constant dense<0.000000e+00> : vector<192x384xf32>
    %7 = tpu.matmul %6, %5, %cst_6 {dimension_numbers = #tpu.dot_dimension_numbers<[1], [0], [0], [1], [0, 0, 1, 1], [], []>} : vector<192x28xbf16>, vector<28x384xbf16>, vector<192x384xf32> -> vector<192x384xf32>
    %8 = vector.extract_strided_slice %2 {offsets = [192, 0], sizes = [192, 28], strides = [1, 1]} : vector<960x28xf32> to vector<192x28xf32>
    %c1 = arith.constant 1 : index
    %c0_7 = arith.constant 0 : index
    %c0_8 = arith.constant 0 : index
    %9 = vector.load %arg3[%c1, %c0_7, %c0_8] : memref<5x28x384xbf16, #tpu.memory_space<vmem>>, vector<1x28x384xbf16>
    %10 = vector.shape_cast %9 : vector<1x28x384xbf16> to vector<28x384xbf16>
    %11 = arith.truncf %8 : vector<192x28xf32> to vector<192x28xbf16>
    %cst_9 = arith.constant dense<0.000000e+00> : vector<192x384xf32>
    %12 = tpu.matmul %11, %10, %cst_9 {dimension_numbers = #tpu.dot_dimension_numbers<[1], [0], [0], [1], [0, 0, 1, 1], [], []>} : vector<192x28xbf16>, vector<28x384xbf16>, vector<192x384xf32> -> vector<192x384xf32>
    %13 = arith.addf %7, %12 : vector<192x384xf32>
    %14 = vector.extract_strided_slice %2 {offsets = [384, 0], sizes = [192, 28], strides = [1, 1]} : vector<960x28xf32> to vector<192x28xf32>
    %c2 = arith.constant 2 : index
    %c0_10 = arith.constant 0 : index
    %c0_11 = arith.constant 0 : index
    %15 = vector.load %arg3[%c2, %c0_10, %c0_11] : memref<5x28x384xbf16, #tpu.memory_space<vmem>>, vector<1x28x384xbf16>
    %16 = vector.shape_cast %15 : vector<1x28x384xbf16> to vector<28x384xbf16>
    %17 = arith.truncf %14 : vector<192x28xf32> to vector<192x28xbf16>
    %cst_12 = arith.constant dense<0.000000e+00> : vector<192x384xf32>
    %18 = tpu.matmul %17, %16, %cst_12 {dimension_numbers = #tpu.dot_dimension_numbers<[1], [0], [0], [1], [0, 0, 1, 1], [], []>} : vector<192x28xbf16>, vector<28x384xbf16>, vector<192x384xf32> -> vector<192x384xf32>
    %19 = arith.addf %13, %18 : vector<192x384xf32>
    %20 = vector.extract_strided_slice %2 {offsets = [576, 0], sizes = [192, 28], strides = [1, 1]} : vector<960x28xf32> to vector<192x28xf32>
    %c3 = arith.constant 3 : index
    %c0_13 = arith.constant 0 : index
    %c0_14 = arith.constant 0 : index
    %21 = vector.load %arg3[%c3, %c0_13, %c0_14] : memref<5x28x384xbf16, #tpu.memory_space<vmem>>, vector<1x28x384xbf16>
    %22 = vector.shape_cast %21 : vector<1x28x384xbf16> to vector<28x384xbf16>
    %23 = arith.truncf %20 : vector<192x28xf32> to vector<192x28xbf16>
    %cst_15 = arith.constant dense<0.000000e+00> : vector<192x384xf32>
    %24 = tpu.matmul %23, %22, %cst_15 {dimension_numbers = #tpu.dot_dimension_numbers<[1], [0], [0], [1], [0, 0, 1, 1], [], []>} : vector<192x28xbf16>, vector<28x384xbf16>, vector<192x384xf32> -> vector<192x384xf32>
    %25 = arith.addf %19, %24 : vector<192x384xf32>
    %26 = vector.extract_strided_slice %2 {offsets = [768, 0], sizes = [192, 28], strides = [1, 1]} : vector<960x28xf32> to vector<192x28xf32>
    %c4 = arith.constant 4 : index
    %c0_16 = arith.constant 0 : index
    %c0_17 = arith.constant 0 : index
    %27 = vector.load %arg3[%c4, %c0_16, %c0_17] : memref<5x28x384xbf16, #tpu.memory_space<vmem>>, vector<1x28x384xbf16>
    %28 = vector.shape_cast %27 : vector<1x28x384xbf16> to vector<28x384xbf16>
    %29 = arith.truncf %26 : vector<192x28xf32> to vector<192x28xbf16>
    %cst_18 = arith.constant dense<0.000000e+00> : vector<192x384xf32>
    %30 = tpu.matmul %29, %28, %cst_18 {dimension_numbers = #tpu.dot_dimension_numbers<[1], [0], [0], [1], [0, 0, 1, 1], [], []>} : vector<192x28xbf16>, vector<28x384xbf16>, vector<192x384xf32> -> vector<192x384xf32>
    %31 = arith.addf %25, %30 : vector<192x384xf32>
    %c0_19 = arith.constant 0 : index
    %c0_20 = arith.constant 0 : index
    %32 = vector.load %arg4[%c0_19, %c0_20] : memref<1x384xf32, #tpu.memory_space<vmem>>, vector<1x384xf32>
    %33 = vector.broadcast %32 : vector<1x384xf32> to vector<192x384xf32>
    %34 = arith.addf %31, %33 : vector<192x384xf32>
    %cst_21 = arith.constant 0.000000e+00 : f32
    %35 = vector.broadcast %cst_21 : f32 to vector<192x384xf32>
    %36 = arith.maximumf %34, %35 : vector<192x384xf32>
    %c0_22 = arith.constant 0 : index
    %c0_23 = arith.constant 0 : index
    %37 = vector.load %arg5[%c0_22, %c0_23] : memref<320x192xbf16, #tpu.memory_space<vmem>>, vector<320x192xbf16>
    %38 = arith.truncf %36 : vector<192x384xf32> to vector<192x384xbf16>
    %cst_24 = arith.constant dense<0.000000e+00> : vector<320x384xf32>
    %39 = tpu.matmul %37, %38, %cst_24 {dimension_numbers = #tpu.dot_dimension_numbers<[1], [0], [0], [1], [0, 0, 1, 1], [], []>} : vector<320x192xbf16>, vector<192x384xbf16>, vector<320x384xf32> -> vector<320x384xf32>
    %40 = vector.extract_strided_slice %39 {offsets = [0, 0], sizes = [64, 384], strides = [1, 1]} : vector<320x384xf32> to vector<64x384xf32>
    %c0_25 = arith.constant 0 : index
    %c0_26 = arith.constant 0 : index
    %c0_27 = arith.constant 0 : index
    %41 = vector.load %arg6[%c0_25, %c0_26, %c0_27] : memref<5x384x128xbf16, #tpu.memory_space<vmem>>, vector<1x384x128xbf16>
    %42 = vector.shape_cast %41 : vector<1x384x128xbf16> to vector<384x128xbf16>
    %43 = arith.truncf %40 : vector<64x384xf32> to vector<64x384xbf16>
    %cst_28 = arith.constant dense<0.000000e+00> : vector<64x128xf32>
    %44 = tpu.matmul %43, %42, %cst_28 {dimension_numbers = #tpu.dot_dimension_numbers<[1], [0], [0], [1], [0, 0, 1, 1], [], []>} : vector<64x384xbf16>, vector<384x128xbf16>, vector<64x128xf32> -> vector<64x128xf32>
    %45 = vector.extract_strided_slice %39 {offsets = [64, 0], sizes = [64, 384], strides = [1, 1]} : vector<320x384xf32> to vector<64x384xf32>
    %c1_29 = arith.constant 1 : index
    %c0_30 = arith.constant 0 : index
    %c0_31 = arith.constant 0 : index
    %46 = vector.load %arg6[%c1_29, %c0_30, %c0_31] : memref<5x384x128xbf16, #tpu.memory_space<vmem>>, vector<1x384x128xbf16>
    %47 = vector.shape_cast %46 : vector<1x384x128xbf16> to vector<384x128xbf16>
    %48 = arith.truncf %45 : vector<64x384xf32> to vector<64x384xbf16>
    %cst_32 = arith.constant dense<0.000000e+00> : vector<64x128xf32>
    %49 = tpu.matmul %48, %47, %cst_32 {dimension_numbers = #tpu.dot_dimension_numbers<[1], [0], [0], [1], [0, 0, 1, 1], [], []>} : vector<64x384xbf16>, vector<384x128xbf16>, vector<64x128xf32> -> vector<64x128xf32>
    %50 = arith.addf %44, %49 : vector<64x128xf32>
    %51 = vector.extract_strided_slice %39 {offsets = [128, 0], sizes = [64, 384], strides = [1, 1]} : vector<320x384xf32> to vector<64x384xf32>
    %c2_33 = arith.constant 2 : index
    %c0_34 = arith.constant 0 : index
    %c0_35 = arith.constant 0 : index
    %52 = vector.load %arg6[%c2_33, %c0_34, %c0_35] : memref<5x384x128xbf16, #tpu.memory_space<vmem>>, vector<1x384x128xbf16>
    %53 = vector.shape_cast %52 : vector<1x384x128xbf16> to vector<384x128xbf16>
    %54 = arith.truncf %51 : vector<64x384xf32> to vector<64x384xbf16>
    %cst_36 = arith.constant dense<0.000000e+00> : vector<64x128xf32>
    %55 = tpu.matmul %54, %53, %cst_36 {dimension_numbers = #tpu.dot_dimension_numbers<[1], [0], [0], [1], [0, 0, 1, 1], [], []>} : vector<64x384xbf16>, vector<384x128xbf16>, vector<64x128xf32> -> vector<64x128xf32>
    %56 = arith.addf %50, %55 : vector<64x128xf32>
    %57 = vector.extract_strided_slice %39 {offsets = [192, 0], sizes = [64, 384], strides = [1, 1]} : vector<320x384xf32> to vector<64x384xf32>
    %c3_37 = arith.constant 3 : index
    %c0_38 = arith.constant 0 : index
    %c0_39 = arith.constant 0 : index
    %58 = vector.load %arg6[%c3_37, %c0_38, %c0_39] : memref<5x384x128xbf16, #tpu.memory_space<vmem>>, vector<1x384x128xbf16>
    %59 = vector.shape_cast %58 : vector<1x384x128xbf16> to vector<384x128xbf16>
    %60 = arith.truncf %57 : vector<64x384xf32> to vector<64x384xbf16>
    %cst_40 = arith.constant dense<0.000000e+00> : vector<64x128xf32>
    %61 = tpu.matmul %60, %59, %cst_40 {dimension_numbers = #tpu.dot_dimension_numbers<[1], [0], [0], [1], [0, 0, 1, 1], [], []>} : vector<64x384xbf16>, vector<384x128xbf16>, vector<64x128xf32> -> vector<64x128xf32>
    %62 = arith.addf %56, %61 : vector<64x128xf32>
    %63 = vector.extract_strided_slice %39 {offsets = [256, 0], sizes = [64, 384], strides = [1, 1]} : vector<320x384xf32> to vector<64x384xf32>
    %c4_41 = arith.constant 4 : index
    %c0_42 = arith.constant 0 : index
    %c0_43 = arith.constant 0 : index
    %64 = vector.load %arg6[%c4_41, %c0_42, %c0_43] : memref<5x384x128xbf16, #tpu.memory_space<vmem>>, vector<1x384x128xbf16>
    %65 = vector.shape_cast %64 : vector<1x384x128xbf16> to vector<384x128xbf16>
    %66 = arith.truncf %63 : vector<64x384xf32> to vector<64x384xbf16>
    %cst_44 = arith.constant dense<0.000000e+00> : vector<64x128xf32>
    %67 = tpu.matmul %66, %65, %cst_44 {dimension_numbers = #tpu.dot_dimension_numbers<[1], [0], [0], [1], [0, 0, 1, 1], [], []>} : vector<64x384xbf16>, vector<384x128xbf16>, vector<64x128xf32> -> vector<64x128xf32>
    %68 = arith.addf %62, %67 : vector<64x128xf32>
    %c0_45 = arith.constant 0 : index
    %c0_46 = arith.constant 0 : index
    %69 = vector.load %arg7[%c0_45, %c0_46] : memref<1x128xf32, #tpu.memory_space<vmem>>, vector<1x128xf32>
    %70 = vector.broadcast %69 : vector<1x128xf32> to vector<64x128xf32>
    %71 = arith.addf %68, %70 : vector<64x128xf32>
    %cst_47 = arith.constant 0.000000e+00 : f32
    %72 = vector.broadcast %cst_47 : f32 to vector<64x128xf32>
    %73 = arith.maximumf %71, %72 : vector<64x128xf32>
    %c0_48 = arith.constant 0 : index
    %c0_49 = arith.constant 0 : index
    %74 = vector.load %arg8[%c0_48, %c0_49] : memref<32x64xbf16, #tpu.memory_space<vmem>>, vector<32x64xbf16>
    %75 = arith.truncf %73 : vector<64x128xf32> to vector<64x128xbf16>
    %cst_50 = arith.constant dense<0.000000e+00> : vector<32x128xf32>
    %76 = tpu.matmul %74, %75, %cst_50 {dimension_numbers = #tpu.dot_dimension_numbers<[1], [0], [0], [1], [0, 0, 1, 1], [], []>} : vector<32x64xbf16>, vector<64x128xbf16>, vector<32x128xf32> -> vector<32x128xf32>
    %77 = vector.extract_strided_slice %76 {offsets = [0, 0], sizes = [8, 128], strides = [1, 1]} : vector<32x128xf32> to vector<8x128xf32>
    %c0_51 = arith.constant 0 : index
    %c0_52 = arith.constant 0 : index
    %c0_53 = arith.constant 0 : index
    %78 = vector.load %arg9[%c0_51, %c0_52, %c0_53] : memref<4x128x32xbf16, #tpu.memory_space<vmem>>, vector<1x128x32xbf16>
    %79 = vector.shape_cast %78 : vector<1x128x32xbf16> to vector<128x32xbf16>
    %80 = arith.truncf %77 : vector<8x128xf32> to vector<8x128xbf16>
    %cst_54 = arith.constant dense<0.000000e+00> : vector<8x32xf32>
    %81 = tpu.matmul %80, %79, %cst_54 {dimension_numbers = #tpu.dot_dimension_numbers<[1], [0], [0], [1], [0, 0, 1, 1], [], []>} : vector<8x128xbf16>, vector<128x32xbf16>, vector<8x32xf32> -> vector<8x32xf32>
    %82 = vector.extract_strided_slice %76 {offsets = [8, 0], sizes = [8, 128], strides = [1, 1]} : vector<32x128xf32> to vector<8x128xf32>
    %c1_55 = arith.constant 1 : index
    %c0_56 = arith.constant 0 : index
    %c0_57 = arith.constant 0 : index
    %83 = vector.load %arg9[%c1_55, %c0_56, %c0_57] : memref<4x128x32xbf16, #tpu.memory_space<vmem>>, vector<1x128x32xbf16>
    %84 = vector.shape_cast %83 : vector<1x128x32xbf16> to vector<128x32xbf16>
    %85 = arith.truncf %82 : vector<8x128xf32> to vector<8x128xbf16>
    %cst_58 = arith.constant dense<0.000000e+00> : vector<8x32xf32>
    %86 = tpu.matmul %85, %84, %cst_58 {dimension_numbers = #tpu.dot_dimension_numbers<[1], [0], [0], [1], [0, 0, 1, 1], [], []>} : vector<8x128xbf16>, vector<128x32xbf16>, vector<8x32xf32> -> vector<8x32xf32>
    %87 = arith.addf %81, %86 : vector<8x32xf32>
    %88 = vector.extract_strided_slice %76 {offsets = [16, 0], sizes = [8, 128], strides = [1, 1]} : vector<32x128xf32> to vector<8x128xf32>
    %c2_59 = arith.constant 2 : index
    %c0_60 = arith.constant 0 : index
    %c0_61 = arith.constant 0 : index
    %89 = vector.load %arg9[%c2_59, %c0_60, %c0_61] : memref<4x128x32xbf16, #tpu.memory_space<vmem>>, vector<1x128x32xbf16>
    %90 = vector.shape_cast %89 : vector<1x128x32xbf16> to vector<128x32xbf16>
    %91 = arith.truncf %88 : vector<8x128xf32> to vector<8x128xbf16>
    %cst_62 = arith.constant dense<0.000000e+00> : vector<8x32xf32>
    %92 = tpu.matmul %91, %90, %cst_62 {dimension_numbers = #tpu.dot_dimension_numbers<[1], [0], [0], [1], [0, 0, 1, 1], [], []>} : vector<8x128xbf16>, vector<128x32xbf16>, vector<8x32xf32> -> vector<8x32xf32>
    %93 = arith.addf %87, %92 : vector<8x32xf32>
    %94 = vector.extract_strided_slice %76 {offsets = [24, 0], sizes = [8, 128], strides = [1, 1]} : vector<32x128xf32> to vector<8x128xf32>
    %c3_63 = arith.constant 3 : index
    %c0_64 = arith.constant 0 : index
    %c0_65 = arith.constant 0 : index
    %95 = vector.load %arg9[%c3_63, %c0_64, %c0_65] : memref<4x128x32xbf16, #tpu.memory_space<vmem>>, vector<1x128x32xbf16>
    %96 = vector.shape_cast %95 : vector<1x128x32xbf16> to vector<128x32xbf16>
    %97 = arith.truncf %94 : vector<8x128xf32> to vector<8x128xbf16>
    %cst_66 = arith.constant dense<0.000000e+00> : vector<8x32xf32>
    %98 = tpu.matmul %97, %96, %cst_66 {dimension_numbers = #tpu.dot_dimension_numbers<[1], [0], [0], [1], [0, 0, 1, 1], [], []>} : vector<8x128xbf16>, vector<128x32xbf16>, vector<8x32xf32> -> vector<8x32xf32>
    %99 = arith.addf %93, %98 : vector<8x32xf32>
    %c0_67 = arith.constant 0 : index
    %c0_68 = arith.constant 0 : index
    %100 = vector.load %arg10[%c0_67, %c0_68] : memref<1x32xf32, #tpu.memory_space<vmem>>, vector<1x32xf32>
    %101 = vector.broadcast %100 : vector<1x32xf32> to vector<8x32xf32>
    %102 = arith.addf %99, %101 : vector<8x32xf32>
    %cst_69 = arith.constant 0.000000e+00 : f32
    %103 = vector.broadcast %cst_69 : f32 to vector<8x32xf32>
    %104 = arith.maximumf %102, %103 : vector<8x32xf32>
    %c0_70 = arith.constant 0 : index
    %c0_71 = arith.constant 0 : index
    %105 = vector.load %arg11[%c0_70, %c0_71] : memref<32x512xbf16, #tpu.memory_space<vmem>>, vector<32x512xbf16>
    %106 = arith.truncf %104 : vector<8x32xf32> to vector<8x32xbf16>
    %cst_72 = arith.constant dense<0.000000e+00> : vector<8x512xf32>
    %107 = tpu.matmul %106, %105, %cst_72 {dimension_numbers = #tpu.dot_dimension_numbers<[1], [0], [0], [1], [0, 0, 1, 1], [], []>} : vector<8x32xbf16>, vector<32x512xbf16>, vector<8x512xf32> -> vector<8x512xf32>
    %c0_73 = arith.constant 0 : index
    %c0_74 = arith.constant 0 : index
    %108 = vector.load %arg12[%c0_73, %c0_74] : memref<1x512xf32, #tpu.memory_space<vmem>>, vector<1x512xf32>
    %109 = vector.broadcast %108 : vector<1x512xf32> to vector<8x512xf32>
    %110 = arith.addf %107, %109 : vector<8x512xf32>
    %cst_75 = arith.constant 0.000000e+00 : f32
    %111 = vector.broadcast %cst_75 : f32 to vector<8x512xf32>
    %112 = arith.maximumf %110, %111 : vector<8x512xf32>
    %c0_76 = arith.constant 0 : index
    %c0_77 = arith.constant 0 : index
    %113 = vector.load %arg13[%c0_76, %c0_77] : memref<512x256xbf16, #tpu.memory_space<vmem>>, vector<512x256xbf16>
    %114 = arith.truncf %112 : vector<8x512xf32> to vector<8x512xbf16>
    %cst_78 = arith.constant dense<0.000000e+00> : vector<8x256xf32>
    %115 = tpu.matmul %114, %113, %cst_78 {dimension_numbers = #tpu.dot_dimension_numbers<[1], [0], [0], [1], [0, 0, 1, 1], [], []>} : vector<8x512xbf16>, vector<512x256xbf16>, vector<8x256xf32> -> vector<8x256xf32>
    %c0_79 = arith.constant 0 : index
    %c0_80 = arith.constant 0 : index
    %116 = vector.load %arg14[%c0_79, %c0_80] : memref<1x256xf32, #tpu.memory_space<vmem>>, vector<1x256xf32>
    %117 = vector.broadcast %116 : vector<1x256xf32> to vector<8x256xf32>
    %118 = arith.addf %115, %117 : vector<8x256xf32>
    %cst_81 = arith.constant 0.000000e+00 : f32
    %119 = vector.broadcast %cst_81 : f32 to vector<8x256xf32>
    %120 = arith.maximumf %118, %119 : vector<8x256xf32>
    %c0_82 = arith.constant 0 : index
    %c0_83 = arith.constant 0 : index
    %121 = vector.load %arg15[%c0_82, %c0_83] : memref<256x64xbf16, #tpu.memory_space<vmem>>, vector<256x64xbf16>
    %122 = arith.truncf %120 : vector<8x256xf32> to vector<8x256xbf16>
    %cst_84 = arith.constant dense<0.000000e+00> : vector<8x64xf32>
    %123 = tpu.matmul %122, %121, %cst_84 {dimension_numbers = #tpu.dot_dimension_numbers<[1], [0], [0], [1], [0, 0, 1, 1], [], []>} : vector<8x256xbf16>, vector<256x64xbf16>, vector<8x64xf32> -> vector<8x64xf32>
    %c0_85 = arith.constant 0 : index
    %c0_86 = arith.constant 0 : index
    %124 = vector.load %arg16[%c0_85, %c0_86] : memref<1x64xf32, #tpu.memory_space<vmem>>, vector<1x64xf32>
    %125 = vector.broadcast %124 : vector<1x64xf32> to vector<8x64xf32>
    %126 = arith.addf %123, %125 : vector<8x64xf32>
    %cst_87 = arith.constant 0.000000e+00 : f32
    %127 = vector.broadcast %cst_87 : f32 to vector<8x64xf32>
    %128 = arith.maximumf %126, %127 : vector<8x64xf32>
    %c0_88 = arith.constant 0 : index
    %c0_89 = arith.constant 0 : index
    %129 = vector.load %arg17[%c0_88, %c0_89] : memref<64x128xbf16, #tpu.memory_space<vmem>>, vector<64x128xbf16>
    %130 = arith.truncf %128 : vector<8x64xf32> to vector<8x64xbf16>
    %cst_90 = arith.constant dense<0.000000e+00> : vector<8x128xf32>
    %131 = tpu.matmul %130, %129, %cst_90 {dimension_numbers = #tpu.dot_dimension_numbers<[1], [0], [0], [1], [0, 0, 1, 1], [], []>} : vector<8x64xbf16>, vector<64x128xbf16>, vector<8x128xf32> -> vector<8x128xf32>
    %c0_91 = arith.constant 0 : index
    %c0_92 = arith.constant 0 : index
    %132 = vector.load %arg18[%c0_91, %c0_92] : memref<1x128xf32, #tpu.memory_space<vmem>>, vector<1x128xf32>
    %133 = vector.broadcast %132 : vector<1x128xf32> to vector<8x128xf32>
    %134 = arith.addf %131, %133 : vector<8x128xf32>
    %c0_93 = arith.constant 0 : index
    %c0_94 = arith.constant 0 : index
    %135 = vector.load %arg19[%c0_93, %c0_94] : memref<8x128xf32, #tpu.memory_space<vmem>>, vector<8x128xf32>
    tpu.vector_store %arg19[%c0_93, %c0_94], %134 {strides = array<i32>} : memref<8x128xf32, #tpu.memory_space<vmem>>, vector<8x128xf32>,
    return
  }
  func.func @transform_0(%arg0: i32) -> (i32, i32) {
    %c0_i32 = arith.constant 0 : i32
    %c0_i32_0 = arith.constant 0 : i32
    return %arg0, %c0_i32 : i32, i32
  }
  func.func @transform_1(%arg0: i32) -> (i32, i32) {
    %c0_i32 = arith.constant 0 : i32
    %c0_i32_0 = arith.constant 0 : i32
    %c0_i32_1 = arith.constant 0 : i32
    return %c0_i32, %c0_i32_0 : i32, i32
  }
  func.func @transform_2(%arg0: i32) -> (i32, i32, i32) {
    %c0_i32 = arith.constant 0 : i32
    %c0_i32_0 = arith.constant 0 : i32
    %c0_i32_1 = arith.constant 0 : i32
    %c0_i32_2 = arith.constant 0 : i32
    return %c0_i32, %c0_i32_0, %c0_i32_1 : i32, i32, i32
  }
  func.func @transform_3(%arg0: i32) -> (i32, i32) {
    %c0_i32 = arith.constant 0 : i32
    %c0_i32_0 = arith.constant 0 : i32
    %c0_i32_1 = arith.constant 0 : i32
    return %c0_i32, %c0_i32_0 : i32, i32
  }
  func.func @transform_4(%arg0: i32) -> (i32, i32) {
    %c0_i32 = arith.constant 0 : i32
    %c0_i32_0 = arith.constant 0 : i32
    %c0_i32_1 = arith.constant 0 : i32
    return %c0_i32, %c0_i32_0 : i32, i32
  }
  func.func @transform_5(%arg0: i32) -> (i32, i32, i32) {
    %c0_i32 = arith.constant 0 : i32
    %c0_i32_0 = arith.constant 0 : i32
    %c0_i32_1 = arith.constant 0 : i32
    %c0_i32_2 = arith.constant 0 : i32
    return %c0_i32, %c0_i32_0, %c0_i32_1 : i32, i32, i32
  }
  func.func @transform_6(%arg0: i32) -> (i32, i32) {
    %c0_i32 = arith.constant 0 : i32
    %c0_i32_0 = arith.constant 0 : i32
    %c0_i32_1 = arith.constant 0 : i32
    return %c0_i32, %c0_i32_0 : i32, i32
  }
  func.func @transform_7(%arg0: i32) -> (i32, i32) {
    %c0_i32 = arith.constant 0 : i32
    %c0_i32_0 = arith.constant 0 : i32
    %c0_i32_1 = arith.constant 0 : i32
    return %c0_i32, %c0_i32_0 : i32, i32
  }
  func.func @transform_8(%arg0: i32) -> (i32, i32, i32) {
    %c0_i32 = arith.constant 0 : i32
    %c0_i32_0 = arith.constant 0 : i32
    %c0_i32_1 = arith.constant 0 : i32
    %c0_i32_2 = arith.constant 0 : i32
    return %c0_i32, %c0_i32_0, %c0_i32_1 : i32, i32, i32
  }
  func.func @transform_9(%arg0: i32) -> (i32, i32) {
    %c0_i32 = arith.constant 0 : i32
    %c0_i32_0 = arith.constant 0 : i32
    %c0_i32_1 = arith.constant 0 : i32
    return %c0_i32, %c0_i32_0 : i32, i32
  }
  func.func @transform_10(%arg0: i32) -> (i32, i32) {
    %c0_i32 = arith.constant 0 : i32
    %c0_i32_0 = arith.constant 0 : i32
    %c0_i32_1 = arith.constant 0 : i32
    return %c0_i32, %c0_i32_0 : i32, i32
  }
  func.func @transform_11(%arg0: i32) -> (i32, i32) {
    %c0_i32 = arith.constant 0 : i32
    %c0_i32_0 = arith.constant 0 : i32
    %c0_i32_1 = arith.constant 0 : i32
    return %c0_i32, %c0_i32_0 : i32, i32
  }
  func.func @transform_12(%arg0: i32) -> (i32, i32) {
    %c0_i32 = arith.constant 0 : i32
    %c0_i32_0 = arith.constant 0 : i32
    %c0_i32_1 = arith.constant 0 : i32
    return %c0_i32, %c0_i32_0 : i32, i32
  }
  func.func @transform_13(%arg0: i32) -> (i32, i32) {
    %c0_i32 = arith.constant 0 : i32
    %c0_i32_0 = arith.constant 0 : i32
    %c0_i32_1 = arith.constant 0 : i32
    return %c0_i32, %c0_i32_0 : i32, i32
  }
  func.func @transform_14(%arg0: i32) -> (i32, i32) {
    %c0_i32 = arith.constant 0 : i32
    %c0_i32_0 = arith.constant 0 : i32
    %c0_i32_1 = arith.constant 0 : i32
    return %c0_i32, %c0_i32_0 : i32, i32
  }
  func.func @transform_15(%arg0: i32) -> (i32, i32) {
    %c0_i32 = arith.constant 0 : i32
    %c0_i32_0 = arith.constant 0 : i32
    %c0_i32_1 = arith.constant 0 : i32
    return %c0_i32, %c0_i32_0 : i32, i32
  }
  func.func @transform_16(%arg0: i32) -> (i32, i32) {
    %c0_i32 = arith.constant 0 : i32
    %c0_i32_0 = arith.constant 0 : i32
    %c0_i32_1 = arith.constant 0 : i32
    return %c0_i32, %c0_i32_0 : i32, i32
  }
  func.func @transform_17(%arg0: i32) -> (i32, i32) {
    %c0_i32 = arith.constant 0 : i32
    %c0_i32_0 = arith.constant 0 : i32
    %c0_i32_1 = arith.constant 0 : i32
    return %c0_i32, %c0_i32_0 : i32, i32
  }
  func.func @transform_18(%arg0: i32) -> (i32, i32) {
    %c0_i32 = arith.constant 0 : i32
    %c0_i32_0 = arith.constant 0 : i32
    return %arg0, %c0_i32 : i32, i32
  }
}

</mosaic_0001>

<llo_original>
// kernel: cat_nn_conv_forward.1
$region0: #{cat_nn_conv_forward.1}
  #allocation0 [shape = 'u32[]', space=smem, size = 0x4, offset = 0x4, fixed_abs, tag = 'smem constant byte address 0x4 - core index']
  #allocation1 [shape = 'u32[144,128]{1,0:T(1,128)}', space=vmem, size = 0x12000, scoped, tag = 'internal scratch']
  %s0 = inlined_call_operand.vmem [shape: bf16[224,28], index: 0, kind: input, shape index: {}]
  %s1 = inlined_call_operand.vmem [shape: bf16[960,224], index: 1, kind: input, shape index: {}]
  %s2 = inlined_call_operand.vmem [shape: bf16[5,28,384], index: 2, kind: input, shape index: {}]
  %s3 = inlined_call_operand.vmem [shape: f32[1,384], index: 3, kind: input, shape index: {}]
  %s4 = inlined_call_operand.vmem [shape: bf16[320,192], index: 4, kind: input, shape index: {}]
  %s5 = inlined_call_operand.vmem [shape: bf16[5,384,128], index: 5, kind: input, shape index: {}]
  %s6 = inlined_call_operand.vmem [shape: f32[1,128], index: 6, kind: input, shape index: {}]
  %s7 = inlined_call_operand.vmem [shape: bf16[32,64], index: 7, kind: input, shape index: {}]
  %s8 = inlined_call_operand.vmem [shape: bf16[4,128,32], index: 8, kind: input, shape index: {}]
  %s9 = inlined_call_operand.vmem [shape: f32[1,32], index: 9, kind: input, shape index: {}]
  %s10 = inlined_call_operand.vmem [shape: bf16[32,512], index: 10, kind: input, shape index: {}]
  %s11 = inlined_call_operand.vmem [shape: f32[1,512], index: 11, kind: input, shape index: {}]
  %s12 = inlined_call_operand.vmem [shape: bf16[512,256], index: 12, kind: input, shape index: {}]
  %s13 = inlined_call_operand.vmem [shape: f32[1,256], index: 13, kind: input, shape index: {}]
  %s14 = inlined_call_operand.vmem [shape: bf16[256,64], index: 14, kind: input, shape index: {}]
  %s15 = inlined_call_operand.vmem [shape: f32[1,64], index: 15, kind: input, shape index: {}]
  %s16 = inlined_call_operand.vmem [shape: bf16[64,128], index: 16, kind: input, shape index: {}]
  %s17 = inlined_call_operand.vmem [shape: f32[1,128], index: 17, kind: input, shape index: {}]
  %s18 = inlined_call_operand.vmem [shape: f32[8,128], index: 18, kind: output, shape index: {}]
  %s19 = sld [smem:[#allocation0]]
  $region82: #{cat_nn_conv_forward.1} parent=0
    _
  %s21 = ssub.s32 1, %s19
  %s22 = scalar_select 0, %s21, %s19
  // Predicated region
  $region2: #{cat_nn_conv_forward.1} parent=0 // pred_check
    _
  $region3: #{cat_nn_conv_forward.1} parent=0 // pred_check_branch
    %24 = sbr.rel (0) target = $region5
  $region4: #{cat_nn_conv_forward.1} parent=0 // pred_region
    _
  $region5: #{cat_nn_conv_forward.1} parent=0 // pred_fallthru
    _
  // Predicated region
  $region6: #{cat_nn_conv_forward.1} parent=0 // pred_check
    _
  $region7: #{cat_nn_conv_forward.1} parent=0 // pred_check_branch
    %26 = sbr.rel (0) target = $region9
  $region8: #{cat_nn_conv_forward.1} parent=0 // pred_region
    _
  $region9: #{cat_nn_conv_forward.1} parent=0 // pred_fallthru
    _
  // Predicated region
  $region10: #{cat_nn_conv_forward.1} parent=0 // pred_check
    _
  $region11: #{cat_nn_conv_forward.1} parent=0 // pred_check_branch
    %28 = sbr.rel (0) target = $region13
  $region12: #{cat_nn_conv_forward.1} parent=0 // pred_region
    _
  $region13: #{cat_nn_conv_forward.1} parent=0 // pred_fallthru
    _
  // Predicated region
  $region14: #{cat_nn_conv_forward.1} parent=0 // pred_check
    _
  $region15: #{cat_nn_conv_forward.1} parent=0 // pred_check_branch
    %30 = sbr.rel (0) target = $region17
  $region16: #{cat_nn_conv_forward.1} parent=0 // pred_region
    _
  $region17: #{cat_nn_conv_forward.1} parent=0 // pred_fallthru
    _
  // Predicated region
  $region18: #{cat_nn_conv_forward.1} parent=0 // pred_check
    _
  $region19: #{cat_nn_conv_forward.1} parent=0 // pred_check_branch
    %32 = sbr.rel (0) target = $region21
  $region20: #{cat_nn_conv_forward.1} parent=0 // pred_region
    _
  $region21: #{cat_nn_conv_forward.1} parent=0 // pred_fallthru
    _
  // Predicated region
  $region22: #{cat_nn_conv_forward.1} parent=0 // pred_check
    _
  $region23: #{cat_nn_conv_forward.1} parent=0 // pred_check_branch
    %34 = sbr.rel (0) target = $region25
  $region24: #{cat_nn_conv_forward.1} parent=0 // pred_region
    _
  $region25: #{cat_nn_conv_forward.1} parent=0 // pred_fallthru
    _
  // Predicated region
  $region26: #{cat_nn_conv_forward.1} parent=0 // pred_check
    _
  $region27: #{cat_nn_conv_forward.1} parent=0 // pred_check_branch
    %36 = sbr.rel (0) target = $region29
  $region28: #{cat_nn_conv_forward.1} parent=0 // pred_region
    _
  $region29: #{cat_nn_conv_forward.1} parent=0 // pred_fallthru
    _
  // Predicated region
  $region30: #{cat_nn_conv_forward.1} parent=0 // pred_check
    _
  $region31: #{cat_nn_conv_forward.1} parent=0 // pred_check_branch
    %38 = sbr.rel (0) target = $region33
  $region32: #{cat_nn_conv_forward.1} parent=0 // pred_region
    _
  $region33: #{cat_nn_conv_forward.1} parent=0 // pred_fallthru
    _
  // Predicated region
  $region34: #{cat_nn_conv_forward.1} parent=0 // pred_check
    _
  $region35: #{cat_nn_conv_forward.1} parent=0 // pred_check_branch
    %40 = sbr.rel (0) target = $region37
  $region36: #{cat_nn_conv_forward.1} parent=0 // pred_region
    _
  $region37: #{cat_nn_conv_forward.1} parent=0 // pred_fallthru
    _
  // Predicated region
  $region38: #{cat_nn_conv_forward.1} parent=0 // pred_check
    _
  $region39: #{cat_nn_conv_forward.1} parent=0 // pred_check_branch
    %42 = sbr.rel (0) target = $region41
  $region40: #{cat_nn_conv_forward.1} parent=0 // pred_region
    _
  $region41: #{cat_nn_conv_forward.1} parent=0 // pred_fallthru
    _
  // Predicated region
  $region42: #{cat_nn_conv_forward.1} parent=0 // pred_check
    _
  $region43: #{cat_nn_conv_forward.1} parent=0 // pred_check_branch
    %44 = sbr.rel (0) target = $region45
  $region44: #{cat_nn_conv_forward.1} parent=0 // pred_region
    _
  $region45: #{cat_nn_conv_forward.1} parent=0 // pred_fallthru
    _
  // Predicated region
  $region46: #{cat_nn_conv_forward.1} parent=0 // pred_check
    _
  $region47: #{cat_nn_conv_forward.1} parent=0 // pred_check_branch
    %46 = sbr.rel (0) target = $region49
  $region48: #{cat_nn_conv_forward.1} parent=0 // pred_region
    _
  $region49: #{cat_nn_conv_forward.1} parent=0 // pred_fallthru
    _
  // Predicated region
  $region50: #{cat_nn_conv_forward.1} parent=0 // pred_check
    _
  $region51: #{cat_nn_conv_forward.1} parent=0 // pred_check_branch
    %48 = sbr.rel (0) target = $region53
  $region52: #{cat_nn_conv_forward.1} parent=0 // pred_region
    _
  $region53: #{cat_nn_conv_forward.1} parent=0 // pred_fallthru
    _
  // Predicated region
  $region54: #{cat_nn_conv_forward.1} parent=0 // pred_check
    _
  $region55: #{cat_nn_conv_forward.1} parent=0 // pred_check_branch
    %50 = sbr.rel (0) target = $region57
  $region56: #{cat_nn_conv_forward.1} parent=0 // pred_region
    _
  $region57: #{cat_nn_conv_forward.1} parent=0 // pred_fallthru
    _
  // Predicated region
  $region58: #{cat_nn_conv_forward.1} parent=0 // pred_check
    _
  $region59: #{cat_nn_conv_forward.1} parent=0 // pred_check_branch
    %52 = sbr.rel (0) target = $region61
  $region60: #{cat_nn_conv_forward.1} parent=0 // pred_region
    _
  $region61: #{cat_nn_conv_forward.1} parent=0 // pred_fallthru
    _
  // Predicated region
  $region62: #{cat_nn_conv_forward.1} parent=0 // pred_check
    _
  $region63: #{cat_nn_conv_forward.1} parent=0 // pred_check_branch
    %54 = sbr.rel (0) target = $region65
  $region64: #{cat_nn_conv_forward.1} parent=0 // pred_region
    _
  $region65: #{cat_nn_conv_forward.1} parent=0 // pred_fallthru
    _
  // Predicated region
  $region66: #{cat_nn_conv_forward.1} parent=0 // pred_check
    _
  $region67: #{cat_nn_conv_forward.1} parent=0 // pred_check_branch
    %56 = sbr.rel (0) target = $region69
  $region68: #{cat_nn_conv_forward.1} parent=0 // pred_region
    _
  $region69: #{cat_nn_conv_forward.1} parent=0 // pred_fallthru
    _
  // Predicated region
  $region70: #{cat_nn_conv_forward.1} parent=0 // pred_check
    _
  $region71: #{cat_nn_conv_forward.1} parent=0 // pred_check_branch
    %58 = sbr.rel (0) target = $region73
  $region72: #{cat_nn_conv_forward.1} parent=0 // pred_region
    _
  $region73: #{cat_nn_conv_forward.1} parent=0 // pred_fallthru
    _
  %v60 = vld [vmem:[%s0] sm:$0xf]
  %v61 = vld [vmem:[%s0 + $0x4] sm:$0xf]
  %v62 = vld [vmem:[%s0 + $0x8] sm:$0xf]
  %v63 = vld [vmem:[%s0 + $0xc] sm:$0xf]
  %v64 = vld [vmem:[%s0 + $0x10] sm:$0xf]
  %v65 = vld [vmem:[%s0 + $0x14] sm:$0xf]
  %v66 = vld [vmem:[%s0 + $0x18] sm:$0xf]
  %v67 = vld [vmem:[%s0 + $0x1c] sm:$0xf]
  %v68 = vld [vmem:[%s0 + $0x20] sm:$0xf]
  %v69 = vld [vmem:[%s0 + $0x24] sm:$0xf]
  %v70 = vld [vmem:[%s0 + $0x28] sm:$0xf]
  %v71 = vld [vmem:[%s0 + $0x2c] sm:$0xf]
  %v72 = vld [vmem:[%s0 + $0x30] sm:$0xf]
  %v73 = vld [vmem:[%s0 + $0x34] sm:$0xf]
  %v74 = vld [vmem:[%s0 + $0x38] sm:$0xf]
  %v75 = vld [vmem:[%s0 + $0x3c] sm:$0xf]
  %v76 = vld [vmem:[%s0 + $0x40] sm:$0xf]
  %v77 = vld [vmem:[%s0 + $0x44] sm:$0xf]
  %v78 = vld [vmem:[%s0 + $0x48] sm:$0xf]
  %v79 = vld [vmem:[%s0 + $0x4c] sm:$0xf]
  %v80 = vld [vmem:[%s0 + $0x50] sm:$0xf]
  %v81 = vld [vmem:[%s0 + $0x54] sm:$0xf]
  %v82 = vld [vmem:[%s0 + $0x58] sm:$0xf]
  %v83 = vld [vmem:[%s0 + $0x5c] sm:$0xf]
  %v84 = vld [vmem:[%s0 + $0x60] sm:$0xf]
  %v85 = vld [vmem:[%s0 + $0x64] sm:$0xf]
  %v86 = vld [vmem:[%s0 + $0x68] sm:$0xf]
  %v87 = vld [vmem:[%s0 + $0x6c] sm:$0xf]
  %v88 = vld [vmem:[%s1] sm:$0xff]
  %v89 = vld [vmem:[%s1 + $0x8] sm:$0xff]
  %v90 = vld [vmem:[%s1 + $0x10] sm:$0xff]
  %v91 = vld [vmem:[%s1 + $0x18] sm:$0xff]
  %v92 = vld [vmem:[%s1 + $0x20] sm:$0xff]
  %v93 = vld [vmem:[%s1 + $0x28] sm:$0xff]
  %v94 = vld [vmem:[%s1 + $0x30] sm:$0xff]
  %v95 = vld [vmem:[%s1 + $0x38] sm:$0xff]
  %v96 = vld [vmem:[%s1 + $0x40] sm:$0xff]
  %v97 = vld [vmem:[%s1 + $0x48] sm:$0xff]
  %v98 = vld [vmem:[%s1 + $0x50] sm:$0xff]
  %v99 = vld [vmem:[%s1 + $0x58] sm:$0xff]
  %v100 = vld [vmem:[%s1 + $0x60] sm:$0xff]
  %v101 = vld [vmem:[%s1 + $0x68] sm:$0xff]
  %v102 = vld [vmem:[%s1 + $0x70] sm:$0xff]
  %v103 = vld [vmem:[%s1 + $0x78] sm:$0xff]
  %v104 = vld [vmem:[%s1 + $0x80] sm:$0xff]
  %v105 = vld [vmem:[%s1 + $0x88] sm:$0xff]
  %v106 = vld [vmem:[%s1 + $0x90] sm:$0xff]
  %v107 = vld [vmem:[%s1 + $0x98] sm:$0xff]
  %v108 = vld [vmem:[%s1 + $0xa0] sm:$0xff]
  %v109 = vld [vmem:[%s1 + $0xa8] sm:$0xff]
  %v110 = vld [vmem:[%s1 + $0xb0] sm:$0xff]
  %v111 = vld [vmem:[%s1 + $0xb8] sm:$0xff]
  %v112 = vld [vmem:[%s1 + $0xc0] sm:$0xff]
  %v113 = vld [vmem:[%s1 + $0xc8] sm:$0xff]
  %v114 = vld [vmem:[%s1 + $0xd0] sm:$0xff]
  %v115 = vld [vmem:[%s1 + $0xd8] sm:$0xff]
  %v116 = vld [vmem:[%s1 + $0xe0] sm:$0xff]
  %v117 = vld [vmem:[%s1 + $0xe8] sm:$0xff]
  %v118 = vld [vmem:[%s1 + $0xf0] sm:$0xff]
  %v119 = vld [vmem:[%s1 + $0xf8] sm:$0xff]
  %v120 = vld [vmem:[%s1 + $0x100] sm:$0xff]
  %v121 = vld [vmem:[%s1 + $0x108] sm:$0xff]
  %v122 = vld [vmem:[%s1 + $0x110] sm:$0xff]
  %v123 = vld [vmem:[%s1 + $0x118] sm:$0xff]
  %v124 = vld [vmem:[%s1 + $0x120] sm:$0xff]
  %v125 = vld [vmem:[%s1 + $0x128] sm:$0xff]
  %v126 = vld [vmem:[%s1 + $0x130] sm:$0xff]
  %v127 = vld [vmem:[%s1 + $0x138] sm:$0xff]
  %v128 = vld [vmem:[%s1 + $0x140] sm:$0xff]
  %v129 = vld [vmem:[%s1 + $0x148] sm:$0xff]
  %v130 = vld [vmem:[%s1 + $0x150] sm:$0xff]
  %v131 = vld [vmem:[%s1 + $0x158] sm:$0xff]
  %v132 = vld [vmem:[%s1 + $0x160] sm:$0xff]
  %v133 = vld [vmem:[%s1 + $0x168] sm:$0xff]
  %v134 = vld [vmem:[%s1 + $0x170] sm:$0xff]
  %v135 = vld [vmem:[%s1 + $0x178] sm:$0xff]
  %v136 = vld [vmem:[%s1 + $0x180] sm:$0xff]
  %v137 = vld [vmem:[%s1 + $0x188] sm:$0xff]
  %v138 = vld [vmem:[%s1 + $0x190] sm:$0xff]
  %v139 = vld [vmem:[%s1 + $0x198] sm:$0xff]
  %v140 = vld [vmem:[%s1 + $0x1a0] sm:$0xff]
  %v141 = vld [vmem:[%s1 + $0x1a8] sm:$0xff]
  %v142 = vld [vmem:[%s1 + $0x1b0] sm:$0xff]
  %v143 = vld [vmem:[%s1 + $0x1b8] sm:$0xff]
  %v144 = vld [vmem:[%s1 + $0x1c0] sm:$0xff]
  %v145 = vld [vmem:[%s1 + $0x1c8] sm:$0xff]
  %v146 = vld [vmem:[%s1 + $0x1d0] sm:$0xff]
  %v147 = vld [vmem:[%s1 + $0x1d8] sm:$0xff]
  %v148 = vld [vmem:[%s1 + $0x1e0] sm:$0xff]
  %v149 = vld [vmem:[%s1 + $0x1e8] sm:$0xff]
  %v150 = vld [vmem:[%s1 + $0x1f0] sm:$0xff]
  %v151 = vld [vmem:[%s1 + $0x1f8] sm:$0xff]
  %v152 = vld [vmem:[%s1 + $0x200] sm:$0xff]
  %v153 = vld [vmem:[%s1 + $0x208] sm:$0xff]
  %v154 = vld [vmem:[%s1 + $0x210] sm:$0xff]
  %v155 = vld [vmem:[%s1 + $0x218] sm:$0xff]
  %v156 = vld [vmem:[%s1 + $0x220] sm:$0xff]
  %v157 = vld [vmem:[%s1 + $0x228] sm:$0xff]
  %v158 = vld [vmem:[%s1 + $0x230] sm:$0xff]
  %v159 = vld [vmem:[%s1 + $0x238] sm:$0xff]
  %v160 = vld [vmem:[%s1 + $0x240] sm:$0xff]
  %v161 = vld [vmem:[%s1 + $0x248] sm:$0xff]
  %v162 = vld [vmem:[%s1 + $0x250] sm:$0xff]
  %v163 = vld [vmem:[%s1 + $0x258] sm:$0xff]
  %v164 = vld [vmem:[%s1 + $0x260] sm:$0xff]
  %v165 = vld [vmem:[%s1 + $0x268] sm:$0xff]
  %v166 = vld [vmem:[%s1 + $0x270] sm:$0xff]
  %v167 = vld [vmem:[%s1 + $0x278] sm:$0xff]
  %v168 = vld [vmem:[%s1 + $0x280] sm:$0xff]
  %v169 = vld [vmem:[%s1 + $0x288] sm:$0xff]
  %v170 = vld [vmem:[%s1 + $0x290] sm:$0xff]
  %v171 = vld [vmem:[%s1 + $0x298] sm:$0xff]
  %v172 = vld [vmem:[%s1 + $0x2a0] sm:$0xff]
  %v173 = vld [vmem:[%s1 + $0x2a8] sm:$0xff]
  %v174 = vld [vmem:[%s1 + $0x2b0] sm:$0xff]
  %v175 = vld [vmem:[%s1 + $0x2b8] sm:$0xff]
  %v176 = vld [vmem:[%s1 + $0x2c0] sm:$0xff]
  %v177 = vld [vmem:[%s1 + $0x2c8] sm:$0xff]
  %v178 = vld [vmem:[%s1 + $0x2d0] sm:$0xff]
  %v179 = vld [vmem:[%s1 + $0x2d8] sm:$0xff]
  %v180 = vld [vmem:[%s1 + $0x2e0] sm:$0xff]
  %v181 = vld [vmem:[%s1 + $0x2e8] sm:$0xff]
  %v182 = vld [vmem:[%s1 + $0x2f0] sm:$0xff]
  %v183 = vld [vmem:[%s1 + $0x2f8] sm:$0xff]
  %v184 = vld [vmem:[%s1 + $0x300] sm:$0xff]
  %v185 = vld [vmem:[%s1 + $0x308] sm:$0xff]
  %v186 = vld [vmem:[%s1 + $0x310] sm:$0xff]
  %v187 = vld [vmem:[%s1 + $0x318] sm:$0xff]
  %v188 = vld [vmem:[%s1 + $0x320] sm:$0xff]
  %v189 = vld [vmem:[%s1 + $0x328] sm:$0xff]
  %v190 = vld [vmem:[%s1 + $0x330] sm:$0xff]
  %v191 = vld [vmem:[%s1 + $0x338] sm:$0xff]
  %v192 = vld [vmem:[%s1 + $0x340] sm:$0xff]
  %v193 = vld [vmem:[%s1 + $0x348] sm:$0xff]
  %v194 = vld [vmem:[%s1 + $0x350] sm:$0xff]
  %v195 = vld [vmem:[%s1 + $0x358] sm:$0xff]
  %v196 = vld [vmem:[%s1 + $0x360] sm:$0xff]
  %v197 = vld [vmem:[%s1 + $0x368] sm:$0xff]
  %v198 = vld [vmem:[%s1 + $0x370] sm:$0xff]
  %v199 = vld [vmem:[%s1 + $0x378] sm:$0xff]
  %v200 = vld [vmem:[%s1 + $0x380] sm:$0xff]
  %v201 = vld [vmem:[%s1 + $0x388] sm:$0xff]
  %v202 = vld [vmem:[%s1 + $0x390] sm:$0xff]
  %v203 = vld [vmem:[%s1 + $0x398] sm:$0xff]
  %v204 = vld [vmem:[%s1 + $0x3a0] sm:$0xff]
  %v205 = vld [vmem:[%s1 + $0x3a8] sm:$0xff]
  %v206 = vld [vmem:[%s1 + $0x3b0] sm:$0xff]
  %v207 = vld [vmem:[%s1 + $0x3b8] sm:$0xff]
  %v328 = vunpack.c.l.b16 %v88
  %v329 = vunpack.c.h.b16 %v88
  %v330 = vunpack.c.l.b16 %v89
  %v331 = vunpack.c.h.b16 %v89
  %v332 = vunpack.c.l.b16 %v90
  %v333 = vunpack.c.h.b16 %v90
  %v334 = vunpack.c.l.b16 %v91
  %v335 = vunpack.c.h.b16 %v91
  %v336 = vunpack.c.l.b16 %v92
  %v337 = vunpack.c.h.b16 %v92
  %v338 = vunpack.c.l.b16 %v93
  %v339 = vunpack.c.h.b16 %v93
  %v340 = vunpack.c.l.b16 %v94
  %v341 = vunpack.c.h.b16 %v94
  %v342 = vunpack.c.l.b16 %v95
  %v343 = vunpack.c.h.b16 %v95
  %v344 = vunpack.c.l.b16 %v96
  %v345 = vunpack.c.h.b16 %v96
  %v346 = vunpack.c.l.b16 %v97
  %v347 = vunpack.c.h.b16 %v97
  %v348 = vunpack.c.l.b16 %v98
  %v349 = vunpack.c.h.b16 %v98
  %v350 = vunpack.c.l.b16 %v99
  %v351 = vunpack.c.h.b16 %v99
  %v352 = vunpack.c.l.b16 %v100
  %v353 = vunpack.c.h.b16 %v100
  %v354 = vunpack.c.l.b16 %v101
  %v355 = vunpack.c.h.b16 %v101
  %v356 = vunpack.c.l.b16 %v102
  %v357 = vunpack.c.h.b16 %v102
  %v358 = vunpack.c.l.b16 %v103
  %v359 = vunpack.c.h.b16 %v103
  %v360 = vunpack.c.l.b16 %v104
  %v361 = vunpack.c.h.b16 %v104
  %v362 = vunpack.c.l.b16 %v105
  %v363 = vunpack.c.h.b16 %v105
  %v364 = vunpack.c.l.b16 %v106
  %v365 = vunpack.c.h.b16 %v106
  %v366 = vunpack.c.l.b16 %v107
  %v367 = vunpack.c.h.b16 %v107
  %v368 = vunpack.c.l.b16 %v108
  %v369 = vunpack.c.h.b16 %v108
  %v370 = vunpack.c.l.b16 %v109
  %v371 = vunpack.c.h.b16 %v109
  %v372 = vunpack.c.l.b16 %v110
  %v373 = vunpack.c.h.b16 %v110
  %v374 = vunpack.c.l.b16 %v111
  %v375 = vunpack.c.h.b16 %v111
  %v376 = vunpack.c.l.b16 %v112
  %v377 = vunpack.c.h.b16 %v112
  %v378 = vunpack.c.l.b16 %v113
  %v379 = vunpack.c.h.b16 %v113
  %v380 = vunpack.c.l.b16 %v114
  %v381 = vunpack.c.h.b16 %v114
  %v382 = vunpack.c.l.b16 %v115
  %v383 = vunpack.c.h.b16 %v115
  %v384 = vunpack.c.l.b16 %v116
  %v385 = vunpack.c.h.b16 %v116
  %v386 = vunpack.c.l.b16 %v117
  %v387 = vunpack.c.h.b16 %v117
  %v388 = vunpack.c.l.b16 %v118
  %v389 = vunpack.c.h.b16 %v118
  %v390 = vunpack.c.l.b16 %v119
  %v391 = vunpack.c.h.b16 %v119
  %v392 = vunpack.c.l.b16 %v120
  %v393 = vunpack.c.h.b16 %v120
  %v394 = vunpack.c.l.b16 %v121
  %v395 = vunpack.c.h.b16 %v121
  %v396 = vunpack.c.l.b16 %v122
  %v397 = vunpack.c.h.b16 %v122
  %v398 = vunpack.c.l.b16 %v123
  %v399 = vunpack.c.h.b16 %v123
  %v400 = vunpack.c.l.b16 %v124
  %v401 = vunpack.c.h.b16 %v124
  %v402 = vunpack.c.l.b16 %v125
  %v403 = vunpack.c.h.b16 %v125
  %v404 = vunpack.c.l.b16 %v126
  %v405 = vunpack.c.h.b16 %v126
  %v406 = vunpack.c.l.b16 %v127
  %v407 = vunpack.c.h.b16 %v127
  %v408 = vunpack.c.l.b16 %v128
  %v409 = vunpack.c.h.b16 %v128
  %v410 = vunpack.c.l.b16 %v129
  %v411 = vunpack.c.h.b16 %v129
  %v412 = vunpack.c.l.b16 %v130
  %v413 = vunpack.c.h.b16 %v130
  %v414 = vunpack.c.l.b16 %v131
  %v415 = vunpack.c.h.b16 %v131
  %v416 = vunpack.c.l.b16 %v132
  %v417 = vunpack.c.h.b16 %v132
  %v418 = vunpack.c.l.b16 %v133
  %v419 = vunpack.c.h.b16 %v133
  %v420 = vunpack.c.l.b16 %v134
  %v421 = vunpack.c.h.b16 %v134
  %v422 = vunpack.c.l.b16 %v135
  %v423 = vunpack.c.h.b16 %v135
  %v424 = vunpack.c.l.b16 %v136
  %v425 = vunpack.c.h.b16 %v136
  %v426 = vunpack.c.l.b16 %v137
  %v427 = vunpack.c.h.b16 %v137
  %v428 = vunpack.c.l.b16 %v138
  %v429 = vunpack.c.h.b16 %v138
  %v430 = vunpack.c.l.b16 %v139
  %v431 = vunpack.c.h.b16 %v139
  %v432 = vunpack.c.l.b16 %v140
  %v433 = vunpack.c.h.b16 %v140
  %v434 = vunpack.c.l.b16 %v141
  %v435 = vunpack.c.h.b16 %v141
  %v436 = vunpack.c.l.b16 %v142
  %v437 = vunpack.c.h.b16 %v142
  %v438 = vunpack.c.l.b16 %v143
  %v439 = vunpack.c.h.b16 %v143
  %v440 = vunpack.c.l.b16 %v144
  %v441 = vunpack.c.h.b16 %v144
  %v442 = vunpack.c.l.b16 %v145
  %v443 = vunpack.c.h.b16 %v145
  %v444 = vunpack.c.l.b16 %v146
  %v445 = vunpack.c.h.b16 %v146
  %v446 = vunpack.c.l.b16 %v147
  %v447 = vunpack.c.h.b16 %v147
  %v448 = vunpack.c.l.b16 %v148
  %v449 = vunpack.c.h.b16 %v148
  %v450 = vunpack.c.l.b16 %v149
  %v451 = vunpack.c.h.b16 %v149
  %v452 = vunpack.c.l.b16 %v150
  %v453 = vunpack.c.h.b16 %v150
  %v454 = vunpack.c.l.b16 %v151
  %v455 = vunpack.c.h.b16 %v151
  %v456 = vunpack.c.l.b16 %v152
  %v457 = vunpack.c.h.b16 %v152
  %v458 = vunpack.c.l.b16 %v153
  %v459 = vunpack.c.h.b16 %v153
  %v460 = vunpack.c.l.b16 %v154
  %v461 = vunpack.c.h.b16 %v154
  %v462 = vunpack.c.l.b16 %v155
  %v463 = vunpack.c.h.b16 %v155
  %v464 = vunpack.c.l.b16 %v156
  %v465 = vunpack.c.h.b16 %v156
  %v466 = vunpack.c.l.b16 %v157
  %v467 = vunpack.c.h.b16 %v157
  %v468 = vunpack.c.l.b16 %v158
  %v469 = vunpack.c.h.b16 %v158
  %v470 = vunpack.c.l.b16 %v159
  %v471 = vunpack.c.h.b16 %v159
  %v472 = vunpack.c.l.b16 %v160
  %v473 = vunpack.c.h.b16 %v160
  %v474 = vunpack.c.l.b16 %v161
  %v475 = vunpack.c.h.b16 %v161
  %v476 = vunpack.c.l.b16 %v162
  %v477 = vunpack.c.h.b16 %v162
  %v478 = vunpack.c.l.b16 %v163
  %v479 = vunpack.c.h.b16 %v163
  %v480 = vunpack.c.l.b16 %v164
  %v481 = vunpack.c.h.b16 %v164
  %v482 = vunpack.c.l.b16 %v165
  %v483 = vunpack.c.h.b16 %v165
  %v484 = vunpack.c.l.b16 %v166
  %v485 = vunpack.c.h.b16 %v166
  %v486 = vunpack.c.l.b16 %v167
  %v487 = vunpack.c.h.b16 %v167
  %v488 = vunpack.c.l.b16 %v168
  %v489 = vunpack.c.h.b16 %v168
  %v490 = vunpack.c.l.b16 %v169
  %v491 = vunpack.c.h.b16 %v169
  %v492 = vunpack.c.l.b16 %v170
  %v493 = vunpack.c.h.b16 %v170
  %v494 = vunpack.c.l.b16 %v171
  %v495 = vunpack.c.h.b16 %v171
  %v496 = vunpack.c.l.b16 %v172
  %v497 = vunpack.c.h.b16 %v172
  %v498 = vunpack.c.l.b16 %v173
  %v499 = vunpack.c.h.b16 %v173
  %v500 = vunpack.c.l.b16 %v174
  %v501 = vunpack.c.h.b16 %v174
  %v502 = vunpack.c.l.b16 %v175
  %v503 = vunpack.c.h.b16 %v175
  %v504 = vunpack.c.l.b16 %v176
  %v505 = vunpack.c.h.b16 %v176
  %v506 = vunpack.c.l.b16 %v177
  %v507 = vunpack.c.h.b16 %v177
  %v508 = vunpack.c.l.b16 %v178
  %v509 = vunpack.c.h.b16 %v178
  %v510 = vunpack.c.l.b16 %v179
  %v511 = vunpack.c.h.b16 %v179
  %v512 = vunpack.c.l.b16 %v180
  %v513 = vunpack.c.h.b16 %v180
  %v514 = vunpack.c.l.b16 %v181
  %v515 = vunpack.c.h.b16 %v181
  %v516 = vunpack.c.l.b16 %v182
  %v517 = vunpack.c.h.b16 %v182
  %v518 = vunpack.c.l.b16 %v183
  %v519 = vunpack.c.h.b16 %v183
  %v520 = vunpack.c.l.b16 %v184
  %v521 = vunpack.c.h.b16 %v184
  %v522 = vunpack.c.l.b16 %v185
  %v523 = vunpack.c.h.b16 %v185
  %v524 = vunpack.c.l.b16 %v186
  %v525 = vunpack.c.h.b16 %v186
  %v526 = vunpack.c.l.b16 %v187
  %v527 = vunpack.c.h.b16 %v187
  %v528 = vunpack.c.l.b16 %v188
  %v529 = vunpack.c.h.b16 %v188
  %v530 = vunpack.c.l.b16 %v189
  %v531 = vunpack.c.h.b16 %v189
  %v532 = vunpack.c.l.b16 %v190
  %v533 = vunpack.c.h.b16 %v190
  %v534 = vunpack.c.l.b16 %v191
  %v535 = vunpack.c.h.b16 %v191
  %v536 = vunpack.c.l.b16 %v192
  %v537 = vunpack.c.h.b16 %v192
  %v538 = vunpack.c.l.b16 %v193
  %v539 = vunpack.c.h.b16 %v193
  %v540 = vunpack.c.l.b16 %v194
  %v541 = vunpack.c.h.b16 %v194
  %v542 = vunpack.c.l.b16 %v195
  %v543 = vunpack.c.h.b16 %v195
  %v544 = vunpack.c.l.b16 %v196
  %v545 = vunpack.c.h.b16 %v196
  %v546 = vunpack.c.l.b16 %v197
  %v547 = vunpack.c.h.b16 %v197
  %v548 = vunpack.c.l.b16 %v198
  %v549 = vunpack.c.h.b16 %v198
  %v550 = vunpack.c.l.b16 %v199
  %v551 = vunpack.c.h.b16 %v199
  %v552 = vunpack.c.l.b16 %v200
  %v553 = vunpack.c.h.b16 %v200
  %v554 = vunpack.c.l.b16 %v201
  %v555 = vunpack.c.h.b16 %v201
  %v556 = vunpack.c.l.b16 %v202
  %v557 = vunpack.c.h.b16 %v202
  %v558 = vunpack.c.l.b16 %v203
  %v559 = vunpack.c.h.b16 %v203
  %v560 = vunpack.c.l.b16 %v204
  %v561 = vunpack.c.h.b16 %v204
  %v562 = vunpack.c.l.b16 %v205
  %v563 = vunpack.c.h.b16 %v205
  %v564 = vunpack.c.l.b16 %v206
  %v565 = vunpack.c.h.b16 %v206
  %v566 = vunpack.c.l.b16 %v207
  %v567 = vunpack.c.h.b16 %v207
  %v568 = vpack.c.b16 %v330, %v328
  %v569 = vpack.c.b16 %v331, %v329
  %v570 = vpack.c.b16 %v334, %v332
  %v571 = vpack.c.b16 %v335, %v333
  %v572 = vpack.c.b16 %v338, %v336
  %v573 = vpack.c.b16 %v339, %v337
  %v574 = vpack.c.b16 %v342, %v340
  %v575 = vpack.c.b16 %v343, %v341
  %v576 = vpack.c.b16 %v346, %v344
  %v577 = vpack.c.b16 %v347, %v345
  %v578 = vpack.c.b16 %v350, %v348
  %v579 = vpack.c.b16 %v351, %v349
  %v580 = vpack.c.b16 %v354, %v352
  %v581 = vpack.c.b16 %v355, %v353
  %v582 = vpack.c.b16 %v358, %v356
  %v583 = vpack.c.b16 %v359, %v357
  %v584 = vpack.c.b16 %v362, %v360
  %v585 = vpack.c.b16 %v363, %v361
  %v586 = vpack.c.b16 %v366, %v364
  %v587 = vpack.c.b16 %v367, %v365
  %v588 = vpack.c.b16 %v370, %v368
  %v589 = vpack.c.b16 %v371, %v369
  %v590 = vpack.c.b16 %v374, %v372
  %v591 = vpack.c.b16 %v375, %v373
  %v592 = vpack.c.b16 %v378, %v376
  %v593 = vpack.c.b16 %v379, %v377
  %v594 = vpack.c.b16 %v382, %v380
  %v595 = vpack.c.b16 %v383, %v381
  %v596 = vpack.c.b16 %v386, %v384
  %v597 = vpack.c.b16 %v387, %v385
  %v598 = vpack.c.b16 %v390, %v388
  %v599 = vpack.c.b16 %v391, %v389
  %v600 = vpack.c.b16 %v394, %v392
  %v601 = vpack.c.b16 %v395, %v393
  %v602 = vpack.c.b16 %v398, %v396
  %v603 = vpack.c.b16 %v399, %v397
  %v604 = vpack.c.b16 %v402, %v400
  %v605 = vpack.c.b16 %v403, %v401
  %v606 = vpack.c.b16 %v406, %v404
  %v607 = vpack.c.b16 %v407, %v405
  %v608 = vpack.c.b16 %v410, %v408
  %v609 = vpack.c.b16 %v411, %v409
  %v610 = vpack.c.b16 %v414, %v412
  %v611 = vpack.c.b16 %v415, %v413
  %v612 = vpack.c.b16 %v418, %v416
  %v613 = vpack.c.b16 %v419, %v417
  %v614 = vpack.c.b16 %v422, %v420
  %v615 = vpack.c.b16 %v423, %v421
  %v616 = vpack.c.b16 %v426, %v424
  %v617 = vpack.c.b16 %v427, %v425
  %v618 = vpack.c.b16 %v430, %v428
  %v619 = vpack.c.b16 %v431, %v429
  %v620 = vpack.c.b16 %v434, %v432
  %v621 = vpack.c.b16 %v435, %v433
  %v622 = vpack.c.b16 %v438, %v436
  %v623 = vpack.c.b16 %v439, %v437
  %v624 = vpack.c.b16 %v442, %v440
  %v625 = vpack.c.b16 %v443, %v441
  %v626 = vpack.c.b16 %v446, %v444
  %v627 = vpack.c.b16 %v447, %v445
  %v628 = vpack.c.b16 %v450, %v448
  %v629 = vpack.c.b16 %v451, %v449
  %v630 = vpack.c.b16 %v454, %v452
  %v631 = vpack.c.b16 %v455, %v453
  %v632 = vpack.c.b16 %v458, %v456
  %v633 = vpack.c.b16 %v459, %v457
  %v634 = vpack.c.b16 %v462, %v460
  %v635 = vpack.c.b16 %v463, %v461
  %v636 = vpack.c.b16 %v466, %v464
  %v637 = vpack.c.b16 %v467, %v465
  %v638 = vpack.c.b16 %v470, %v468
  %v639 = vpack.c.b16 %v471, %v469
  %v640 = vpack.c.b16 %v474, %v472
  %v641 = vpack.c.b16 %v475, %v473
  %v642 = vpack.c.b16 %v478, %v476
  %v643 = vpack.c.b16 %v479, %v477
  %v644 = vpack.c.b16 %v482, %v480
  %v645 = vpack.c.b16 %v483, %v481
  %v646 = vpack.c.b16 %v486, %v484
  %v647 = vpack.c.b16 %v487, %v485
  %v648 = vpack.c.b16 %v490, %v488
  %v649 = vpack.c.b16 %v491, %v489
  %v650 = vpack.c.b16 %v494, %v492
  %v651 = vpack.c.b16 %v495, %v493
  %v652 = vpack.c.b16 %v498, %v496
  %v653 = vpack.c.b16 %v499, %v497
  %v654 = vpack.c.b16 %v502, %v500
  %v655 = vpack.c.b16 %v503, %v501
  %v656 = vpack.c.b16 %v506, %v504
  %v657 = vpack.c.b16 %v507, %v505
  %v658 = vpack.c.b16 %v510, %v508
  %v659 = vpack.c.b16 %v511, %v509
  %v660 = vpack.c.b16 %v514, %v512
  %v661 = vpack.c.b16 %v515, %v513
  %v662 = vpack.c.b16 %v518, %v516
  %v663 = vpack.c.b16 %v519, %v517
  %v664 = vpack.c.b16 %v522, %v520
  %v665 = vpack.c.b16 %v523, %v521
  %v666 = vpack.c.b16 %v526, %v524
  %v667 = vpack.c.b16 %v527, %v525
  %v668 = vpack.c.b16 %v530, %v528
  %v669 = vpack.c.b16 %v531, %v529
  %v670 = vpack.c.b16 %v534, %v532
  %v671 = vpack.c.b16 %v535, %v533
  %v672 = vpack.c.b16 %v538, %v536
  %v673 = vpack.c.b16 %v539, %v537
  %v674 = vpack.c.b16 %v542, %v540
  %v675 = vpack.c.b16 %v543, %v541
  %v676 = vpack.c.b16 %v546, %v544
  %v677 = vpack.c.b16 %v547, %v545
  %v678 = vpack.c.b16 %v550, %v548
  %v679 = vpack.c.b16 %v551, %v549
  %v680 = vpack.c.b16 %v554, %v552
  %v681 = vpack.c.b16 %v555, %v553
  %v682 = vpack.c.b16 %v558, %v556
  %v683 = vpack.c.b16 %v559, %v557
  %v684 = vpack.c.b16 %v562, %v560
  %v685 = vpack.c.b16 %v563, %v561
  %v686 = vpack.c.b16 %v566, %v564
  %v687 = vpack.c.b16 %v567, %v565
  %v776 = vunpack.c.l.b16 %v60
  %v777 = vunpack.c.l.b16 %v61
  %v778 = vunpack.c.l.b16 %v62
  %v779 = vunpack.c.l.b16 %v63
  %v780 = vunpack.c.l.b16 %v64
  %v781 = vunpack.c.l.b16 %v65
  %v782 = vunpack.c.l.b16 %v66
  %v783 = vunpack.c.l.b16 %v67
  %v784 = vunpack.c.l.b16 %v68
  %v785 = vunpack.c.l.b16 %v69
  %v786 = vunpack.c.l.b16 %v70
  %v787 = vunpack.c.l.b16 %v71
  %v788 = vunpack.c.l.b16 %v72
  %v789 = vunpack.c.l.b16 %v73
  %v790 = vunpack.c.l.b16 %v74
  %v791 = vunpack.c.l.b16 %v75
  %v792 = vunpack.c.l.b16 %v76
  %v793 = vunpack.c.l.b16 %v77
  %v794 = vunpack.c.l.b16 %v78
  %v795 = vunpack.c.l.b16 %v79
  %v796 = vunpack.c.l.b16 %v80
  %v797 = vunpack.c.l.b16 %v81
  %v798 = vunpack.c.l.b16 %v82
  %v799 = vunpack.c.l.b16 %v83
  %v800 = vunpack.c.l.b16 %v84
  %v801 = vunpack.c.l.b16 %v85
  %v802 = vunpack.c.l.b16 %v86
  %v803 = vunpack.c.l.b16 %v87
  %v804 = vpack.c.b16 %v777, %v776
  %v805 = vpack.c.b16 %v779, %v778
  %v806 = vpack.c.b16 %v781, %v780
  %v807 = vpack.c.b16 %v783, %v782
  %v808 = vpack.c.b16 %v785, %v784
  %v809 = vpack.c.b16 %v787, %v786
  %v810 = vpack.c.b16 %v789, %v788
  %v811 = vpack.c.b16 %v791, %v790
  %v812 = vpack.c.b16 %v793, %v792
  %v813 = vpack.c.b16 %v795, %v794
  %v814 = vpack.c.b16 %v797, %v796
  %v815 = vpack.c.b16 %v799, %v798
  %v816 = vpack.c.b16 %v801, %v800
  %v817 = vpack.c.b16 %v803, %v802
  %vm832 = vcmask 785408
  %v834 = vsel %vm832, %v569, 0
  %v837 = vsel %vm832, %v571, 0
  %v840 = vsel %vm832, %v573, 0
  %v843 = vsel %vm832, %v575, 0
  %v846 = vsel %vm832, %v577, 0
  %v849 = vsel %vm832, %v579, 0
  %v852 = vsel %vm832, %v581, 0
  %v855 = vsel %vm832, %v583, 0
  %v858 = vsel %vm832, %v585, 0
  %v861 = vsel %vm832, %v587, 0
  %v864 = vsel %vm832, %v589, 0
  %v867 = vsel %vm832, %v591, 0
  %v870 = vsel %vm832, %v593, 0
  %v873 = vsel %vm832, %v595, 0
  %v876 = vsel %vm832, %v597, 0
  %v879 = vsel %vm832, %v599, 0
  %v882 = vsel %vm832, %v601, 0
  %v885 = vsel %vm832, %v603, 0
  %v888 = vsel %vm832, %v605, 0
  %v891 = vsel %vm832, %v607, 0
  %v894 = vsel %vm832, %v609, 0
  %v897 = vsel %vm832, %v611, 0
  %v900 = vsel %vm832, %v613, 0
  %v903 = vsel %vm832, %v615, 0
  %v906 = vsel %vm832, %v617, 0
  %v909 = vsel %vm832, %v619, 0
  %v912 = vsel %vm832, %v621, 0
  %v915 = vsel %vm832, %v623, 0
  %v918 = vsel %vm832, %v625, 0
  %v921 = vsel %vm832, %v627, 0
  %v924 = vsel %vm832, %v629, 0
  %v927 = vsel %vm832, %v631, 0
  %v930 = vsel %vm832, %v633, 0
  %v933 = vsel %vm832, %v635, 0
  %v936 = vsel %vm832, %v637, 0
  %v939 = vsel %vm832, %v639, 0
  %v942 = vsel %vm832, %v641, 0
  %v945 = vsel %vm832, %v643, 0
  %v948 = vsel %vm832, %v645, 0
  %v951 = vsel %vm832, %v647, 0
  %v954 = vsel %vm832, %v649, 0
  %v957 = vsel %vm832, %v651, 0
  %v960 = vsel %vm832, %v653, 0
  %v963 = vsel %vm832, %v655, 0
  %v966 = vsel %vm832, %v657, 0
  %v969 = vsel %vm832, %v659, 0
  %v972 = vsel %vm832, %v661, 0
  %v975 = vsel %vm832, %v663, 0
  %v978 = vsel %vm832, %v665, 0
  %v981 = vsel %vm832, %v667, 0
  %v984 = vsel %vm832, %v669, 0
  %v987 = vsel %vm832, %v671, 0
  %v990 = vsel %vm832, %v673, 0
  %v993 = vsel %vm832, %v675, 0
  %v996 = vsel %vm832, %v677, 0
  %v999 = vsel %vm832, %v679, 0
  %v1002 = vsel %vm832, %v681, 0
  %v1005 = vsel %vm832, %v683, 0
  %v1008 = vsel %vm832, %v685, 0
  %v1011 = vsel %vm832, %v687, 0
  %1013 = vmatprep.subr.bf16.mxu0 0
  %1014 = vmatpush1.bf16.msra.mxu0 %v804
  %1015 = vmatprep.subr.bf16.mxu0 0
  %1016 = vmatpush1.bf16.msra.mxu0 %v805
  %1017 = vmatprep.subr.bf16.mxu0 0
  %1018 = vmatpush1.bf16.msra.mxu0 %v806
  %1019 = vmatprep.subr.bf16.mxu0 0
  %1020 = vmatpush1.bf16.msra.mxu0 %v807
  %1021 = vmatprep.subr.bf16.mxu0 0
  %1022 = vmatpush1.bf16.msra.mxu0 %v808
  %1023 = vmatprep.subr.bf16.mxu0 0
  %1024 = vmatpush1.bf16.msra.mxu0 %v809
  %1025 = vmatprep.subr.bf16.mxu0 0
  %1026 = vmatpush1.bf16.msra.mxu0 %v810
  %1027 = vmatprep.subr.bf16.mxu0 0
  %1028 = vmatpush1.bf16.msra.mxu0 %v811
  %1029 = vmatprep.subr.bf16.mxu0 0
  %1030 = vmatpush1.bf16.msra.mxu0 %v812
  %1031 = vmatprep.subr.bf16.mxu0 0
  %1032 = vmatpush1.bf16.msra.mxu0 %v813
  %1033 = vmatprep.subr.bf16.mxu0 0
  %1034 = vmatpush1.bf16.msra.mxu0 %v814
  %1035 = vmatprep.subr.bf16.mxu0 0
  %1036 = vmatpush1.bf16.msra.mxu0 %v815
  %1037 = vmatprep.subr.bf16.mxu0 0
  %1038 = vmatpush1.bf16.msra.mxu0 %v816
  %1039 = vmatprep.subr.bf16.mxu0 0
  %1040 = vmatpush1.bf16.msra.mxu0 %v817
  %1041 = vmatprep.subr.bf16.mxu0 0
  %1042 = vmatpush1.bf16.msra.mxu0 0
  %1043 = vmatprep.subr.bf16.mxu0 0
  %1044 = vmatpush1.bf16.msra.mxu0 0
  %1045 = vmatprep.mubr.bf16.mxu0 %v834
  %1046 = vmatmul.mubr.bf16.gmra.mrb[0].mxu0 %v568
  %v1047 = vpop.f32.mrb[0].mxu0
  %v1048 = vadd.f32 0.0, %v1047
  %v1049 = vpop.f32.mrb[0].mxu0
  %v1050 = vpop.f32.mrb[0].mxu0
  %v1051 = vadd.f32 0.0, %v1050
  %v1052 = vpop.f32.mrb[0].mxu0
  %1053 = vmatprep.mubr.bf16.mxu0 %v837
  %1054 = vmatmul.mubr.bf16.gmra.mrb[0].mxu0 %v570
  %v1055 = vpop.f32.mrb[0].mxu0
  %v1056 = vadd.f32 0.0, %v1055
  %v1057 = vpop.f32.mrb[0].mxu0
  %v1058 = vpop.f32.mrb[0].mxu0
  %v1059 = vadd.f32 0.0, %v1058
  %v1060 = vpop.f32.mrb[0].mxu0
  %1061 = vmatprep.mubr.bf16.mxu0 %v840
  %1062 = vmatmul.mubr.bf16.gmra.mrb[0].mxu0 %v572
  %v1063 = vpop.f32.mrb[0].mxu0
  %v1064 = vadd.f32 0.0, %v1063
  %v1065 = vpop.f32.mrb[0].mxu0
  %v1066 = vpop.f32.mrb[0].mxu0
  %v1067 = vadd.f32 0.0, %v1066
  %v1068 = vpop.f32.mrb[0].mxu0
  %1069 = vmatprep.mubr.bf16.mxu0 %v843
  %1070 = vmatmul.mubr.bf16.gmra.mrb[0].mxu0 %v574
  %v1071 = vpop.f32.mrb[0].mxu0
  %v1072 = vadd.f32 0.0, %v1071
  %v1073 = vpop.f32.mrb[0].mxu0
  %v1074 = vpop.f32.mrb[0].mxu0
  %v1075 = vadd.f32 0.0, %v1074
  %v1076 = vpop.f32.mrb[0].mxu0
  %1077 = vmatprep.mubr.bf16.mxu0 %v846
  %1078 = vmatmul.mubr.bf16.gmra.mrb[0].mxu0 %v576
  %v1079 = vpop.f32.mrb[0].mxu0
  %v1080 = vadd.f32 0.0, %v1079
  %v1081 = vpop.f32.mrb[0].mxu0
  %v1082 = vpop.f32.mrb[0].mxu0
  %v1083 = vadd.f32 0.0, %v1082
  %v1084 = vpop.f32.mrb[0].mxu0
  %1085 = vmatprep.mubr.bf16.mxu0 %v849
  %1086 = vmatmul.mubr.bf16.gmra.mrb[0].mxu0 %v578
  %v1087 = vpop.f32.mrb[0].mxu0
  %v1088 = vadd.f32 0.0, %v1087
  %v1089 = vpop.f32.mrb[0].mxu0
  %v1090 = vpop.f32.mrb[0].mxu0
  %v1091 = vadd.f32 0.0, %v1090
  %v1092 = vpop.f32.mrb[0].mxu0
  %1093 = vmatprep.mubr.bf16.mxu0 %v852
  %1094 = vmatmul.mubr.bf16.gmra.mrb[0].mxu0 %v580
  %v1095 = vpop.f32.mrb[0].mxu0
  %v1096 = vadd.f32 0.0, %v1095
  %v1097 = vpop.f32.mrb[0].mxu0
  %v1098 = vpop.f32.mrb[0].mxu0
  %v1099 = vadd.f32 0.0, %v1098
  %v1100 = vpop.f32.mrb[0].mxu0
  %1101 = vmatprep.mubr.bf16.mxu0 %v855
  %1102 = vmatmul.mubr.bf16.gmra.mrb[0].mxu0 %v582
  %v1103 = vpop.f32.mrb[0].mxu0
  %v1104 = vadd.f32 0.0, %v1103
  %v1105 = vpop.f32.mrb[0].mxu0
  %v1106 = vpop.f32.mrb[0].mxu0
  %v1107 = vadd.f32 0.0, %v1106
  %v1108 = vpop.f32.mrb[0].mxu0
  %1109 = vmatprep.mubr.bf16.mxu0 %v858
  %1110 = vmatmul.mubr.bf16.gmra.mrb[0].mxu0 %v584
  %v1111 = vpop.f32.mrb[0].mxu0
  %v1112 = vadd.f32 0.0, %v1111
  %v1113 = vpop.f32.mrb[0].mxu0
  %v1114 = vpop.f32.mrb[0].mxu0
  %v1115 = vadd.f32 0.0, %v1114
  %v1116 = vpop.f32.mrb[0].mxu0
  %1117 = vmatprep.mubr.bf16.mxu0 %v861
  %1118 = vmatmul.mubr.bf16.gmra.mrb[0].mxu0 %v586
  %v1119 = vpop.f32.mrb[0].mxu0
  %v1120 = vadd.f32 0.0, %v1119
  %v1121 = vpop.f32.mrb[0].mxu0
  %v1122 = vpop.f32.mrb[0].mxu0
  %v1123 = vadd.f32 0.0, %v1122
  %v1124 = vpop.f32.mrb[0].mxu0
  %1125 = vmatprep.mubr.bf16.mxu0 %v864
  %1126 = vmatmul.mubr.bf16.gmra.mrb[0].mxu0 %v588
  %v1127 = vpop.f32.mrb[0].mxu0
  %v1128 = vadd.f32 0.0, %v1127
  %v1129 = vpop.f32.mrb[0].mxu0
  %v1130 = vpop.f32.mrb[0].mxu0
  %v1131 = vadd.f32 0.0, %v1130
  %v1132 = vpop.f32.mrb[0].mxu0
  %1133 = vmatprep.mubr.bf16.mxu0 %v867
  %1134 = vmatmul.mubr.bf16.gmra.mrb[0].mxu0 %v590
  %v1135 = vpop.f32.mrb[0].mxu0
  %v1136 = vadd.f32 0.0, %v1135
  %v1137 = vpop.f32.mrb[0].mxu0
  %v1138 = vpop.f32.mrb[0].mxu0
  %v1139 = vadd.f32 0.0, %v1138
  %v1140 = vpop.f32.mrb[0].mxu0
  %1141 = vmatprep.mubr.bf16.mxu0 %v870
  %1142 = vmatmul.mubr.bf16.gmra.mrb[0].mxu0 %v592
  %v1143 = vpop.f32.mrb[0].mxu0
  %v1144 = vadd.f32 0.0, %v1143
  %v1145 = vpop.f32.mrb[0].mxu0
  %v1146 = vpop.f32.mrb[0].mxu0
  %v1147 = vadd.f32 0.0, %v1146
  %v1148 = vpop.f32.mrb[0].mxu0
  %1149 = vmatprep.mubr.bf16.mxu0 %v873
  %1150 = vmatmul.mubr.bf16.gmra.mrb[0].mxu0 %v594
  %v1151 = vpop.f32.mrb[0].mxu0
  %v1152 = vadd.f32 0.0, %v1151
  %v1153 = vpop.f32.mrb[0].mxu0
  %v1154 = vpop.f32.mrb[0].mxu0
  %v1155 = vadd.f32 0.0, %v1154
  %v1156 = vpop.f32.mrb[0].mxu0
  %1157 = vmatprep.mubr.bf16.mxu0 %v876
  %1158 = vmatmul.mubr.bf16.gmra.mrb[0].mxu0 %v596
  %v1159 = vpop.f32.mrb[0].mxu0
  %v1160 = vadd.f32 0.0, %v1159
  %v1161 = vpop.f32.mrb[0].mxu0
  %v1162 = vpop.f32.mrb[0].mxu0
  %v1163 = vadd.f32 0.0, %v1162
  %v1164 = vpop.f32.mrb[0].mxu0
  %1165 = vmatprep.mubr.bf16.mxu0 %v879
  %1166 = vmatmul.mubr.bf16.gmra.mrb[0].mxu0 %v598
  %v1167 = vpop.f32.mrb[0].mxu0
  %v1168 = vadd.f32 0.0, %v1167
  %v1169 = vpop.f32.mrb[0].mxu0
  %v1170 = vpop.f32.mrb[0].mxu0
  %v1171 = vadd.f32 0.0, %v1170
  %v1172 = vpop.f32.mrb[0].mxu0
  %1173 = vmatprep.mubr.bf16.mxu0 %v882
  %1174 = vmatmul.mubr.bf16.gmra.mrb[0].mxu0 %v600
  %v1175 = vpop.f32.mrb[0].mxu0
  %v1176 = vadd.f32 0.0, %v1175
  %v1177 = vpop.f32.mrb[0].mxu0
  %v1178 = vpop.f32.mrb[0].mxu0
  %v1179 = vadd.f32 0.0, %v1178
  %v1180 = vpop.f32.mrb[0].mxu0
  %1181 = vmatprep.mubr.bf16.mxu0 %v885
  %1182 = vmatmul.mubr.bf16.gmra.mrb[0].mxu0 %v602
  %v1183 = vpop.f32.mrb[0].mxu0
  %v1184 = vadd.f32 0.0, %v1183
  %v1185 = vpop.f32.mrb[0].mxu0
  %v1186 = vpop.f32.mrb[0].mxu0
  %v1187 = vadd.f32 0.0, %v1186
  %v1188 = vpop.f32.mrb[0].mxu0
  %1189 = vmatprep.mubr.bf16.mxu0 %v888
  %1190 = vmatmul.mubr.bf16.gmra.mrb[0].mxu0 %v604
  %v1191 = vpop.f32.mrb[0].mxu0
  %v1192 = vadd.f32 0.0, %v1191
  %v1193 = vpop.f32.mrb[0].mxu0
  %v1194 = vpop.f32.mrb[0].mxu0
  %v1195 = vadd.f32 0.0, %v1194
  %v1196 = vpop.f32.mrb[0].mxu0
  %1197 = vmatprep.mubr.bf16.mxu0 %v891
  %1198 = vmatmul.mubr.bf16.gmra.mrb[0].mxu0 %v606
  %v1199 = vpop.f32.mrb[0].mxu0
  %v1200 = vadd.f32 0.0, %v1199
  %v1201 = vpop.f32.mrb[0].mxu0
  %v1202 = vpop.f32.mrb[0].mxu0
  %v1203 = vadd.f32 0.0, %v1202
  %v1204 = vpop.f32.mrb[0].mxu0
  %1205 = vmatprep.mubr.bf16.mxu0 %v894
  %1206 = vmatmul.mubr.bf16.gmra.mrb[0].mxu0 %v608
  %v1207 = vpop.f32.mrb[0].mxu0
  %v1208 = vadd.f32 0.0, %v1207
  %v1209 = vpop.f32.mrb[0].mxu0
  %v1210 = vpop.f32.mrb[0].mxu0
  %v1211 = vadd.f32 0.0, %v1210
  %v1212 = vpop.f32.mrb[0].mxu0
  %1213 = vmatprep.mubr.bf16.mxu0 %v897
  %1214 = vmatmul.mubr.bf16.gmra.mrb[0].mxu0 %v610
  %v1215 = vpop.f32.mrb[0].mxu0
  %v1216 = vadd.f32 0.0, %v1215
  %v1217 = vpop.f32.mrb[0].mxu0
  %v1218 = vpop.f32.mrb[0].mxu0
  %v1219 = vadd.f32 0.0, %v1218
  %v1220 = vpop.f32.mrb[0].mxu0
  %1221 = vmatprep.mubr.bf16.mxu0 %v900
  %1222 = vmatmul.mubr.bf16.gmra.mrb[0].mxu0 %v612
  %v1223 = vpop.f32.mrb[0].mxu0
  %v1224 = vadd.f32 0.0, %v1223
  %v1225 = vpop.f32.mrb[0].mxu0
  %v1226 = vpop.f32.mrb[0].mxu0
  %v1227 = vadd.f32 0.0, %v1226
  %v1228 = vpop.f32.mrb[0].mxu0
  %1229 = vmatprep.mubr.bf16.mxu0 %v903
  %1230 = vmatmul.mubr.bf16.gmra.mrb[0].mxu0 %v614
  %v1231 = vpop.f32.mrb[0].mxu0
  %v1232 = vadd.f32 0.0, %v1231
  %v1233 = vpop.f32.mrb[0].mxu0
  %v1234 = vpop.f32.mrb[0].mxu0
  %v1235 = vadd.f32 0.0, %v1234
  %v1236 = vpop.f32.mrb[0].mxu0
  %1237 = vmatprep.mubr.bf16.mxu0 %v906
  %1238 = vmatmul.mubr.bf16.gmra.mrb[0].mxu0 %v616
  %v1239 = vpop.f32.mrb[0].mxu0
  %v1240 = vadd.f32 0.0, %v1239
  %v1241 = vpop.f32.mrb[0].mxu0
  %v1242 = vpop.f32.mrb[0].mxu0
  %v1243 = vadd.f32 0.0, %v1242
  %v1244 = vpop.f32.mrb[0].mxu0
  %1245 = vmatprep.mubr.bf16.mxu0 %v909
  %1246 = vmatmul.mubr.bf16.gmra.mrb[0].mxu0 %v618
  %v1247 = vpop.f32.mrb[0].mxu0
  %v1248 = vadd.f32 0.0, %v1247
  %v1249 = vpop.f32.mrb[0].mxu0
  %v1250 = vpop.f32.mrb[0].mxu0
  %v1251 = vadd.f32 0.0, %v1250
  %v1252 = vpop.f32.mrb[0].mxu0
  %1253 = vmatprep.mubr.bf16.mxu0 %v912
  %1254 = vmatmul.mubr.bf16.gmra.mrb[0].mxu0 %v620
  %v1255 = vpop.f32.mrb[0].mxu0
  %v1256 = vadd.f32 0.0, %v1255
  %v1257 = vpop.f32.mrb[0].mxu0
  %v1258 = vpop.f32.mrb[0].mxu0
  %v1259 = vadd.f32 0.0, %v1258
  %v1260 = vpop.f32.mrb[0].mxu0
  %1261 = vmatprep.mubr.bf16.mxu0 %v915
  %1262 = vmatmul.mubr.bf16.gmra.mrb[0].mxu0 %v622
  %v1263 = vpop.f32.mrb[0].mxu0
  %v1264 = vadd.f32 0.0, %v1263
  %v1265 = vpop.f32.mrb[0].mxu0
  %v1266 = vpop.f32.mrb[0].mxu0
  %v1267 = vadd.f32 0.0, %v1266
  %v1268 = vpop.f32.mrb[0].mxu0
  %1269 = vmatprep.mubr.bf16.mxu0 %v918
  %1270 = vmatmul.mubr.bf16.gmra.mrb[0].mxu0 %v624
  %v1271 = vpop.f32.mrb[0].mxu0
  %v1272 = vadd.f32 0.0, %v1271
  %v1273 = vpop.f32.mrb[0].mxu0
  %v1274 = vpop.f32.mrb[0].mxu0
  %v1275 = vadd.f32 0.0, %v1274
  %v1276 = vpop.f32.mrb[0].mxu0
  %1277 = vmatprep.mubr.bf16.mxu0 %v921
  %1278 = vmatmul.mubr.bf16.gmra.mrb[0].mxu0 %v626
  %v1279 = vpop.f32.mrb[0].mxu0
  %v1280 = vadd.f32 0.0, %v1279
  %v1281 = vpop.f32.mrb[0].mxu0
  %v1282 = vpop.f32.mrb[0].mxu0
  %v1283 = vadd.f32 0.0, %v1282
  %v1284 = vpop.f32.mrb[0].mxu0
  %1285 = vmatprep.mubr.bf16.mxu0 %v924
  %1286 = vmatmul.mubr.bf16.gmra.mrb[0].mxu0 %v628
  %v1287 = vpop.f32.mrb[0].mxu0
  %v1288 = vadd.f32 0.0, %v1287
  %v1289 = vpop.f32.mrb[0].mxu0
  %v1290 = vpop.f32.mrb[0].mxu0
  %v1291 = vadd.f32 0.0, %v1290
  %v1292 = vpop.f32.mrb[0].mxu0
  %1293 = vmatprep.mubr.bf16.mxu0 %v927
  %1294 = vmatmul.mubr.bf16.gmra.mrb[0].mxu0 %v630
  %v1295 = vpop.f32.mrb[0].mxu0
  %v1296 = vadd.f32 0.0, %v1295
  %v1297 = vpop.f32.mrb[0].mxu0
  %v1298 = vpop.f32.mrb[0].mxu0
  %v1299 = vadd.f32 0.0, %v1298
  %v1300 = vpop.f32.mrb[0].mxu0
  %1301 = vmatprep.mubr.bf16.mxu0 %v930
  %1302 = vmatmul.mubr.bf16.gmra.mrb[0].mxu0 %v632
  %v1303 = vpop.f32.mrb[0].mxu0
  %v1304 = vadd.f32 0.0, %v1303
  %v1305 = vpop.f32.mrb[0].mxu0
  %v1306 = vpop.f32.mrb[0].mxu0
  %v1307 = vadd.f32 0.0, %v1306
  %v1308 = vpop.f32.mrb[0].mxu0
  %1309 = vmatprep.mubr.bf16.mxu0 %v933
  %1310 = vmatmul.mubr.bf16.gmra.mrb[0].mxu0 %v634
  %v1311 = vpop.f32.mrb[0].mxu0
  %v1312 = vadd.f32 0.0, %v1311
  %v1313 = vpop.f32.mrb[0].mxu0
  %v1314 = vpop.f32.mrb[0].mxu0
  %v1315 = vadd.f32 0.0, %v1314
  %v1316 = vpop.f32.mrb[0].mxu0
  %1317 = vmatprep.mubr.bf16.mxu0 %v936
  %1318 = vmatmul.mubr.bf16.gmra.mrb[0].mxu0 %v636
  %v1319 = vpop.f32.mrb[0].mxu0
  %v1320 = vadd.f32 0.0, %v1319
  %v1321 = vpop.f32.mrb[0].mxu0
  %v1322 = vpop.f32.mrb[0].mxu0
  %v1323 = vadd.f32 0.0, %v1322
  %v1324 = vpop.f32.mrb[0].mxu0
  %1325 = vmatprep.mubr.bf16.mxu0 %v939
  %1326 = vmatmul.mubr.bf16.gmra.mrb[0].mxu0 %v638
  %v1327 = vpop.f32.mrb[0].mxu0
  %v1328 = vadd.f32 0.0, %v1327
  %v1329 = vpop.f32.mrb[0].mxu0
  %v1330 = vpop.f32.mrb[0].mxu0
  %v1331 = vadd.f32 0.0, %v1330
  %v1332 = vpop.f32.mrb[0].mxu0
  %1333 = vmatprep.mubr.bf16.mxu0 %v942
  %1334 = vmatmul.mubr.bf16.gmra.mrb[0].mxu0 %v640
  %v1335 = vpop.f32.mrb[0].mxu0
  %v1336 = vadd.f32 0.0, %v1335
  %v1337 = vpop.f32.mrb[0].mxu0
  %v1338 = vpop.f32.mrb[0].mxu0
  %v1339 = vadd.f32 0.0, %v1338
  %v1340 = vpop.f32.mrb[0].mxu0
  %1341 = vmatprep.mubr.bf16.mxu0 %v945
  %1342 = vmatmul.mubr.bf16.gmra.mrb[0].mxu0 %v642
  %v1343 = vpop.f32.mrb[0].mxu0
  %v1344 = vadd.f32 0.0, %v1343
  %v1345 = vpop.f32.mrb[0].mxu0
  %v1346 = vpop.f32.mrb[0].mxu0
  %v1347 = vadd.f32 0.0, %v1346
  %v1348 = vpop.f32.mrb[0].mxu0
  %1349 = vmatprep.mubr.bf16.mxu0 %v948
  %1350 = vmatmul.mubr.bf16.gmra.mrb[0].mxu0 %v644
  %v1351 = vpop.f32.mrb[0].mxu0
  %v1352 = vadd.f32 0.0, %v1351
  %v1353 = vpop.f32.mrb[0].mxu0
  %v1354 = vpop.f32.mrb[0].mxu0
  %v1355 = vadd.f32 0.0, %v1354
  %v1356 = vpop.f32.mrb[0].mxu0
  %1357 = vmatprep.mubr.bf16.mxu0 %v951
  %1358 = vmatmul.mubr.bf16.gmra.mrb[0].mxu0 %v646
  %v1359 = vpop.f32.mrb[0].mxu0
  %v1360 = vadd.f32 0.0, %v1359
  %v1361 = vpop.f32.mrb[0].mxu0
  %v1362 = vpop.f32.mrb[0].mxu0
  %v1363 = vadd.f32 0.0, %v1362
  %v1364 = vpop.f32.mrb[0].mxu0
  %1365 = vmatprep.mubr.bf16.mxu0 %v954
  %1366 = vmatmul.mubr.bf16.gmra.mrb[0].mxu0 %v648
  %v1367 = vpop.f32.mrb[0].mxu0
  %v1368 = vadd.f32 0.0, %v1367
  %v1369 = vpop.f32.mrb[0].mxu0
  %v1370 = vpop.f32.mrb[0].mxu0
  %v1371 = vadd.f32 0.0, %v1370
  %v1372 = vpop.f32.mrb[0].mxu0
  %1373 = vmatprep.mubr.bf16.mxu0 %v957
  %1374 = vmatmul.mubr.bf16.gmra.mrb[0].mxu0 %v650
  %v1375 = vpop.f32.mrb[0].mxu0
  %v1376 = vadd.f32 0.0, %v1375
  %v1377 = vpop.f32.mrb[0].mxu0
  %v1378 = vpop.f32.mrb[0].mxu0
  %v1379 = vadd.f32 0.0, %v1378
  %v1380 = vpop.f32.mrb[0].mxu0
  %1381 = vmatprep.mubr.bf16.mxu0 %v960
  %1382 = vmatmul.mubr.bf16.gmra.mrb[0].mxu0 %v652
  %v1383 = vpop.f32.mrb[0].mxu0
  %v1384 = vadd.f32 0.0, %v1383
  %v1385 = vpop.f32.mrb[0].mxu0
  %v1386 = vpop.f32.mrb[0].mxu0
  %v1387 = vadd.f32 0.0, %v1386
  %v1388 = vpop.f32.mrb[0].mxu0
  %1389 = vmatprep.mubr.bf16.mxu0 %v963
  %1390 = vmatmul.mubr.bf16.gmra.mrb[0].mxu0 %v654
  %v1391 = vpop.f32.mrb[0].mxu0
  %v1392 = vadd.f32 0.0, %v1391
  %v1393 = vpop.f32.mrb[0].mxu0
  %v1394 = vpop.f32.mrb[0].mxu0
  %v1395 = vadd.f32 0.0, %v1394
  %v1396 = vpop.f32.mrb[0].mxu0
  %1397 = vmatprep.mubr.bf16.mxu0 %v966
  %1398 = vmatmul.mubr.bf16.gmra.mrb[0].mxu0 %v656
  %v1399 = vpop.f32.mrb[0].mxu0
  %v1400 = vadd.f32 0.0, %v1399
  %v1401 = vpop.f32.mrb[0].mxu0
  %v1402 = vpop.f32.mrb[0].mxu0
  %v1403 = vadd.f32 0.0, %v1402
  %v1404 = vpop.f32.mrb[0].mxu0
  %1405 = vmatprep.mubr.bf16.mxu0 %v969
  %1406 = vmatmul.mubr.bf16.gmra.mrb[0].mxu0 %v658
  %v1407 = vpop.f32.mrb[0].mxu0
  %v1408 = vadd.f32 0.0, %v1407
  %v1409 = vpop.f32.mrb[0].mxu0
  %v1410 = vpop.f32.mrb[0].mxu0
  %v1411 = vadd.f32 0.0, %v1410
  %v1412 = vpop.f32.mrb[0].mxu0
  %1413 = vmatprep.mubr.bf16.mxu0 %v972
  %1414 = vmatmul.mubr.bf16.gmra.mrb[0].mxu0 %v660
  %v1415 = vpop.f32.mrb[0].mxu0
  %v1416 = vadd.f32 0.0, %v1415
  %v1417 = vpop.f32.mrb[0].mxu0
  %v1418 = vpop.f32.mrb[0].mxu0
  %v1419 = vadd.f32 0.0, %v1418
  %v1420 = vpop.f32.mrb[0].mxu0
  %1421 = vmatprep.mubr.bf16.mxu0 %v975
  %1422 = vmatmul.mubr.bf16.gmra.mrb[0].mxu0 %v662
  %v1423 = vpop.f32.mrb[0].mxu0
  %v1424 = vadd.f32 0.0, %v1423
  %v1425 = vpop.f32.mrb[0].mxu0
  %v1426 = vpop.f32.mrb[0].mxu0
  %v1427 = vadd.f32 0.0, %v1426
  %v1428 = vpop.f32.mrb[0].mxu0
  %1429 = vmatprep.mubr.bf16.mxu0 %v978
  %1430 = vmatmul.mubr.bf16.gmra.mrb[0].mxu0 %v664
  %v1431 = vpop.f32.mrb[0].mxu0
  %v1432 = vadd.f32 0.0, %v1431
  %v1433 = vpop.f32.mrb[0].mxu0
  %v1434 = vpop.f32.mrb[0].mxu0
  %v1435 = vadd.f32 0.0, %v1434
  %v1436 = vpop.f32.mrb[0].mxu0
  %1437 = vmatprep.mubr.bf16.mxu0 %v981
  %1438 = vmatmul.mubr.bf16.gmra.mrb[0].mxu0 %v666
  %v1439 = vpop.f32.mrb[0].mxu0
  %v1440 = vadd.f32 0.0, %v1439
  %v1441 = vpop.f32.mrb[0].mxu0
  %v1442 = vpop.f32.mrb[0].mxu0
  %v1443 = vadd.f32 0.0, %v1442
  %v1444 = vpop.f32.mrb[0].mxu0
  %1445 = vmatprep.mubr.bf16.mxu0 %v984
  %1446 = vmatmul.mubr.bf16.gmra.mrb[0].mxu0 %v668
  %v1447 = vpop.f32.mrb[0].mxu0
  %v1448 = vadd.f32 0.0, %v1447
  %v1449 = vpop.f32.mrb[0].mxu0
  %v1450 = vpop.f32.mrb[0].mxu0
  %v1451 = vadd.f32 0.0, %v1450
  %v1452 = vpop.f32.mrb[0].mxu0
  %1453 = vmatprep.mubr.bf16.mxu0 %v987
  %1454 = vmatmul.mubr.bf16.gmra.mrb[0].mxu0 %v670
  %v1455 = vpop.f32.mrb[0].mxu0
  %v1456 = vadd.f32 0.0, %v1455
  %v1457 = vpop.f32.mrb[0].mxu0
  %v1458 = vpop.f32.mrb[0].mxu0
  %v1459 = vadd.f32 0.0, %v1458
  %v1460 = vpop.f32.mrb[0].mxu0
  %1461 = vmatprep.mubr.bf16.mxu0 %v990
  %1462 = vmatmul.mubr.bf16.gmra.mrb[0].mxu0 %v672
  %v1463 = vpop.f32.mrb[0].mxu0
  %v1464 = vadd.f32 0.0, %v1463
  %v1465 = vpop.f32.mrb[0].mxu0
  %v1466 = vpop.f32.mrb[0].mxu0
  %v1467 = vadd.f32 0.0, %v1466
  %v1468 = vpop.f32.mrb[0].mxu0
  %1469 = vmatprep.mubr.bf16.mxu0 %v993
  %1470 = vmatmul.mubr.bf16.gmra.mrb[0].mxu0 %v674
  %v1471 = vpop.f32.mrb[0].mxu0
  %v1472 = vadd.f32 0.0, %v1471
  %v1473 = vpop.f32.mrb[0].mxu0
  %v1474 = vpop.f32.mrb[0].mxu0
  %v1475 = vadd.f32 0.0, %v1474
  %v1476 = vpop.f32.mrb[0].mxu0
  %1477 = vmatprep.mubr.bf16.mxu0 %v996
  %1478 = vmatmul.mubr.bf16.gmra.mrb[0].mxu0 %v676
  %v1479 = vpop.f32.mrb[0].mxu0
  %v1480 = vadd.f32 0.0, %v1479
  %v1481 = vpop.f32.mrb[0].mxu0
  %v1482 = vpop.f32.mrb[0].mxu0
  %v1483 = vadd.f32 0.0, %v1482
  %v1484 = vpop.f32.mrb[0].mxu0
  %1485 = vmatprep.mubr.bf16.mxu0 %v999
  %1486 = vmatmul.mubr.bf16.gmra.mrb[0].mxu0 %v678
  %v1487 = vpop.f32.mrb[0].mxu0
  %v1488 = vadd.f32 0.0, %v1487
  %v1489 = vpop.f32.mrb[0].mxu0
  %v1490 = vpop.f32.mrb[0].mxu0
  %v1491 = vadd.f32 0.0, %v1490
  %v1492 = vpop.f32.mrb[0].mxu0
  %1493 = vmatprep.mubr.bf16.mxu0 %v1002
  %1494 = vmatmul.mubr.bf16.gmra.mrb[0].mxu0 %v680
  %v1495 = vpop.f32.mrb[0].mxu0
  %v1496 = vadd.f32 0.0, %v1495
  %v1497 = vpop.f32.mrb[0].mxu0
  %v1498 = vpop.f32.mrb[0].mxu0
  %v1499 = vadd.f32 0.0, %v1498
  %v1500 = vpop.f32.mrb[0].mxu0
  %1501 = vmatprep.mubr.bf16.mxu0 %v1005
  %1502 = vmatmul.mubr.bf16.gmra.mrb[0].mxu0 %v682
  %v1503 = vpop.f32.mrb[0].mxu0
  %v1504 = vadd.f32 0.0, %v1503
  %v1505 = vpop.f32.mrb[0].mxu0
  %v1506 = vpop.f32.mrb[0].mxu0
  %v1507 = vadd.f32 0.0, %v1506
  %v1508 = vpop.f32.mrb[0].mxu0
  %1509 = vmatprep.mubr.bf16.mxu0 %v1008
  %1510 = vmatmul.mubr.bf16.gmra.mrb[0].mxu0 %v684
  %v1511 = vpop.f32.mrb[0].mxu0
  %v1512 = vadd.f32 0.0, %v1511
  %v1513 = vpop.f32.mrb[0].mxu0
  %v1514 = vpop.f32.mrb[0].mxu0
  %v1515 = vadd.f32 0.0, %v1514
  %v1516 = vpop.f32.mrb[0].mxu0
  %1517 = vmatprep.mubr.bf16.mxu0 %v1011
  %1518 = vmatmul.mubr.bf16.gmra.mrb[0].mxu0 %v686
  %v1519 = vpop.f32.mrb[0].mxu0
  %v1520 = vadd.f32 0.0, %v1519
  %v1521 = vpop.f32.mrb[0].mxu0
  %v1522 = vpop.f32.mrb[0].mxu0
  %v1523 = vadd.f32 0.0, %v1522
  %v1524 = vpop.f32.mrb[0].mxu0
  %1525 = vdwg.mxu0
  %v1526 = vld [vmem:[%s2] sm:$0xff]
  %v1527 = vld [vmem:[%s2 + $0x8] sm:$0xf]
  %v1528 = vld [vmem:[%s2 + $0xc] sm:$0xff]
  %v1529 = vld [vmem:[%s2 + $0x14] sm:$0xf]
  %v1530 = vld [vmem:[%s2 + $0x18] sm:$0xff]
  %v1531 = vld [vmem:[%s2 + $0x20] sm:$0xf]
  %v1532 = vld [vmem:[%s2 + $0x24] sm:$0x33]
  %v1533 = vld [vmem:[%s2 + $0x2c] sm:$0x3]
  %v1534 = vpack.c.bf16 %v1051, %v1048
  %v1535 = vpack.c.bf16 %v1059, %v1056
  %v1536 = vpack.c.bf16 %v1067, %v1064
  %v1537 = vpack.c.bf16 %v1075, %v1072
  %v1538 = vpack.c.bf16 %v1083, %v1080
  %v1539 = vpack.c.bf16 %v1091, %v1088
  %v1540 = vpack.c.bf16 %v1099, %v1096
  %v1541 = vpack.c.bf16 %v1107, %v1104
  %v1542 = vpack.c.bf16 %v1115, %v1112
  %v1543 = vpack.c.bf16 %v1123, %v1120
  %v1544 = vpack.c.bf16 %v1131, %v1128
  %v1545 = vpack.c.bf16 %v1139, %v1136
  %s1546 = scalar_lea.vmem %s2, 48
  %v1547 = vld [vmem:[%s1546] sm:$0xff]
  %v1548 = vld [vmem:[%s1546 + $0x8] sm:$0xf]
  %v1549 = vld [vmem:[%s1546 + $0xc] sm:$0xff]
  %v1550 = vld [vmem:[%s1546 + $0x14] sm:$0xf]
  %v1551 = vld [vmem:[%s1546 + $0x18] sm:$0xff]
  %v1552 = vld [vmem:[%s1546 + $0x20] sm:$0xf]
  %v1553 = vld [vmem:[%s1546 + $0x24] sm:$0x33]
  %v1554 = vld [vmem:[%s1546 + $0x2c] sm:$0x3]
  %v1555 = vpack.c.bf16 %v1147, %v1144
  %v1556 = vpack.c.bf16 %v1155, %v1152
  %v1557 = vpack.c.bf16 %v1163, %v1160
  %v1558 = vpack.c.bf16 %v1171, %v1168
  %v1559 = vpack.c.bf16 %v1179, %v1176
  %v1560 = vpack.c.bf16 %v1187, %v1184
  %v1561 = vpack.c.bf16 %v1195, %v1192
  %v1562 = vpack.c.bf16 %v1203, %v1200
  %v1563 = vpack.c.bf16 %v1211, %v1208
  %v1564 = vpack.c.bf16 %v1219, %v1216
  %v1565 = vpack.c.bf16 %v1227, %v1224
  %v1566 = vpack.c.bf16 %v1235, %v1232
  %v1575 = vunpack.c.l.b16 %v1547
  %v1576 = vunpack.c.h.b16 %v1547
  %v1577 = vunpack.c.l.b16 %v1548
  %v1578 = vunpack.c.l.b16 %v1549
  %v1579 = vunpack.c.h.b16 %v1549
  %v1580 = vunpack.c.l.b16 %v1550
  %v1581 = vunpack.c.l.b16 %v1551
  %v1582 = vunpack.c.h.b16 %v1551
  %v1583 = vunpack.c.l.b16 %v1552
  %v1584 = vunpack.c.l.b16 %v1553
  %v1585 = vunpack.c.h.b16 %v1553
  %v1586 = vunpack.c.l.b16 %v1554
  %v1587 = vpack.c.b16 %v1578, %v1575
  %v1588 = vpack.c.b16 %v1579, %v1576
  %v1589 = vpack.c.b16 %v1580, %v1577
  %v1590 = vpack.c.b16 %v1584, %v1581
  %v1591 = vpack.c.b16 %v1585, %v1582
  %v1592 = vpack.c.b16 %v1586, %v1583
  %vm1596 = vcmask 228352
  %v1598 = vsel %vm1596, %v1555, 0
  %v1601 = vsel %vm1596, %v1556, 0
  %v1604 = vsel %vm1596, %v1557, 0
  %v1607 = vsel %vm1596, %v1558, 0
  %v1610 = vsel %vm1596, %v1559, 0
  %v1613 = vsel %vm1596, %v1560, 0
  %v1616 = vsel %vm1596, %v1561, 0
  %v1619 = vsel %vm1596, %v1562, 0
  %v1622 = vsel %vm1596, %v1563, 0
  %v1625 = vsel %vm1596, %v1564, 0
  %v1628 = vsel %vm1596, %v1565, 0
  %v1631 = vsel %vm1596, %v1566, 0
  %vm1633 = vcmask 1045504
  %v1635 = vsel %vm1633, %v1590, 0
  %v1638 = vsel %vm1633, %v1591, 0
  %v1641 = vsel %vm1633, %v1592, 0
  %1643 = vmatprep.subr.bf16.mxu0 %v1588
  %1644 = vmatpush1.bf16.msra.mxu0 %v1587
  %1645 = vmatprep.subr.bf16.mxu0 %v1638
  %1646 = vmatpush1.bf16.msra.mxu0 %v1635
  %1647 = vmatprep.subr.bf16.mxu0 0
  %1648 = vmatpush1.bf16.msra.mxu0 0
  %1649 = vmatprep.subr.bf16.mxu0 0
  %1650 = vmatpush1.bf16.msra.mxu0 0
  %1651 = vmatprep.subr.bf16.mxu0 0
  %1652 = vmatpush1.bf16.msra.mxu0 0
  %1653 = vmatprep.subr.bf16.mxu0 0
  %1654 = vmatpush1.bf16.msra.mxu0 0
  %1655 = vmatprep.subr.bf16.mxu0 0
  %1656 = vmatpush1.bf16.msra.mxu0 0
  %1657 = vmatprep.subr.bf16.mxu0 0
  %1658 = vmatpush1.bf16.msra.mxu0 0
  %1659 = vmatprep.subr.bf16.mxu0 0
  %1660 = vmatpush1.bf16.msra.mxu0 0
  %1661 = vmatprep.subr.bf16.mxu0 0
  %1662 = vmatpush1.bf16.msra.mxu0 0
  %1663 = vmatprep.subr.bf16.mxu0 0
  %1664 = vmatpush1.bf16.msra.mxu0 0
  %1665 = vmatprep.subr.bf16.mxu0 0
  %1666 = vmatpush1.bf16.msra.mxu0 0
  %1667 = vmatprep.subr.bf16.mxu0 0
  %1668 = vmatpush1.bf16.msra.mxu0 0
  %1669 = vmatprep.subr.bf16.mxu0 0
  %1670 = vmatpush1.bf16.msra.mxu0 0
  %1671 = vmatprep.subr.bf16.mxu0 0
  %1672 = vmatpush1.bf16.msra.mxu0 0
  %1673 = vmatprep.subr.bf16.mxu0 0
  %1674 = vmatpush1.bf16.msra.mxu0 0
  %1675 = vmatprep.mubr.bf16.mxu0 0
  %1676 = vmatmul.mubr.bf16.gmra.mrb[0].mxu0 %v1598
  %v1677 = vpop.f32.mrb[0].mxu0
  %v1678 = vadd.f32 0.0, %v1677
  %v1679 = vpop.f32.mrb[0].mxu0
  %v1680 = vadd.f32 0.0, %v1679
  %v1681 = vpop.f32.mrb[0].mxu0
  %v1682 = vadd.f32 0.0, %v1681
  %v1683 = vpop.f32.mrb[0].mxu0
  %v1684 = vadd.f32 0.0, %v1683
  %1685 = vmatprep.mubr.bf16.mxu0 0
  %1686 = vmatmul.mubr.bf16.gmra.mrb[0].mxu0 %v1601
  %v1687 = vpop.f32.mrb[0].mxu0
  %v1688 = vadd.f32 0.0, %v1687
  %v1689 = vpop.f32.mrb[0].mxu0
  %v1690 = vadd.f32 0.0, %v1689
  %v1691 = vpop.f32.mrb[0].mxu0
  %v1692 = vadd.f32 0.0, %v1691
  %v1693 = vpop.f32.mrb[0].mxu0
  %v1694 = vadd.f32 0.0, %v1693
  %1695 = vmatprep.mubr.bf16.mxu0 0
  %1696 = vmatmul.mubr.bf16.gmra.mrb[0].mxu0 %v1604
  %v1697 = vpop.f32.mrb[0].mxu0
  %v1698 = vadd.f32 0.0, %v1697
  %v1699 = vpop.f32.mrb[0].mxu0
  %v1700 = vadd.f32 0.0, %v1699
  %v1701 = vpop.f32.mrb[0].mxu0
  %v1702 = vadd.f32 0.0, %v1701
  %v1703 = vpop.f32.mrb[0].mxu0
  %v1704 = vadd.f32 0.0, %v1703
  %1705 = vmatprep.mubr.bf16.mxu0 0
  %1706 = vmatmul.mubr.bf16.gmra.mrb[0].mxu0 %v1607
  %v1707 = vpop.f32.mrb[0].mxu0
  %v1708 = vadd.f32 0.0, %v1707
  %v1709 = vpop.f32.mrb[0].mxu0
  %v1710 = vadd.f32 0.0, %v1709
  %v1711 = vpop.f32.mrb[0].mxu0
  %v1712 = vadd.f32 0.0, %v1711
  %v1713 = vpop.f32.mrb[0].mxu0
  %v1714 = vadd.f32 0.0, %v1713
  %1715 = vmatprep.mubr.bf16.mxu0 0
  %1716 = vmatmul.mubr.bf16.gmra.mrb[0].mxu0 %v1610
  %v1717 = vpop.f32.mrb[0].mxu0
  %v1718 = vadd.f32 0.0, %v1717
  %v1719 = vpop.f32.mrb[0].mxu0
  %v1720 = vadd.f32 0.0, %v1719
  %v1721 = vpop.f32.mrb[0].mxu0
  %v1722 = vadd.f32 0.0, %v1721
  %v1723 = vpop.f32.mrb[0].mxu0
  %v1724 = vadd.f32 0.0, %v1723
  %1725 = vmatprep.mubr.bf16.mxu0 0
  %1726 = vmatmul.mubr.bf16.gmra.mrb[0].mxu0 %v1613
  %v1727 = vpop.f32.mrb[0].mxu0
  %v1728 = vadd.f32 0.0, %v1727
  %v1729 = vpop.f32.mrb[0].mxu0
  %v1730 = vadd.f32 0.0, %v1729
  %v1731 = vpop.f32.mrb[0].mxu0
  %v1732 = vadd.f32 0.0, %v1731
  %v1733 = vpop.f32.mrb[0].mxu0
  %v1734 = vadd.f32 0.0, %v1733
  %1735 = vmatprep.mubr.bf16.mxu0 0
  %1736 = vmatmul.mubr.bf16.gmra.mrb[0].mxu0 %v1616
  %v1737 = vpop.f32.mrb[0].mxu0
  %v1738 = vadd.f32 0.0, %v1737
  %v1739 = vpop.f32.mrb[0].mxu0
  %v1740 = vadd.f32 0.0, %v1739
  %v1741 = vpop.f32.mrb[0].mxu0
  %v1742 = vadd.f32 0.0, %v1741
  %v1743 = vpop.f32.mrb[0].mxu0
  %v1744 = vadd.f32 0.0, %v1743
  %1745 = vmatprep.mubr.bf16.mxu0 0
  %1746 = vmatmul.mubr.bf16.gmra.mrb[0].mxu0 %v1619
  %v1747 = vpop.f32.mrb[0].mxu0
  %v1748 = vadd.f32 0.0, %v1747
  %v1749 = vpop.f32.mrb[0].mxu0
  %v1750 = vadd.f32 0.0, %v1749
  %v1751 = vpop.f32.mrb[0].mxu0
  %v1752 = vadd.f32 0.0, %v1751
  %v1753 = vpop.f32.mrb[0].mxu0
  %v1754 = vadd.f32 0.0, %v1753
  %1755 = vmatprep.mubr.bf16.mxu0 0
  %1756 = vmatmul.mubr.bf16.gmra.mrb[0].mxu0 %v1622
  %v1757 = vpop.f32.mrb[0].mxu0
  %v1758 = vadd.f32 0.0, %v1757
  %v1759 = vpop.f32.mrb[0].mxu0
  %v1760 = vadd.f32 0.0, %v1759
  %v1761 = vpop.f32.mrb[0].mxu0
  %v1762 = vadd.f32 0.0, %v1761
  %v1763 = vpop.f32.mrb[0].mxu0
  %v1764 = vadd.f32 0.0, %v1763
  %1765 = vmatprep.mubr.bf16.mxu0 0
  %1766 = vmatmul.mubr.bf16.gmra.mrb[0].mxu0 %v1625
  %v1767 = vpop.f32.mrb[0].mxu0
  %v1768 = vadd.f32 0.0, %v1767
  %v1769 = vpop.f32.mrb[0].mxu0
  %v1770 = vadd.f32 0.0, %v1769
  %v1771 = vpop.f32.mrb[0].mxu0
  %v1772 = vadd.f32 0.0, %v1771
  %v1773 = vpop.f32.mrb[0].mxu0
  %v1774 = vadd.f32 0.0, %v1773
  %1775 = vmatprep.mubr.bf16.mxu0 0
  %1776 = vmatmul.mubr.bf16.gmra.mrb[0].mxu0 %v1628
  %v1777 = vpop.f32.mrb[0].mxu0
  %v1778 = vadd.f32 0.0, %v1777
  %v1779 = vpop.f32.mrb[0].mxu0
  %v1780 = vadd.f32 0.0, %v1779
  %v1781 = vpop.f32.mrb[0].mxu0
  %v1782 = vadd.f32 0.0, %v1781
  %v1783 = vpop.f32.mrb[0].mxu0
  %v1784 = vadd.f32 0.0, %v1783
  %1785 = vmatprep.mubr.bf16.mxu0 0
  %1786 = vmatmul.mubr.bf16.gmra.mrb[0].mxu0 %v1631
  %v1787 = vpop.f32.mrb[0].mxu0
  %v1788 = vadd.f32 0.0, %v1787
  %v1789 = vpop.f32.mrb[0].mxu0
  %v1790 = vadd.f32 0.0, %v1789
  %v1791 = vpop.f32.mrb[0].mxu0
  %v1792 = vadd.f32 0.0, %v1791
  %v1793 = vpop.f32.mrb[0].mxu0
  %v1794 = vadd.f32 0.0, %v1793
  %1795 = vdwg.mxu0
  %1796 = vmatprep.subr.bf16.mxu0 0
  %1797 = vmatpush1.bf16.msra.mxu0 %v1589
  %1798 = vmatprep.subr.bf16.mxu0 0
  %1799 = vmatpush1.bf16.msra.mxu0 %v1641
  %1800 = vmatprep.subr.bf16.mxu0 0
  %1801 = vmatpush1.bf16.msra.mxu0 0
  %1802 = vmatprep.subr.bf16.mxu0 0
  %1803 = vmatpush1.bf16.msra.mxu0 0
  %1804 = vmatprep.subr.bf16.mxu0 0
  %1805 = vmatpush1.bf16.msra.mxu0 0
  %1806 = vmatprep.subr.bf16.mxu0 0
  %1807 = vmatpush1.bf16.msra.mxu0 0
  %1808 = vmatprep.subr.bf16.mxu0 0
  %1809 = vmatpush1.bf16.msra.mxu0 0
  %1810 = vmatprep.subr.bf16.mxu0 0
  %1811 = vmatpush1.bf16.msra.mxu0 0
  %1812 = vmatprep.subr.bf16.mxu0 0
  %1813 = vmatpush1.bf16.msra.mxu0 0
  %1814 = vmatprep.subr.bf16.mxu0 0
  %1815 = vmatpush1.bf16.msra.mxu0 0
  %1816 = vmatprep.subr.bf16.mxu0 0
  %1817 = vmatpush1.bf16.msra.mxu0 0
  %1818 = vmatprep.subr.bf16.mxu0 0
  %1819 = vmatpush1.bf16.msra.mxu0 0
  %1820 = vmatprep.subr.bf16.mxu0 0
  %1821 = vmatpush1.bf16.msra.mxu0 0
  %1822 = vmatprep.subr.bf16.mxu0 0
  %1823 = vmatpush1.bf16.msra.mxu0 0
  %1824 = vmatprep.subr.bf16.mxu0 0
  %1825 = vmatpush1.bf16.msra.mxu0 0
  %1826 = vmatprep.subr.bf16.mxu0 0
  %1827 = vmatpush1.bf16.msra.mxu0 0
  %1828 = vmatprep.mubr.bf16.mxu0 0
  %1829 = vmatmul.mubr.bf16.gmra.mrb[0].mxu0 %v1598
  %v1830 = vpop.f32.mrb[0].mxu0
  %v1831 = vadd.f32 0.0, %v1830
  %v1832 = vpop.f32.mrb[0].mxu0
  %v1833 = vpop.f32.mrb[0].mxu0
  %v1834 = vadd.f32 0.0, %v1833
  %v1835 = vpop.f32.mrb[0].mxu0
  %1836 = vmatprep.mubr.bf16.mxu0 0
  %1837 = vmatmul.mubr.bf16.gmra.mrb[0].mxu0 %v1601
  %v1838 = vpop.f32.mrb[0].mxu0
  %v1839 = vadd.f32 0.0, %v1838
  %v1840 = vpop.f32.mrb[0].mxu0
  %v1841 = vpop.f32.mrb[0].mxu0
  %v1842 = vadd.f32 0.0, %v1841
  %v1843 = vpop.f32.mrb[0].mxu0
  %1844 = vmatprep.mubr.bf16.mxu0 0
  %1845 = vmatmul.mubr.bf16.gmra.mrb[0].mxu0 %v1604
  %v1846 = vpop.f32.mrb[0].mxu0
  %v1847 = vadd.f32 0.0, %v1846
  %v1848 = vpop.f32.mrb[0].mxu0
  %v1849 = vpop.f32.mrb[0].mxu0
  %v1850 = vadd.f32 0.0, %v1849
  %v1851 = vpop.f32.mrb[0].mxu0
  %1852 = vmatprep.mubr.bf16.mxu0 0
  %1853 = vmatmul.mubr.bf16.gmra.mrb[0].mxu0 %v1607
  %v1854 = vpop.f32.mrb[0].mxu0
  %v1855 = vadd.f32 0.0, %v1854
  %v1856 = vpop.f32.mrb[0].mxu0
  %v1857 = vpop.f32.mrb[0].mxu0
  %v1858 = vadd.f32 0.0, %v1857
  %v1859 = vpop.f32.mrb[0].mxu0
  %1860 = vmatprep.mubr.bf16.mxu0 0
  %1861 = vmatmul.mubr.bf16.gmra.mrb[0].mxu0 %v1610
  %v1862 = vpop.f32.mrb[0].mxu0
  %v1863 = vadd.f32 0.0, %v1862
  %v1864 = vpop.f32.mrb[0].mxu0
  %v1865 = vpop.f32.mrb[0].mxu0
  %v1866 = vadd.f32 0.0, %v1865
  %v1867 = vpop.f32.mrb[0].mxu0
  %1868 = vmatprep.mubr.bf16.mxu0 0
  %1869 = vmatmul.mubr.bf16.gmra.mrb[0].mxu0 %v1613
  %v1870 = vpop.f32.mrb[0].mxu0
  %v1871 = vadd.f32 0.0, %v1870
  %v1872 = vpop.f32.mrb[0].mxu0
  %v1873 = vpop.f32.mrb[0].mxu0
  %v1874 = vadd.f32 0.0, %v1873
  %v1875 = vpop.f32.mrb[0].mxu0
  %1876 = vmatprep.mubr.bf16.mxu0 0
  %1877 = vmatmul.mubr.bf16.gmra.mrb[0].mxu0 %v1616
  %v1878 = vpop.f32.mrb[0].mxu0
  %v1879 = vadd.f32 0.0, %v1878
  %v1880 = vpop.f32.mrb[0].mxu0
  %v1881 = vpop.f32.mrb[0].mxu0
  %v1882 = vadd.f32 0.0, %v1881
  %v1883 = vpop.f32.mrb[0].mxu0
  %1884 = vmatprep.mubr.bf16.mxu0 0
  %1885 = vmatmul.mubr.bf16.gmra.mrb[0].mxu0 %v1619
  %v1886 = vpop.f32.mrb[0].mxu0
  %v1887 = vadd.f32 0.0, %v1886
  %v1888 = vpop.f32.mrb[0].mxu0
  %v1889 = vpop.f32.mrb[0].mxu0
  %v1890 = vadd.f32 0.0, %v1889
  %v1891 = vpop.f32.mrb[0].mxu0
  %1892 = vmatprep.mubr.bf16.mxu0 0
  %1893 = vmatmul.mubr.bf16.gmra.mrb[0].mxu0 %v1622
  %v1894 = vpop.f32.mrb[0].mxu0
  %v1895 = vadd.f32 0.0, %v1894
  %v1896 = vpop.f32.mrb[0].mxu0
  %v1897 = vpop.f32.mrb[0].mxu0
  %v1898 = vadd.f32 0.0, %v1897
  %v1899 = vpop.f32.mrb[0].mxu0
  %1900 = vmatprep.mubr.bf16.mxu0 0
  %1901 = vmatmul.mubr.bf16.gmra.mrb[0].mxu0 %v1625
  %v1902 = vpop.f32.mrb[0].mxu0
  %v1903 = vadd.f32 0.0, %v1902
  %v1904 = vpop.f32.mrb[0].mxu0
  %v1905 = vpop.f32.mrb[0].mxu0
  %v1906 = vadd.f32 0.0, %v1905
  %v1907 = vpop.f32.mrb[0].mxu0
  %1908 = vmatprep.mubr.bf16.mxu0 0
  %1909 = vmatmul.mubr.bf16.gmra.mrb[0].mxu0 %v1628
  %v1910 = vpop.f32.mrb[0].mxu0
  %v1911 = vadd.f32 0.0, %v1910
  %v1912 = vpop.f32.mrb[0].mxu0
  %v1913 = vpop.f32.mrb[0].mxu0
  %v1914 = vadd.f32 0.0, %v1913
  %v1915 = vpop.f32.mrb[0].mxu0
  %1916 = vmatprep.mubr.bf16.mxu0 0
  %1917 = vmatmul.mubr.bf16.gmra.mrb[0].mxu0 %v1631
  %v1918 = vpop.f32.mrb[0].mxu0
  %v1919 = vadd.f32 0.0, %v1918
  %v1920 = vpop.f32.mrb[0].mxu0
  %v1921 = vpop.f32.mrb[0].mxu0
  %v1922 = vadd.f32 0.0, %v1921
  %v1923 = vpop.f32.mrb[0].mxu0
  %1924 = vdwg.mxu0
  %v1933 = vunpack.c.l.b16 %v1526
  %v1934 = vunpack.c.h.b16 %v1526
  %v1935 = vunpack.c.l.b16 %v1527
  %v1936 = vunpack.c.l.b16 %v1528
  %v1937 = vunpack.c.h.b16 %v1528
  %v1938 = vunpack.c.l.b16 %v1529
  %v1939 = vunpack.c.l.b16 %v1530
  %v1940 = vunpack.c.h.b16 %v1530
  %v1941 = vunpack.c.l.b16 %v1531
  %v1942 = vunpack.c.l.b16 %v1532
  %v1943 = vunpack.c.h.b16 %v1532
  %v1944 = vunpack.c.l.b16 %v1533
  %v1945 = vpack.c.b16 %v1936, %v1933
  %v1946 = vpack.c.b16 %v1937, %v1934
  %v1947 = vpack.c.b16 %v1938, %v1935
  %v1948 = vpack.c.b16 %v1942, %v1939
  %v1949 = vpack.c.b16 %v1943, %v1940
  %v1950 = vpack.c.b16 %v1944, %v1941
  %v1955 = vsel %vm1596, %v1534, 0
  %v1958 = vsel %vm1596, %v1535, 0
  %v1961 = vsel %vm1596, %v1536, 0
  %v1964 = vsel %vm1596, %v1537, 0
  %v1967 = vsel %vm1596, %v1538, 0
  %v1970 = vsel %vm1596, %v1539, 0
  %v1973 = vsel %vm1596, %v1540, 0
  %v1976 = vsel %vm1596, %v1541, 0
  %v1979 = vsel %vm1596, %v1542, 0
  %v1982 = vsel %vm1596, %v1543, 0
  %v1985 = vsel %vm1596, %v1544, 0
  %v1988 = vsel %vm1596, %v1545, 0
  %v1991 = vsel %vm1633, %v1948, 0
  %v1994 = vsel %vm1633, %v1949, 0
  %v1997 = vsel %vm1633, %v1950, 0
  %1999 = vmatprep.subr.bf16.mxu0 %v1946
  %2000 = vmatpush1.bf16.msra.mxu0 %v1945
  %2001 = vmatprep.subr.bf16.mxu0 %v1994
  %2002 = vmatpush1.bf16.msra.mxu0 %v1991
  %2003 = vmatprep.subr.bf16.mxu0 0
  %2004 = vmatpush1.bf16.msra.mxu0 0
  %2005 = vmatprep.subr.bf16.mxu0 0
  %2006 = vmatpush1.bf16.msra.mxu0 0
  %2007 = vmatprep.subr.bf16.mxu0 0
  %2008 = vmatpush1.bf16.msra.mxu0 0
  %2009 = vmatprep.subr.bf16.mxu0 0
  %2010 = vmatpush1.bf16.msra.mxu0 0
  %2011 = vmatprep.subr.bf16.mxu0 0
  %2012 = vmatpush1.bf16.msra.mxu0 0
  %2013 = vmatprep.subr.bf16.mxu0 0
  %2014 = vmatpush1.bf16.msra.mxu0 0
  %2015 = vmatprep.subr.bf16.mxu0 0
  %2016 = vmatpush1.bf16.msra.mxu0 0
  %2017 = vmatprep.subr.bf16.mxu0 0
  %2018 = vmatpush1.bf16.msra.mxu0 0
  %2019 = vmatprep.subr.bf16.mxu0 0
  %2020 = vmatpush1.bf16.msra.mxu0 0
  %2021 = vmatprep.subr.bf16.mxu0 0
  %2022 = vmatpush1.bf16.msra.mxu0 0
  %2023 = vmatprep.subr.bf16.mxu0 0
  %2024 = vmatpush1.bf16.msra.mxu0 0
  %2025 = vmatprep.subr.bf16.mxu0 0
  %2026 = vmatpush1.bf16.msra.mxu0 0
  %2027 = vmatprep.subr.bf16.mxu0 0
  %2028 = vmatpush1.bf16.msra.mxu0 0
  %2029 = vmatprep.subr.bf16.mxu0 0
  %2030 = vmatpush1.bf16.msra.mxu0 0
  %2031 = vmatprep.mubr.bf16.mxu0 0
  %2032 = vmatmul.mubr.bf16.gmra.mrb[0].mxu0 %v1955
  %v2033 = vpop.f32.mrb[0].mxu0
  %v2034 = vadd.f32 %v1678, %v2033
  %v2035 = vpop.f32.mrb[0].mxu0
  %v2036 = vadd.f32 %v1680, %v2035
  %v2037 = vpop.f32.mrb[0].mxu0
  %v2038 = vadd.f32 %v1682, %v2037
  %v2039 = vpop.f32.mrb[0].mxu0
  %v2040 = vadd.f32 %v1684, %v2039
  %2041 = vmatprep.mubr.bf16.mxu0 0
  %2042 = vmatmul.mubr.bf16.gmra.mrb[0].mxu0 %v1958
  %v2043 = vpop.f32.mrb[0].mxu0
  %v2044 = vadd.f32 %v1688, %v2043
  %v2045 = vpop.f32.mrb[0].mxu0
  %v2046 = vadd.f32 %v1690, %v2045
  %v2047 = vpop.f32.mrb[0].mxu0
  %v2048 = vadd.f32 %v1692, %v2047
  %v2049 = vpop.f32.mrb[0].mxu0
  %v2050 = vadd.f32 %v1694, %v2049
  %2051 = vmatprep.mubr.bf16.mxu0 0
  %2052 = vmatmul.mubr.bf16.gmra.mrb[0].mxu0 %v1961
  %v2053 = vpop.f32.mrb[0].mxu0
  %v2054 = vadd.f32 %v1698, %v2053
  %v2055 = vpop.f32.mrb[0].mxu0
  %v2056 = vadd.f32 %v1700, %v2055
  %v2057 = vpop.f32.mrb[0].mxu0
  %v2058 = vadd.f32 %v1702, %v2057
  %v2059 = vpop.f32.mrb[0].mxu0
  %v2060 = vadd.f32 %v1704, %v2059
  %2061 = vmatprep.mubr.bf16.mxu0 0
  %2062 = vmatmul.mubr.bf16.gmra.mrb[0].mxu0 %v1964
  %v2063 = vpop.f32.mrb[0].mxu0
  %v2064 = vadd.f32 %v1708, %v2063
  %v2065 = vpop.f32.mrb[0].mxu0
  %v2066 = vadd.f32 %v1710, %v2065
  %v2067 = vpop.f32.mrb[0].mxu0
  %v2068 = vadd.f32 %v1712, %v2067
  %v2069 = vpop.f32.mrb[0].mxu0
  %v2070 = vadd.f32 %v1714, %v2069
  %2071 = vmatprep.mubr.bf16.mxu0 0
  %2072 = vmatmul.mubr.bf16.gmra.mrb[0].mxu0 %v1967
  %v2073 = vpop.f32.mrb[0].mxu0
  %v2074 = vadd.f32 %v1718, %v2073
  %v2075 = vpop.f32.mrb[0].mxu0
  %v2076 = vadd.f32 %v1720, %v2075
  %v2077 = vpop.f32.mrb[0].mxu0
  %v2078 = vadd.f32 %v1722, %v2077
  %v2079 = vpop.f32.mrb[0].mxu0
  %v2080 = vadd.f32 %v1724, %v2079
  %2081 = vmatprep.mubr.bf16.mxu0 0
  %2082 = vmatmul.mubr.bf16.gmra.mrb[0].mxu0 %v1970
  %v2083 = vpop.f32.mrb[0].mxu0
  %v2084 = vadd.f32 %v1728, %v2083
  %v2085 = vpop.f32.mrb[0].mxu0
  %v2086 = vadd.f32 %v1730, %v2085
  %v2087 = vpop.f32.mrb[0].mxu0
  %v2088 = vadd.f32 %v1732, %v2087
  %v2089 = vpop.f32.mrb[0].mxu0
  %v2090 = vadd.f32 %v1734, %v2089
  %2091 = vmatprep.mubr.bf16.mxu0 0
  %2092 = vmatmul.mubr.bf16.gmra.mrb[0].mxu0 %v1973
  %v2093 = vpop.f32.mrb[0].mxu0
  %v2094 = vadd.f32 %v1738, %v2093
  %v2095 = vpop.f32.mrb[0].mxu0
  %v2096 = vadd.f32 %v1740, %v2095
  %v2097 = vpop.f32.mrb[0].mxu0
  %v2098 = vadd.f32 %v1742, %v2097
  %v2099 = vpop.f32.mrb[0].mxu0
  %v2100 = vadd.f32 %v1744, %v2099
  %2101 = vmatprep.mubr.bf16.mxu0 0
  %2102 = vmatmul.mubr.bf16.gmra.mrb[0].mxu0 %v1976
  %v2103 = vpop.f32.mrb[0].mxu0
  %v2104 = vadd.f32 %v1748, %v2103
  %v2105 = vpop.f32.mrb[0].mxu0
  %v2106 = vadd.f32 %v1750, %v2105
  %v2107 = vpop.f32.mrb[0].mxu0
  %v2108 = vadd.f32 %v1752, %v2107
  %v2109 = vpop.f32.mrb[0].mxu0
  %v2110 = vadd.f32 %v1754, %v2109
  %2111 = vmatprep.mubr.bf16.mxu0 0
  %2112 = vmatmul.mubr.bf16.gmra.mrb[0].mxu0 %v1979
  %v2113 = vpop.f32.mrb[0].mxu0
  %v2114 = vadd.f32 %v1758, %v2113
  %v2115 = vpop.f32.mrb[0].mxu0
  %v2116 = vadd.f32 %v1760, %v2115
  %v2117 = vpop.f32.mrb[0].mxu0
  %v2118 = vadd.f32 %v1762, %v2117
  %v2119 = vpop.f32.mrb[0].mxu0
  %v2120 = vadd.f32 %v1764, %v2119
  %2121 = vmatprep.mubr.bf16.mxu0 0
  %2122 = vmatmul.mubr.bf16.gmra.mrb[0].mxu0 %v1982
  %v2123 = vpop.f32.mrb[0].mxu0
  %v2124 = vadd.f32 %v1768, %v2123
  %v2125 = vpop.f32.mrb[0].mxu0
  %v2126 = vadd.f32 %v1770, %v2125
  %v2127 = vpop.f32.mrb[0].mxu0
  %v2128 = vadd.f32 %v1772, %v2127
  %v2129 = vpop.f32.mrb[0].mxu0
  %v2130 = vadd.f32 %v1774, %v2129
  %2131 = vmatprep.mubr.bf16.mxu0 0
  %2132 = vmatmul.mubr.bf16.gmra.mrb[0].mxu0 %v1985
  %v2133 = vpop.f32.mrb[0].mxu0
  %v2134 = vadd.f32 %v1778, %v2133
  %v2135 = vpop.f32.mrb[0].mxu0
  %v2136 = vadd.f32 %v1780, %v2135
  %v2137 = vpop.f32.mrb[0].mxu0
  %v2138 = vadd.f32 %v1782, %v2137
  %v2139 = vpop.f32.mrb[0].mxu0
  %v2140 = vadd.f32 %v1784, %v2139
  %2141 = vmatprep.mubr.bf16.mxu0 0
  %2142 = vmatmul.mubr.bf16.gmra.mrb[0].mxu0 %v1988
  %v2143 = vpop.f32.mrb[0].mxu0
  %v2144 = vadd.f32 %v1788, %v2143
  %v2145 = vpop.f32.mrb[0].mxu0
  %v2146 = vadd.f32 %v1790, %v2145
  %v2147 = vpop.f32.mrb[0].mxu0
  %v2148 = vadd.f32 %v1792, %v2147
  %v2149 = vpop.f32.mrb[0].mxu0
  %v2150 = vadd.f32 %v1794, %v2149
  %2151 = vdwg.mxu0
  %2152 = vmatprep.subr.bf16.mxu0 0
  %2153 = vmatpush1.bf16.msra.mxu0 %v1947
  %2154 = vmatprep.subr.bf16.mxu0 0
  %2155 = vmatpush1.bf16.msra.mxu0 %v1997
  %2156 = vmatprep.subr.bf16.mxu0 0
  %2157 = vmatpush1.bf16.msra.mxu0 0
  %2158 = vmatprep.subr.bf16.mxu0 0
  %2159 = vmatpush1.bf16.msra.mxu0 0
  %2160 = vmatprep.subr.bf16.mxu0 0
  %2161 = vmatpush1.bf16.msra.mxu0 0
  %2162 = vmatprep.subr.bf16.mxu0 0
  %2163 = vmatpush1.bf16.msra.mxu0 0
  %2164 = vmatprep.subr.bf16.mxu0 0
  %2165 = vmatpush1.bf16.msra.mxu0 0
  %2166 = vmatprep.subr.bf16.mxu0 0
  %2167 = vmatpush1.bf16.msra.mxu0 0
  %2168 = vmatprep.subr.bf16.mxu0 0
  %2169 = vmatpush1.bf16.msra.mxu0 0
  %2170 = vmatprep.subr.bf16.mxu0 0
  %2171 = vmatpush1.bf16.msra.mxu0 0
  %2172 = vmatprep.subr.bf16.mxu0 0
  %2173 = vmatpush1.bf16.msra.mxu0 0
  %2174 = vmatprep.subr.bf16.mxu0 0
  %2175 = vmatpush1.bf16.msra.mxu0 0
  %2176 = vmatprep.subr.bf16.mxu0 0
  %2177 = vmatpush1.bf16.msra.mxu0 0
  %2178 = vmatprep.subr.bf16.mxu0 0
  %2179 = vmatpush1.bf16.msra.mxu0 0
  %2180 = vmatprep.subr.bf16.mxu0 0
  %2181 = vmatpush1.bf16.msra.mxu0 0
  %2182 = vmatprep.subr.bf16.mxu0 0
  %2183 = vmatpush1.bf16.msra.mxu0 0
  %2184 = vmatprep.mubr.bf16.mxu0 0
  %2185 = vmatmul.mubr.bf16.gmra.mrb[0].mxu0 %v1955
  %v2186 = vpop.f32.mrb[0].mxu0
  %v2187 = vadd.f32 %v1831, %v2186
  %v2188 = vpop.f32.mrb[0].mxu0
  %v2189 = vpop.f32.mrb[0].mxu0
  %v2190 = vadd.f32 %v1834, %v2189
  %v2191 = vpop.f32.mrb[0].mxu0
  %2192 = vmatprep.mubr.bf16.mxu0 0
  %2193 = vmatmul.mubr.bf16.gmra.mrb[0].mxu0 %v1958
  %v2194 = vpop.f32.mrb[0].mxu0
  %v2195 = vadd.f32 %v1839, %v2194
  %v2196 = vpop.f32.mrb[0].mxu0
  %v2197 = vpop.f32.mrb[0].mxu0
  %v2198 = vadd.f32 %v1842, %v2197
  %v2199 = vpop.f32.mrb[0].mxu0
  %2200 = vmatprep.mubr.bf16.mxu0 0
  %2201 = vmatmul.mubr.bf16.gmra.mrb[0].mxu0 %v1961
  %v2202 = vpop.f32.mrb[0].mxu0
  %v2203 = vadd.f32 %v1847, %v2202
  %v2204 = vpop.f32.mrb[0].mxu0
  %v2205 = vpop.f32.mrb[0].mxu0
  %v2206 = vadd.f32 %v1850, %v2205
  %v2207 = vpop.f32.mrb[0].mxu0
  %2208 = vmatprep.mubr.bf16.mxu0 0
  %2209 = vmatmul.mubr.bf16.gmra.mrb[0].mxu0 %v1964
  %v2210 = vpop.f32.mrb[0].mxu0
  %v2211 = vadd.f32 %v1855, %v2210
  %v2212 = vpop.f32.mrb[0].mxu0
  %v2213 = vpop.f32.mrb[0].mxu0
  %v2214 = vadd.f32 %v1858, %v2213
  %v2215 = vpop.f32.mrb[0].mxu0
  %2216 = vmatprep.mubr.bf16.mxu0 0
  %2217 = vmatmul.mubr.bf16.gmra.mrb[0].mxu0 %v1967
  %v2218 = vpop.f32.mrb[0].mxu0
  %v2219 = vadd.f32 %v1863, %v2218
  %v2220 = vpop.f32.mrb[0].mxu0
  %v2221 = vpop.f32.mrb[0].mxu0
  %v2222 = vadd.f32 %v1866, %v2221
  %v2223 = vpop.f32.mrb[0].mxu0
  %2224 = vmatprep.mubr.bf16.mxu0 0
  %2225 = vmatmul.mubr.bf16.gmra.mrb[0].mxu0 %v1970
  %v2226 = vpop.f32.mrb[0].mxu0
  %v2227 = vadd.f32 %v1871, %v2226
  %v2228 = vpop.f32.mrb[0].mxu0
  %v2229 = vpop.f32.mrb[0].mxu0
  %v2230 = vadd.f32 %v1874, %v2229
  %v2231 = vpop.f32.mrb[0].mxu0
  %2232 = vmatprep.mubr.bf16.mxu0 0
  %2233 = vmatmul.mubr.bf16.gmra.mrb[0].mxu0 %v1973
  %v2234 = vpop.f32.mrb[0].mxu0
  %v2235 = vadd.f32 %v1879, %v2234
  %v2236 = vpop.f32.mrb[0].mxu0
  %v2237 = vpop.f32.mrb[0].mxu0
  %v2238 = vadd.f32 %v1882, %v2237
  %v2239 = vpop.f32.mrb[0].mxu0
  %2240 = vmatprep.mubr.bf16.mxu0 0
  %2241 = vmatmul.mubr.bf16.gmra.mrb[0].mxu0 %v1976
  %v2242 = vpop.f32.mrb[0].mxu0
  %v2243 = vadd.f32 %v1887, %v2242
  %v2244 = vpop.f32.mrb[0].mxu0
  %v2245 = vpop.f32.mrb[0].mxu0
  %v2246 = vadd.f32 %v1890, %v2245
  %v2247 = vpop.f32.mrb[0].mxu0
  %2248 = vmatprep.mubr.bf16.mxu0 0
  %2249 = vmatmul.mubr.bf16.gmra.mrb[0].mxu0 %v1979
  %v2250 = vpop.f32.mrb[0].mxu0
  %v2251 = vadd.f32 %v1895, %v2250
  %v2252 = vpop.f32.mrb[0].mxu0
  %v2253 = vpop.f32.mrb[0].mxu0
  %v2254 = vadd.f32 %v1898, %v2253
  %v2255 = vpop.f32.mrb[0].mxu0
  %2256 = vmatprep.mubr.bf16.mxu0 0
  %2257 = vmatmul.mubr.bf16.gmra.mrb[0].mxu0 %v1982
  %v2258 = vpop.f32.mrb[0].mxu0
  %v2259 = vadd.f32 %v1903, %v2258
  %v2260 = vpop.f32.mrb[0].mxu0
  %v2261 = vpop.f32.mrb[0].mxu0
  %v2262 = vadd.f32 %v1906, %v2261
  %v2263 = vpop.f32.mrb[0].mxu0
  %2264 = vmatprep.mubr.bf16.mxu0 0
  %2265 = vmatmul.mubr.bf16.gmra.mrb[0].mxu0 %v1985
  %v2266 = vpop.f32.mrb[0].mxu0
  %v2267 = vadd.f32 %v1911, %v2266
  %v2268 = vpop.f32.mrb[0].mxu0
  %v2269 = vpop.f32.mrb[0].mxu0
  %v2270 = vadd.f32 %v1914, %v2269
  %v2271 = vpop.f32.mrb[0].mxu0
  %2272 = vmatprep.mubr.bf16.mxu0 0
  %2273 = vmatmul.mubr.bf16.gmra.mrb[0].mxu0 %v1988
  %v2274 = vpop.f32.mrb[0].mxu0
  %v2275 = vadd.f32 %v1919, %v2274
  %v2276 = vpop.f32.mrb[0].mxu0
  %v2277 = vpop.f32.mrb[0].mxu0
  %v2278 = vadd.f32 %v1922, %v2277
  %v2279 = vpop.f32.mrb[0].mxu0
  %2280 = vdwg.mxu0
  %s2281 = scalar_lea.vmem %s2, 96
  %v2282 = vld [vmem:[%s2281] sm:$0xff]
  %v2283 = vld [vmem:[%s2281 + $0x8] sm:$0xf]
  %v2284 = vld [vmem:[%s2281 + $0xc] sm:$0xff]
  %v2285 = vld [vmem:[%s2281 + $0x14] sm:$0xf]
  %v2286 = vld [vmem:[%s2281 + $0x18] sm:$0xff]
  %v2287 = vld [vmem:[%s2281 + $0x20] sm:$0xf]
  %v2288 = vld [vmem:[%s2281 + $0x24] sm:$0x33]
  %v2289 = vld [vmem:[%s2281 + $0x2c] sm:$0x3]
  %v2290 = vpack.c.bf16 %v1243, %v1240
  %v2291 = vpack.c.bf16 %v1251, %v1248
  %v2292 = vpack.c.bf16 %v1259, %v1256
  %v2293 = vpack.c.bf16 %v1267, %v1264
  %v2294 = vpack.c.bf16 %v1275, %v1272
  %v2295 = vpack.c.bf16 %v1283, %v1280
  %v2296 = vpack.c.bf16 %v1291, %v1288
  %v2297 = vpack.c.bf16 %v1299, %v1296
  %v2298 = vpack.c.bf16 %v1307, %v1304
  %v2299 = vpack.c.bf16 %v1315, %v1312
  %v2300 = vpack.c.bf16 %v1323, %v1320
  %v2301 = vpack.c.bf16 %v1331, %v1328
  %v2310 = vunpack.c.l.b16 %v2282
  %v2311 = vunpack.c.h.b16 %v2282
  %v2312 = vunpack.c.l.b16 %v2283
  %v2313 = vunpack.c.l.b16 %v2284
  %v2314 = vunpack.c.h.b16 %v2284
  %v2315 = vunpack.c.l.b16 %v2285
  %v2316 = vunpack.c.l.b16 %v2286
  %v2317 = vunpack.c.h.b16 %v2286
  %v2318 = vunpack.c.l.b16 %v2287
  %v2319 = vunpack.c.l.b16 %v2288
  %v2320 = vunpack.c.h.b16 %v2288
  %v2321 = vunpack.c.l.b16 %v2289
  %v2322 = vpack.c.b16 %v2313, %v2310
  %v2323 = vpack.c.b16 %v2314, %v2311
  %v2324 = vpack.c.b16 %v2315, %v2312
  %v2325 = vpack.c.b16 %v2319, %v2316
  %v2326 = vpack.c.b16 %v2320, %v2317
  %v2327 = vpack.c.b16 %v2321, %v2318
  %v2332 = vsel %vm1596, %v2290, 0
  %v2335 = vsel %vm1596, %v2291, 0
  %v2338 = vsel %vm1596, %v2292, 0
  %v2341 = vsel %vm1596, %v2293, 0
  %v2344 = vsel %vm1596, %v2294, 0
  %v2347 = vsel %vm1596, %v2295, 0
  %v2350 = vsel %vm1596, %v2296, 0
  %v2353 = vsel %vm1596, %v2297, 0
  %v2356 = vsel %vm1596, %v2298, 0
  %v2359 = vsel %vm1596, %v2299, 0
  %v2362 = vsel %vm1596, %v2300, 0
  %v2365 = vsel %vm1596, %v2301, 0
  %v2368 = vsel %vm1633, %v2325, 0
  %v2371 = vsel %vm1633, %v2326, 0
  %v2374 = vsel %vm1633, %v2327, 0
  %2376 = vmatprep.subr.bf16.mxu0 %v2323
  %2377 = vmatpush1.bf16.msra.mxu0 %v2322
  %2378 = vmatprep.subr.bf16.mxu0 %v2371
  %2379 = vmatpush1.bf16.msra.mxu0 %v2368
  %2380 = vmatprep.subr.bf16.mxu0 0
  %2381 = vmatpush1.bf16.msra.mxu0 0
  %2382 = vmatprep.subr.bf16.mxu0 0
  %2383 = vmatpush1.bf16.msra.mxu0 0
  %2384 = vmatprep.subr.bf16.mxu0 0
  %2385 = vmatpush1.bf16.msra.mxu0 0
  %2386 = vmatprep.subr.bf16.mxu0 0
  %2387 = vmatpush1.bf16.msra.mxu0 0
  %2388 = vmatprep.subr.bf16.mxu0 0
  %2389 = vmatpush1.bf16.msra.mxu0 0
  %2390 = vmatprep.subr.bf16.mxu0 0
  %2391 = vmatpush1.bf16.msra.mxu0 0
  %2392 = vmatprep.subr.bf16.mxu0 0
  %2393 = vmatpush1.bf16.msra.mxu0 0
  %2394 = vmatprep.subr.bf16.mxu0 0
  %2395 = vmatpush1.bf16.msra.mxu0 0
  %2396 = vmatprep.subr.bf16.mxu0 0
  %2397 = vmatpush1.bf16.msra.mxu0 0
  %2398 = vmatprep.subr.bf16.mxu0 0
  %2399 = vmatpush1.bf16.msra.mxu0 0
  %2400 = vmatprep.subr.bf16.mxu0 0
  %2401 = vmatpush1.bf16.msra.mxu0 0
  %2402 = vmatprep.subr.bf16.mxu0 0
  %2403 = vmatpush1.bf16.msra.mxu0 0
  %2404 = vmatprep.subr.bf16.mxu0 0
  %2405 = vmatpush1.bf16.msra.mxu0 0
  %2406 = vmatprep.subr.bf16.mxu0 0
  %2407 = vmatpush1.bf16.msra.mxu0 0
  %2408 = vmatprep.mubr.bf16.mxu0 0
  %2409 = vmatmul.mubr.bf16.gmra.mrb[0].mxu0 %v2332
  %v2410 = vpop.f32.mrb[0].mxu0
  %v2411 = vadd.f32 0.0, %v2410
  %v2412 = vpop.f32.mrb[0].mxu0
  %v2413 = vadd.f32 0.0, %v2412
  %v2414 = vpop.f32.mrb[0].mxu0
  %v2415 = vadd.f32 0.0, %v2414
  %v2416 = vpop.f32.mrb[0].mxu0
  %v2417 = vadd.f32 0.0, %v2416
  %2418 = vmatprep.mubr.bf16.mxu0 0
  %2419 = vmatmul.mubr.bf16.gmra.mrb[0].mxu0 %v2335
  %v2420 = vpop.f32.mrb[0].mxu0
  %v2421 = vadd.f32 0.0, %v2420
  %v2422 = vpop.f32.mrb[0].mxu0
  %v2423 = vadd.f32 0.0, %v2422
  %v2424 = vpop.f32.mrb[0].mxu0
  %v2425 = vadd.f32 0.0, %v2424
  %v2426 = vpop.f32.mrb[0].mxu0
  %v2427 = vadd.f32 0.0, %v2426
  %2428 = vmatprep.mubr.bf16.mxu0 0
  %2429 = vmatmul.mubr.bf16.gmra.mrb[0].mxu0 %v2338
  %v2430 = vpop.f32.mrb[0].mxu0
  %v2431 = vadd.f32 0.0, %v2430
  %v2432 = vpop.f32.mrb[0].mxu0
  %v2433 = vadd.f32 0.0, %v2432
  %v2434 = vpop.f32.mrb[0].mxu0
  %v2435 = vadd.f32 0.0, %v2434
  %v2436 = vpop.f32.mrb[0].mxu0
  %v2437 = vadd.f32 0.0, %v2436
  %2438 = vmatprep.mubr.bf16.mxu0 0
  %2439 = vmatmul.mubr.bf16.gmra.mrb[0].mxu0 %v2341
  %v2440 = vpop.f32.mrb[0].mxu0
  %v2441 = vadd.f32 0.0, %v2440
  %v2442 = vpop.f32.mrb[0].mxu0
  %v2443 = vadd.f32 0.0, %v2442
  %v2444 = vpop.f32.mrb[0].mxu0
  %v2445 = vadd.f32 0.0, %v2444
  %v2446 = vpop.f32.mrb[0].mxu0
  %v2447 = vadd.f32 0.0, %v2446
  %2448 = vmatprep.mubr.bf16.mxu0 0
  %2449 = vmatmul.mubr.bf16.gmra.mrb[0].mxu0 %v2344
  %v2450 = vpop.f32.mrb[0].mxu0
  %v2451 = vadd.f32 0.0, %v2450
  %v2452 = vpop.f32.mrb[0].mxu0
  %v2453 = vadd.f32 0.0, %v2452
  %v2454 = vpop.f32.mrb[0].mxu0
  %v2455 = vadd.f32 0.0, %v2454
  %v2456 = vpop.f32.mrb[0].mxu0
  %v2457 = vadd.f32 0.0, %v2456
  %2458 = vmatprep.mubr.bf16.mxu0 0
  %2459 = vmatmul.mubr.bf16.gmra.mrb[0].mxu0 %v2347
  %v2460 = vpop.f32.mrb[0].mxu0
  %v2461 = vadd.f32 0.0, %v2460
  %v2462 = vpop.f32.mrb[0].mxu0
  %v2463 = vadd.f32 0.0, %v2462
  %v2464 = vpop.f32.mrb[0].mxu0
  %v2465 = vadd.f32 0.0, %v2464
  %v2466 = vpop.f32.mrb[0].mxu0
  %v2467 = vadd.f32 0.0, %v2466
  %2468 = vmatprep.mubr.bf16.mxu0 0
  %2469 = vmatmul.mubr.bf16.gmra.mrb[0].mxu0 %v2350
  %v2470 = vpop.f32.mrb[0].mxu0
  %v2471 = vadd.f32 0.0, %v2470
  %v2472 = vpop.f32.mrb[0].mxu0
  %v2473 = vadd.f32 0.0, %v2472
  %v2474 = vpop.f32.mrb[0].mxu0
  %v2475 = vadd.f32 0.0, %v2474
  %v2476 = vpop.f32.mrb[0].mxu0
  %v2477 = vadd.f32 0.0, %v2476
  %2478 = vmatprep.mubr.bf16.mxu0 0
  %2479 = vmatmul.mubr.bf16.gmra.mrb[0].mxu0 %v2353
  %v2480 = vpop.f32.mrb[0].mxu0
  %v2481 = vadd.f32 0.0, %v2480
  %v2482 = vpop.f32.mrb[0].mxu0
  %v2483 = vadd.f32 0.0, %v2482
  %v2484 = vpop.f32.mrb[0].mxu0
  %v2485 = vadd.f32 0.0, %v2484
  %v2486 = vpop.f32.mrb[0].mxu0
  %v2487 = vadd.f32 0.0, %v2486
  %2488 = vmatprep.mubr.bf16.mxu0 0
  %2489 = vmatmul.mubr.bf16.gmra.mrb[0].mxu0 %v2356
  %v2490 = vpop.f32.mrb[0].mxu0
  %v2491 = vadd.f32 0.0, %v2490
  %v2492 = vpop.f32.mrb[0].mxu0
  %v2493 = vadd.f32 0.0, %v2492
  %v2494 = vpop.f32.mrb[0].mxu0
  %v2495 = vadd.f32 0.0, %v2494
  %v2496 = vpop.f32.mrb[0].mxu0
  %v2497 = vadd.f32 0.0, %v2496
  %2498 = vmatprep.mubr.bf16.mxu0 0
  %2499 = vmatmul.mubr.bf16.gmra.mrb[0].mxu0 %v2359
  %v2500 = vpop.f32.mrb[0].mxu0
  %v2501 = vadd.f32 0.0, %v2500
  %v2502 = vpop.f32.mrb[0].mxu0
  %v2503 = vadd.f32 0.0, %v2502
  %v2504 = vpop.f32.mrb[0].mxu0
  %v2505 = vadd.f32 0.0, %v2504
  %v2506 = vpop.f32.mrb[0].mxu0
  %v2507 = vadd.f32 0.0, %v2506
  %2508 = vmatprep.mubr.bf16.mxu0 0
  %2509 = vmatmul.mubr.bf16.gmra.mrb[0].mxu0 %v2362
  %v2510 = vpop.f32.mrb[0].mxu0
  %v2511 = vadd.f32 0.0, %v2510
  %v2512 = vpop.f32.mrb[0].mxu0
  %v2513 = vadd.f32 0.0, %v2512
  %v2514 = vpop.f32.mrb[0].mxu0
  %v2515 = vadd.f32 0.0, %v2514
  %v2516 = vpop.f32.mrb[0].mxu0
  %v2517 = vadd.f32 0.0, %v2516
  %2518 = vmatprep.mubr.bf16.mxu0 0
  %2519 = vmatmul.mubr.bf16.gmra.mrb[0].mxu0 %v2365
  %v2520 = vpop.f32.mrb[0].mxu0
  %v2521 = vadd.f32 0.0, %v2520
  %v2522 = vpop.f32.mrb[0].mxu0
  %v2523 = vadd.f32 0.0, %v2522
  %v2524 = vpop.f32.mrb[0].mxu0
  %v2525 = vadd.f32 0.0, %v2524
  %v2526 = vpop.f32.mrb[0].mxu0
  %v2527 = vadd.f32 0.0, %v2526
  %2528 = vdwg.mxu0
  %2529 = vmatprep.subr.bf16.mxu0 0
  %2530 = vmatpush1.bf16.msra.mxu0 %v2324
  %2531 = vmatprep.subr.bf16.mxu0 0
  %2532 = vmatpush1.bf16.msra.mxu0 %v2374
  %2533 = vmatprep.subr.bf16.mxu0 0
  %2534 = vmatpush1.bf16.msra.mxu0 0
  %2535 = vmatprep.subr.bf16.mxu0 0
  %2536 = vmatpush1.bf16.msra.mxu0 0
  %2537 = vmatprep.subr.bf16.mxu0 0
  %2538 = vmatpush1.bf16.msra.mxu0 0
  %2539 = vmatprep.subr.bf16.mxu0 0
  %2540 = vmatpush1.bf16.msra.mxu0 0
  %2541 = vmatprep.subr.bf16.mxu0 0
  %2542 = vmatpush1.bf16.msra.mxu0 0
  %2543 = vmatprep.subr.bf16.mxu0 0
  %2544 = vmatpush1.bf16.msra.mxu0 0
  %2545 = vmatprep.subr.bf16.mxu0 0
  %2546 = vmatpush1.bf16.msra.mxu0 0
  %2547 = vmatprep.subr.bf16.mxu0 0
  %2548 = vmatpush1.bf16.msra.mxu0 0
  %2549 = vmatprep.subr.bf16.mxu0 0
  %2550 = vmatpush1.bf16.msra.mxu0 0
  %2551 = vmatprep.subr.bf16.mxu0 0
  %2552 = vmatpush1.bf16.msra.mxu0 0
  %2553 = vmatprep.subr.bf16.mxu0 0
  %2554 = vmatpush1.bf16.msra.mxu0 0
  %2555 = vmatprep.subr.bf16.mxu0 0
  %2556 = vmatpush1.bf16.msra.mxu0 0
  %2557 = vmatprep.subr.bf16.mxu0 0
  %2558 = vmatpush1.bf16.msra.mxu0 0
  %2559 = vmatprep.subr.bf16.mxu0 0
  %2560 = vmatpush1.bf16.msra.mxu0 0
  %2561 = vmatprep.mubr.bf16.mxu0 0
  %2562 = vmatmul.mubr.bf16.gmra.mrb[0].mxu0 %v2332
  %v2563 = vpop.f32.mrb[0].mxu0
  %v2564 = vadd.f32 0.0, %v2563
  %v2565 = vpop.f32.mrb[0].mxu0
  %v2566 = vpop.f32.mrb[0].mxu0
  %v2567 = vadd.f32 0.0, %v2566
  %v2568 = vpop.f32.mrb[0].mxu0
  %2569 = vmatprep.mubr.bf16.mxu0 0
  %2570 = vmatmul.mubr.bf16.gmra.mrb[0].mxu0 %v2335
  %v2571 = vpop.f32.mrb[0].mxu0
  %v2572 = vadd.f32 0.0, %v2571
  %v2573 = vpop.f32.mrb[0].mxu0
  %v2574 = vpop.f32.mrb[0].mxu0
  %v2575 = vadd.f32 0.0, %v2574
  %v2576 = vpop.f32.mrb[0].mxu0
  %2577 = vmatprep.mubr.bf16.mxu0 0
  %2578 = vmatmul.mubr.bf16.gmra.mrb[0].mxu0 %v2338
  %v2579 = vpop.f32.mrb[0].mxu0
  %v2580 = vadd.f32 0.0, %v2579
  %v2581 = vpop.f32.mrb[0].mxu0
  %v2582 = vpop.f32.mrb[0].mxu0
  %v2583 = vadd.f32 0.0, %v2582
  %v2584 = vpop.f32.mrb[0].mxu0
  %2585 = vmatprep.mubr.bf16.mxu0 0
  %2586 = vmatmul.mubr.bf16.gmra.mrb[0].mxu0 %v2341
  %v2587 = vpop.f32.mrb[0].mxu0
  %v2588 = vadd.f32 0.0, %v2587
  %v2589 = vpop.f32.mrb[0].mxu0
  %v2590 = vpop.f32.mrb[0].mxu0
  %v2591 = vadd.f32 0.0, %v2590
  %v2592 = vpop.f32.mrb[0].mxu0
  %2593 = vmatprep.mubr.bf16.mxu0 0
  %2594 = vmatmul.mubr.bf16.gmra.mrb[0].mxu0 %v2344
  %v2595 = vpop.f32.mrb[0].mxu0
  %v2596 = vadd.f32 0.0, %v2595
  %v2597 = vpop.f32.mrb[0].mxu0
  %v2598 = vpop.f32.mrb[0].mxu0
  %v2599 = vadd.f32 0.0, %v2598
  %v2600 = vpop.f32.mrb[0].mxu0
  %2601 = vmatprep.mubr.bf16.mxu0 0
  %2602 = vmatmul.mubr.bf16.gmra.mrb[0].mxu0 %v2347
  %v2603 = vpop.f32.mrb[0].mxu0
  %v2604 = vadd.f32 0.0, %v2603
  %v2605 = vpop.f32.mrb[0].mxu0
  %v2606 = vpop.f32.mrb[0].mxu0
  %v2607 = vadd.f32 0.0, %v2606
  %v2608 = vpop.f32.mrb[0].mxu0
  %2609 = vmatprep.mubr.bf16.mxu0 0
  %2610 = vmatmul.mubr.bf16.gmra.mrb[0].mxu0 %v2350
  %v2611 = vpop.f32.mrb[0].mxu0
  %v2612 = vadd.f32 0.0, %v2611
  %v2613 = vpop.f32.mrb[0].mxu0
  %v2614 = vpop.f32.mrb[0].mxu0
  %v2615 = vadd.f32 0.0, %v2614
  %v2616 = vpop.f32.mrb[0].mxu0
  %2617 = vmatprep.mubr.bf16.mxu0 0
  %2618 = vmatmul.mubr.bf16.gmra.mrb[0].mxu0 %v2353
  %v2619 = vpop.f32.mrb[0].mxu0
  %v2620 = vadd.f32 0.0, %v2619
  %v2621 = vpop.f32.mrb[0].mxu0
  %v2622 = vpop.f32.mrb[0].mxu0
  %v2623 = vadd.f32 0.0, %v2622
  %v2624 = vpop.f32.mrb[0].mxu0
  %2625 = vmatprep.mubr.bf16.mxu0 0
  %2626 = vmatmul.mubr.bf16.gmra.mrb[0].mxu0 %v2356
  %v2627 = vpop.f32.mrb[0].mxu0
  %v2628 = vadd.f32 0.0, %v2627
  %v2629 = vpop.f32.mrb[0].mxu0
  %v2630 = vpop.f32.mrb[0].mxu0
  %v2631 = vadd.f32 0.0, %v2630
  %v2632 = vpop.f32.mrb[0].mxu0
  %2633 = vmatprep.mubr.bf16.mxu0 0
  %2634 = vmatmul.mubr.bf16.gmra.mrb[0].mxu0 %v2359
  %v2635 = vpop.f32.mrb[0].mxu0
  %v2636 = vadd.f32 0.0, %v2635
  %v2637 = vpop.f32.mrb[0].mxu0
  %v2638 = vpop.f32.mrb[0].mxu0
  %v2639 = vadd.f32 0.0, %v2638
  %v2640 = vpop.f32.mrb[0].mxu0
  %2641 = vmatprep.mubr.bf16.mxu0 0
  %2642 = vmatmul.mubr.bf16.gmra.mrb[0].mxu0 %v2362
  %v2643 = vpop.f32.mrb[0].mxu0
  %v2644 = vadd.f32 0.0, %v2643
  %v2645 = vpop.f32.mrb[0].mxu0
  %v2646 = vpop.f32.mrb[0].mxu0
  %v2647 = vadd.f32 0.0, %v2646
  %v2648 = vpop.f32.mrb[0].mxu0
  %2649 = vmatprep.mubr.bf16.mxu0 0
  %2650 = vmatmul.mubr.bf16.gmra.mrb[0].mxu0 %v2365
  %v2651 = vpop.f32.mrb[0].mxu0
  %v2652 = vadd.f32 0.0, %v2651
  %v2653 = vpop.f32.mrb[0].mxu0
  %v2654 = vpop.f32.mrb[0].mxu0
  %v2655 = vadd.f32 0.0, %v2654
  %v2656 = vpop.f32.mrb[0].mxu0
  %2657 = vdwg.mxu0
  %v2658 = vadd.f32 %v2034, %v2411
  %v2659 = vadd.f32 %v2036, %v2413
  %v2660 = vadd.f32 %v2187, %v2564
  %v2661 = vadd.f32 %v2038, %v2415
  %v2662 = vadd.f32 %v2040, %v2417
  %v2663 = vadd.f32 %v2190, %v2567
  %v2664 = vadd.f32 %v2044, %v2421
  %v2665 = vadd.f32 %v2046, %v2423
  %v2666 = vadd.f32 %v2195, %v2572
  %v2667 = vadd.f32 %v2048, %v2425
  %v2668 = vadd.f32 %v2050, %v2427
  %v2669 = vadd.f32 %v2198, %v2575
  %v2670 = vadd.f32 %v2054, %v2431
  %v2671 = vadd.f32 %v2056, %v2433
  %v2672 = vadd.f32 %v2203, %v2580
  %v2673 = vadd.f32 %v2058, %v2435
  %v2674 = vadd.f32 %v2060, %v2437
  %v2675 = vadd.f32 %v2206, %v2583
  %v2676 = vadd.f32 %v2064, %v2441
  %v2677 = vadd.f32 %v2066, %v2443
  %v2678 = vadd.f32 %v2211, %v2588
  %v2679 = vadd.f32 %v2068, %v2445
  %v2680 = vadd.f32 %v2070, %v2447
  %v2681 = vadd.f32 %v2214, %v2591
  %v2682 = vadd.f32 %v2074, %v2451
  %v2683 = vadd.f32 %v2076, %v2453
  %v2684 = vadd.f32 %v2219, %v2596
  %v2685 = vadd.f32 %v2078, %v2455
  %v2686 = vadd.f32 %v2080, %v2457
  %v2687 = vadd.f32 %v2222, %v2599
  %v2688 = vadd.f32 %v2084, %v2461
  %v2689 = vadd.f32 %v2086, %v2463
  %v2690 = vadd.f32 %v2227, %v2604
  %v2691 = vadd.f32 %v2088, %v2465
  %v2692 = vadd.f32 %v2090, %v2467
  %v2693 = vadd.f32 %v2230, %v2607
  %v2694 = vadd.f32 %v2094, %v2471
  %v2695 = vadd.f32 %v2096, %v2473
  %v2696 = vadd.f32 %v2235, %v2612
  %v2697 = vadd.f32 %v2098, %v2475
  %v2698 = vadd.f32 %v2100, %v2477
  %v2699 = vadd.f32 %v2238, %v2615
  %v2700 = vadd.f32 %v2104, %v2481
  %v2701 = vadd.f32 %v2106, %v2483
  %v2702 = vadd.f32 %v2243, %v2620
  %v2703 = vadd.f32 %v2108, %v2485
  %v2704 = vadd.f32 %v2110, %v2487
  %v2705 = vadd.f32 %v2246, %v2623
  %v2706 = vadd.f32 %v2114, %v2491
  %v2707 = vadd.f32 %v2116, %v2493
  %v2708 = vadd.f32 %v2251, %v2628
  %v2709 = vadd.f32 %v2118, %v2495
  %v2710 = vadd.f32 %v2120, %v2497
  %v2711 = vadd.f32 %v2254, %v2631
  %v2712 = vadd.f32 %v2124, %v2501
  %v2713 = vadd.f32 %v2126, %v2503
  %v2714 = vadd.f32 %v2259, %v2636
  %v2715 = vadd.f32 %v2128, %v2505
  %v2716 = vadd.f32 %v2130, %v2507
  %v2717 = vadd.f32 %v2262, %v2639
  %v2718 = vadd.f32 %v2134, %v2511
  %v2719 = vadd.f32 %v2136, %v2513
  %v2720 = vadd.f32 %v2267, %v2644
  %v2721 = vadd.f32 %v2138, %v2515
  %v2722 = vadd.f32 %v2140, %v2517
  %v2723 = vadd.f32 %v2270, %v2647
  %v2724 = vadd.f32 %v2144, %v2521
  %v2725 = vadd.f32 %v2146, %v2523
  %v2726 = vadd.f32 %v2275, %v2652
  %v2727 = vadd.f32 %v2148, %v2525
  %v2728 = vadd.f32 %v2150, %v2527
  %v2729 = vadd.f32 %v2278, %v2655
  %s2730 = scalar_lea.vmem %s2, 144
  %v2731 = vld [vmem:[%s2730] sm:$0xff]
  %v2732 = vld [vmem:[%s2730 + $0x8] sm:$0xf]
  %v2733 = vld [vmem:[%s2730 + $0xc] sm:$0xff]
  %v2734 = vld [vmem:[%s2730 + $0x14] sm:$0xf]
  %v2735 = vld [vmem:[%s2730 + $0x18] sm:$0xff]
  %v2736 = vld [vmem:[%s2730 + $0x20] sm:$0xf]
  %v2737 = vld [vmem:[%s2730 + $0x24] sm:$0x33]
  %v2738 = vld [vmem:[%s2730 + $0x2c] sm:$0x3]
  %v2739 = vpack.c.bf16 %v1339, %v1336
  %v2740 = vpack.c.bf16 %v1347, %v1344
  %v2741 = vpack.c.bf16 %v1355, %v1352
  %v2742 = vpack.c.bf16 %v1363, %v1360
  %v2743 = vpack.c.bf16 %v1371, %v1368
  %v2744 = vpack.c.bf16 %v1379, %v1376
  %v2745 = vpack.c.bf16 %v1387, %v1384
  %v2746 = vpack.c.bf16 %v1395, %v1392
  %v2747 = vpack.c.bf16 %v1403, %v1400
  %v2748 = vpack.c.bf16 %v1411, %v1408
  %v2749 = vpack.c.bf16 %v1419, %v1416
  %v2750 = vpack.c.bf16 %v1427, %v1424
  %v2759 = vunpack.c.l.b16 %v2731
  %v2760 = vunpack.c.h.b16 %v2731
  %v2761 = vunpack.c.l.b16 %v2732
  %v2762 = vunpack.c.l.b16 %v2733
  %v2763 = vunpack.c.h.b16 %v2733
  %v2764 = vunpack.c.l.b16 %v2734
  %v2765 = vunpack.c.l.b16 %v2735
  %v2766 = vunpack.c.h.b16 %v2735
  %v2767 = vunpack.c.l.b16 %v2736
  %v2768 = vunpack.c.l.b16 %v2737
  %v2769 = vunpack.c.h.b16 %v2737
  %v2770 = vunpack.c.l.b16 %v2738
  %v2771 = vpack.c.b16 %v2762, %v2759
  %v2772 = vpack.c.b16 %v2763, %v2760
  %v2773 = vpack.c.b16 %v2764, %v2761
  %v2774 = vpack.c.b16 %v2768, %v2765
  %v2775 = vpack.c.b16 %v2769, %v2766
  %v2776 = vpack.c.b16 %v2770, %v2767
  %v2781 = vsel %vm1596, %v2739, 0
  %v2784 = vsel %vm1596, %v2740, 0
  %v2787 = vsel %vm1596, %v2741, 0
  %v2790 = vsel %vm1596, %v2742, 0
  %v2793 = vsel %vm1596, %v2743, 0
  %v2796 = vsel %vm1596, %v2744, 0
  %v2799 = vsel %vm1596, %v2745, 0
  %v2802 = vsel %vm1596, %v2746, 0
  %v2805 = vsel %vm1596, %v2747, 0
  %v2808 = vsel %vm1596, %v2748, 0
  %v2811 = vsel %vm1596, %v2749, 0
  %v2814 = vsel %vm1596, %v2750, 0
  %v2817 = vsel %vm1633, %v2774, 0
  %v2820 = vsel %vm1633, %v2775, 0
  %v2823 = vsel %vm1633, %v2776, 0
  %2825 = vmatprep.subr.bf16.mxu0 %v2772
  %2826 = vmatpush1.bf16.msra.mxu0 %v2771
  %2827 = vmatprep.subr.bf16.mxu0 %v2820
  %2828 = vmatpush1.bf16.msra.mxu0 %v2817
  %2829 = vmatprep.subr.bf16.mxu0 0
  %2830 = vmatpush1.bf16.msra.mxu0 0
  %2831 = vmatprep.subr.bf16.mxu0 0
  %2832 = vmatpush1.bf16.msra.mxu0 0
  %2833 = vmatprep.subr.bf16.mxu0 0
  %2834 = vmatpush1.bf16.msra.mxu0 0
  %2835 = vmatprep.subr.bf16.mxu0 0
  %2836 = vmatpush1.bf16.msra.mxu0 0
  %2837 = vmatprep.subr.bf16.mxu0 0
  %2838 = vmatpush1.bf16.msra.mxu0 0
  %2839 = vmatprep.subr.bf16.mxu0 0
  %2840 = vmatpush1.bf16.msra.mxu0 0
  %2841 = vmatprep.subr.bf16.mxu0 0
  %2842 = vmatpush1.bf16.msra.mxu0 0
  %2843 = vmatprep.subr.bf16.mxu0 0
  %2844 = vmatpush1.bf16.msra.mxu0 0
  %2845 = vmatprep.subr.bf16.mxu0 0
  %2846 = vmatpush1.bf16.msra.mxu0 0
  %2847 = vmatprep.subr.bf16.mxu0 0
  %2848 = vmatpush1.bf16.msra.mxu0 0
  %2849 = vmatprep.subr.bf16.mxu0 0
  %2850 = vmatpush1.bf16.msra.mxu0 0
  %2851 = vmatprep.subr.bf16.mxu0 0
  %2852 = vmatpush1.bf16.msra.mxu0 0
  %2853 = vmatprep.subr.bf16.mxu0 0
  %2854 = vmatpush1.bf16.msra.mxu0 0
  %2855 = vmatprep.subr.bf16.mxu0 0
  %2856 = vmatpush1.bf16.msra.mxu0 0
  %2857 = vmatprep.mubr.bf16.mxu0 0
  %2858 = vmatmul.mubr.bf16.gmra.mrb[0].mxu0 %v2781
  %v2859 = vpop.f32.mrb[0].mxu0
  %v2860 = vadd.f32 0.0, %v2859
  %v2861 = vpop.f32.mrb[0].mxu0
  %v2862 = vadd.f32 0.0, %v2861
  %v2863 = vpop.f32.mrb[0].mxu0
  %v2864 = vadd.f32 0.0, %v2863
  %v2865 = vpop.f32.mrb[0].mxu0
  %v2866 = vadd.f32 0.0, %v2865
  %2867 = vmatprep.mubr.bf16.mxu0 0
  %2868 = vmatmul.mubr.bf16.gmra.mrb[0].mxu0 %v2784
  %v2869 = vpop.f32.mrb[0].mxu0
  %v2870 = vadd.f32 0.0, %v2869
  %v2871 = vpop.f32.mrb[0].mxu0
  %v2872 = vadd.f32 0.0, %v2871
  %v2873 = vpop.f32.mrb[0].mxu0
  %v2874 = vadd.f32 0.0, %v2873
  %v2875 = vpop.f32.mrb[0].mxu0
  %v2876 = vadd.f32 0.0, %v2875
  %2877 = vmatprep.mubr.bf16.mxu0 0
  %2878 = vmatmul.mubr.bf16.gmra.mrb[0].mxu0 %v2787
  %v2879 = vpop.f32.mrb[0].mxu0
  %v2880 = vadd.f32 0.0, %v2879
  %v2881 = vpop.f32.mrb[0].mxu0
  %v2882 = vadd.f32 0.0, %v2881
  %v2883 = vpop.f32.mrb[0].mxu0
  %v2884 = vadd.f32 0.0, %v2883
  %v2885 = vpop.f32.mrb[0].mxu0
  %v2886 = vadd.f32 0.0, %v2885
  %2887 = vmatprep.mubr.bf16.mxu0 0
  %2888 = vmatmul.mubr.bf16.gmra.mrb[0].mxu0 %v2790
  %v2889 = vpop.f32.mrb[0].mxu0
  %v2890 = vadd.f32 0.0, %v2889
  %v2891 = vpop.f32.mrb[0].mxu0
  %v2892 = vadd.f32 0.0, %v2891
  %v2893 = vpop.f32.mrb[0].mxu0
  %v2894 = vadd.f32 0.0, %v2893
  %v2895 = vpop.f32.mrb[0].mxu0
  %v2896 = vadd.f32 0.0, %v2895
  %2897 = vmatprep.mubr.bf16.mxu0 0
  %2898 = vmatmul.mubr.bf16.gmra.mrb[0].mxu0 %v2793
  %v2899 = vpop.f32.mrb[0].mxu0
  %v2900 = vadd.f32 0.0, %v2899
  %v2901 = vpop.f32.mrb[0].mxu0
  %v2902 = vadd.f32 0.0, %v2901
  %v2903 = vpop.f32.mrb[0].mxu0
  %v2904 = vadd.f32 0.0, %v2903
  %v2905 = vpop.f32.mrb[0].mxu0
  %v2906 = vadd.f32 0.0, %v2905
  %2907 = vmatprep.mubr.bf16.mxu0 0
  %2908 = vmatmul.mubr.bf16.gmra.mrb[0].mxu0 %v2796
  %v2909 = vpop.f32.mrb[0].mxu0
  %v2910 = vadd.f32 0.0, %v2909
  %v2911 = vpop.f32.mrb[0].mxu0
  %v2912 = vadd.f32 0.0, %v2911
  %v2913 = vpop.f32.mrb[0].mxu0
  %v2914 = vadd.f32 0.0, %v2913
  %v2915 = vpop.f32.mrb[0].mxu0
  %v2916 = vadd.f32 0.0, %v2915
  %2917 = vmatprep.mubr.bf16.mxu0 0
  %2918 = vmatmul.mubr.bf16.gmra.mrb[0].mxu0 %v2799
  %v2919 = vpop.f32.mrb[0].mxu0
  %v2920 = vadd.f32 0.0, %v2919
  %v2921 = vpop.f32.mrb[0].mxu0
  %v2922 = vadd.f32 0.0, %v2921
  %v2923 = vpop.f32.mrb[0].mxu0
  %v2924 = vadd.f32 0.0, %v2923
  %v2925 = vpop.f32.mrb[0].mxu0
  %v2926 = vadd.f32 0.0, %v2925
  %2927 = vmatprep.mubr.bf16.mxu0 0
  %2928 = vmatmul.mubr.bf16.gmra.mrb[0].mxu0 %v2802
  %v2929 = vpop.f32.mrb[0].mxu0
  %v2930 = vadd.f32 0.0, %v2929
  %v2931 = vpop.f32.mrb[0].mxu0
  %v2932 = vadd.f32 0.0, %v2931
  %v2933 = vpop.f32.mrb[0].mxu0
  %v2934 = vadd.f32 0.0, %v2933
  %v2935 = vpop.f32.mrb[0].mxu0
  %v2936 = vadd.f32 0.0, %v2935
  %2937 = vmatprep.mubr.bf16.mxu0 0
  %2938 = vmatmul.mubr.bf16.gmra.mrb[0].mxu0 %v2805
  %v2939 = vpop.f32.mrb[0].mxu0
  %v2940 = vadd.f32 0.0, %v2939
  %v2941 = vpop.f32.mrb[0].mxu0
  %v2942 = vadd.f32 0.0, %v2941
  %v2943 = vpop.f32.mrb[0].mxu0
  %v2944 = vadd.f32 0.0, %v2943
  %v2945 = vpop.f32.mrb[0].mxu0
  %v2946 = vadd.f32 0.0, %v2945
  %2947 = vmatprep.mubr.bf16.mxu0 0
  %2948 = vmatmul.mubr.bf16.gmra.mrb[0].mxu0 %v2808
  %v2949 = vpop.f32.mrb[0].mxu0
  %v2950 = vadd.f32 0.0, %v2949
  %v2951 = vpop.f32.mrb[0].mxu0
  %v2952 = vadd.f32 0.0, %v2951
  %v2953 = vpop.f32.mrb[0].mxu0
  %v2954 = vadd.f32 0.0, %v2953
  %v2955 = vpop.f32.mrb[0].mxu0
  %v2956 = vadd.f32 0.0, %v2955
  %2957 = vmatprep.mubr.bf16.mxu0 0
  %2958 = vmatmul.mubr.bf16.gmra.mrb[0].mxu0 %v2811
  %v2959 = vpop.f32.mrb[0].mxu0
  %v2960 = vadd.f32 0.0, %v2959
  %v2961 = vpop.f32.mrb[0].mxu0
  %v2962 = vadd.f32 0.0, %v2961
  %v2963 = vpop.f32.mrb[0].mxu0
  %v2964 = vadd.f32 0.0, %v2963
  %v2965 = vpop.f32.mrb[0].mxu0
  %v2966 = vadd.f32 0.0, %v2965
  %2967 = vmatprep.mubr.bf16.mxu0 0
  %2968 = vmatmul.mubr.bf16.gmra.mrb[0].mxu0 %v2814
  %v2969 = vpop.f32.mrb[0].mxu0
  %v2970 = vadd.f32 0.0, %v2969
  %v2971 = vpop.f32.mrb[0].mxu0
  %v2972 = vadd.f32 0.0, %v2971
  %v2973 = vpop.f32.mrb[0].mxu0
  %v2974 = vadd.f32 0.0, %v2973
  %v2975 = vpop.f32.mrb[0].mxu0
  %v2976 = vadd.f32 0.0, %v2975
  %2977 = vdwg.mxu0
  %2978 = vmatprep.subr.bf16.mxu0 0
  %2979 = vmatpush1.bf16.msra.mxu0 %v2773
  %2980 = vmatprep.subr.bf16.mxu0 0
  %2981 = vmatpush1.bf16.msra.mxu0 %v2823
  %2982 = vmatprep.subr.bf16.mxu0 0
  %2983 = vmatpush1.bf16.msra.mxu0 0
  %2984 = vmatprep.subr.bf16.mxu0 0
  %2985 = vmatpush1.bf16.msra.mxu0 0
  %2986 = vmatprep.subr.bf16.mxu0 0
  %2987 = vmatpush1.bf16.msra.mxu0 0
  %2988 = vmatprep.subr.bf16.mxu0 0
  %2989 = vmatpush1.bf16.msra.mxu0 0
  %2990 = vmatprep.subr.bf16.mxu0 0
  %2991 = vmatpush1.bf16.msra.mxu0 0
  %2992 = vmatprep.subr.bf16.mxu0 0
  %2993 = vmatpush1.bf16.msra.mxu0 0
  %2994 = vmatprep.subr.bf16.mxu0 0
  %2995 = vmatpush1.bf16.msra.mxu0 0
  %2996 = vmatprep.subr.bf16.mxu0 0
  %2997 = vmatpush1.bf16.msra.mxu0 0
  %2998 = vmatprep.subr.bf16.mxu0 0
  %2999 = vmatpush1.bf16.msra.mxu0 0
  %3000 = vmatprep.subr.bf16.mxu0 0
  %3001 = vmatpush1.bf16.msra.mxu0 0
  %3002 = vmatprep.subr.bf16.mxu0 0
  %3003 = vmatpush1.bf16.msra.mxu0 0
  %3004 = vmatprep.subr.bf16.mxu0 0
  %3005 = vmatpush1.bf16.msra.mxu0 0
  %3006 = vmatprep.subr.bf16.mxu0 0
  %3007 = vmatpush1.bf16.msra.mxu0 0
  %3008 = vmatprep.subr.bf16.mxu0 0
  %3009 = vmatpush1.bf16.msra.mxu0 0
  %3010 = vmatprep.mubr.bf16.mxu0 0
  %3011 = vmatmul.mubr.bf16.gmra.mrb[0].mxu0 %v2781
  %v3012 = vpop.f32.mrb[0].mxu0
  %v3013 = vadd.f32 0.0, %v3012
  %v3014 = vpop.f32.mrb[0].mxu0
  %v3015 = vpop.f32.mrb[0].mxu0
  %v3016 = vadd.f32 0.0, %v3015
  %v3017 = vpop.f32.mrb[0].mxu0
  %3018 = vmatprep.mubr.bf16.mxu0 0
  %3019 = vmatmul.mubr.bf16.gmra.mrb[0].mxu0 %v2784
  %v3020 = vpop.f32.mrb[0].mxu0
  %v3021 = vadd.f32 0.0, %v3020
  %v3022 = vpop.f32.mrb[0].mxu0
  %v3023 = vpop.f32.mrb[0].mxu0
  %v3024 = vadd.f32 0.0, %v3023
  %v3025 = vpop.f32.mrb[0].mxu0
  %3026 = vmatprep.mubr.bf16.mxu0 0
  %3027 = vmatmul.mubr.bf16.gmra.mrb[0].mxu0 %v2787
  %v3028 = vpop.f32.mrb[0].mxu0
  %v3029 = vadd.f32 0.0, %v3028
  %v3030 = vpop.f32.mrb[0].mxu0
  %v3031 = vpop.f32.mrb[0].mxu0
  %v3032 = vadd.f32 0.0, %v3031
  %v3033 = vpop.f32.mrb[0].mxu0
  %3034 = vmatprep.mubr.bf16.mxu0 0
  %3035 = vmatmul.mubr.bf16.gmra.mrb[0].mxu0 %v2790
  %v3036 = vpop.f32.mrb[0].mxu0
  %v3037 = vadd.f32 0.0, %v3036
  %v3038 = vpop.f32.mrb[0].mxu0
  %v3039 = vpop.f32.mrb[0].mxu0
  %v3040 = vadd.f32 0.0, %v3039
  %v3041 = vpop.f32.mrb[0].mxu0
  %3042 = vmatprep.mubr.bf16.mxu0 0
  %3043 = vmatmul.mubr.bf16.gmra.mrb[0].mxu0 %v2793
  %v3044 = vpop.f32.mrb[0].mxu0
  %v3045 = vadd.f32 0.0, %v3044
  %v3046 = vpop.f32.mrb[0].mxu0
  %v3047 = vpop.f32.mrb[0].mxu0
  %v3048 = vadd.f32 0.0, %v3047
  %v3049 = vpop.f32.mrb[0].mxu0
  %3050 = vmatprep.mubr.bf16.mxu0 0
  %3051 = vmatmul.mubr.bf16.gmra.mrb[0].mxu0 %v2796
  %v3052 = vpop.f32.mrb[0].mxu0
  %v3053 = vadd.f32 0.0, %v3052
  %v3054 = vpop.f32.mrb[0].mxu0
  %v3055 = vpop.f32.mrb[0].mxu0
  %v3056 = vadd.f32 0.0, %v3055
  %v3057 = vpop.f32.mrb[0].mxu0
  %3058 = vmatprep.mubr.bf16.mxu0 0
  %3059 = vmatmul.mubr.bf16.gmra.mrb[0].mxu0 %v2799
  %v3060 = vpop.f32.mrb[0].mxu0
  %v3061 = vadd.f32 0.0, %v3060
  %v3062 = vpop.f32.mrb[0].mxu0
  %v3063 = vpop.f32.mrb[0].mxu0
  %v3064 = vadd.f32 0.0, %v3063
  %v3065 = vpop.f32.mrb[0].mxu0
  %3066 = vmatprep.mubr.bf16.mxu0 0
  %3067 = vmatmul.mubr.bf16.gmra.mrb[0].mxu0 %v2802
  %v3068 = vpop.f32.mrb[0].mxu0
  %v3069 = vadd.f32 0.0, %v3068
  %v3070 = vpop.f32.mrb[0].mxu0
  %v3071 = vpop.f32.mrb[0].mxu0
  %v3072 = vadd.f32 0.0, %v3071
  %v3073 = vpop.f32.mrb[0].mxu0
  %3074 = vmatprep.mubr.bf16.mxu0 0
  %3075 = vmatmul.mubr.bf16.gmra.mrb[0].mxu0 %v2805
  %v3076 = vpop.f32.mrb[0].mxu0
  %v3077 = vadd.f32 0.0, %v3076
  %v3078 = vpop.f32.mrb[0].mxu0
  %v3079 = vpop.f32.mrb[0].mxu0
  %v3080 = vadd.f32 0.0, %v3079
  %v3081 = vpop.f32.mrb[0].mxu0
  %3082 = vmatprep.mubr.bf16.mxu0 0
  %3083 = vmatmul.mubr.bf16.gmra.mrb[0].mxu0 %v2808
  %v3084 = vpop.f32.mrb[0].mxu0
  %v3085 = vadd.f32 0.0, %v3084
  %v3086 = vpop.f32.mrb[0].mxu0
  %v3087 = vpop.f32.mrb[0].mxu0
  %v3088 = vadd.f32 0.0, %v3087
  %v3089 = vpop.f32.mrb[0].mxu0
  %3090 = vmatprep.mubr.bf16.mxu0 0
  %3091 = vmatmul.mubr.bf16.gmra.mrb[0].mxu0 %v2811
  %v3092 = vpop.f32.mrb[0].mxu0
  %v3093 = vadd.f32 0.0, %v3092
  %v3094 = vpop.f32.mrb[0].mxu0
  %v3095 = vpop.f32.mrb[0].mxu0
  %v3096 = vadd.f32 0.0, %v3095
  %v3097 = vpop.f32.mrb[0].mxu0
  %3098 = vmatprep.mubr.bf16.mxu0 0
  %3099 = vmatmul.mubr.bf16.gmra.mrb[0].mxu0 %v2814
  %v3100 = vpop.f32.mrb[0].mxu0
  %v3101 = vadd.f32 0.0, %v3100
  %v3102 = vpop.f32.mrb[0].mxu0
  %v3103 = vpop.f32.mrb[0].mxu0
  %v3104 = vadd.f32 0.0, %v3103
  %v3105 = vpop.f32.mrb[0].mxu0
  %3106 = vdwg.mxu0
  %v3107 = vadd.f32 %v2658, %v2860
  %v3108 = vadd.f32 %v2659, %v2862
  %v3109 = vadd.f32 %v2660, %v3013
  %v3110 = vadd.f32 %v2661, %v2864
  %v3111 = vadd.f32 %v2662, %v2866
  %v3112 = vadd.f32 %v2663, %v3016
  %v3113 = vadd.f32 %v2664, %v2870
  %v3114 = vadd.f32 %v2665, %v2872
  %v3115 = vadd.f32 %v2666, %v3021
  %v3116 = vadd.f32 %v2667, %v2874
  %v3117 = vadd.f32 %v2668, %v2876
  %v3118 = vadd.f32 %v2669, %v3024
  %v3119 = vadd.f32 %v2670, %v2880
  %v3120 = vadd.f32 %v2671, %v2882
  %v3121 = vadd.f32 %v2672, %v3029
  %v3122 = vadd.f32 %v2673, %v2884
  %v3123 = vadd.f32 %v2674, %v2886
  %v3124 = vadd.f32 %v2675, %v3032
  %v3125 = vadd.f32 %v2676, %v2890
  %v3126 = vadd.f32 %v2677, %v2892
  %v3127 = vadd.f32 %v2678, %v3037
  %v3128 = vadd.f32 %v2679, %v2894
  %v3129 = vadd.f32 %v2680, %v2896
  %v3130 = vadd.f32 %v2681, %v3040
  %v3131 = vadd.f32 %v2682, %v2900
  %v3132 = vadd.f32 %v2683, %v2902
  %v3133 = vadd.f32 %v2684, %v3045
  %v3134 = vadd.f32 %v2685, %v2904
  %v3135 = vadd.f32 %v2686, %v2906
  %v3136 = vadd.f32 %v2687, %v3048
  %v3137 = vadd.f32 %v2688, %v2910
  %v3138 = vadd.f32 %v2689, %v2912
  %v3139 = vadd.f32 %v2690, %v3053
  %v3140 = vadd.f32 %v2691, %v2914
  %v3141 = vadd.f32 %v2692, %v2916
  %v3142 = vadd.f32 %v2693, %v3056
  %v3143 = vadd.f32 %v2694, %v2920
  %v3144 = vadd.f32 %v2695, %v2922
  %v3145 = vadd.f32 %v2696, %v3061
  %v3146 = vadd.f32 %v2697, %v2924
  %v3147 = vadd.f32 %v2698, %v2926
  %v3148 = vadd.f32 %v2699, %v3064
  %v3149 = vadd.f32 %v2700, %v2930
  %v3150 = vadd.f32 %v2701, %v2932
  %v3151 = vadd.f32 %v2702, %v3069
  %v3152 = vadd.f32 %v2703, %v2934
  %v3153 = vadd.f32 %v2704, %v2936
  %v3154 = vadd.f32 %v2705, %v3072
  %v3155 = vadd.f32 %v2706, %v2940
  %v3156 = vadd.f32 %v2707, %v2942
  %v3157 = vadd.f32 %v2708, %v3077
  %v3158 = vadd.f32 %v2709, %v2944
  %v3159 = vadd.f32 %v2710, %v2946
  %v3160 = vadd.f32 %v2711, %v3080
  %v3161 = vadd.f32 %v2712, %v2950
  %v3162 = vadd.f32 %v2713, %v2952
  %v3163 = vadd.f32 %v2714, %v3085
  %v3164 = vadd.f32 %v2715, %v2954
  %v3165 = vadd.f32 %v2716, %v2956
  %v3166 = vadd.f32 %v2717, %v3088
  %v3167 = vadd.f32 %v2718, %v2960
  %v3168 = vadd.f32 %v2719, %v2962
  %v3169 = vadd.f32 %v2720, %v3093
  %v3170 = vadd.f32 %v2721, %v2964
  %v3171 = vadd.f32 %v2722, %v2966
  %v3172 = vadd.f32 %v2723, %v3096
  %v3173 = vadd.f32 %v2724, %v2970
  %v3174 = vadd.f32 %v2725, %v2972
  %v3175 = vadd.f32 %v2726, %v3101
  %v3176 = vadd.f32 %v2727, %v2974
  %v3177 = vadd.f32 %v2728, %v2976
  %v3178 = vadd.f32 %v2729, %v3104
  %s3179 = scalar_lea.vmem %s2, 192
  %v3180 = vld [vmem:[%s3179] sm:$0xff]
  %v3181 = vld [vmem:[%s3179 + $0x8] sm:$0xf]
  %v3182 = vld [vmem:[%s3179 + $0xc] sm:$0xff]
  %v3183 = vld [vmem:[%s3179 + $0x14] sm:$0xf]
  %v3184 = vld [vmem:[%s3179 + $0x18] sm:$0xff]
  %v3185 = vld [vmem:[%s3179 + $0x20] sm:$0xf]
  %v3186 = vld [vmem:[%s3179 + $0x24] sm:$0x33]
  %v3187 = vld [vmem:[%s3179 + $0x2c] sm:$0x3]
  %v3188 = vpack.c.bf16 %v1435, %v1432
  %v3189 = vpack.c.bf16 %v1443, %v1440
  %v3190 = vpack.c.bf16 %v1451, %v1448
  %v3191 = vpack.c.bf16 %v1459, %v1456
  %v3192 = vpack.c.bf16 %v1467, %v1464
  %v3193 = vpack.c.bf16 %v1475, %v1472
  %v3194 = vpack.c.bf16 %v1483, %v1480
  %v3195 = vpack.c.bf16 %v1491, %v1488
  %v3196 = vpack.c.bf16 %v1499, %v1496
  %v3197 = vpack.c.bf16 %v1507, %v1504
  %v3198 = vpack.c.bf16 %v1515, %v1512
  %v3199 = vpack.c.bf16 %v1523, %v1520
  %v3208 = vunpack.c.l.b16 %v3180
  %v3209 = vunpack.c.h.b16 %v3180
  %v3210 = vunpack.c.l.b16 %v3181
  %v3211 = vunpack.c.l.b16 %v3182
  %v3212 = vunpack.c.h.b16 %v3182
  %v3213 = vunpack.c.l.b16 %v3183
  %v3214 = vunpack.c.l.b16 %v3184
  %v3215 = vunpack.c.h.b16 %v3184
  %v3216 = vunpack.c.l.b16 %v3185
  %v3217 = vunpack.c.l.b16 %v3186
  %v3218 = vunpack.c.h.b16 %v3186
  %v3219 = vunpack.c.l.b16 %v3187
  %v3220 = vpack.c.b16 %v3211, %v3208
  %v3221 = vpack.c.b16 %v3212, %v3209
  %v3222 = vpack.c.b16 %v3213, %v3210
  %v3223 = vpack.c.b16 %v3217, %v3214
  %v3224 = vpack.c.b16 %v3218, %v3215
  %v3225 = vpack.c.b16 %v3219, %v3216
  %v3230 = vsel %vm1596, %v3188, 0
  %v3233 = vsel %vm1596, %v3189, 0
  %v3236 = vsel %vm1596, %v3190, 0
  %v3239 = vsel %vm1596, %v3191, 0
  %v3242 = vsel %vm1596, %v3192, 0
  %v3245 = vsel %vm1596, %v3193, 0
  %v3248 = vsel %vm1596, %v3194, 0
  %v3251 = vsel %vm1596, %v3195, 0
  %v3254 = vsel %vm1596, %v3196, 0
  %v3257 = vsel %vm1596, %v3197, 0
  %v3260 = vsel %vm1596, %v3198, 0
  %v3263 = vsel %vm1596, %v3199, 0
  %v3266 = vsel %vm1633, %v3223, 0
  %v3269 = vsel %vm1633, %v3224, 0
  %v3272 = vsel %vm1633, %v3225, 0
  %3274 = vmatprep.subr.bf16.mxu0 %v3221
  %3275 = vmatpush1.bf16.msra.mxu0 %v3220
  %3276 = vmatprep.subr.bf16.mxu0 %v3269
  %3277 = vmatpush1.bf16.msra.mxu0 %v3266
  %3278 = vmatprep.subr.bf16.mxu0 0
  %3279 = vmatpush1.bf16.msra.mxu0 0
  %3280 = vmatprep.subr.bf16.mxu0 0
  %3281 = vmatpush1.bf16.msra.mxu0 0
  %3282 = vmatprep.subr.bf16.mxu0 0
  %3283 = vmatpush1.bf16.msra.mxu0 0
  %3284 = vmatprep.subr.bf16.mxu0 0
  %3285 = vmatpush1.bf16.msra.mxu0 0
  %3286 = vmatprep.subr.bf16.mxu0 0
  %3287 = vmatpush1.bf16.msra.mxu0 0
  %3288 = vmatprep.subr.bf16.mxu0 0
  %3289 = vmatpush1.bf16.msra.mxu0 0
  %3290 = vmatprep.subr.bf16.mxu0 0
  %3291 = vmatpush1.bf16.msra.mxu0 0
  %3292 = vmatprep.subr.bf16.mxu0 0
  %3293 = vmatpush1.bf16.msra.mxu0 0
  %3294 = vmatprep.subr.bf16.mxu0 0
  %3295 = vmatpush1.bf16.msra.mxu0 0
  %3296 = vmatprep.subr.bf16.mxu0 0
  %3297 = vmatpush1.bf16.msra.mxu0 0
  %3298 = vmatprep.subr.bf16.mxu0 0
  %3299 = vmatpush1.bf16.msra.mxu0 0
  %3300 = vmatprep.subr.bf16.mxu0 0
  %3301 = vmatpush1.bf16.msra.mxu0 0
  %3302 = vmatprep.subr.bf16.mxu0 0
  %3303 = vmatpush1.bf16.msra.mxu0 0
  %3304 = vmatprep.subr.bf16.mxu0 0
  %3305 = vmatpush1.bf16.msra.mxu0 0
  %3306 = vmatprep.mubr.bf16.mxu0 0
  %3307 = vmatmul.mubr.bf16.gmra.mrb[0].mxu0 %v3230
  %v3308 = vpop.f32.mrb[0].mxu0
  %v3309 = vadd.f32 0.0, %v3308
  %v3310 = vpop.f32.mrb[0].mxu0
  %v3311 = vadd.f32 0.0, %v3310
  %v3312 = vpop.f32.mrb[0].mxu0
  %v3313 = vadd.f32 0.0, %v3312
  %v3314 = vpop.f32.mrb[0].mxu0
  %v3315 = vadd.f32 0.0, %v3314
  %3316 = vmatprep.mubr.bf16.mxu0 0
  %3317 = vmatmul.mubr.bf16.gmra.mrb[0].mxu0 %v3233
  %v3318 = vpop.f32.mrb[0].mxu0
  %v3319 = vadd.f32 0.0, %v3318
  %v3320 = vpop.f32.mrb[0].mxu0
  %v3321 = vadd.f32 0.0, %v3320
  %v3322 = vpop.f32.mrb[0].mxu0
  %v3323 = vadd.f32 0.0, %v3322
  %v3324 = vpop.f32.mrb[0].mxu0
  %v3325 = vadd.f32 0.0, %v3324
  %3326 = vmatprep.mubr.bf16.mxu0 0
  %3327 = vmatmul.mubr.bf16.gmra.mrb[0].mxu0 %v3236
  %v3328 = vpop.f32.mrb[0].mxu0
  %v3329 = vadd.f32 0.0, %v3328
  %v3330 = vpop.f32.mrb[0].mxu0
  %v3331 = vadd.f32 0.0, %v3330
  %v3332 = vpop.f32.mrb[0].mxu0
  %v3333 = vadd.f32 0.0, %v3332
  %v3334 = vpop.f32.mrb[0].mxu0
  %v3335 = vadd.f32 0.0, %v3334
  %3336 = vmatprep.mubr.bf16.mxu0 0
  %3337 = vmatmul.mubr.bf16.gmra.mrb[0].mxu0 %v3239
  %v3338 = vpop.f32.mrb[0].mxu0
  %v3339 = vadd.f32 0.0, %v3338
  %v3340 = vpop.f32.mrb[0].mxu0
  %v3341 = vadd.f32 0.0, %v3340
  %v3342 = vpop.f32.mrb[0].mxu0
  %v3343 = vadd.f32 0.0, %v3342
  %v3344 = vpop.f32.mrb[0].mxu0
  %v3345 = vadd.f32 0.0, %v3344
  %3346 = vmatprep.mubr.bf16.mxu0 0
  %3347 = vmatmul.mubr.bf16.gmra.mrb[0].mxu0 %v3242
  %v3348 = vpop.f32.mrb[0].mxu0
  %v3349 = vadd.f32 0.0, %v3348
  %v3350 = vpop.f32.mrb[0].mxu0
  %v3351 = vadd.f32 0.0, %v3350
  %v3352 = vpop.f32.mrb[0].mxu0
  %v3353 = vadd.f32 0.0, %v3352
  %v3354 = vpop.f32.mrb[0].mxu0
  %v3355 = vadd.f32 0.0, %v3354
  %3356 = vmatprep.mubr.bf16.mxu0 0
  %3357 = vmatmul.mubr.bf16.gmra.mrb[0].mxu0 %v3245
  %v3358 = vpop.f32.mrb[0].mxu0
  %v3359 = vadd.f32 0.0, %v3358
  %v3360 = vpop.f32.mrb[0].mxu0
  %v3361 = vadd.f32 0.0, %v3360
  %v3362 = vpop.f32.mrb[0].mxu0
  %v3363 = vadd.f32 0.0, %v3362
  %v3364 = vpop.f32.mrb[0].mxu0
  %v3365 = vadd.f32 0.0, %v3364
  %3366 = vmatprep.mubr.bf16.mxu0 0
  %3367 = vmatmul.mubr.bf16.gmra.mrb[0].mxu0 %v3248
  %v3368 = vpop.f32.mrb[0].mxu0
  %v3369 = vadd.f32 0.0, %v3368
  %v3370 = vpop.f32.mrb[0].mxu0
  %v3371 = vadd.f32 0.0, %v3370
  %v3372 = vpop.f32.mrb[0].mxu0
  %v3373 = vadd.f32 0.0, %v3372
  %v3374 = vpop.f32.mrb[0].mxu0
  %v3375 = vadd.f32 0.0, %v3374
  %3376 = vmatprep.mubr.bf16.mxu0 0
  %3377 = vmatmul.mubr.bf16.gmra.mrb[0].mxu0 %v3251
  %v3378 = vpop.f32.mrb[0].mxu0
  %v3379 = vadd.f32 0.0, %v3378
  %v3380 = vpop.f32.mrb[0].mxu0
  %v3381 = vadd.f32 0.0, %v3380
  %v3382 = vpop.f32.mrb[0].mxu0
  %v3383 = vadd.f32 0.0, %v3382
  %v3384 = vpop.f32.mrb[0].mxu0
  %v3385 = vadd.f32 0.0, %v3384
  %3386 = vmatprep.mubr.bf16.mxu0 0
  %3387 = vmatmul.mubr.bf16.gmra.mrb[0].mxu0 %v3254
  %v3388 = vpop.f32.mrb[0].mxu0
  %v3389 = vadd.f32 0.0, %v3388
  %v3390 = vpop.f32.mrb[0].mxu0
  %v3391 = vadd.f32 0.0, %v3390
  %v3392 = vpop.f32.mrb[0].mxu0
  %v3393 = vadd.f32 0.0, %v3392
  %v3394 = vpop.f32.mrb[0].mxu0
  %v3395 = vadd.f32 0.0, %v3394
  %3396 = vmatprep.mubr.bf16.mxu0 0
  %3397 = vmatmul.mubr.bf16.gmra.mrb[0].mxu0 %v3257
  %v3398 = vpop.f32.mrb[0].mxu0
  %v3399 = vadd.f32 0.0, %v3398
  %v3400 = vpop.f32.mrb[0].mxu0
  %v3401 = vadd.f32 0.0, %v3400
  %v3402 = vpop.f32.mrb[0].mxu0
  %v3403 = vadd.f32 0.0, %v3402
  %v3404 = vpop.f32.mrb[0].mxu0
  %v3405 = vadd.f32 0.0, %v3404
  %3406 = vmatprep.mubr.bf16.mxu0 0
  %3407 = vmatmul.mubr.bf16.gmra.mrb[0].mxu0 %v3260
  %v3408 = vpop.f32.mrb[0].mxu0
  %v3409 = vadd.f32 0.0, %v3408
  %v3410 = vpop.f32.mrb[0].mxu0
  %v3411 = vadd.f32 0.0, %v3410
  %v3412 = vpop.f32.mrb[0].mxu0
  %v3413 = vadd.f32 0.0, %v3412
  %v3414 = vpop.f32.mrb[0].mxu0
  %v3415 = vadd.f32 0.0, %v3414
  %3416 = vmatprep.mubr.bf16.mxu0 0
  %3417 = vmatmul.mubr.bf16.gmra.mrb[0].mxu0 %v3263
  %v3418 = vpop.f32.mrb[0].mxu0
  %v3419 = vadd.f32 0.0, %v3418
  %v3420 = vpop.f32.mrb[0].mxu0
  %v3421 = vadd.f32 0.0, %v3420
  %v3422 = vpop.f32.mrb[0].mxu0
  %v3423 = vadd.f32 0.0, %v3422
  %v3424 = vpop.f32.mrb[0].mxu0
  %v3425 = vadd.f32 0.0, %v3424
  %3426 = vdwg.mxu0
  %3427 = vmatprep.subr.bf16.mxu0 0
  %3428 = vmatpush1.bf16.msra.mxu0 %v3222
  %3429 = vmatprep.subr.bf16.mxu0 0
  %3430 = vmatpush1.bf16.msra.mxu0 %v3272
  %3431 = vmatprep.subr.bf16.mxu0 0
  %3432 = vmatpush1.bf16.msra.mxu0 0
  %3433 = vmatprep.subr.bf16.mxu0 0
  %3434 = vmatpush1.bf16.msra.mxu0 0
  %3435 = vmatprep.subr.bf16.mxu0 0
  %3436 = vmatpush1.bf16.msra.mxu0 0
  %3437 = vmatprep.subr.bf16.mxu0 0
  %3438 = vmatpush1.bf16.msra.mxu0 0
  %3439 = vmatprep.subr.bf16.mxu0 0
  %3440 = vmatpush1.bf16.msra.mxu0 0
  %3441 = vmatprep.subr.bf16.mxu0 0
  %3442 = vmatpush1.bf16.msra.mxu0 0
  %3443 = vmatprep.subr.bf16.mxu0 0
  %3444 = vmatpush1.bf16.msra.mxu0 0
  %3445 = vmatprep.subr.bf16.mxu0 0
  %3446 = vmatpush1.bf16.msra.mxu0 0
  %3447 = vmatprep.subr.bf16.mxu0 0
  %3448 = vmatpush1.bf16.msra.mxu0 0
  %3449 = vmatprep.subr.bf16.mxu0 0
  %3450 = vmatpush1.bf16.msra.mxu0 0
  %3451 = vmatprep.subr.bf16.mxu0 0
  %3452 = vmatpush1.bf16.msra.mxu0 0
  %3453 = vmatprep.subr.bf16.mxu0 0
  %3454 = vmatpush1.bf16.msra.mxu0 0
  %3455 = vmatprep.subr.bf16.mxu0 0
  %3456 = vmatpush1.bf16.msra.mxu0 0
  %3457 = vmatprep.subr.bf16.mxu0 0
  %3458 = vmatpush1.bf16.msra.mxu0 0
  %3459 = vmatprep.mubr.bf16.mxu0 0
  %3460 = vmatmul.mubr.bf16.gmra.mrb[0].mxu0 %v3230
  %v3461 = vpop.f32.mrb[0].mxu0
  %v3462 = vadd.f32 0.0, %v3461
  %v3463 = vpop.f32.mrb[0].mxu0
  %v3464 = vpop.f32.mrb[0].mxu0
  %v3465 = vadd.f32 0.0, %v3464
  %v3466 = vpop.f32.mrb[0].mxu0
  %3467 = vmatprep.mubr.bf16.mxu0 0
  %3468 = vmatmul.mubr.bf16.gmra.mrb[0].mxu0 %v3233
  %v3469 = vpop.f32.mrb[0].mxu0
  %v3470 = vadd.f32 0.0, %v3469
  %v3471 = vpop.f32.mrb[0].mxu0
  %v3472 = vpop.f32.mrb[0].mxu0
  %v3473 = vadd.f32 0.0, %v3472
  %v3474 = vpop.f32.mrb[0].mxu0
  %3475 = vmatprep.mubr.bf16.mxu0 0
  %3476 = vmatmul.mubr.bf16.gmra.mrb[0].mxu0 %v3236
  %v3477 = vpop.f32.mrb[0].mxu0
  %v3478 = vadd.f32 0.0, %v3477
  %v3479 = vpop.f32.mrb[0].mxu0
  %v3480 = vpop.f32.mrb[0].mxu0
  %v3481 = vadd.f32 0.0, %v3480
  %v3482 = vpop.f32.mrb[0].mxu0
  %3483 = vmatprep.mubr.bf16.mxu0 0
  %3484 = vmatmul.mubr.bf16.gmra.mrb[0].mxu0 %v3239
  %v3485 = vpop.f32.mrb[0].mxu0
  %v3486 = vadd.f32 0.0, %v3485
  %v3487 = vpop.f32.mrb[0].mxu0
  %v3488 = vpop.f32.mrb[0].mxu0
  %v3489 = vadd.f32 0.0, %v3488
  %v3490 = vpop.f32.mrb[0].mxu0
  %3491 = vmatprep.mubr.bf16.mxu0 0
  %3492 = vmatmul.mubr.bf16.gmra.mrb[0].mxu0 %v3242
  %v3493 = vpop.f32.mrb[0].mxu0
  %v3494 = vadd.f32 0.0, %v3493
  %v3495 = vpop.f32.mrb[0].mxu0
  %v3496 = vpop.f32.mrb[0].mxu0
  %v3497 = vadd.f32 0.0, %v3496
  %v3498 = vpop.f32.mrb[0].mxu0
  %3499 = vmatprep.mubr.bf16.mxu0 0
  %3500 = vmatmul.mubr.bf16.gmra.mrb[0].mxu0 %v3245
  %v3501 = vpop.f32.mrb[0].mxu0
  %v3502 = vadd.f32 0.0, %v3501
  %v3503 = vpop.f32.mrb[0].mxu0
  %v3504 = vpop.f32.mrb[0].mxu0
  %v3505 = vadd.f32 0.0, %v3504
  %v3506 = vpop.f32.mrb[0].mxu0
  %3507 = vmatprep.mubr.bf16.mxu0 0
  %3508 = vmatmul.mubr.bf16.gmra.mrb[0].mxu0 %v3248
  %v3509 = vpop.f32.mrb[0].mxu0
  %v3510 = vadd.f32 0.0, %v3509
  %v3511 = vpop.f32.mrb[0].mxu0
  %v3512 = vpop.f32.mrb[0].mxu0
  %v3513 = vadd.f32 0.0, %v3512
  %v3514 = vpop.f32.mrb[0].mxu0
  %3515 = vmatprep.mubr.bf16.mxu0 0
  %3516 = vmatmul.mubr.bf16.gmra.mrb[0].mxu0 %v3251
  %v3517 = vpop.f32.mrb[0].mxu0
  %v3518 = vadd.f32 0.0, %v3517
  %v3519 = vpop.f32.mrb[0].mxu0
  %v3520 = vpop.f32.mrb[0].mxu0
  %v3521 = vadd.f32 0.0, %v3520
  %v3522 = vpop.f32.mrb[0].mxu0
  %3523 = vmatprep.mubr.bf16.mxu0 0
  %3524 = vmatmul.mubr.bf16.gmra.mrb[0].mxu0 %v3254
  %v3525 = vpop.f32.mrb[0].mxu0
  %v3526 = vadd.f32 0.0, %v3525
  %v3527 = vpop.f32.mrb[0].mxu0
  %v3528 = vpop.f32.mrb[0].mxu0
  %v3529 = vadd.f32 0.0, %v3528
  %v3530 = vpop.f32.mrb[0].mxu0
  %3531 = vmatprep.mubr.bf16.mxu0 0
  %3532 = vmatmul.mubr.bf16.gmra.mrb[0].mxu0 %v3257
  %v3533 = vpop.f32.mrb[0].mxu0
  %v3534 = vadd.f32 0.0, %v3533
  %v3535 = vpop.f32.mrb[0].mxu0
  %v3536 = vpop.f32.mrb[0].mxu0
  %v3537 = vadd.f32 0.0, %v3536
  %v3538 = vpop.f32.mrb[0].mxu0
  %3539 = vmatprep.mubr.bf16.mxu0 0
  %3540 = vmatmul.mubr.bf16.gmra.mrb[0].mxu0 %v3260
  %v3541 = vpop.f32.mrb[0].mxu0
  %v3542 = vadd.f32 0.0, %v3541
  %v3543 = vpop.f32.mrb[0].mxu0
  %v3544 = vpop.f32.mrb[0].mxu0
  %v3545 = vadd.f32 0.0, %v3544
  %v3546 = vpop.f32.mrb[0].mxu0
  %3547 = vmatprep.mubr.bf16.mxu0 0
  %3548 = vmatmul.mubr.bf16.gmra.mrb[0].mxu0 %v3263
  %v3549 = vpop.f32.mrb[0].mxu0
  %v3550 = vadd.f32 0.0, %v3549
  %v3551 = vpop.f32.mrb[0].mxu0
  %v3552 = vpop.f32.mrb[0].mxu0
  %v3553 = vadd.f32 0.0, %v3552
  %v3554 = vpop.f32.mrb[0].mxu0
  %3555 = vdwg.mxu0
  %v3556 = vadd.f32 %v3107, %v3309
  %v3557 = vadd.f32 %v3108, %v3311
  %v3558 = vadd.f32 %v3109, %v3462
  %v3559 = vadd.f32 %v3110, %v3313
  %v3560 = vadd.f32 %v3111, %v3315
  %v3561 = vadd.f32 %v3112, %v3465
  %v3562 = vadd.f32 %v3113, %v3319
  %v3563 = vadd.f32 %v3114, %v3321
  %v3564 = vadd.f32 %v3115, %v3470
  %v3565 = vadd.f32 %v3116, %v3323
  %v3566 = vadd.f32 %v3117, %v3325
  %v3567 = vadd.f32 %v3118, %v3473
  %v3568 = vadd.f32 %v3119, %v3329
  %v3569 = vadd.f32 %v3120, %v3331
  %v3570 = vadd.f32 %v3121, %v3478
  %v3571 = vadd.f32 %v3122, %v3333
  %v3572 = vadd.f32 %v3123, %v3335
  %v3573 = vadd.f32 %v3124, %v3481
  %v3574 = vadd.f32 %v3125, %v3339
  %v3575 = vadd.f32 %v3126, %v3341
  %v3576 = vadd.f32 %v3127, %v3486
  %v3577 = vadd.f32 %v3128, %v3343
  %v3578 = vadd.f32 %v3129, %v3345
  %v3579 = vadd.f32 %v3130, %v3489
  %v3580 = vadd.f32 %v3131, %v3349
  %v3581 = vadd.f32 %v3132, %v3351
  %v3582 = vadd.f32 %v3133, %v3494
  %v3583 = vadd.f32 %v3134, %v3353
  %v3584 = vadd.f32 %v3135, %v3355
  %v3585 = vadd.f32 %v3136, %v3497
  %v3586 = vadd.f32 %v3137, %v3359
  %v3587 = vadd.f32 %v3138, %v3361
  %v3588 = vadd.f32 %v3139, %v3502
  %v3589 = vadd.f32 %v3140, %v3363
  %v3590 = vadd.f32 %v3141, %v3365
  %v3591 = vadd.f32 %v3142, %v3505
  %v3592 = vadd.f32 %v3143, %v3369
  %v3593 = vadd.f32 %v3144, %v3371
  %v3594 = vadd.f32 %v3145, %v3510
  %v3595 = vadd.f32 %v3146, %v3373
  %v3596 = vadd.f32 %v3147, %v3375
  %v3597 = vadd.f32 %v3148, %v3513
  %v3598 = vadd.f32 %v3149, %v3379
  %v3599 = vadd.f32 %v3150, %v3381
  %v3600 = vadd.f32 %v3151, %v3518
  %v3601 = vadd.f32 %v3152, %v3383
  %v3602 = vadd.f32 %v3153, %v3385
  %v3603 = vadd.f32 %v3154, %v3521
  %v3604 = vadd.f32 %v3155, %v3389
  %v3605 = vadd.f32 %v3156, %v3391
  %v3606 = vadd.f32 %v3157, %v3526
  %v3607 = vadd.f32 %v3158, %v3393
  %v3608 = vadd.f32 %v3159, %v3395
  %v3609 = vadd.f32 %v3160, %v3529
  %v3610 = vadd.f32 %v3161, %v3399
  %v3611 = vadd.f32 %v3162, %v3401
  %v3612 = vadd.f32 %v3163, %v3534
  %v3613 = vadd.f32 %v3164, %v3403
  %v3614 = vadd.f32 %v3165, %v3405
  %v3615 = vadd.f32 %v3166, %v3537
  %v3616 = vadd.f32 %v3167, %v3409
  %v3617 = vadd.f32 %v3168, %v3411
  %v3618 = vadd.f32 %v3169, %v3542
  %v3619 = vadd.f32 %v3170, %v3413
  %v3620 = vadd.f32 %v3171, %v3415
  %v3621 = vadd.f32 %v3172, %v3545
  %v3622 = vadd.f32 %v3173, %v3419
  %v3623 = vadd.f32 %v3174, %v3421
  %v3624 = vadd.f32 %v3175, %v3550
  %v3625 = vadd.f32 %v3176, %v3423
  %v3626 = vadd.f32 %v3177, %v3425
  %v3627 = vadd.f32 %v3178, %v3553
  %v3628 = vld [vmem:[%s3] sm:$0x7]
  %v3630 = vlaneseq
  %v3631 = vshrl.u32 %v3630, 7
  %v3632 = vsub.s32 0, %v3631
  %v3633 = vrot.slane %v3628, %v3632
  %v3634 = vlaneseq
  %v3635 = vshrl.u32 %v3634, 7
  %v3636 = vsub.s32 1, %v3635
  %v3637 = vrot.slane %v3628, %v3636
  %v3638 = vlaneseq
  %v3639 = vshrl.u32 %v3638, 7
  %v3640 = vsub.s32 2, %v3639
  %v3641 = vrot.slane %v3628, %v3640
  %v3645 = vadd.f32 %v3556, %v3633
  %v3646 = vadd.f32 %v3557, %v3637
  %v3647 = vadd.f32 %v3558, %v3641
  %v3648 = vadd.f32 %v3559, %v3633
  %v3649 = vadd.f32 %v3560, %v3637
  %v3650 = vadd.f32 %v3561, %v3641
  %v3651 = vadd.f32 %v3562, %v3633
  %v3652 = vadd.f32 %v3563, %v3637
  %v3653 = vadd.f32 %v3564, %v3641
  %v3654 = vadd.f32 %v3565, %v3633
  %v3655 = vadd.f32 %v3566, %v3637
  %v3656 = vadd.f32 %v3567, %v3641
  %v3657 = vadd.f32 %v3568, %v3633
  %v3658 = vadd.f32 %v3569, %v3637
  %v3659 = vadd.f32 %v3570, %v3641
  %v3660 = vadd.f32 %v3571, %v3633
  %v3661 = vadd.f32 %v3572, %v3637
  %v3662 = vadd.f32 %v3573, %v3641
  %v3663 = vadd.f32 %v3574, %v3633
  %v3664 = vadd.f32 %v3575, %v3637
  %v3665 = vadd.f32 %v3576, %v3641
  %v3666 = vadd.f32 %v3577, %v3633
  %v3667 = vadd.f32 %v3578, %v3637
  %v3668 = vadd.f32 %v3579, %v3641
  %v3669 = vadd.f32 %v3580, %v3633
  %v3670 = vadd.f32 %v3581, %v3637
  %v3671 = vadd.f32 %v3582, %v3641
  %v3672 = vadd.f32 %v3583, %v3633
  %v3673 = vadd.f32 %v3584, %v3637
  %v3674 = vadd.f32 %v3585, %v3641
  %v3675 = vadd.f32 %v3586, %v3633
  %v3676 = vadd.f32 %v3587, %v3637
  %v3677 = vadd.f32 %v3588, %v3641
  %v3678 = vadd.f32 %v3589, %v3633
  %v3679 = vadd.f32 %v3590, %v3637
  %v3680 = vadd.f32 %v3591, %v3641
  %v3681 = vadd.f32 %v3592, %v3633
  %v3682 = vadd.f32 %v3593, %v3637
  %v3683 = vadd.f32 %v3594, %v3641
  %v3684 = vadd.f32 %v3595, %v3633
  %v3685 = vadd.f32 %v3596, %v3637
  %v3686 = vadd.f32 %v3597, %v3641
  %v3687 = vadd.f32 %v3598, %v3633
  %v3688 = vadd.f32 %v3599, %v3637
  %v3689 = vadd.f32 %v3600, %v3641
  %v3690 = vadd.f32 %v3601, %v3633
  %v3691 = vadd.f32 %v3602, %v3637
  %v3692 = vadd.f32 %v3603, %v3641
  %v3693 = vadd.f32 %v3604, %v3633
  %v3694 = vadd.f32 %v3605, %v3637
  %v3695 = vadd.f32 %v3606, %v3641
  %v3696 = vadd.f32 %v3607, %v3633
  %v3697 = vadd.f32 %v3608, %v3637
  %v3698 = vadd.f32 %v3609, %v3641
  %v3699 = vadd.f32 %v3610, %v3633
  %v3700 = vadd.f32 %v3611, %v3637
  %v3701 = vadd.f32 %v3612, %v3641
  %v3702 = vadd.f32 %v3613, %v3633
  %v3703 = vadd.f32 %v3614, %v3637
  %v3704 = vadd.f32 %v3615, %v3641
  %v3705 = vadd.f32 %v3616, %v3633
  %v3706 = vadd.f32 %v3617, %v3637
  %v3707 = vadd.f32 %v3618, %v3641
  %v3708 = vadd.f32 %v3619, %v3633
  %v3709 = vadd.f32 %v3620, %v3637
  %v3710 = vadd.f32 %v3621, %v3641
  %v3711 = vadd.f32 %v3622, %v3633
  %v3712 = vadd.f32 %v3623, %v3637
  %v3713 = vadd.f32 %v3624, %v3641
  %v3714 = vadd.f32 %v3625, %v3633
  %v3715 = vadd.f32 %v3626, %v3637
  %v3716 = vadd.f32 %v3627, %v3641
  %v3717 = vmax.f32 %v3645, 0.0
  %v3718 = vmax.f32 %v3646, 0.0
  %v3719 = vmax.f32 %v3647, 0.0
  %v3720 = vmax.f32 %v3648, 0.0
  %v3721 = vmax.f32 %v3649, 0.0
  %v3722 = vmax.f32 %v3650, 0.0
  %v3723 = vmax.f32 %v3651, 0.0
  %v3724 = vmax.f32 %v3652, 0.0
  %v3725 = vmax.f32 %v3653, 0.0
  %v3726 = vmax.f32 %v3654, 0.0
  %v3727 = vmax.f32 %v3655, 0.0
  %v3728 = vmax.f32 %v3656, 0.0
  %v3729 = vmax.f32 %v3657, 0.0
  %v3730 = vmax.f32 %v3658, 0.0
  %v3731 = vmax.f32 %v3659, 0.0
  %v3732 = vmax.f32 %v3660, 0.0
  %v3733 = vmax.f32 %v3661, 0.0
  %v3734 = vmax.f32 %v3662, 0.0
  %v3735 = vmax.f32 %v3663, 0.0
  %v3736 = vmax.f32 %v3664, 0.0
  %v3737 = vmax.f32 %v3665, 0.0
  %v3738 = vmax.f32 %v3666, 0.0
  %v3739 = vmax.f32 %v3667, 0.0
  %v3740 = vmax.f32 %v3668, 0.0
  %v3741 = vmax.f32 %v3669, 0.0
  %v3742 = vmax.f32 %v3670, 0.0
  %v3743 = vmax.f32 %v3671, 0.0
  %v3744 = vmax.f32 %v3672, 0.0
  %v3745 = vmax.f32 %v3673, 0.0
  %v3746 = vmax.f32 %v3674, 0.0
  %v3747 = vmax.f32 %v3675, 0.0
  %v3748 = vmax.f32 %v3676, 0.0
  %v3749 = vmax.f32 %v3677, 0.0
  %v3750 = vmax.f32 %v3678, 0.0
  %v3751 = vmax.f32 %v3679, 0.0
  %v3752 = vmax.f32 %v3680, 0.0
  %v3753 = vmax.f32 %v3681, 0.0
  %v3754 = vmax.f32 %v3682, 0.0
  %v3755 = vmax.f32 %v3683, 0.0
  %v3756 = vmax.f32 %v3684, 0.0
  %v3757 = vmax.f32 %v3685, 0.0
  %v3758 = vmax.f32 %v3686, 0.0
  %v3759 = vmax.f32 %v3687, 0.0
  %v3760 = vmax.f32 %v3688, 0.0
  %v3761 = vmax.f32 %v3689, 0.0
  %v3762 = vmax.f32 %v3690, 0.0
  %v3763 = vmax.f32 %v3691, 0.0
  %v3764 = vmax.f32 %v3692, 0.0
  %v3765 = vmax.f32 %v3693, 0.0
  %v3766 = vmax.f32 %v3694, 0.0
  %v3767 = vmax.f32 %v3695, 0.0
  %v3768 = vmax.f32 %v3696, 0.0
  %v3769 = vmax.f32 %v3697, 0.0
  %v3770 = vmax.f32 %v3698, 0.0
  %v3771 = vmax.f32 %v3699, 0.0
  %v3772 = vmax.f32 %v3700, 0.0
  %v3773 = vmax.f32 %v3701, 0.0
  %v3774 = vmax.f32 %v3702, 0.0
  %v3775 = vmax.f32 %v3703, 0.0
  %v3776 = vmax.f32 %v3704, 0.0
  %v3777 = vmax.f32 %v3705, 0.0
  %v3778 = vmax.f32 %v3706, 0.0
  %v3779 = vmax.f32 %v3707, 0.0
  %v3780 = vmax.f32 %v3708, 0.0
  %v3781 = vmax.f32 %v3709, 0.0
  %v3782 = vmax.f32 %v3710, 0.0
  %v3783 = vmax.f32 %v3711, 0.0
  %v3784 = vmax.f32 %v3712, 0.0
  %v3785 = vmax.f32 %v3713, 0.0
  %v3786 = vmax.f32 %v3714, 0.0
  %v3787 = vmax.f32 %v3715, 0.0
  %v3788 = vmax.f32 %v3716, 0.0
  %v3789 = vld [vmem:[%s4] sm:$0xff]
  %v3790 = vld [vmem:[%s4 + $0x8] sm:$0xff]
  %v3791 = vld [vmem:[%s4 + $0x10] sm:$0xff]
  %v3792 = vld [vmem:[%s4 + $0x18] sm:$0xff]
  %v3793 = vld [vmem:[%s4 + $0x20] sm:$0xff]
  %v3794 = vld [vmem:[%s4 + $0x28] sm:$0xff]
  %v3795 = vld [vmem:[%s4 + $0x30] sm:$0xff]
  %v3796 = vld [vmem:[%s4 + $0x38] sm:$0xff]
  %v3797 = vld [vmem:[%s4 + $0x40] sm:$0xff]
  %v3798 = vld [vmem:[%s4 + $0x48] sm:$0xff]
  %v3799 = vld [vmem:[%s4 + $0x50] sm:$0xff]
  %v3800 = vld [vmem:[%s4 + $0x58] sm:$0xff]
  %v3801 = vld [vmem:[%s4 + $0x60] sm:$0xff]
  %v3802 = vld [vmem:[%s4 + $0x68] sm:$0xff]
  %v3803 = vld [vmem:[%s4 + $0x70] sm:$0xff]
  %v3804 = vld [vmem:[%s4 + $0x78] sm:$0xff]
  %v3805 = vld [vmem:[%s4 + $0x80] sm:$0xff]
  %v3806 = vld [vmem:[%s4 + $0x88] sm:$0xff]
  %v3807 = vld [vmem:[%s4 + $0x90] sm:$0xff]
  %v3808 = vld [vmem:[%s4 + $0x98] sm:$0xff]
  %v3809 = vld [vmem:[%s4 + $0xa0] sm:$0xff]
  %v3810 = vld [vmem:[%s4 + $0xa8] sm:$0xff]
  %v3811 = vld [vmem:[%s4 + $0xb0] sm:$0xff]
  %v3812 = vld [vmem:[%s4 + $0xb8] sm:$0xff]
  %v3813 = vld [vmem:[%s4 + $0xc0] sm:$0xff]
  %v3814 = vld [vmem:[%s4 + $0xc8] sm:$0xff]
  %v3815 = vld [vmem:[%s4 + $0xd0] sm:$0xff]
  %v3816 = vld [vmem:[%s4 + $0xd8] sm:$0xff]
  %v3817 = vld [vmem:[%s4 + $0xe0] sm:$0xff]
  %v3818 = vld [vmem:[%s4 + $0xe8] sm:$0xff]
  %v3819 = vld [vmem:[%s4 + $0xf0] sm:$0xff]
  %v3820 = vld [vmem:[%s4 + $0xf8] sm:$0xff]
  %v3821 = vld [vmem:[%s4 + $0x100] sm:$0xff]
  %v3822 = vld [vmem:[%s4 + $0x108] sm:$0xff]
  %v3823 = vld [vmem:[%s4 + $0x110] sm:$0xff]
  %v3824 = vld [vmem:[%s4 + $0x118] sm:$0xff]
  %v3825 = vld [vmem:[%s4 + $0x120] sm:$0xff]
  %v3826 = vld [vmem:[%s4 + $0x128] sm:$0xff]
  %v3827 = vld [vmem:[%s4 + $0x130] sm:$0xff]
  %v3828 = vld [vmem:[%s4 + $0x138] sm:$0xff]
  %v3829 = vpack.c.bf16 %v3720, %v3717
  %v3830 = vpack.c.bf16 %v3721, %v3718
  %v3831 = vpack.c.bf16 %v3722, %v3719
  %v3832 = vpack.c.bf16 %v3726, %v3723
  %v3833 = vpack.c.bf16 %v3727, %v3724
  %v3834 = vpack.c.bf16 %v3728, %v3725
  %v3835 = vpack.c.bf16 %v3732, %v3729
  %v3836 = vpack.c.bf16 %v3733, %v3730
  %v3837 = vpack.c.bf16 %v3734, %v3731
  %v3838 = vpack.c.bf16 %v3738, %v3735
  %v3839 = vpack.c.bf16 %v3739, %v3736
  %v3840 = vpack.c.bf16 %v3740, %v3737
  %v3841 = vpack.c.bf16 %v3744, %v3741
  %v3842 = vpack.c.bf16 %v3745, %v3742
  %v3843 = vpack.c.bf16 %v3746, %v3743
  %v3844 = vpack.c.bf16 %v3750, %v3747
  %v3845 = vpack.c.bf16 %v3751, %v3748
  %v3846 = vpack.c.bf16 %v3752, %v3749
  %v3847 = vpack.c.bf16 %v3756, %v3753
  %v3848 = vpack.c.bf16 %v3757, %v3754
  %v3849 = vpack.c.bf16 %v3758, %v3755
  %v3850 = vpack.c.bf16 %v3762, %v3759
  %v3851 = vpack.c.bf16 %v3763, %v3760
  %v3852 = vpack.c.bf16 %v3764, %v3761
  %v3853 = vpack.c.bf16 %v3768, %v3765
  %v3854 = vpack.c.bf16 %v3769, %v3766
  %v3855 = vpack.c.bf16 %v3770, %v3767
  %v3856 = vpack.c.bf16 %v3774, %v3771
  %v3857 = vpack.c.bf16 %v3775, %v3772
  %v3858 = vpack.c.bf16 %v3776, %v3773
  %v3859 = vpack.c.bf16 %v3780, %v3777
  %v3860 = vpack.c.bf16 %v3781, %v3778
  %v3861 = vpack.c.bf16 %v3782, %v3779
  %v3862 = vpack.c.bf16 %v3786, %v3783
  %v3863 = vpack.c.bf16 %v3787, %v3784
  %v3864 = vpack.c.bf16 %v3788, %v3785
  %v3905 = vunpack.c.l.b16 %v3789
  %v3906 = vunpack.c.h.b16 %v3789
  %v3907 = vunpack.c.l.b16 %v3790
  %v3908 = vunpack.c.h.b16 %v3790
  %v3909 = vunpack.c.l.b16 %v3791
  %v3910 = vunpack.c.h.b16 %v3791
  %v3911 = vunpack.c.l.b16 %v3792
  %v3912 = vunpack.c.h.b16 %v3792
  %v3913 = vunpack.c.l.b16 %v3793
  %v3914 = vunpack.c.h.b16 %v3793
  %v3915 = vunpack.c.l.b16 %v3794
  %v3916 = vunpack.c.h.b16 %v3794
  %v3917 = vunpack.c.l.b16 %v3795
  %v3918 = vunpack.c.h.b16 %v3795
  %v3919 = vunpack.c.l.b16 %v3796
  %v3920 = vunpack.c.h.b16 %v3796
  %v3921 = vunpack.c.l.b16 %v3797
  %v3922 = vunpack.c.h.b16 %v3797
  %v3923 = vunpack.c.l.b16 %v3798
  %v3924 = vunpack.c.h.b16 %v3798
  %v3925 = vunpack.c.l.b16 %v3799
  %v3926 = vunpack.c.h.b16 %v3799
  %v3927 = vunpack.c.l.b16 %v3800
  %v3928 = vunpack.c.h.b16 %v3800
  %v3929 = vunpack.c.l.b16 %v3801
  %v3930 = vunpack.c.h.b16 %v3801
  %v3931 = vunpack.c.l.b16 %v3802
  %v3932 = vunpack.c.h.b16 %v3802
  %v3933 = vunpack.c.l.b16 %v3803
  %v3934 = vunpack.c.h.b16 %v3803
  %v3935 = vunpack.c.l.b16 %v3804
  %v3936 = vunpack.c.h.b16 %v3804
  %v3937 = vunpack.c.l.b16 %v3805
  %v3938 = vunpack.c.h.b16 %v3805
  %v3939 = vunpack.c.l.b16 %v3806
  %v3940 = vunpack.c.h.b16 %v3806
  %v3941 = vunpack.c.l.b16 %v3807
  %v3942 = vunpack.c.h.b16 %v3807
  %v3943 = vunpack.c.l.b16 %v3808
  %v3944 = vunpack.c.h.b16 %v3808
  %v3945 = vunpack.c.l.b16 %v3809
  %v3946 = vunpack.c.h.b16 %v3809
  %v3947 = vunpack.c.l.b16 %v3810
  %v3948 = vunpack.c.h.b16 %v3810
  %v3949 = vunpack.c.l.b16 %v3811
  %v3950 = vunpack.c.h.b16 %v3811
  %v3951 = vunpack.c.l.b16 %v3812
  %v3952 = vunpack.c.h.b16 %v3812
  %v3953 = vunpack.c.l.b16 %v3813
  %v3954 = vunpack.c.h.b16 %v3813
  %v3955 = vunpack.c.l.b16 %v3814
  %v3956 = vunpack.c.h.b16 %v3814
  %v3957 = vunpack.c.l.b16 %v3815
  %v3958 = vunpack.c.h.b16 %v3815
  %v3959 = vunpack.c.l.b16 %v3816
  %v3960 = vunpack.c.h.b16 %v3816
  %v3961 = vunpack.c.l.b16 %v3817
  %v3962 = vunpack.c.h.b16 %v3817
  %v3963 = vunpack.c.l.b16 %v3818
  %v3964 = vunpack.c.h.b16 %v3818
  %v3965 = vunpack.c.l.b16 %v3819
  %v3966 = vunpack.c.h.b16 %v3819
  %v3967 = vunpack.c.l.b16 %v3820
  %v3968 = vunpack.c.h.b16 %v3820
  %v3969 = vunpack.c.l.b16 %v3821
  %v3970 = vunpack.c.h.b16 %v3821
  %v3971 = vunpack.c.l.b16 %v3822
  %v3972 = vunpack.c.h.b16 %v3822
  %v3973 = vunpack.c.l.b16 %v3823
  %v3974 = vunpack.c.h.b16 %v3823
  %v3975 = vunpack.c.l.b16 %v3824
  %v3976 = vunpack.c.h.b16 %v3824
  %v3977 = vunpack.c.l.b16 %v3825
  %v3978 = vunpack.c.h.b16 %v3825
  %v3979 = vunpack.c.l.b16 %v3826
  %v3980 = vunpack.c.h.b16 %v3826
  %v3981 = vunpack.c.l.b16 %v3827
  %v3982 = vunpack.c.h.b16 %v3827
  %v3983 = vunpack.c.l.b16 %v3828
  %v3984 = vunpack.c.h.b16 %v3828
  %v3985 = vpack.c.b16 %v3907, %v3905
  %v3986 = vpack.c.b16 %v3908, %v3906
  %v3987 = vpack.c.b16 %v3911, %v3909
  %v3988 = vpack.c.b16 %v3912, %v3910
  %v3989 = vpack.c.b16 %v3915, %v3913
  %v3990 = vpack.c.b16 %v3916, %v3914
  %v3991 = vpack.c.b16 %v3919, %v3917
  %v3992 = vpack.c.b16 %v3920, %v3918
  %v3993 = vpack.c.b16 %v3923, %v3921
  %v3994 = vpack.c.b16 %v3924, %v3922
  %v3995 = vpack.c.b16 %v3927, %v3925
  %v3996 = vpack.c.b16 %v3928, %v3926
  %v3997 = vpack.c.b16 %v3931, %v3929
  %v3998 = vpack.c.b16 %v3932, %v3930
  %v3999 = vpack.c.b16 %v3935, %v3933
  %v4000 = vpack.c.b16 %v3936, %v3934
  %v4001 = vpack.c.b16 %v3939, %v3937
  %v4002 = vpack.c.b16 %v3940, %v3938
  %v4003 = vpack.c.b16 %v3943, %v3941
  %v4004 = vpack.c.b16 %v3944, %v3942
  %v4005 = vpack.c.b16 %v3947, %v3945
  %v4006 = vpack.c.b16 %v3948, %v3946
  %v4007 = vpack.c.b16 %v3951, %v3949
  %v4008 = vpack.c.b16 %v3952, %v3950
  %v4009 = vpack.c.b16 %v3955, %v3953
  %v4010 = vpack.c.b16 %v3956, %v3954
  %v4011 = vpack.c.b16 %v3959, %v3957
  %v4012 = vpack.c.b16 %v3960, %v3958
  %v4013 = vpack.c.b16 %v3963, %v3961
  %v4014 = vpack.c.b16 %v3964, %v3962
  %v4015 = vpack.c.b16 %v3967, %v3965
  %v4016 = vpack.c.b16 %v3968, %v3966
  %v4017 = vpack.c.b16 %v3971, %v3969
  %v4018 = vpack.c.b16 %v3972, %v3970
  %v4019 = vpack.c.b16 %v3975, %v3973
  %v4020 = vpack.c.b16 %v3976, %v3974
  %v4021 = vpack.c.b16 %v3979, %v3977
  %v4022 = vpack.c.b16 %v3980, %v3978
  %v4023 = vpack.c.b16 %v3983, %v3981
  %v4024 = vpack.c.b16 %v3984, %v3982
  %vm4045 = vcmask 523264
  %v4047 = vsel %vm4045, %v3986, 0
  %v4050 = vsel %vm4045, %v3988, 0
  %v4053 = vsel %vm4045, %v3990, 0
  %v4056 = vsel %vm4045, %v3992, 0
  %v4059 = vsel %vm4045, %v3994, 0
  %v4062 = vsel %vm4045, %v3996, 0
  %v4065 = vsel %vm4045, %v3998, 0
  %v4068 = vsel %vm4045, %v4000, 0
  %v4071 = vsel %vm4045, %v4002, 0
  %v4074 = vsel %vm4045, %v4004, 0
  %v4077 = vsel %vm4045, %v4006, 0
  %v4080 = vsel %vm4045, %v4008, 0
  %v4083 = vsel %vm4045, %v4010, 0
  %v4086 = vsel %vm4045, %v4012, 0
  %v4089 = vsel %vm4045, %v4014, 0
  %v4092 = vsel %vm4045, %v4016, 0
  %v4095 = vsel %vm4045, %v4018, 0
  %v4098 = vsel %vm4045, %v4020, 0
  %v4101 = vsel %vm4045, %v4022, 0
  %v4104 = vsel %vm4045, %v4024, 0
  %4106 = vmatprep.subr.bf16.mxu0 %v3830
  %4107 = vmatpush1.bf16.msra.mxu0 %v3829
  %4108 = vmatprep.subr.bf16.mxu0 %v3833
  %4109 = vmatpush1.bf16.msra.mxu0 %v3832
  %4110 = vmatprep.subr.bf16.mxu0 %v3836
  %4111 = vmatpush1.bf16.msra.mxu0 %v3835
  %4112 = vmatprep.subr.bf16.mxu0 %v3839
  %4113 = vmatpush1.bf16.msra.mxu0 %v3838
  %4114 = vmatprep.subr.bf16.mxu0 %v3842
  %4115 = vmatpush1.bf16.msra.mxu0 %v3841
  %4116 = vmatprep.subr.bf16.mxu0 %v3845
  %4117 = vmatpush1.bf16.msra.mxu0 %v3844
  %4118 = vmatprep.subr.bf16.mxu0 %v3848
  %4119 = vmatpush1.bf16.msra.mxu0 %v3847
  %4120 = vmatprep.subr.bf16.mxu0 %v3851
  %4121 = vmatpush1.bf16.msra.mxu0 %v3850
  %4122 = vmatprep.subr.bf16.mxu0 %v3854
  %4123 = vmatpush1.bf16.msra.mxu0 %v3853
  %4124 = vmatprep.subr.bf16.mxu0 %v3857
  %4125 = vmatpush1.bf16.msra.mxu0 %v3856
  %4126 = vmatprep.subr.bf16.mxu0 %v3860
  %4127 = vmatpush1.bf16.msra.mxu0 %v3859
  %4128 = vmatprep.subr.bf16.mxu0 %v3863
  %4129 = vmatpush1.bf16.msra.mxu0 %v3862
  %4130 = vmatprep.subr.bf16.mxu0 0
  %4131 = vmatpush1.bf16.msra.mxu0 0
  %4132 = vmatprep.subr.bf16.mxu0 0
  %4133 = vmatpush1.bf16.msra.mxu0 0
  %4134 = vmatprep.subr.bf16.mxu0 0
  %4135 = vmatpush1.bf16.msra.mxu0 0
  %4136 = vmatprep.subr.bf16.mxu0 0
  %4137 = vmatpush1.bf16.msra.mxu0 0
  %4138 = vmatprep.mubr.bf16.mxu0 %v4047
  %4139 = vmatmul.mubr.bf16.gmra.mrb[0].mxu0 %v3985
  %v4140 = vpop.f32.mrb[0].mxu0
  %v4141 = vadd.f32 0.0, %v4140
  %v4142 = vpop.f32.mrb[0].mxu0
  %v4143 = vadd.f32 0.0, %v4142
  %v4144 = vpop.f32.mrb[0].mxu0
  %v4145 = vadd.f32 0.0, %v4144
  %v4146 = vpop.f32.mrb[0].mxu0
  %v4147 = vadd.f32 0.0, %v4146
  %4148 = vmatprep.mubr.bf16.mxu0 %v4050
  %4149 = vmatmul.mubr.bf16.gmra.mrb[0].mxu0 %v3987
  %v4150 = vpop.f32.mrb[0].mxu0
  %v4151 = vadd.f32 0.0, %v4150
  %v4152 = vpop.f32.mrb[0].mxu0
  %v4153 = vadd.f32 0.0, %v4152
  %v4154 = vpop.f32.mrb[0].mxu0
  %v4155 = vadd.f32 0.0, %v4154
  %v4156 = vpop.f32.mrb[0].mxu0
  %v4157 = vadd.f32 0.0, %v4156
  %4158 = vmatprep.mubr.bf16.mxu0 %v4053
  %4159 = vmatmul.mubr.bf16.gmra.mrb[0].mxu0 %v3989
  %v4160 = vpop.f32.mrb[0].mxu0
  %v4161 = vadd.f32 0.0, %v4160
  %v4162 = vpop.f32.mrb[0].mxu0
  %v4163 = vadd.f32 0.0, %v4162
  %v4164 = vpop.f32.mrb[0].mxu0
  %v4165 = vadd.f32 0.0, %v4164
  %v4166 = vpop.f32.mrb[0].mxu0
  %v4167 = vadd.f32 0.0, %v4166
  %4168 = vmatprep.mubr.bf16.mxu0 %v4056
  %4169 = vmatmul.mubr.bf16.gmra.mrb[0].mxu0 %v3991
  %v4170 = vpop.f32.mrb[0].mxu0
  %v4171 = vadd.f32 0.0, %v4170
  %v4172 = vpop.f32.mrb[0].mxu0
  %v4173 = vadd.f32 0.0, %v4172
  %v4174 = vpop.f32.mrb[0].mxu0
  %v4175 = vadd.f32 0.0, %v4174
  %v4176 = vpop.f32.mrb[0].mxu0
  %v4177 = vadd.f32 0.0, %v4176
  %4178 = vmatprep.mubr.bf16.mxu0 %v4059
  %4179 = vmatmul.mubr.bf16.gmra.mrb[0].mxu0 %v3993
  %v4180 = vpop.f32.mrb[0].mxu0
  %v4181 = vadd.f32 0.0, %v4180
  %v4182 = vpop.f32.mrb[0].mxu0
  %v4183 = vadd.f32 0.0, %v4182
  %v4184 = vpop.f32.mrb[0].mxu0
  %v4185 = vadd.f32 0.0, %v4184
  %v4186 = vpop.f32.mrb[0].mxu0
  %v4187 = vadd.f32 0.0, %v4186
  %4188 = vmatprep.mubr.bf16.mxu0 %v4062
  %4189 = vmatmul.mubr.bf16.gmra.mrb[0].mxu0 %v3995
  %v4190 = vpop.f32.mrb[0].mxu0
  %v4191 = vadd.f32 0.0, %v4190
  %v4192 = vpop.f32.mrb[0].mxu0
  %v4193 = vadd.f32 0.0, %v4192
  %v4194 = vpop.f32.mrb[0].mxu0
  %v4195 = vadd.f32 0.0, %v4194
  %v4196 = vpop.f32.mrb[0].mxu0
  %v4197 = vadd.f32 0.0, %v4196
  %4198 = vmatprep.mubr.bf16.mxu0 %v4065
  %4199 = vmatmul.mubr.bf16.gmra.mrb[0].mxu0 %v3997
  %v4200 = vpop.f32.mrb[0].mxu0
  %v4201 = vadd.f32 0.0, %v4200
  %v4202 = vpop.f32.mrb[0].mxu0
  %v4203 = vadd.f32 0.0, %v4202
  %v4204 = vpop.f32.mrb[0].mxu0
  %v4205 = vadd.f32 0.0, %v4204
  %v4206 = vpop.f32.mrb[0].mxu0
  %v4207 = vadd.f32 0.0, %v4206
  %4208 = vmatprep.mubr.bf16.mxu0 %v4068
  %4209 = vmatmul.mubr.bf16.gmra.mrb[0].mxu0 %v3999
  %v4210 = vpop.f32.mrb[0].mxu0
  %v4211 = vadd.f32 0.0, %v4210
  %v4212 = vpop.f32.mrb[0].mxu0
  %v4213 = vadd.f32 0.0, %v4212
  %v4214 = vpop.f32.mrb[0].mxu0
  %v4215 = vadd.f32 0.0, %v4214
  %v4216 = vpop.f32.mrb[0].mxu0
  %v4217 = vadd.f32 0.0, %v4216
  %4218 = vmatprep.mubr.bf16.mxu0 %v4071
  %4219 = vmatmul.mubr.bf16.gmra.mrb[0].mxu0 %v4001
  %v4220 = vpop.f32.mrb[0].mxu0
  %v4221 = vadd.f32 0.0, %v4220
  %v4222 = vpop.f32.mrb[0].mxu0
  %v4223 = vadd.f32 0.0, %v4222
  %v4224 = vpop.f32.mrb[0].mxu0
  %v4225 = vadd.f32 0.0, %v4224
  %v4226 = vpop.f32.mrb[0].mxu0
  %v4227 = vadd.f32 0.0, %v4226
  %4228 = vmatprep.mubr.bf16.mxu0 %v4074
  %4229 = vmatmul.mubr.bf16.gmra.mrb[0].mxu0 %v4003
  %v4230 = vpop.f32.mrb[0].mxu0
  %v4231 = vadd.f32 0.0, %v4230
  %v4232 = vpop.f32.mrb[0].mxu0
  %v4233 = vadd.f32 0.0, %v4232
  %v4234 = vpop.f32.mrb[0].mxu0
  %v4235 = vadd.f32 0.0, %v4234
  %v4236 = vpop.f32.mrb[0].mxu0
  %v4237 = vadd.f32 0.0, %v4236
  %4238 = vmatprep.mubr.bf16.mxu0 %v4077
  %4239 = vmatmul.mubr.bf16.gmra.mrb[0].mxu0 %v4005
  %v4240 = vpop.f32.mrb[0].mxu0
  %v4241 = vadd.f32 0.0, %v4240
  %v4242 = vpop.f32.mrb[0].mxu0
  %v4243 = vadd.f32 0.0, %v4242
  %v4244 = vpop.f32.mrb[0].mxu0
  %v4245 = vadd.f32 0.0, %v4244
  %v4246 = vpop.f32.mrb[0].mxu0
  %v4247 = vadd.f32 0.0, %v4246
  %4248 = vmatprep.mubr.bf16.mxu0 %v4080
  %4249 = vmatmul.mubr.bf16.gmra.mrb[0].mxu0 %v4007
  %v4250 = vpop.f32.mrb[0].mxu0
  %v4251 = vadd.f32 0.0, %v4250
  %v4252 = vpop.f32.mrb[0].mxu0
  %v4253 = vadd.f32 0.0, %v4252
  %v4254 = vpop.f32.mrb[0].mxu0
  %v4255 = vadd.f32 0.0, %v4254
  %v4256 = vpop.f32.mrb[0].mxu0
  %v4257 = vadd.f32 0.0, %v4256
  %4258 = vmatprep.mubr.bf16.mxu0 %v4083
  %4259 = vmatmul.mubr.bf16.gmra.mrb[0].mxu0 %v4009
  %v4260 = vpop.f32.mrb[0].mxu0
  %v4261 = vadd.f32 0.0, %v4260
  %v4262 = vpop.f32.mrb[0].mxu0
  %v4263 = vadd.f32 0.0, %v4262
  %v4264 = vpop.f32.mrb[0].mxu0
  %v4265 = vadd.f32 0.0, %v4264
  %v4266 = vpop.f32.mrb[0].mxu0
  %v4267 = vadd.f32 0.0, %v4266
  %4268 = vmatprep.mubr.bf16.mxu0 %v4086
  %4269 = vmatmul.mubr.bf16.gmra.mrb[0].mxu0 %v4011
  %v4270 = vpop.f32.mrb[0].mxu0
  %v4271 = vadd.f32 0.0, %v4270
  %v4272 = vpop.f32.mrb[0].mxu0
  %v4273 = vadd.f32 0.0, %v4272
  %v4274 = vpop.f32.mrb[0].mxu0
  %v4275 = vadd.f32 0.0, %v4274
  %v4276 = vpop.f32.mrb[0].mxu0
  %v4277 = vadd.f32 0.0, %v4276
  %4278 = vmatprep.mubr.bf16.mxu0 %v4089
  %4279 = vmatmul.mubr.bf16.gmra.mrb[0].mxu0 %v4013
  %v4280 = vpop.f32.mrb[0].mxu0
  %v4281 = vadd.f32 0.0, %v4280
  %v4282 = vpop.f32.mrb[0].mxu0
  %v4283 = vadd.f32 0.0, %v4282
  %v4284 = vpop.f32.mrb[0].mxu0
  %v4285 = vadd.f32 0.0, %v4284
  %v4286 = vpop.f32.mrb[0].mxu0
  %v4287 = vadd.f32 0.0, %v4286
  %4288 = vmatprep.mubr.bf16.mxu0 %v4092
  %4289 = vmatmul.mubr.bf16.gmra.mrb[0].mxu0 %v4015
  %v4290 = vpop.f32.mrb[0].mxu0
  %v4291 = vadd.f32 0.0, %v4290
  %v4292 = vpop.f32.mrb[0].mxu0
  %v4293 = vadd.f32 0.0, %v4292
  %v4294 = vpop.f32.mrb[0].mxu0
  %v4295 = vadd.f32 0.0, %v4294
  %v4296 = vpop.f32.mrb[0].mxu0
  %v4297 = vadd.f32 0.0, %v4296
  %4298 = vmatprep.mubr.bf16.mxu0 %v4095
  %4299 = vmatmul.mubr.bf16.gmra.mrb[0].mxu0 %v4017
  %v4300 = vpop.f32.mrb[0].mxu0
  %v4301 = vadd.f32 0.0, %v4300
  %v4302 = vpop.f32.mrb[0].mxu0
  %v4303 = vadd.f32 0.0, %v4302
  %v4304 = vpop.f32.mrb[0].mxu0
  %v4305 = vadd.f32 0.0, %v4304
  %v4306 = vpop.f32.mrb[0].mxu0
  %v4307 = vadd.f32 0.0, %v4306
  %4308 = vmatprep.mubr.bf16.mxu0 %v4098
  %4309 = vmatmul.mubr.bf16.gmra.mrb[0].mxu0 %v4019
  %v4310 = vpop.f32.mrb[0].mxu0
  %v4311 = vadd.f32 0.0, %v4310
  %v4312 = vpop.f32.mrb[0].mxu0
  %v4313 = vadd.f32 0.0, %v4312
  %v4314 = vpop.f32.mrb[0].mxu0
  %v4315 = vadd.f32 0.0, %v4314
  %v4316 = vpop.f32.mrb[0].mxu0
  %v4317 = vadd.f32 0.0, %v4316
  %4318 = vmatprep.mubr.bf16.mxu0 %v4101
  %4319 = vmatmul.mubr.bf16.gmra.mrb[0].mxu0 %v4021
  %v4320 = vpop.f32.mrb[0].mxu0
  %v4321 = vadd.f32 0.0, %v4320
  %v4322 = vpop.f32.mrb[0].mxu0
  %v4323 = vadd.f32 0.0, %v4322
  %v4324 = vpop.f32.mrb[0].mxu0
  %v4325 = vadd.f32 0.0, %v4324
  %v4326 = vpop.f32.mrb[0].mxu0
  %v4327 = vadd.f32 0.0, %v4326
  %4328 = vmatprep.mubr.bf16.mxu0 %v4104
  %4329 = vmatmul.mubr.bf16.gmra.mrb[0].mxu0 %v4023
  %v4330 = vpop.f32.mrb[0].mxu0
  %v4331 = vadd.f32 0.0, %v4330
  %v4332 = vpop.f32.mrb[0].mxu0
  %v4333 = vadd.f32 0.0, %v4332
  %v4334 = vpop.f32.mrb[0].mxu0
  %v4335 = vadd.f32 0.0, %v4334
  %v4336 = vpop.f32.mrb[0].mxu0
  %v4337 = vadd.f32 0.0, %v4336
  %4338 = vdwg.mxu0
  %4339 = vmatprep.subr.bf16.mxu0 0
  %4340 = vmatpush1.bf16.msra.mxu0 %v3831
  %4341 = vmatprep.subr.bf16.mxu0 0
  %4342 = vmatpush1.bf16.msra.mxu0 %v3834
  %4343 = vmatprep.subr.bf16.mxu0 0
  %4344 = vmatpush1.bf16.msra.mxu0 %v3837
  %4345 = vmatprep.subr.bf16.mxu0 0
  %4346 = vmatpush1.bf16.msra.mxu0 %v3840
  %4347 = vmatprep.subr.bf16.mxu0 0
  %4348 = vmatpush1.bf16.msra.mxu0 %v3843
  %4349 = vmatprep.subr.bf16.mxu0 0
  %4350 = vmatpush1.bf16.msra.mxu0 %v3846
  %4351 = vmatprep.subr.bf16.mxu0 0
  %4352 = vmatpush1.bf16.msra.mxu0 %v3849
  %4353 = vmatprep.subr.bf16.mxu0 0
  %4354 = vmatpush1.bf16.msra.mxu0 %v3852
  %4355 = vmatprep.subr.bf16.mxu0 0
  %4356 = vmatpush1.bf16.msra.mxu0 %v3855
  %4357 = vmatprep.subr.bf16.mxu0 0
  %4358 = vmatpush1.bf16.msra.mxu0 %v3858
  %4359 = vmatprep.subr.bf16.mxu0 0
  %4360 = vmatpush1.bf16.msra.mxu0 %v3861
  %4361 = vmatprep.subr.bf16.mxu0 0
  %4362 = vmatpush1.bf16.msra.mxu0 %v3864
  %4363 = vmatprep.subr.bf16.mxu0 0
  %4364 = vmatpush1.bf16.msra.mxu0 0
  %4365 = vmatprep.subr.bf16.mxu0 0
  %4366 = vmatpush1.bf16.msra.mxu0 0
  %4367 = vmatprep.subr.bf16.mxu0 0
  %4368 = vmatpush1.bf16.msra.mxu0 0
  %4369 = vmatprep.subr.bf16.mxu0 0
  %4370 = vmatpush1.bf16.msra.mxu0 0
  %4371 = vmatprep.mubr.bf16.mxu0 %v4047
  %4372 = vmatmul.mubr.bf16.gmra.mrb[0].mxu0 %v3985
  %v4373 = vpop.f32.mrb[0].mxu0
  %v4374 = vadd.f32 0.0, %v4373
  %v4375 = vpop.f32.mrb[0].mxu0
  %v4376 = vpop.f32.mrb[0].mxu0
  %v4377 = vadd.f32 0.0, %v4376
  %v4378 = vpop.f32.mrb[0].mxu0
  %4379 = vmatprep.mubr.bf16.mxu0 %v4050
  %4380 = vmatmul.mubr.bf16.gmra.mrb[0].mxu0 %v3987
  %v4381 = vpop.f32.mrb[0].mxu0
  %v4382 = vadd.f32 0.0, %v4381
  %v4383 = vpop.f32.mrb[0].mxu0
  %v4384 = vpop.f32.mrb[0].mxu0
  %v4385 = vadd.f32 0.0, %v4384
  %v4386 = vpop.f32.mrb[0].mxu0
  %4387 = vmatprep.mubr.bf16.mxu0 %v4053
  %4388 = vmatmul.mubr.bf16.gmra.mrb[0].mxu0 %v3989
  %v4389 = vpop.f32.mrb[0].mxu0
  %v4390 = vadd.f32 0.0, %v4389
  %v4391 = vpop.f32.mrb[0].mxu0
  %v4392 = vpop.f32.mrb[0].mxu0
  %v4393 = vadd.f32 0.0, %v4392
  %v4394 = vpop.f32.mrb[0].mxu0
  %4395 = vmatprep.mubr.bf16.mxu0 %v4056
  %4396 = vmatmul.mubr.bf16.gmra.mrb[0].mxu0 %v3991
  %v4397 = vpop.f32.mrb[0].mxu0
  %v4398 = vadd.f32 0.0, %v4397
  %v4399 = vpop.f32.mrb[0].mxu0
  %v4400 = vpop.f32.mrb[0].mxu0
  %v4401 = vadd.f32 0.0, %v4400
  %v4402 = vpop.f32.mrb[0].mxu0
  %4403 = vmatprep.mubr.bf16.mxu0 %v4059
  %4404 = vmatmul.mubr.bf16.gmra.mrb[0].mxu0 %v3993
  %v4405 = vpop.f32.mrb[0].mxu0
  %v4406 = vadd.f32 0.0, %v4405
  %v4407 = vpop.f32.mrb[0].mxu0
  %v4408 = vpop.f32.mrb[0].mxu0
  %v4409 = vadd.f32 0.0, %v4408
  %v4410 = vpop.f32.mrb[0].mxu0
  %4411 = vmatprep.mubr.bf16.mxu0 %v4062
  %4412 = vmatmul.mubr.bf16.gmra.mrb[0].mxu0 %v3995
  %v4413 = vpop.f32.mrb[0].mxu0
  %v4414 = vadd.f32 0.0, %v4413
  %v4415 = vpop.f32.mrb[0].mxu0
  %v4416 = vpop.f32.mrb[0].mxu0
  %v4417 = vadd.f32 0.0, %v4416
  %v4418 = vpop.f32.mrb[0].mxu0
  %4419 = vmatprep.mubr.bf16.mxu0 %v4065
  %4420 = vmatmul.mubr.bf16.gmra.mrb[0].mxu0 %v3997
  %v4421 = vpop.f32.mrb[0].mxu0
  %v4422 = vadd.f32 0.0, %v4421
  %v4423 = vpop.f32.mrb[0].mxu0
  %v4424 = vpop.f32.mrb[0].mxu0
  %v4425 = vadd.f32 0.0, %v4424
  %v4426 = vpop.f32.mrb[0].mxu0
  %4427 = vmatprep.mubr.bf16.mxu0 %v4068
  %4428 = vmatmul.mubr.bf16.gmra.mrb[0].mxu0 %v3999
  %v4429 = vpop.f32.mrb[0].mxu0
  %v4430 = vadd.f32 0.0, %v4429
  %v4431 = vpop.f32.mrb[0].mxu0
  %v4432 = vpop.f32.mrb[0].mxu0
  %v4433 = vadd.f32 0.0, %v4432
  %v4434 = vpop.f32.mrb[0].mxu0
  %4435 = vmatprep.mubr.bf16.mxu0 %v4071
  %4436 = vmatmul.mubr.bf16.gmra.mrb[0].mxu0 %v4001
  %v4437 = vpop.f32.mrb[0].mxu0
  %v4438 = vadd.f32 0.0, %v4437
  %v4439 = vpop.f32.mrb[0].mxu0
  %v4440 = vpop.f32.mrb[0].mxu0
  %v4441 = vadd.f32 0.0, %v4440
  %v4442 = vpop.f32.mrb[0].mxu0
  %4443 = vmatprep.mubr.bf16.mxu0 %v4074
  %4444 = vmatmul.mubr.bf16.gmra.mrb[0].mxu0 %v4003
  %v4445 = vpop.f32.mrb[0].mxu0
  %v4446 = vadd.f32 0.0, %v4445
  %v4447 = vpop.f32.mrb[0].mxu0
  %v4448 = vpop.f32.mrb[0].mxu0
  %v4449 = vadd.f32 0.0, %v4448
  %v4450 = vpop.f32.mrb[0].mxu0
  %4451 = vmatprep.mubr.bf16.mxu0 %v4077
  %4452 = vmatmul.mubr.bf16.gmra.mrb[0].mxu0 %v4005
  %v4453 = vpop.f32.mrb[0].mxu0
  %v4454 = vadd.f32 0.0, %v4453
  %v4455 = vpop.f32.mrb[0].mxu0
  %v4456 = vpop.f32.mrb[0].mxu0
  %v4457 = vadd.f32 0.0, %v4456
  %v4458 = vpop.f32.mrb[0].mxu0
  %4459 = vmatprep.mubr.bf16.mxu0 %v4080
  %4460 = vmatmul.mubr.bf16.gmra.mrb[0].mxu0 %v4007
  %v4461 = vpop.f32.mrb[0].mxu0
  %v4462 = vadd.f32 0.0, %v4461
  %v4463 = vpop.f32.mrb[0].mxu0
  %v4464 = vpop.f32.mrb[0].mxu0
  %v4465 = vadd.f32 0.0, %v4464
  %v4466 = vpop.f32.mrb[0].mxu0
  %4467 = vmatprep.mubr.bf16.mxu0 %v4083
  %4468 = vmatmul.mubr.bf16.gmra.mrb[0].mxu0 %v4009
  %v4469 = vpop.f32.mrb[0].mxu0
  %v4470 = vadd.f32 0.0, %v4469
  %v4471 = vpop.f32.mrb[0].mxu0
  %v4472 = vpop.f32.mrb[0].mxu0
  %v4473 = vadd.f32 0.0, %v4472
  %v4474 = vpop.f32.mrb[0].mxu0
  %4475 = vmatprep.mubr.bf16.mxu0 %v4086
  %4476 = vmatmul.mubr.bf16.gmra.mrb[0].mxu0 %v4011
  %v4477 = vpop.f32.mrb[0].mxu0
  %v4478 = vadd.f32 0.0, %v4477
  %v4479 = vpop.f32.mrb[0].mxu0
  %v4480 = vpop.f32.mrb[0].mxu0
  %v4481 = vadd.f32 0.0, %v4480
  %v4482 = vpop.f32.mrb[0].mxu0
  %4483 = vmatprep.mubr.bf16.mxu0 %v4089
  %4484 = vmatmul.mubr.bf16.gmra.mrb[0].mxu0 %v4013
  %v4485 = vpop.f32.mrb[0].mxu0
  %v4486 = vadd.f32 0.0, %v4485
  %v4487 = vpop.f32.mrb[0].mxu0
  %v4488 = vpop.f32.mrb[0].mxu0
  %v4489 = vadd.f32 0.0, %v4488
  %v4490 = vpop.f32.mrb[0].mxu0
  %4491 = vmatprep.mubr.bf16.mxu0 %v4092
  %4492 = vmatmul.mubr.bf16.gmra.mrb[0].mxu0 %v4015
  %v4493 = vpop.f32.mrb[0].mxu0
  %v4494 = vadd.f32 0.0, %v4493
  %v4495 = vpop.f32.mrb[0].mxu0
  %v4496 = vpop.f32.mrb[0].mxu0
  %v4497 = vadd.f32 0.0, %v4496
  %v4498 = vpop.f32.mrb[0].mxu0
  %4499 = vmatprep.mubr.bf16.mxu0 %v4095
  %4500 = vmatmul.mubr.bf16.gmra.mrb[0].mxu0 %v4017
  %v4501 = vpop.f32.mrb[0].mxu0
  %v4502 = vadd.f32 0.0, %v4501
  %v4503 = vpop.f32.mrb[0].mxu0
  %v4504 = vpop.f32.mrb[0].mxu0
  %v4505 = vadd.f32 0.0, %v4504
  %v4506 = vpop.f32.mrb[0].mxu0
  %4507 = vmatprep.mubr.bf16.mxu0 %v4098
  %4508 = vmatmul.mubr.bf16.gmra.mrb[0].mxu0 %v4019
  %v4509 = vpop.f32.mrb[0].mxu0
  %v4510 = vadd.f32 0.0, %v4509
  %v4511 = vpop.f32.mrb[0].mxu0
  %v4512 = vpop.f32.mrb[0].mxu0
  %v4513 = vadd.f32 0.0, %v4512
  %v4514 = vpop.f32.mrb[0].mxu0
  %4515 = vmatprep.mubr.bf16.mxu0 %v4101
  %4516 = vmatmul.mubr.bf16.gmra.mrb[0].mxu0 %v4021
  %v4517 = vpop.f32.mrb[0].mxu0
  %v4518 = vadd.f32 0.0, %v4517
  %v4519 = vpop.f32.mrb[0].mxu0
  %v4520 = vpop.f32.mrb[0].mxu0
  %v4521 = vadd.f32 0.0, %v4520
  %v4522 = vpop.f32.mrb[0].mxu0
  %4523 = vmatprep.mubr.bf16.mxu0 %v4104
  %4524 = vmatmul.mubr.bf16.gmra.mrb[0].mxu0 %v4023
  %v4525 = vpop.f32.mrb[0].mxu0
  %v4526 = vadd.f32 0.0, %v4525
  %v4527 = vpop.f32.mrb[0].mxu0
  %v4528 = vpop.f32.mrb[0].mxu0
  %v4529 = vadd.f32 0.0, %v4528
  %v4530 = vpop.f32.mrb[0].mxu0
  %4531 = vdwg.mxu0
  %v4532 = vld [vmem:[%s5] sm:$0xf]
  %v4533 = vld [vmem:[%s5 + $0x4] sm:$0xf]
  %v4534 = vld [vmem:[%s5 + $0x8] sm:$0xf]
  %v4535 = vld [vmem:[%s5 + $0xc] sm:$0xf]
  %v4536 = vld [vmem:[%s5 + $0x10] sm:$0xf]
  %v4537 = vld [vmem:[%s5 + $0x14] sm:$0xf]
  %v4538 = vld [vmem:[%s5 + $0x18] sm:$0xf]
  %v4539 = vld [vmem:[%s5 + $0x1c] sm:$0xf]
  %v4540 = vld [vmem:[%s5 + $0x20] sm:$0xf]
  %v4541 = vld [vmem:[%s5 + $0x24] sm:$0xf]
  %v4542 = vld [vmem:[%s5 + $0x28] sm:$0xf]
  %v4543 = vld [vmem:[%s5 + $0x2c] sm:$0xf]
  %v4544 = vld [vmem:[%s5 + $0x30] sm:$0xf]
  %v4545 = vld [vmem:[%s5 + $0x34] sm:$0xf]
  %v4546 = vld [vmem:[%s5 + $0x38] sm:$0xf]
  %v4547 = vld [vmem:[%s5 + $0x3c] sm:$0xf]
  %v4548 = vld [vmem:[%s5 + $0x40] sm:$0xf]
  %v4549 = vld [vmem:[%s5 + $0x44] sm:$0xf]
  %v4550 = vld [vmem:[%s5 + $0x48] sm:$0xf]
  %v4551 = vld [vmem:[%s5 + $0x4c] sm:$0xf]
  %v4552 = vld [vmem:[%s5 + $0x50] sm:$0xf]
  %v4553 = vld [vmem:[%s5 + $0x54] sm:$0xf]
  %v4554 = vld [vmem:[%s5 + $0x58] sm:$0xf]
  %v4555 = vld [vmem:[%s5 + $0x5c] sm:$0xf]
  %v4556 = vld [vmem:[%s5 + $0x60] sm:$0xf]
  %v4557 = vld [vmem:[%s5 + $0x64] sm:$0xf]
  %v4558 = vld [vmem:[%s5 + $0x68] sm:$0xf]
  %v4559 = vld [vmem:[%s5 + $0x6c] sm:$0xf]
  %v4560 = vld [vmem:[%s5 + $0x70] sm:$0xf]
  %v4561 = vld [vmem:[%s5 + $0x74] sm:$0xf]
  %v4562 = vld [vmem:[%s5 + $0x78] sm:$0xf]
  %v4563 = vld [vmem:[%s5 + $0x7c] sm:$0xf]
  %v4564 = vld [vmem:[%s5 + $0x80] sm:$0xf]
  %v4565 = vld [vmem:[%s5 + $0x84] sm:$0xf]
  %v4566 = vld [vmem:[%s5 + $0x88] sm:$0xf]
  %v4567 = vld [vmem:[%s5 + $0x8c] sm:$0xf]
  %v4568 = vld [vmem:[%s5 + $0x90] sm:$0xf]
  %v4569 = vld [vmem:[%s5 + $0x94] sm:$0xf]
  %v4570 = vld [vmem:[%s5 + $0x98] sm:$0xf]
  %v4571 = vld [vmem:[%s5 + $0x9c] sm:$0xf]
  %v4572 = vld [vmem:[%s5 + $0xa0] sm:$0xf]
  %v4573 = vld [vmem:[%s5 + $0xa4] sm:$0xf]
  %v4574 = vld [vmem:[%s5 + $0xa8] sm:$0xf]
  %v4575 = vld [vmem:[%s5 + $0xac] sm:$0xf]
  %v4576 = vld [vmem:[%s5 + $0xb0] sm:$0xf]
  %v4577 = vld [vmem:[%s5 + $0xb4] sm:$0xf]
  %v4578 = vld [vmem:[%s5 + $0xb8] sm:$0xf]
  %v4579 = vld [vmem:[%s5 + $0xbc] sm:$0xf]
  %v4580 = vpack.c.bf16 %v4145, %v4141
  %v4581 = vpack.c.bf16 %v4147, %v4143
  %v4582 = vpack.c.bf16 %v4377, %v4374
  %v4583 = vpack.c.bf16 %v4155, %v4151
  %v4584 = vpack.c.bf16 %v4157, %v4153
  %v4585 = vpack.c.bf16 %v4385, %v4382
  %v4586 = vpack.c.bf16 %v4165, %v4161
  %v4587 = vpack.c.bf16 %v4167, %v4163
  %v4588 = vpack.c.bf16 %v4393, %v4390
  %v4589 = vpack.c.bf16 %v4175, %v4171
  %v4590 = vpack.c.bf16 %v4177, %v4173
  %v4591 = vpack.c.bf16 %v4401, %v4398
  %s4592 = scalar_lea.vmem %s5, 192
  %v4593 = vld [vmem:[%s4592] sm:$0xf]
  %v4594 = vld [vmem:[%s4592 + $0x4] sm:$0xf]
  %v4595 = vld [vmem:[%s4592 + $0x8] sm:$0xf]
  %v4596 = vld [vmem:[%s4592 + $0xc] sm:$0xf]
  %v4597 = vld [vmem:[%s4592 + $0x10] sm:$0xf]
  %v4598 = vld [vmem:[%s4592 + $0x14] sm:$0xf]
  %v4599 = vld [vmem:[%s4592 + $0x18] sm:$0xf]
  %v4600 = vld [vmem:[%s4592 + $0x1c] sm:$0xf]
  %v4601 = vld [vmem:[%s4592 + $0x20] sm:$0xf]
  %v4602 = vld [vmem:[%s4592 + $0x24] sm:$0xf]
  %v4603 = vld [vmem:[%s4592 + $0x28] sm:$0xf]
  %v4604 = vld [vmem:[%s4592 + $0x2c] sm:$0xf]
  %v4605 = vld [vmem:[%s4592 + $0x30] sm:$0xf]
  %v4606 = vld [vmem:[%s4592 + $0x34] sm:$0xf]
  %v4607 = vld [vmem:[%s4592 + $0x38] sm:$0xf]
  %v4608 = vld [vmem:[%s4592 + $0x3c] sm:$0xf]
  %v4609 = vld [vmem:[%s4592 + $0x40] sm:$0xf]
  %v4610 = vld [vmem:[%s4592 + $0x44] sm:$0xf]
  %v4611 = vld [vmem:[%s4592 + $0x48] sm:$0xf]
  %v4612 = vld [vmem:[%s4592 + $0x4c] sm:$0xf]
  %v4613 = vld [vmem:[%s4592 + $0x50] sm:$0xf]
  %v4614 = vld [vmem:[%s4592 + $0x54] sm:$0xf]
  %v4615 = vld [vmem:[%s4592 + $0x58] sm:$0xf]
  %v4616 = vld [vmem:[%s4592 + $0x5c] sm:$0xf]
  %v4617 = vld [vmem:[%s4592 + $0x60] sm:$0xf]
  %v4618 = vld [vmem:[%s4592 + $0x64] sm:$0xf]
  %v4619 = vld [vmem:[%s4592 + $0x68] sm:$0xf]
  %v4620 = vld [vmem:[%s4592 + $0x6c] sm:$0xf]
  %v4621 = vld [vmem:[%s4592 + $0x70] sm:$0xf]
  %v4622 = vld [vmem:[%s4592 + $0x74] sm:$0xf]
  %v4623 = vld [vmem:[%s4592 + $0x78] sm:$0xf]
  %v4624 = vld [vmem:[%s4592 + $0x7c] sm:$0xf]
  %v4625 = vld [vmem:[%s4592 + $0x80] sm:$0xf]
  %v4626 = vld [vmem:[%s4592 + $0x84] sm:$0xf]
  %v4627 = vld [vmem:[%s4592 + $0x88] sm:$0xf]
  %v4628 = vld [vmem:[%s4592 + $0x8c] sm:$0xf]
  %v4629 = vld [vmem:[%s4592 + $0x90] sm:$0xf]
  %v4630 = vld [vmem:[%s4592 + $0x94] sm:$0xf]
  %v4631 = vld [vmem:[%s4592 + $0x98] sm:$0xf]
  %v4632 = vld [vmem:[%s4592 + $0x9c] sm:$0xf]
  %v4633 = vld [vmem:[%s4592 + $0xa0] sm:$0xf]
  %v4634 = vld [vmem:[%s4592 + $0xa4] sm:$0xf]
  %v4635 = vld [vmem:[%s4592 + $0xa8] sm:$0xf]
  %v4636 = vld [vmem:[%s4592 + $0xac] sm:$0xf]
  %v4637 = vld [vmem:[%s4592 + $0xb0] sm:$0xf]
  %v4638 = vld [vmem:[%s4592 + $0xb4] sm:$0xf]
  %v4639 = vld [vmem:[%s4592 + $0xb8] sm:$0xf]
  %v4640 = vld [vmem:[%s4592 + $0xbc] sm:$0xf]
  %v4641 = vpack.c.bf16 %v4185, %v4181
  %v4642 = vpack.c.bf16 %v4187, %v4183
  %v4643 = vpack.c.bf16 %v4409, %v4406
  %v4644 = vpack.c.bf16 %v4195, %v4191
  %v4645 = vpack.c.bf16 %v4197, %v4193
  %v4646 = vpack.c.bf16 %v4417, %v4414
  %v4647 = vpack.c.bf16 %v4205, %v4201
  %v4648 = vpack.c.bf16 %v4207, %v4203
  %v4649 = vpack.c.bf16 %v4425, %v4422
  %v4650 = vpack.c.bf16 %v4215, %v4211
  %v4651 = vpack.c.bf16 %v4217, %v4213
  %v4652 = vpack.c.bf16 %v4433, %v4430
  %v4701 = vunpack.c.l.b16 %v4593
  %v4702 = vunpack.c.l.b16 %v4594
  %v4703 = vunpack.c.l.b16 %v4595
  %v4704 = vunpack.c.l.b16 %v4596
  %v4705 = vunpack.c.l.b16 %v4597
  %v4706 = vunpack.c.l.b16 %v4598
  %v4707 = vunpack.c.l.b16 %v4599
  %v4708 = vunpack.c.l.b16 %v4600
  %v4709 = vunpack.c.l.b16 %v4601
  %v4710 = vunpack.c.l.b16 %v4602
  %v4711 = vunpack.c.l.b16 %v4603
  %v4712 = vunpack.c.l.b16 %v4604
  %v4713 = vunpack.c.l.b16 %v4605
  %v4714 = vunpack.c.l.b16 %v4606
  %v4715 = vunpack.c.l.b16 %v4607
  %v4716 = vunpack.c.l.b16 %v4608
  %v4717 = vunpack.c.l.b16 %v4609
  %v4718 = vunpack.c.l.b16 %v4610
  %v4719 = vunpack.c.l.b16 %v4611
  %v4720 = vunpack.c.l.b16 %v4612
  %v4721 = vunpack.c.l.b16 %v4613
  %v4722 = vunpack.c.l.b16 %v4614
  %v4723 = vunpack.c.l.b16 %v4615
  %v4724 = vunpack.c.l.b16 %v4616
  %v4725 = vunpack.c.l.b16 %v4617
  %v4726 = vunpack.c.l.b16 %v4618
  %v4727 = vunpack.c.l.b16 %v4619
  %v4728 = vunpack.c.l.b16 %v4620
  %v4729 = vunpack.c.l.b16 %v4621
  %v4730 = vunpack.c.l.b16 %v4622
  %v4731 = vunpack.c.l.b16 %v4623
  %v4732 = vunpack.c.l.b16 %v4624
  %v4733 = vunpack.c.l.b16 %v4625
  %v4734 = vunpack.c.l.b16 %v4626
  %v4735 = vunpack.c.l.b16 %v4627
  %v4736 = vunpack.c.l.b16 %v4628
  %v4737 = vunpack.c.l.b16 %v4629
  %v4738 = vunpack.c.l.b16 %v4630
  %v4739 = vunpack.c.l.b16 %v4631
  %v4740 = vunpack.c.l.b16 %v4632
  %v4741 = vunpack.c.l.b16 %v4633
  %v4742 = vunpack.c.l.b16 %v4634
  %v4743 = vunpack.c.l.b16 %v4635
  %v4744 = vunpack.c.l.b16 %v4636
  %v4745 = vunpack.c.l.b16 %v4637
  %v4746 = vunpack.c.l.b16 %v4638
  %v4747 = vunpack.c.l.b16 %v4639
  %v4748 = vunpack.c.l.b16 %v4640
  %v4749 = vpack.c.b16 %v4702, %v4701
  %v4750 = vpack.c.b16 %v4704, %v4703
  %v4751 = vpack.c.b16 %v4706, %v4705
  %v4752 = vpack.c.b16 %v4708, %v4707
  %v4753 = vpack.c.b16 %v4710, %v4709
  %v4754 = vpack.c.b16 %v4712, %v4711
  %v4755 = vpack.c.b16 %v4714, %v4713
  %v4756 = vpack.c.b16 %v4716, %v4715
  %v4757 = vpack.c.b16 %v4718, %v4717
  %v4758 = vpack.c.b16 %v4720, %v4719
  %v4759 = vpack.c.b16 %v4722, %v4721
  %v4760 = vpack.c.b16 %v4724, %v4723
  %v4761 = vpack.c.b16 %v4726, %v4725
  %v4762 = vpack.c.b16 %v4728, %v4727
  %v4763 = vpack.c.b16 %v4730, %v4729
  %v4764 = vpack.c.b16 %v4732, %v4731
  %v4765 = vpack.c.b16 %v4734, %v4733
  %v4766 = vpack.c.b16 %v4736, %v4735
  %v4767 = vpack.c.b16 %v4738, %v4737
  %v4768 = vpack.c.b16 %v4740, %v4739
  %v4769 = vpack.c.b16 %v4742, %v4741
  %v4770 = vpack.c.b16 %v4744, %v4743
  %v4771 = vpack.c.b16 %v4746, %v4745
  %v4772 = vpack.c.b16 %v4748, %v4747
  %4797 = vmatprep.subr.bf16.mxu0 0
  %4798 = vmatpush1.bf16.msra.mxu0 %v4749
  %4799 = vmatprep.subr.bf16.mxu0 0
  %4800 = vmatpush1.bf16.msra.mxu0 %v4750
  %4801 = vmatprep.subr.bf16.mxu0 0
  %4802 = vmatpush1.bf16.msra.mxu0 %v4751
  %4803 = vmatprep.subr.bf16.mxu0 0
  %4804 = vmatpush1.bf16.msra.mxu0 %v4752
  %4805 = vmatprep.subr.bf16.mxu0 0
  %4806 = vmatpush1.bf16.msra.mxu0 %v4753
  %4807 = vmatprep.subr.bf16.mxu0 0
  %4808 = vmatpush1.bf16.msra.mxu0 %v4754
  %4809 = vmatprep.subr.bf16.mxu0 0
  %4810 = vmatpush1.bf16.msra.mxu0 %v4755
  %4811 = vmatprep.subr.bf16.mxu0 0
  %4812 = vmatpush1.bf16.msra.mxu0 %v4756
  %4813 = vmatprep.subr.bf16.mxu0 0
  %4814 = vmatpush1.bf16.msra.mxu0 %v4757
  %4815 = vmatprep.subr.bf16.mxu0 0
  %4816 = vmatpush1.bf16.msra.mxu0 %v4758
  %4817 = vmatprep.subr.bf16.mxu0 0
  %4818 = vmatpush1.bf16.msra.mxu0 %v4759
  %4819 = vmatprep.subr.bf16.mxu0 0
  %4820 = vmatpush1.bf16.msra.mxu0 %v4760
  %4821 = vmatprep.subr.bf16.mxu0 0
  %4822 = vmatpush1.bf16.msra.mxu0 %v4761
  %4823 = vmatprep.subr.bf16.mxu0 0
  %4824 = vmatpush1.bf16.msra.mxu0 %v4762
  %4825 = vmatprep.subr.bf16.mxu0 0
  %4826 = vmatpush1.bf16.msra.mxu0 %v4763
  %4827 = vmatprep.subr.bf16.mxu0 0
  %4828 = vmatpush1.bf16.msra.mxu0 %v4764
  %4829 = vmatprep.mubr.bf16.mxu0 %v4642
  %4830 = vmatmul.mubr.bf16.gmra.mrb[0].mxu0 %v4641
  %v4831 = vpop.f32.mrb[0].mxu0
  %v4832 = vadd.f32 0.0, %v4831
  %v4833 = vpop.f32.mrb[0].mxu0
  %v4834 = vpop.f32.mrb[0].mxu0
  %v4835 = vadd.f32 0.0, %v4834
  %v4836 = vpop.f32.mrb[0].mxu0
  %4837 = vmatprep.mubr.bf16.mxu0 %v4645
  %4838 = vmatmul.mubr.bf16.gmra.mrb[0].mxu0 %v4644
  %v4839 = vpop.f32.mrb[0].mxu0
  %v4840 = vadd.f32 0.0, %v4839
  %v4841 = vpop.f32.mrb[0].mxu0
  %v4842 = vpop.f32.mrb[0].mxu0
  %v4843 = vadd.f32 0.0, %v4842
  %v4844 = vpop.f32.mrb[0].mxu0
  %4845 = vmatprep.mubr.bf16.mxu0 %v4648
  %4846 = vmatmul.mubr.bf16.gmra.mrb[0].mxu0 %v4647
  %v4847 = vpop.f32.mrb[0].mxu0
  %v4848 = vadd.f32 0.0, %v4847
  %v4849 = vpop.f32.mrb[0].mxu0
  %v4850 = vpop.f32.mrb[0].mxu0
  %v4851 = vadd.f32 0.0, %v4850
  %v4852 = vpop.f32.mrb[0].mxu0
  %4853 = vmatprep.mubr.bf16.mxu0 %v4651
  %4854 = vmatmul.mubr.bf16.gmra.mrb[0].mxu0 %v4650
  %v4855 = vpop.f32.mrb[0].mxu0
  %v4856 = vadd.f32 0.0, %v4855
  %v4857 = vpop.f32.mrb[0].mxu0
  %v4858 = vpop.f32.mrb[0].mxu0
  %v4859 = vadd.f32 0.0, %v4858
  %v4860 = vpop.f32.mrb[0].mxu0
  %4861 = vdwg.mxu0
  %4862 = vmatprep.subr.bf16.mxu0 0
  %4863 = vmatpush1.bf16.msra.mxu0 %v4765
  %4864 = vmatprep.subr.bf16.mxu0 0
  %4865 = vmatpush1.bf16.msra.mxu0 %v4766
  %4866 = vmatprep.subr.bf16.mxu0 0
  %4867 = vmatpush1.bf16.msra.mxu0 %v4767
  %4868 = vmatprep.subr.bf16.mxu0 0
  %4869 = vmatpush1.bf16.msra.mxu0 %v4768
  %4870 = vmatprep.subr.bf16.mxu0 0
  %4871 = vmatpush1.bf16.msra.mxu0 %v4769
  %4872 = vmatprep.subr.bf16.mxu0 0
  %4873 = vmatpush1.bf16.msra.mxu0 %v4770
  %4874 = vmatprep.subr.bf16.mxu0 0
  %4875 = vmatpush1.bf16.msra.mxu0 %v4771
  %4876 = vmatprep.subr.bf16.mxu0 0
  %4877 = vmatpush1.bf16.msra.mxu0 %v4772
  %4878 = vmatprep.subr.bf16.mxu0 0
  %4879 = vmatpush1.bf16.msra.mxu0 0
  %4880 = vmatprep.subr.bf16.mxu0 0
  %4881 = vmatpush1.bf16.msra.mxu0 0
  %4882 = vmatprep.subr.bf16.mxu0 0
  %4883 = vmatpush1.bf16.msra.mxu0 0
  %4884 = vmatprep.subr.bf16.mxu0 0
  %4885 = vmatpush1.bf16.msra.mxu0 0
  %4886 = vmatprep.subr.bf16.mxu0 0
  %4887 = vmatpush1.bf16.msra.mxu0 0
  %4888 = vmatprep.subr.bf16.mxu0 0
  %4889 = vmatpush1.bf16.msra.mxu0 0
  %4890 = vmatprep.subr.bf16.mxu0 0
  %4891 = vmatpush1.bf16.msra.mxu0 0
  %4892 = vmatprep.subr.bf16.mxu0 0
  %4893 = vmatpush1.bf16.msra.mxu0 0
  %4894 = vmatprep.mubr.bf16.mxu0 0
  %4895 = vmatmul.mubr.bf16.gmra.mrb[0].mxu0 %v4643
  %v4896 = vpop.f32.mrb[0].mxu0
  %v4897 = vadd.f32 %v4832, %v4896
  %v4898 = vpop.f32.mrb[0].mxu0
  %v4899 = vpop.f32.mrb[0].mxu0
  %v4900 = vadd.f32 %v4835, %v4899
  %v4901 = vpop.f32.mrb[0].mxu0
  %4902 = vmatprep.mubr.bf16.mxu0 0
  %4903 = vmatmul.mubr.bf16.gmra.mrb[0].mxu0 %v4646
  %v4904 = vpop.f32.mrb[0].mxu0
  %v4905 = vadd.f32 %v4840, %v4904
  %v4906 = vpop.f32.mrb[0].mxu0
  %v4907 = vpop.f32.mrb[0].mxu0
  %v4908 = vadd.f32 %v4843, %v4907
  %v4909 = vpop.f32.mrb[0].mxu0
  %4910 = vmatprep.mubr.bf16.mxu0 0
  %4911 = vmatmul.mubr.bf16.gmra.mrb[0].mxu0 %v4649
  %v4912 = vpop.f32.mrb[0].mxu0
  %v4913 = vadd.f32 %v4848, %v4912
  %v4914 = vpop.f32.mrb[0].mxu0
  %v4915 = vpop.f32.mrb[0].mxu0
  %v4916 = vadd.f32 %v4851, %v4915
  %v4917 = vpop.f32.mrb[0].mxu0
  %4918 = vmatprep.mubr.bf16.mxu0 0
  %4919 = vmatmul.mubr.bf16.gmra.mrb[0].mxu0 %v4652
  %v4920 = vpop.f32.mrb[0].mxu0
  %v4921 = vadd.f32 %v4856, %v4920
  %v4922 = vpop.f32.mrb[0].mxu0
  %v4923 = vpop.f32.mrb[0].mxu0
  %v4924 = vadd.f32 %v4859, %v4923
  %v4925 = vpop.f32.mrb[0].mxu0
  %4926 = vdwg.mxu0
  %v4975 = vunpack.c.l.b16 %v4532
  %v4976 = vunpack.c.l.b16 %v4533
  %v4977 = vunpack.c.l.b16 %v4534
  %v4978 = vunpack.c.l.b16 %v4535
  %v4979 = vunpack.c.l.b16 %v4536
  %v4980 = vunpack.c.l.b16 %v4537
  %v4981 = vunpack.c.l.b16 %v4538
  %v4982 = vunpack.c.l.b16 %v4539
  %v4983 = vunpack.c.l.b16 %v4540
  %v4984 = vunpack.c.l.b16 %v4541
  %v4985 = vunpack.c.l.b16 %v4542
  %v4986 = vunpack.c.l.b16 %v4543
  %v4987 = vunpack.c.l.b16 %v4544
  %v4988 = vunpack.c.l.b16 %v4545
  %v4989 = vunpack.c.l.b16 %v4546
  %v4990 = vunpack.c.l.b16 %v4547
  %v4991 = vunpack.c.l.b16 %v4548
  %v4992 = vunpack.c.l.b16 %v4549
  %v4993 = vunpack.c.l.b16 %v4550
  %v4994 = vunpack.c.l.b16 %v4551
  %v4995 = vunpack.c.l.b16 %v4552
  %v4996 = vunpack.c.l.b16 %v4553
  %v4997 = vunpack.c.l.b16 %v4554
  %v4998 = vunpack.c.l.b16 %v4555
  %v4999 = vunpack.c.l.b16 %v4556
  %v5000 = vunpack.c.l.b16 %v4557
  %v5001 = vunpack.c.l.b16 %v4558
  %v5002 = vunpack.c.l.b16 %v4559
  %v5003 = vunpack.c.l.b16 %v4560
  %v5004 = vunpack.c.l.b16 %v4561
  %v5005 = vunpack.c.l.b16 %v4562
  %v5006 = vunpack.c.l.b16 %v4563
  %v5007 = vunpack.c.l.b16 %v4564
  %v5008 = vunpack.c.l.b16 %v4565
  %v5009 = vunpack.c.l.b16 %v4566
  %v5010 = vunpack.c.l.b16 %v4567
  %v5011 = vunpack.c.l.b16 %v4568
  %v5012 = vunpack.c.l.b16 %v4569
  %v5013 = vunpack.c.l.b16 %v4570
  %v5014 = vunpack.c.l.b16 %v4571
  %v5015 = vunpack.c.l.b16 %v4572
  %v5016 = vunpack.c.l.b16 %v4573
  %v5017 = vunpack.c.l.b16 %v4574
  %v5018 = vunpack.c.l.b16 %v4575
  %v5019 = vunpack.c.l.b16 %v4576
  %v5020 = vunpack.c.l.b16 %v4577
  %v5021 = vunpack.c.l.b16 %v4578
  %v5022 = vunpack.c.l.b16 %v4579
  %v5023 = vpack.c.b16 %v4976, %v4975
  %v5024 = vpack.c.b16 %v4978, %v4977
  %v5025 = vpack.c.b16 %v4980, %v4979
  %v5026 = vpack.c.b16 %v4982, %v4981
  %v5027 = vpack.c.b16 %v4984, %v4983
  %v5028 = vpack.c.b16 %v4986, %v4985
  %v5029 = vpack.c.b16 %v4988, %v4987
  %v5030 = vpack.c.b16 %v4990, %v4989
  %v5031 = vpack.c.b16 %v4992, %v4991
  %v5032 = vpack.c.b16 %v4994, %v4993
  %v5033 = vpack.c.b16 %v4996, %v4995
  %v5034 = vpack.c.b16 %v4998, %v4997
  %v5035 = vpack.c.b16 %v5000, %v4999
  %v5036 = vpack.c.b16 %v5002, %v5001
  %v5037 = vpack.c.b16 %v5004, %v5003
  %v5038 = vpack.c.b16 %v5006, %v5005
  %v5039 = vpack.c.b16 %v5008, %v5007
  %v5040 = vpack.c.b16 %v5010, %v5009
  %v5041 = vpack.c.b16 %v5012, %v5011
  %v5042 = vpack.c.b16 %v5014, %v5013
  %v5043 = vpack.c.b16 %v5016, %v5015
  %v5044 = vpack.c.b16 %v5018, %v5017
  %v5045 = vpack.c.b16 %v5020, %v5019
  %v5046 = vpack.c.b16 %v5022, %v5021
  %5071 = vmatprep.subr.bf16.mxu0 0
  %5072 = vmatpush1.bf16.msra.mxu0 %v5023
  %5073 = vmatprep.subr.bf16.mxu0 0
  %5074 = vmatpush1.bf16.msra.mxu0 %v5024
  %5075 = vmatprep.subr.bf16.mxu0 0
  %5076 = vmatpush1.bf16.msra.mxu0 %v5025
  %5077 = vmatprep.subr.bf16.mxu0 0
  %5078 = vmatpush1.bf16.msra.mxu0 %v5026
  %5079 = vmatprep.subr.bf16.mxu0 0
  %5080 = vmatpush1.bf16.msra.mxu0 %v5027
  %5081 = vmatprep.subr.bf16.mxu0 0
  %5082 = vmatpush1.bf16.msra.mxu0 %v5028
  %5083 = vmatprep.subr.bf16.mxu0 0
  %5084 = vmatpush1.bf16.msra.mxu0 %v5029
  %5085 = vmatprep.subr.bf16.mxu0 0
  %5086 = vmatpush1.bf16.msra.mxu0 %v5030
  %5087 = vmatprep.subr.bf16.mxu0 0
  %5088 = vmatpush1.bf16.msra.mxu0 %v5031
  %5089 = vmatprep.subr.bf16.mxu0 0
  %5090 = vmatpush1.bf16.msra.mxu0 %v5032
  %5091 = vmatprep.subr.bf16.mxu0 0
  %5092 = vmatpush1.bf16.msra.mxu0 %v5033
  %5093 = vmatprep.subr.bf16.mxu0 0
  %5094 = vmatpush1.bf16.msra.mxu0 %v5034
  %5095 = vmatprep.subr.bf16.mxu0 0
  %5096 = vmatpush1.bf16.msra.mxu0 %v5035
  %5097 = vmatprep.subr.bf16.mxu0 0
  %5098 = vmatpush1.bf16.msra.mxu0 %v5036
  %5099 = vmatprep.subr.bf16.mxu0 0
  %5100 = vmatpush1.bf16.msra.mxu0 %v5037
  %5101 = vmatprep.subr.bf16.mxu0 0
  %5102 = vmatpush1.bf16.msra.mxu0 %v5038
  %5103 = vmatprep.mubr.bf16.mxu0 %v4581
  %5104 = vmatmul.mubr.bf16.gmra.mrb[0].mxu0 %v4580
  %v5105 = vpop.f32.mrb[0].mxu0
  %v5106 = vadd.f32 %v4897, %v5105
  %v5107 = vpop.f32.mrb[0].mxu0
  %v5108 = vpop.f32.mrb[0].mxu0
  %v5109 = vadd.f32 %v4900, %v5108
  %v5110 = vpop.f32.mrb[0].mxu0
  %5111 = vmatprep.mubr.bf16.mxu0 %v4584
  %5112 = vmatmul.mubr.bf16.gmra.mrb[0].mxu0 %v4583
  %v5113 = vpop.f32.mrb[0].mxu0
  %v5114 = vadd.f32 %v4905, %v5113
  %v5115 = vpop.f32.mrb[0].mxu0
  %v5116 = vpop.f32.mrb[0].mxu0
  %v5117 = vadd.f32 %v4908, %v5116
  %v5118 = vpop.f32.mrb[0].mxu0
  %5119 = vmatprep.mubr.bf16.mxu0 %v4587
  %5120 = vmatmul.mubr.bf16.gmra.mrb[0].mxu0 %v4586
  %v5121 = vpop.f32.mrb[0].mxu0
  %v5122 = vadd.f32 %v4913, %v5121
  %v5123 = vpop.f32.mrb[0].mxu0
  %v5124 = vpop.f32.mrb[0].mxu0
  %v5125 = vadd.f32 %v4916, %v5124
  %v5126 = vpop.f32.mrb[0].mxu0
  %5127 = vmatprep.mubr.bf16.mxu0 %v4590
  %5128 = vmatmul.mubr.bf16.gmra.mrb[0].mxu0 %v4589
  %v5129 = vpop.f32.mrb[0].mxu0
  %v5130 = vadd.f32 %v4921, %v5129
  %v5131 = vpop.f32.mrb[0].mxu0
  %v5132 = vpop.f32.mrb[0].mxu0
  %v5133 = vadd.f32 %v4924, %v5132
  %v5134 = vpop.f32.mrb[0].mxu0
  %5135 = vdwg.mxu0
  %5136 = vmatprep.subr.bf16.mxu0 0
  %5137 = vmatpush1.bf16.msra.mxu0 %v5039
  %5138 = vmatprep.subr.bf16.mxu0 0
  %5139 = vmatpush1.bf16.msra.mxu0 %v5040
  %5140 = vmatprep.subr.bf16.mxu0 0
  %5141 = vmatpush1.bf16.msra.mxu0 %v5041
  %5142 = vmatprep.subr.bf16.mxu0 0
  %5143 = vmatpush1.bf16.msra.mxu0 %v5042
  %5144 = vmatprep.subr.bf16.mxu0 0
  %5145 = vmatpush1.bf16.msra.mxu0 %v5043
  %5146 = vmatprep.subr.bf16.mxu0 0
  %5147 = vmatpush1.bf16.msra.mxu0 %v5044
  %5148 = vmatprep.subr.bf16.mxu0 0
  %5149 = vmatpush1.bf16.msra.mxu0 %v5045
  %5150 = vmatprep.subr.bf16.mxu0 0
  %5151 = vmatpush1.bf16.msra.mxu0 %v5046
  %5152 = vmatprep.subr.bf16.mxu0 0
  %5153 = vmatpush1.bf16.msra.mxu0 0
  %5154 = vmatprep.subr.bf16.mxu0 0
  %5155 = vmatpush1.bf16.msra.mxu0 0
  %5156 = vmatprep.subr.bf16.mxu0 0
  %5157 = vmatpush1.bf16.msra.mxu0 0
  %5158 = vmatprep.subr.bf16.mxu0 0
  %5159 = vmatpush1.bf16.msra.mxu0 0
  %5160 = vmatprep.subr.bf16.mxu0 0
  %5161 = vmatpush1.bf16.msra.mxu0 0
  %5162 = vmatprep.subr.bf16.mxu0 0
  %5163 = vmatpush1.bf16.msra.mxu0 0
  %5164 = vmatprep.subr.bf16.mxu0 0
  %5165 = vmatpush1.bf16.msra.mxu0 0
  %5166 = vmatprep.subr.bf16.mxu0 0
  %5167 = vmatpush1.bf16.msra.mxu0 0
  %5168 = vmatprep.mubr.bf16.mxu0 0
  %5169 = vmatmul.mubr.bf16.gmra.mrb[0].mxu0 %v4582
  %v5170 = vpop.f32.mrb[0].mxu0
  %v5171 = vadd.f32 %v5106, %v5170
  %v5172 = vpop.f32.mrb[0].mxu0
  %v5173 = vpop.f32.mrb[0].mxu0
  %v5174 = vadd.f32 %v5109, %v5173
  %v5175 = vpop.f32.mrb[0].mxu0
  %5176 = vmatprep.mubr.bf16.mxu0 0
  %5177 = vmatmul.mubr.bf16.gmra.mrb[0].mxu0 %v4585
  %v5178 = vpop.f32.mrb[0].mxu0
  %v5179 = vadd.f32 %v5114, %v5178
  %v5180 = vpop.f32.mrb[0].mxu0
  %v5181 = vpop.f32.mrb[0].mxu0
  %v5182 = vadd.f32 %v5117, %v5181
  %v5183 = vpop.f32.mrb[0].mxu0
  %5184 = vmatprep.mubr.bf16.mxu0 0
  %5185 = vmatmul.mubr.bf16.gmra.mrb[0].mxu0 %v4588
  %v5186 = vpop.f32.mrb[0].mxu0
  %v5187 = vadd.f32 %v5122, %v5186
  %v5188 = vpop.f32.mrb[0].mxu0
  %v5189 = vpop.f32.mrb[0].mxu0
  %v5190 = vadd.f32 %v5125, %v5189
  %v5191 = vpop.f32.mrb[0].mxu0
  %5192 = vmatprep.mubr.bf16.mxu0 0
  %5193 = vmatmul.mubr.bf16.gmra.mrb[0].mxu0 %v4591
  %v5194 = vpop.f32.mrb[0].mxu0
  %v5195 = vadd.f32 %v5130, %v5194
  %v5196 = vpop.f32.mrb[0].mxu0
  %v5197 = vpop.f32.mrb[0].mxu0
  %v5198 = vadd.f32 %v5133, %v5197
  %v5199 = vpop.f32.mrb[0].mxu0
  %5200 = vdwg.mxu0
  %s5201 = scalar_lea.vmem %s5, 384
  %v5202 = vld [vmem:[%s5201] sm:$0xf]
  %v5203 = vld [vmem:[%s5201 + $0x4] sm:$0xf]
  %v5204 = vld [vmem:[%s5201 + $0x8] sm:$0xf]
  %v5205 = vld [vmem:[%s5201 + $0xc] sm:$0xf]
  %v5206 = vld [vmem:[%s5201 + $0x10] sm:$0xf]
  %v5207 = vld [vmem:[%s5201 + $0x14] sm:$0xf]
  %v5208 = vld [vmem:[%s5201 + $0x18] sm:$0xf]
  %v5209 = vld [vmem:[%s5201 + $0x1c] sm:$0xf]
  %v5210 = vld [vmem:[%s5201 + $0x20] sm:$0xf]
  %v5211 = vld [vmem:[%s5201 + $0x24] sm:$0xf]
  %v5212 = vld [vmem:[%s5201 + $0x28] sm:$0xf]
  %v5213 = vld [vmem:[%s5201 + $0x2c] sm:$0xf]
  %v5214 = vld [vmem:[%s5201 + $0x30] sm:$0xf]
  %v5215 = vld [vmem:[%s5201 + $0x34] sm:$0xf]
  %v5216 = vld [vmem:[%s5201 + $0x38] sm:$0xf]
  %v5217 = vld [vmem:[%s5201 + $0x3c] sm:$0xf]
  %v5218 = vld [vmem:[%s5201 + $0x40] sm:$0xf]
  %v5219 = vld [vmem:[%s5201 + $0x44] sm:$0xf]
  %v5220 = vld [vmem:[%s5201 + $0x48] sm:$0xf]
  %v5221 = vld [vmem:[%s5201 + $0x4c] sm:$0xf]
  %v5222 = vld [vmem:[%s5201 + $0x50] sm:$0xf]
  %v5223 = vld [vmem:[%s5201 + $0x54] sm:$0xf]
  %v5224 = vld [vmem:[%s5201 + $0x58] sm:$0xf]
  %v5225 = vld [vmem:[%s5201 + $0x5c] sm:$0xf]
  %v5226 = vld [vmem:[%s5201 + $0x60] sm:$0xf]
  %v5227 = vld [vmem:[%s5201 + $0x64] sm:$0xf]
  %v5228 = vld [vmem:[%s5201 + $0x68] sm:$0xf]
  %v5229 = vld [vmem:[%s5201 + $0x6c] sm:$0xf]
  %v5230 = vld [vmem:[%s5201 + $0x70] sm:$0xf]
  %v5231 = vld [vmem:[%s5201 + $0x74] sm:$0xf]
  %v5232 = vld [vmem:[%s5201 + $0x78] sm:$0xf]
  %v5233 = vld [vmem:[%s5201 + $0x7c] sm:$0xf]
  %v5234 = vld [vmem:[%s5201 + $0x80] sm:$0xf]
  %v5235 = vld [vmem:[%s5201 + $0x84] sm:$0xf]
  %v5236 = vld [vmem:[%s5201 + $0x88] sm:$0xf]
  %v5237 = vld [vmem:[%s5201 + $0x8c] sm:$0xf]
  %v5238 = vld [vmem:[%s5201 + $0x90] sm:$0xf]
  %v5239 = vld [vmem:[%s5201 + $0x94] sm:$0xf]
  %v5240 = vld [vmem:[%s5201 + $0x98] sm:$0xf]
  %v5241 = vld [vmem:[%s5201 + $0x9c] sm:$0xf]
  %v5242 = vld [vmem:[%s5201 + $0xa0] sm:$0xf]
  %v5243 = vld [vmem:[%s5201 + $0xa4] sm:$0xf]
  %v5244 = vld [vmem:[%s5201 + $0xa8] sm:$0xf]
  %v5245 = vld [vmem:[%s5201 + $0xac] sm:$0xf]
  %v5246 = vld [vmem:[%s5201 + $0xb0] sm:$0xf]
  %v5247 = vld [vmem:[%s5201 + $0xb4] sm:$0xf]
  %v5248 = vld [vmem:[%s5201 + $0xb8] sm:$0xf]
  %v5249 = vld [vmem:[%s5201 + $0xbc] sm:$0xf]
  %v5250 = vpack.c.bf16 %v4225, %v4221
  %v5251 = vpack.c.bf16 %v4227, %v4223
  %v5252 = vpack.c.bf16 %v4441, %v4438
  %v5253 = vpack.c.bf16 %v4235, %v4231
  %v5254 = vpack.c.bf16 %v4237, %v4233
  %v5255 = vpack.c.bf16 %v4449, %v4446
  %v5256 = vpack.c.bf16 %v4245, %v4241
  %v5257 = vpack.c.bf16 %v4247, %v4243
  %v5258 = vpack.c.bf16 %v4457, %v4454
  %v5259 = vpack.c.bf16 %v4255, %v4251
  %v5260 = vpack.c.bf16 %v4257, %v4253
  %v5261 = vpack.c.bf16 %v4465, %v4462
  %v5310 = vunpack.c.l.b16 %v5202
  %v5311 = vunpack.c.l.b16 %v5203
  %v5312 = vunpack.c.l.b16 %v5204
  %v5313 = vunpack.c.l.b16 %v5205
  %v5314 = vunpack.c.l.b16 %v5206
  %v5315 = vunpack.c.l.b16 %v5207
  %v5316 = vunpack.c.l.b16 %v5208
  %v5317 = vunpack.c.l.b16 %v5209
  %v5318 = vunpack.c.l.b16 %v5210
  %v5319 = vunpack.c.l.b16 %v5211
  %v5320 = vunpack.c.l.b16 %v5212
  %v5321 = vunpack.c.l.b16 %v5213
  %v5322 = vunpack.c.l.b16 %v5214
  %v5323 = vunpack.c.l.b16 %v5215
  %v5324 = vunpack.c.l.b16 %v5216
  %v5325 = vunpack.c.l.b16 %v5217
  %v5326 = vunpack.c.l.b16 %v5218
  %v5327 = vunpack.c.l.b16 %v5219
  %v5328 = vunpack.c.l.b16 %v5220
  %v5329 = vunpack.c.l.b16 %v5221
  %v5330 = vunpack.c.l.b16 %v5222
  %v5331 = vunpack.c.l.b16 %v5223
  %v5332 = vunpack.c.l.b16 %v5224
  %v5333 = vunpack.c.l.b16 %v5225
  %v5334 = vunpack.c.l.b16 %v5226
  %v5335 = vunpack.c.l.b16 %v5227
  %v5336 = vunpack.c.l.b16 %v5228
  %v5337 = vunpack.c.l.b16 %v5229
  %v5338 = vunpack.c.l.b16 %v5230
  %v5339 = vunpack.c.l.b16 %v5231
  %v5340 = vunpack.c.l.b16 %v5232
  %v5341 = vunpack.c.l.b16 %v5233
  %v5342 = vunpack.c.l.b16 %v5234
  %v5343 = vunpack.c.l.b16 %v5235
  %v5344 = vunpack.c.l.b16 %v5236
  %v5345 = vunpack.c.l.b16 %v5237
  %v5346 = vunpack.c.l.b16 %v5238
  %v5347 = vunpack.c.l.b16 %v5239
  %v5348 = vunpack.c.l.b16 %v5240
  %v5349 = vunpack.c.l.b16 %v5241
  %v5350 = vunpack.c.l.b16 %v5242
  %v5351 = vunpack.c.l.b16 %v5243
  %v5352 = vunpack.c.l.b16 %v5244
  %v5353 = vunpack.c.l.b16 %v5245
  %v5354 = vunpack.c.l.b16 %v5246
  %v5355 = vunpack.c.l.b16 %v5247
  %v5356 = vunpack.c.l.b16 %v5248
  %v5357 = vunpack.c.l.b16 %v5249
  %v5358 = vpack.c.b16 %v5311, %v5310
  %v5359 = vpack.c.b16 %v5313, %v5312
  %v5360 = vpack.c.b16 %v5315, %v5314
  %v5361 = vpack.c.b16 %v5317, %v5316
  %v5362 = vpack.c.b16 %v5319, %v5318
  %v5363 = vpack.c.b16 %v5321, %v5320
  %v5364 = vpack.c.b16 %v5323, %v5322
  %v5365 = vpack.c.b16 %v5325, %v5324
  %v5366 = vpack.c.b16 %v5327, %v5326
  %v5367 = vpack.c.b16 %v5329, %v5328
  %v5368 = vpack.c.b16 %v5331, %v5330
  %v5369 = vpack.c.b16 %v5333, %v5332
  %v5370 = vpack.c.b16 %v5335, %v5334
  %v5371 = vpack.c.b16 %v5337, %v5336
  %v5372 = vpack.c.b16 %v5339, %v5338
  %v5373 = vpack.c.b16 %v5341, %v5340
  %v5374 = vpack.c.b16 %v5343, %v5342
  %v5375 = vpack.c.b16 %v5345, %v5344
  %v5376 = vpack.c.b16 %v5347, %v5346
  %v5377 = vpack.c.b16 %v5349, %v5348
  %v5378 = vpack.c.b16 %v5351, %v5350
  %v5379 = vpack.c.b16 %v5353, %v5352
  %v5380 = vpack.c.b16 %v5355, %v5354
  %v5381 = vpack.c.b16 %v5357, %v5356
  %5406 = vmatprep.subr.bf16.mxu0 0
  %5407 = vmatpush1.bf16.msra.mxu0 %v5358
  %5408 = vmatprep.subr.bf16.mxu0 0
  %5409 = vmatpush1.bf16.msra.mxu0 %v5359
  %5410 = vmatprep.subr.bf16.mxu0 0
  %5411 = vmatpush1.bf16.msra.mxu0 %v5360
  %5412 = vmatprep.subr.bf16.mxu0 0
  %5413 = vmatpush1.bf16.msra.mxu0 %v5361
  %5414 = vmatprep.subr.bf16.mxu0 0
  %5415 = vmatpush1.bf16.msra.mxu0 %v5362
  %5416 = vmatprep.subr.bf16.mxu0 0
  %5417 = vmatpush1.bf16.msra.mxu0 %v5363
  %5418 = vmatprep.subr.bf16.mxu0 0
  %5419 = vmatpush1.bf16.msra.mxu0 %v5364
  %5420 = vmatprep.subr.bf16.mxu0 0
  %5421 = vmatpush1.bf16.msra.mxu0 %v5365
  %5422 = vmatprep.subr.bf16.mxu0 0
  %5423 = vmatpush1.bf16.msra.mxu0 %v5366
  %5424 = vmatprep.subr.bf16.mxu0 0
  %5425 = vmatpush1.bf16.msra.mxu0 %v5367
  %5426 = vmatprep.subr.bf16.mxu0 0
  %5427 = vmatpush1.bf16.msra.mxu0 %v5368
  %5428 = vmatprep.subr.bf16.mxu0 0
  %5429 = vmatpush1.bf16.msra.mxu0 %v5369
  %5430 = vmatprep.subr.bf16.mxu0 0
  %5431 = vmatpush1.bf16.msra.mxu0 %v5370
  %5432 = vmatprep.subr.bf16.mxu0 0
  %5433 = vmatpush1.bf16.msra.mxu0 %v5371
  %5434 = vmatprep.subr.bf16.mxu0 0
  %5435 = vmatpush1.bf16.msra.mxu0 %v5372
  %5436 = vmatprep.subr.bf16.mxu0 0
  %5437 = vmatpush1.bf16.msra.mxu0 %v5373
  %5438 = vmatprep.mubr.bf16.mxu0 %v5251
  %5439 = vmatmul.mubr.bf16.gmra.mrb[0].mxu0 %v5250
  %v5440 = vpop.f32.mrb[0].mxu0
  %v5441 = vadd.f32 0.0, %v5440
  %v5442 = vpop.f32.mrb[0].mxu0
  %v5443 = vpop.f32.mrb[0].mxu0
  %v5444 = vadd.f32 0.0, %v5443
  %v5445 = vpop.f32.mrb[0].mxu0
  %5446 = vmatprep.mubr.bf16.mxu0 %v5254
  %5447 = vmatmul.mubr.bf16.gmra.mrb[0].mxu0 %v5253
  %v5448 = vpop.f32.mrb[0].mxu0
  %v5449 = vadd.f32 0.0, %v5448
  %v5450 = vpop.f32.mrb[0].mxu0
  %v5451 = vpop.f32.mrb[0].mxu0
  %v5452 = vadd.f32 0.0, %v5451
  %v5453 = vpop.f32.mrb[0].mxu0
  %5454 = vmatprep.mubr.bf16.mxu0 %v5257
  %5455 = vmatmul.mubr.bf16.gmra.mrb[0].mxu0 %v5256
  %v5456 = vpop.f32.mrb[0].mxu0
  %v5457 = vadd.f32 0.0, %v5456
  %v5458 = vpop.f32.mrb[0].mxu0
  %v5459 = vpop.f32.mrb[0].mxu0
  %v5460 = vadd.f32 0.0, %v5459
  %v5461 = vpop.f32.mrb[0].mxu0
  %5462 = vmatprep.mubr.bf16.mxu0 %v5260
  %5463 = vmatmul.mubr.bf16.gmra.mrb[0].mxu0 %v5259
  %v5464 = vpop.f32.mrb[0].mxu0
  %v5465 = vadd.f32 0.0, %v5464
  %v5466 = vpop.f32.mrb[0].mxu0
  %v5467 = vpop.f32.mrb[0].mxu0
  %v5468 = vadd.f32 0.0, %v5467
  %v5469 = vpop.f32.mrb[0].mxu0
  %5470 = vdwg.mxu0
  %5471 = vmatprep.subr.bf16.mxu0 0
  %5472 = vmatpush1.bf16.msra.mxu0 %v5374
  %5473 = vmatprep.subr.bf16.mxu0 0
  %5474 = vmatpush1.bf16.msra.mxu0 %v5375
  %5475 = vmatprep.subr.bf16.mxu0 0
  %5476 = vmatpush1.bf16.msra.mxu0 %v5376
  %5477 = vmatprep.subr.bf16.mxu0 0
  %5478 = vmatpush1.bf16.msra.mxu0 %v5377
  %5479 = vmatprep.subr.bf16.mxu0 0
  %5480 = vmatpush1.bf16.msra.mxu0 %v5378
  %5481 = vmatprep.subr.bf16.mxu0 0
  %5482 = vmatpush1.bf16.msra.mxu0 %v5379
  %5483 = vmatprep.subr.bf16.mxu0 0
  %5484 = vmatpush1.bf16.msra.mxu0 %v5380
  %5485 = vmatprep.subr.bf16.mxu0 0
  %5486 = vmatpush1.bf16.msra.mxu0 %v5381
  %5487 = vmatprep.subr.bf16.mxu0 0
  %5488 = vmatpush1.bf16.msra.mxu0 0
  %5489 = vmatprep.subr.bf16.mxu0 0
  %5490 = vmatpush1.bf16.msra.mxu0 0
  %5491 = vmatprep.subr.bf16.mxu0 0
  %5492 = vmatpush1.bf16.msra.mxu0 0
  %5493 = vmatprep.subr.bf16.mxu0 0
  %5494 = vmatpush1.bf16.msra.mxu0 0
  %5495 = vmatprep.subr.bf16.mxu0 0
  %5496 = vmatpush1.bf16.msra.mxu0 0
  %5497 = vmatprep.subr.bf16.mxu0 0
  %5498 = vmatpush1.bf16.msra.mxu0 0
  %5499 = vmatprep.subr.bf16.mxu0 0
  %5500 = vmatpush1.bf16.msra.mxu0 0
  %5501 = vmatprep.subr.bf16.mxu0 0
  %5502 = vmatpush1.bf16.msra.mxu0 0
  %5503 = vmatprep.mubr.bf16.mxu0 0
  %5504 = vmatmul.mubr.bf16.gmra.mrb[0].mxu0 %v5252
  %v5505 = vpop.f32.mrb[0].mxu0
  %v5506 = vadd.f32 %v5441, %v5505
  %v5507 = vpop.f32.mrb[0].mxu0
  %v5508 = vpop.f32.mrb[0].mxu0
  %v5509 = vadd.f32 %v5444, %v5508
  %v5510 = vpop.f32.mrb[0].mxu0
  %5511 = vmatprep.mubr.bf16.mxu0 0
  %5512 = vmatmul.mubr.bf16.gmra.mrb[0].mxu0 %v5255
  %v5513 = vpop.f32.mrb[0].mxu0
  %v5514 = vadd.f32 %v5449, %v5513
  %v5515 = vpop.f32.mrb[0].mxu0
  %v5516 = vpop.f32.mrb[0].mxu0
  %v5517 = vadd.f32 %v5452, %v5516
  %v5518 = vpop.f32.mrb[0].mxu0
  %5519 = vmatprep.mubr.bf16.mxu0 0
  %5520 = vmatmul.mubr.bf16.gmra.mrb[0].mxu0 %v5258
  %v5521 = vpop.f32.mrb[0].mxu0
  %v5522 = vadd.f32 %v5457, %v5521
  %v5523 = vpop.f32.mrb[0].mxu0
  %v5524 = vpop.f32.mrb[0].mxu0
  %v5525 = vadd.f32 %v5460, %v5524
  %v5526 = vpop.f32.mrb[0].mxu0
  %5527 = vmatprep.mubr.bf16.mxu0 0
  %5528 = vmatmul.mubr.bf16.gmra.mrb[0].mxu0 %v5261
  %v5529 = vpop.f32.mrb[0].mxu0
  %v5530 = vadd.f32 %v5465, %v5529
  %v5531 = vpop.f32.mrb[0].mxu0
  %v5532 = vpop.f32.mrb[0].mxu0
  %v5533 = vadd.f32 %v5468, %v5532
  %v5534 = vpop.f32.mrb[0].mxu0
  %5535 = vdwg.mxu0
  %v5536 = vadd.f32 %v5171, %v5506
  %v5537 = vadd.f32 %v5174, %v5509
  %v5538 = vadd.f32 %v5179, %v5514
  %v5539 = vadd.f32 %v5182, %v5517
  %v5540 = vadd.f32 %v5187, %v5522
  %v5541 = vadd.f32 %v5190, %v5525
  %v5542 = vadd.f32 %v5195, %v5530
  %v5543 = vadd.f32 %v5198, %v5533
  %s5544 = scalar_lea.vmem %s5, 576
  %v5545 = vld [vmem:[%s5544] sm:$0xf]
  %v5546 = vld [vmem:[%s5544 + $0x4] sm:$0xf]
  %v5547 = vld [vmem:[%s5544 + $0x8] sm:$0xf]
  %v5548 = vld [vmem:[%s5544 + $0xc] sm:$0xf]
  %v5549 = vld [vmem:[%s5544 + $0x10] sm:$0xf]
  %v5550 = vld [vmem:[%s5544 + $0x14] sm:$0xf]
  %v5551 = vld [vmem:[%s5544 + $0x18] sm:$0xf]
  %v5552 = vld [vmem:[%s5544 + $0x1c] sm:$0xf]
  %v5553 = vld [vmem:[%s5544 + $0x20] sm:$0xf]
  %v5554 = vld [vmem:[%s5544 + $0x24] sm:$0xf]
  %v5555 = vld [vmem:[%s5544 + $0x28] sm:$0xf]
  %v5556 = vld [vmem:[%s5544 + $0x2c] sm:$0xf]
  %v5557 = vld [vmem:[%s5544 + $0x30] sm:$0xf]
  %v5558 = vld [vmem:[%s5544 + $0x34] sm:$0xf]
  %v5559 = vld [vmem:[%s5544 + $0x38] sm:$0xf]
  %v5560 = vld [vmem:[%s5544 + $0x3c] sm:$0xf]
  %v5561 = vld [vmem:[%s5544 + $0x40] sm:$0xf]
  %v5562 = vld [vmem:[%s5544 + $0x44] sm:$0xf]
  %v5563 = vld [vmem:[%s5544 + $0x48] sm:$0xf]
  %v5564 = vld [vmem:[%s5544 + $0x4c] sm:$0xf]
  %v5565 = vld [vmem:[%s5544 + $0x50] sm:$0xf]
  %v5566 = vld [vmem:[%s5544 + $0x54] sm:$0xf]
  %v5567 = vld [vmem:[%s5544 + $0x58] sm:$0xf]
  %v5568 = vld [vmem:[%s5544 + $0x5c] sm:$0xf]
  %v5569 = vld [vmem:[%s5544 + $0x60] sm:$0xf]
  %v5570 = vld [vmem:[%s5544 + $0x64] sm:$0xf]
  %v5571 = vld [vmem:[%s5544 + $0x68] sm:$0xf]
  %v5572 = vld [vmem:[%s5544 + $0x6c] sm:$0xf]
  %v5573 = vld [vmem:[%s5544 + $0x70] sm:$0xf]
  %v5574 = vld [vmem:[%s5544 + $0x74] sm:$0xf]
  %v5575 = vld [vmem:[%s5544 + $0x78] sm:$0xf]
  %v5576 = vld [vmem:[%s5544 + $0x7c] sm:$0xf]
  %v5577 = vld [vmem:[%s5544 + $0x80] sm:$0xf]
  %v5578 = vld [vmem:[%s5544 + $0x84] sm:$0xf]
  %v5579 = vld [vmem:[%s5544 + $0x88] sm:$0xf]
  %v5580 = vld [vmem:[%s5544 + $0x8c] sm:$0xf]
  %v5581 = vld [vmem:[%s5544 + $0x90] sm:$0xf]
  %v5582 = vld [vmem:[%s5544 + $0x94] sm:$0xf]
  %v5583 = vld [vmem:[%s5544 + $0x98] sm:$0xf]
  %v5584 = vld [vmem:[%s5544 + $0x9c] sm:$0xf]
  %v5585 = vld [vmem:[%s5544 + $0xa0] sm:$0xf]
  %v5586 = vld [vmem:[%s5544 + $0xa4] sm:$0xf]
  %v5587 = vld [vmem:[%s5544 + $0xa8] sm:$0xf]
  %v5588 = vld [vmem:[%s5544 + $0xac] sm:$0xf]
  %v5589 = vld [vmem:[%s5544 + $0xb0] sm:$0xf]
  %v5590 = vld [vmem:[%s5544 + $0xb4] sm:$0xf]
  %v5591 = vld [vmem:[%s5544 + $0xb8] sm:$0xf]
  %v5592 = vld [vmem:[%s5544 + $0xbc] sm:$0xf]
  %v5593 = vpack.c.bf16 %v4265, %v4261
  %v5594 = vpack.c.bf16 %v4267, %v4263
  %v5595 = vpack.c.bf16 %v4473, %v4470
  %v5596 = vpack.c.bf16 %v4275, %v4271
  %v5597 = vpack.c.bf16 %v4277, %v4273
  %v5598 = vpack.c.bf16 %v4481, %v4478
  %v5599 = vpack.c.bf16 %v4285, %v4281
  %v5600 = vpack.c.bf16 %v4287, %v4283
  %v5601 = vpack.c.bf16 %v4489, %v4486
  %v5602 = vpack.c.bf16 %v4295, %v4291
  %v5603 = vpack.c.bf16 %v4297, %v4293
  %v5604 = vpack.c.bf16 %v4497, %v4494
  %v5653 = vunpack.c.l.b16 %v5545
  %v5654 = vunpack.c.l.b16 %v5546
  %v5655 = vunpack.c.l.b16 %v5547
  %v5656 = vunpack.c.l.b16 %v5548
  %v5657 = vunpack.c.l.b16 %v5549
  %v5658 = vunpack.c.l.b16 %v5550
  %v5659 = vunpack.c.l.b16 %v5551
  %v5660 = vunpack.c.l.b16 %v5552
  %v5661 = vunpack.c.l.b16 %v5553
  %v5662 = vunpack.c.l.b16 %v5554
  %v5663 = vunpack.c.l.b16 %v5555
  %v5664 = vunpack.c.l.b16 %v5556
  %v5665 = vunpack.c.l.b16 %v5557
  %v5666 = vunpack.c.l.b16 %v5558
  %v5667 = vunpack.c.l.b16 %v5559
  %v5668 = vunpack.c.l.b16 %v5560
  %v5669 = vunpack.c.l.b16 %v5561
  %v5670 = vunpack.c.l.b16 %v5562
  %v5671 = vunpack.c.l.b16 %v5563
  %v5672 = vunpack.c.l.b16 %v5564
  %v5673 = vunpack.c.l.b16 %v5565
  %v5674 = vunpack.c.l.b16 %v5566
  %v5675 = vunpack.c.l.b16 %v5567
  %v5676 = vunpack.c.l.b16 %v5568
  %v5677 = vunpack.c.l.b16 %v5569
  %v5678 = vunpack.c.l.b16 %v5570
  %v5679 = vunpack.c.l.b16 %v5571
  %v5680 = vunpack.c.l.b16 %v5572
  %v5681 = vunpack.c.l.b16 %v5573
  %v5682 = vunpack.c.l.b16 %v5574
  %v5683 = vunpack.c.l.b16 %v5575
  %v5684 = vunpack.c.l.b16 %v5576
  %v5685 = vunpack.c.l.b16 %v5577
  %v5686 = vunpack.c.l.b16 %v5578
  %v5687 = vunpack.c.l.b16 %v5579
  %v5688 = vunpack.c.l.b16 %v5580
  %v5689 = vunpack.c.l.b16 %v5581
  %v5690 = vunpack.c.l.b16 %v5582
  %v5691 = vunpack.c.l.b16 %v5583
  %v5692 = vunpack.c.l.b16 %v5584
  %v5693 = vunpack.c.l.b16 %v5585
  %v5694 = vunpack.c.l.b16 %v5586
  %v5695 = vunpack.c.l.b16 %v5587
  %v5696 = vunpack.c.l.b16 %v5588
  %v5697 = vunpack.c.l.b16 %v5589
  %v5698 = vunpack.c.l.b16 %v5590
  %v5699 = vunpack.c.l.b16 %v5591
  %v5700 = vunpack.c.l.b16 %v5592
  %v5701 = vpack.c.b16 %v5654, %v5653
  %v5702 = vpack.c.b16 %v5656, %v5655
  %v5703 = vpack.c.b16 %v5658, %v5657
  %v5704 = vpack.c.b16 %v5660, %v5659
  %v5705 = vpack.c.b16 %v5662, %v5661
  %v5706 = vpack.c.b16 %v5664, %v5663
  %v5707 = vpack.c.b16 %v5666, %v5665
  %v5708 = vpack.c.b16 %v5668, %v5667
  %v5709 = vpack.c.b16 %v5670, %v5669
  %v5710 = vpack.c.b16 %v5672, %v5671
  %v5711 = vpack.c.b16 %v5674, %v5673
  %v5712 = vpack.c.b16 %v5676, %v5675
  %v5713 = vpack.c.b16 %v5678, %v5677
  %v5714 = vpack.c.b16 %v5680, %v5679
  %v5715 = vpack.c.b16 %v5682, %v5681
  %v5716 = vpack.c.b16 %v5684, %v5683
  %v5717 = vpack.c.b16 %v5686, %v5685
  %v5718 = vpack.c.b16 %v5688, %v5687
  %v5719 = vpack.c.b16 %v5690, %v5689
  %v5720 = vpack.c.b16 %v5692, %v5691
  %v5721 = vpack.c.b16 %v5694, %v5693
  %v5722 = vpack.c.b16 %v5696, %v5695
  %v5723 = vpack.c.b16 %v5698, %v5697
  %v5724 = vpack.c.b16 %v5700, %v5699
  %5749 = vmatprep.subr.bf16.mxu0 0
  %5750 = vmatpush1.bf16.msra.mxu0 %v5701
  %5751 = vmatprep.subr.bf16.mxu0 0
  %5752 = vmatpush1.bf16.msra.mxu0 %v5702
  %5753 = vmatprep.subr.bf16.mxu0 0
  %5754 = vmatpush1.bf16.msra.mxu0 %v5703
  %5755 = vmatprep.subr.bf16.mxu0 0
  %5756 = vmatpush1.bf16.msra.mxu0 %v5704
  %5757 = vmatprep.subr.bf16.mxu0 0
  %5758 = vmatpush1.bf16.msra.mxu0 %v5705
  %5759 = vmatprep.subr.bf16.mxu0 0
  %5760 = vmatpush1.bf16.msra.mxu0 %v5706
  %5761 = vmatprep.subr.bf16.mxu0 0
  %5762 = vmatpush1.bf16.msra.mxu0 %v5707
  %5763 = vmatprep.subr.bf16.mxu0 0
  %5764 = vmatpush1.bf16.msra.mxu0 %v5708
  %5765 = vmatprep.subr.bf16.mxu0 0
  %5766 = vmatpush1.bf16.msra.mxu0 %v5709
  %5767 = vmatprep.subr.bf16.mxu0 0
  %5768 = vmatpush1.bf16.msra.mxu0 %v5710
  %5769 = vmatprep.subr.bf16.mxu0 0
  %5770 = vmatpush1.bf16.msra.mxu0 %v5711
  %5771 = vmatprep.subr.bf16.mxu0 0
  %5772 = vmatpush1.bf16.msra.mxu0 %v5712
  %5773 = vmatprep.subr.bf16.mxu0 0
  %5774 = vmatpush1.bf16.msra.mxu0 %v5713
  %5775 = vmatprep.subr.bf16.mxu0 0
  %5776 = vmatpush1.bf16.msra.mxu0 %v5714
  %5777 = vmatprep.subr.bf16.mxu0 0
  %5778 = vmatpush1.bf16.msra.mxu0 %v5715
  %5779 = vmatprep.subr.bf16.mxu0 0
  %5780 = vmatpush1.bf16.msra.mxu0 %v5716
  %5781 = vmatprep.mubr.bf16.mxu0 %v5594
  %5782 = vmatmul.mubr.bf16.gmra.mrb[0].mxu0 %v5593
  %v5783 = vpop.f32.mrb[0].mxu0
  %v5784 = vadd.f32 0.0, %v5783
  %v5785 = vpop.f32.mrb[0].mxu0
  %v5786 = vpop.f32.mrb[0].mxu0
  %v5787 = vadd.f32 0.0, %v5786
  %v5788 = vpop.f32.mrb[0].mxu0
  %5789 = vmatprep.mubr.bf16.mxu0 %v5597
  %5790 = vmatmul.mubr.bf16.gmra.mrb[0].mxu0 %v5596
  %v5791 = vpop.f32.mrb[0].mxu0
  %v5792 = vadd.f32 0.0, %v5791
  %v5793 = vpop.f32.mrb[0].mxu0
  %v5794 = vpop.f32.mrb[0].mxu0
  %v5795 = vadd.f32 0.0, %v5794
  %v5796 = vpop.f32.mrb[0].mxu0
  %5797 = vmatprep.mubr.bf16.mxu0 %v5600
  %5798 = vmatmul.mubr.bf16.gmra.mrb[0].mxu0 %v5599
  %v5799 = vpop.f32.mrb[0].mxu0
  %v5800 = vadd.f32 0.0, %v5799
  %v5801 = vpop.f32.mrb[0].mxu0
  %v5802 = vpop.f32.mrb[0].mxu0
  %v5803 = vadd.f32 0.0, %v5802
  %v5804 = vpop.f32.mrb[0].mxu0
  %5805 = vmatprep.mubr.bf16.mxu0 %v5603
  %5806 = vmatmul.mubr.bf16.gmra.mrb[0].mxu0 %v5602
  %v5807 = vpop.f32.mrb[0].mxu0
  %v5808 = vadd.f32 0.0, %v5807
  %v5809 = vpop.f32.mrb[0].mxu0
  %v5810 = vpop.f32.mrb[0].mxu0
  %v5811 = vadd.f32 0.0, %v5810
  %v5812 = vpop.f32.mrb[0].mxu0
  %5813 = vdwg.mxu0
  %5814 = vmatprep.subr.bf16.mxu0 0
  %5815 = vmatpush1.bf16.msra.mxu0 %v5717
  %5816 = vmatprep.subr.bf16.mxu0 0
  %5817 = vmatpush1.bf16.msra.mxu0 %v5718
  %5818 = vmatprep.subr.bf16.mxu0 0
  %5819 = vmatpush1.bf16.msra.mxu0 %v5719
  %5820 = vmatprep.subr.bf16.mxu0 0
  %5821 = vmatpush1.bf16.msra.mxu0 %v5720
  %5822 = vmatprep.subr.bf16.mxu0 0
  %5823 = vmatpush1.bf16.msra.mxu0 %v5721
  %5824 = vmatprep.subr.bf16.mxu0 0
  %5825 = vmatpush1.bf16.msra.mxu0 %v5722
  %5826 = vmatprep.subr.bf16.mxu0 0
  %5827 = vmatpush1.bf16.msra.mxu0 %v5723
  %5828 = vmatprep.subr.bf16.mxu0 0
  %5829 = vmatpush1.bf16.msra.mxu0 %v5724
  %5830 = vmatprep.subr.bf16.mxu0 0
  %5831 = vmatpush1.bf16.msra.mxu0 0
  %5832 = vmatprep.subr.bf16.mxu0 0
  %5833 = vmatpush1.bf16.msra.mxu0 0
  %5834 = vmatprep.subr.bf16.mxu0 0
  %5835 = vmatpush1.bf16.msra.mxu0 0
  %5836 = vmatprep.subr.bf16.mxu0 0
  %5837 = vmatpush1.bf16.msra.mxu0 0
  %5838 = vmatprep.subr.bf16.mxu0 0
  %5839 = vmatpush1.bf16.msra.mxu0 0
  %5840 = vmatprep.subr.bf16.mxu0 0
  %5841 = vmatpush1.bf16.msra.mxu0 0
  %5842 = vmatprep.subr.bf16.mxu0 0
  %5843 = vmatpush1.bf16.msra.mxu0 0
  %5844 = vmatprep.subr.bf16.mxu0 0
  %5845 = vmatpush1.bf16.msra.mxu0 0
  %5846 = vmatprep.mubr.bf16.mxu0 0
  %5847 = vmatmul.mubr.bf16.gmra.mrb[0].mxu0 %v5595
  %v5848 = vpop.f32.mrb[0].mxu0
  %v5849 = vadd.f32 %v5784, %v5848
  %v5850 = vpop.f32.mrb[0].mxu0
  %v5851 = vpop.f32.mrb[0].mxu0
  %v5852 = vadd.f32 %v5787, %v5851
  %v5853 = vpop.f32.mrb[0].mxu0
  %5854 = vmatprep.mubr.bf16.mxu0 0
  %5855 = vmatmul.mubr.bf16.gmra.mrb[0].mxu0 %v5598
  %v5856 = vpop.f32.mrb[0].mxu0
  %v5857 = vadd.f32 %v5792, %v5856
  %v5858 = vpop.f32.mrb[0].mxu0
  %v5859 = vpop.f32.mrb[0].mxu0
  %v5860 = vadd.f32 %v5795, %v5859
  %v5861 = vpop.f32.mrb[0].mxu0
  %5862 = vmatprep.mubr.bf16.mxu0 0
  %5863 = vmatmul.mubr.bf16.gmra.mrb[0].mxu0 %v5601
  %v5864 = vpop.f32.mrb[0].mxu0
  %v5865 = vadd.f32 %v5800, %v5864
  %v5866 = vpop.f32.mrb[0].mxu0
  %v5867 = vpop.f32.mrb[0].mxu0
  %v5868 = vadd.f32 %v5803, %v5867
  %v5869 = vpop.f32.mrb[0].mxu0
  %5870 = vmatprep.mubr.bf16.mxu0 0
  %5871 = vmatmul.mubr.bf16.gmra.mrb[0].mxu0 %v5604
  %v5872 = vpop.f32.mrb[0].mxu0
  %v5873 = vadd.f32 %v5808, %v5872
  %v5874 = vpop.f32.mrb[0].mxu0
  %v5875 = vpop.f32.mrb[0].mxu0
  %v5876 = vadd.f32 %v5811, %v5875
  %v5877 = vpop.f32.mrb[0].mxu0
  %5878 = vdwg.mxu0
  %v5879 = vadd.f32 %v5536, %v5849
  %v5880 = vadd.f32 %v5537, %v5852
  %v5881 = vadd.f32 %v5538, %v5857
  %v5882 = vadd.f32 %v5539, %v5860
  %v5883 = vadd.f32 %v5540, %v5865
  %v5884 = vadd.f32 %v5541, %v5868
  %v5885 = vadd.f32 %v5542, %v5873
  %v5886 = vadd.f32 %v5543, %v5876
  %s5887 = scalar_lea.vmem %s5, 768
  %v5888 = vld [vmem:[%s5887] sm:$0xf]
  %v5889 = vld [vmem:[%s5887 + $0x4] sm:$0xf]
  %v5890 = vld [vmem:[%s5887 + $0x8] sm:$0xf]
  %v5891 = vld [vmem:[%s5887 + $0xc] sm:$0xf]
  %v5892 = vld [vmem:[%s5887 + $0x10] sm:$0xf]
  %v5893 = vld [vmem:[%s5887 + $0x14] sm:$0xf]
  %v5894 = vld [vmem:[%s5887 + $0x18] sm:$0xf]
  %v5895 = vld [vmem:[%s5887 + $0x1c] sm:$0xf]
  %v5896 = vld [vmem:[%s5887 + $0x20] sm:$0xf]
  %v5897 = vld [vmem:[%s5887 + $0x24] sm:$0xf]
  %v5898 = vld [vmem:[%s5887 + $0x28] sm:$0xf]
  %v5899 = vld [vmem:[%s5887 + $0x2c] sm:$0xf]
  %v5900 = vld [vmem:[%s5887 + $0x30] sm:$0xf]
  %v5901 = vld [vmem:[%s5887 + $0x34] sm:$0xf]
  %v5902 = vld [vmem:[%s5887 + $0x38] sm:$0xf]
  %v5903 = vld [vmem:[%s5887 + $0x3c] sm:$0xf]
  %v5904 = vld [vmem:[%s5887 + $0x40] sm:$0xf]
  %v5905 = vld [vmem:[%s5887 + $0x44] sm:$0xf]
  %v5906 = vld [vmem:[%s5887 + $0x48] sm:$0xf]
  %v5907 = vld [vmem:[%s5887 + $0x4c] sm:$0xf]
  %v5908 = vld [vmem:[%s5887 + $0x50] sm:$0xf]
  %v5909 = vld [vmem:[%s5887 + $0x54] sm:$0xf]
  %v5910 = vld [vmem:[%s5887 + $0x58] sm:$0xf]
  %v5911 = vld [vmem:[%s5887 + $0x5c] sm:$0xf]
  %v5912 = vld [vmem:[%s5887 + $0x60] sm:$0xf]
  %v5913 = vld [vmem:[%s5887 + $0x64] sm:$0xf]
  %v5914 = vld [vmem:[%s5887 + $0x68] sm:$0xf]
  %v5915 = vld [vmem:[%s5887 + $0x6c] sm:$0xf]
  %v5916 = vld [vmem:[%s5887 + $0x70] sm:$0xf]
  %v5917 = vld [vmem:[%s5887 + $0x74] sm:$0xf]
  %v5918 = vld [vmem:[%s5887 + $0x78] sm:$0xf]
  %v5919 = vld [vmem:[%s5887 + $0x7c] sm:$0xf]
  %v5920 = vld [vmem:[%s5887 + $0x80] sm:$0xf]
  %v5921 = vld [vmem:[%s5887 + $0x84] sm:$0xf]
  %v5922 = vld [vmem:[%s5887 + $0x88] sm:$0xf]
  %v5923 = vld [vmem:[%s5887 + $0x8c] sm:$0xf]
  %v5924 = vld [vmem:[%s5887 + $0x90] sm:$0xf]
  %v5925 = vld [vmem:[%s5887 + $0x94] sm:$0xf]
  %v5926 = vld [vmem:[%s5887 + $0x98] sm:$0xf]
  %v5927 = vld [vmem:[%s5887 + $0x9c] sm:$0xf]
  %v5928 = vld [vmem:[%s5887 + $0xa0] sm:$0xf]
  %v5929 = vld [vmem:[%s5887 + $0xa4] sm:$0xf]
  %v5930 = vld [vmem:[%s5887 + $0xa8] sm:$0xf]
  %v5931 = vld [vmem:[%s5887 + $0xac] sm:$0xf]
  %v5932 = vld [vmem:[%s5887 + $0xb0] sm:$0xf]
  %v5933 = vld [vmem:[%s5887 + $0xb4] sm:$0xf]
  %v5934 = vld [vmem:[%s5887 + $0xb8] sm:$0xf]
  %v5935 = vld [vmem:[%s5887 + $0xbc] sm:$0xf]
  %v5936 = vpack.c.bf16 %v4305, %v4301
  %v5937 = vpack.c.bf16 %v4307, %v4303
  %v5938 = vpack.c.bf16 %v4505, %v4502
  %v5939 = vpack.c.bf16 %v4315, %v4311
  %v5940 = vpack.c.bf16 %v4317, %v4313
  %v5941 = vpack.c.bf16 %v4513, %v4510
  %v5942 = vpack.c.bf16 %v4325, %v4321
  %v5943 = vpack.c.bf16 %v4327, %v4323
  %v5944 = vpack.c.bf16 %v4521, %v4518
  %v5945 = vpack.c.bf16 %v4335, %v4331
  %v5946 = vpack.c.bf16 %v4337, %v4333
  %v5947 = vpack.c.bf16 %v4529, %v4526
  %v5996 = vunpack.c.l.b16 %v5888
  %v5997 = vunpack.c.l.b16 %v5889
  %v5998 = vunpack.c.l.b16 %v5890
  %v5999 = vunpack.c.l.b16 %v5891
  %v6000 = vunpack.c.l.b16 %v5892
  %v6001 = vunpack.c.l.b16 %v5893
  %v6002 = vunpack.c.l.b16 %v5894
  %v6003 = vunpack.c.l.b16 %v5895
  %v6004 = vunpack.c.l.b16 %v5896
  %v6005 = vunpack.c.l.b16 %v5897
  %v6006 = vunpack.c.l.b16 %v5898
  %v6007 = vunpack.c.l.b16 %v5899
  %v6008 = vunpack.c.l.b16 %v5900
  %v6009 = vunpack.c.l.b16 %v5901
  %v6010 = vunpack.c.l.b16 %v5902
  %v6011 = vunpack.c.l.b16 %v5903
  %v6012 = vunpack.c.l.b16 %v5904
  %v6013 = vunpack.c.l.b16 %v5905
  %v6014 = vunpack.c.l.b16 %v5906
  %v6015 = vunpack.c.l.b16 %v5907
  %v6016 = vunpack.c.l.b16 %v5908
  %v6017 = vunpack.c.l.b16 %v5909
  %v6018 = vunpack.c.l.b16 %v5910
  %v6019 = vunpack.c.l.b16 %v5911
  %v6020 = vunpack.c.l.b16 %v5912
  %v6021 = vunpack.c.l.b16 %v5913
  %v6022 = vunpack.c.l.b16 %v5914
  %v6023 = vunpack.c.l.b16 %v5915
  %v6024 = vunpack.c.l.b16 %v5916
  %v6025 = vunpack.c.l.b16 %v5917
  %v6026 = vunpack.c.l.b16 %v5918
  %v6027 = vunpack.c.l.b16 %v5919
  %v6028 = vunpack.c.l.b16 %v5920
  %v6029 = vunpack.c.l.b16 %v5921
  %v6030 = vunpack.c.l.b16 %v5922
  %v6031 = vunpack.c.l.b16 %v5923
  %v6032 = vunpack.c.l.b16 %v5924
  %v6033 = vunpack.c.l.b16 %v5925
  %v6034 = vunpack.c.l.b16 %v5926
  %v6035 = vunpack.c.l.b16 %v5927
  %v6036 = vunpack.c.l.b16 %v5928
  %v6037 = vunpack.c.l.b16 %v5929
  %v6038 = vunpack.c.l.b16 %v5930
  %v6039 = vunpack.c.l.b16 %v5931
  %v6040 = vunpack.c.l.b16 %v5932
  %v6041 = vunpack.c.l.b16 %v5933
  %v6042 = vunpack.c.l.b16 %v5934
  %v6043 = vunpack.c.l.b16 %v5935
  %v6044 = vpack.c.b16 %v5997, %v5996
  %v6045 = vpack.c.b16 %v5999, %v5998
  %v6046 = vpack.c.b16 %v6001, %v6000
  %v6047 = vpack.c.b16 %v6003, %v6002
  %v6048 = vpack.c.b16 %v6005, %v6004
  %v6049 = vpack.c.b16 %v6007, %v6006
  %v6050 = vpack.c.b16 %v6009, %v6008
  %v6051 = vpack.c.b16 %v6011, %v6010
  %v6052 = vpack.c.b16 %v6013, %v6012
  %v6053 = vpack.c.b16 %v6015, %v6014
  %v6054 = vpack.c.b16 %v6017, %v6016
  %v6055 = vpack.c.b16 %v6019, %v6018
  %v6056 = vpack.c.b16 %v6021, %v6020
  %v6057 = vpack.c.b16 %v6023, %v6022
  %v6058 = vpack.c.b16 %v6025, %v6024
  %v6059 = vpack.c.b16 %v6027, %v6026
  %v6060 = vpack.c.b16 %v6029, %v6028
  %v6061 = vpack.c.b16 %v6031, %v6030
  %v6062 = vpack.c.b16 %v6033, %v6032
  %v6063 = vpack.c.b16 %v6035, %v6034
  %v6064 = vpack.c.b16 %v6037, %v6036
  %v6065 = vpack.c.b16 %v6039, %v6038
  %v6066 = vpack.c.b16 %v6041, %v6040
  %v6067 = vpack.c.b16 %v6043, %v6042
  %6092 = vmatprep.subr.bf16.mxu0 0
  %6093 = vmatpush1.bf16.msra.mxu0 %v6044
  %6094 = vmatprep.subr.bf16.mxu0 0
  %6095 = vmatpush1.bf16.msra.mxu0 %v6045
  %6096 = vmatprep.subr.bf16.mxu0 0
  %6097 = vmatpush1.bf16.msra.mxu0 %v6046
  %6098 = vmatprep.subr.bf16.mxu0 0
  %6099 = vmatpush1.bf16.msra.mxu0 %v6047
  %6100 = vmatprep.subr.bf16.mxu0 0
  %6101 = vmatpush1.bf16.msra.mxu0 %v6048
  %6102 = vmatprep.subr.bf16.mxu0 0
  %6103 = vmatpush1.bf16.msra.mxu0 %v6049
  %6104 = vmatprep.subr.bf16.mxu0 0
  %6105 = vmatpush1.bf16.msra.mxu0 %v6050
  %6106 = vmatprep.subr.bf16.mxu0 0
  %6107 = vmatpush1.bf16.msra.mxu0 %v6051
  %6108 = vmatprep.subr.bf16.mxu0 0
  %6109 = vmatpush1.bf16.msra.mxu0 %v6052
  %6110 = vmatprep.subr.bf16.mxu0 0
  %6111 = vmatpush1.bf16.msra.mxu0 %v6053
  %6112 = vmatprep.subr.bf16.mxu0 0
  %6113 = vmatpush1.bf16.msra.mxu0 %v6054
  %6114 = vmatprep.subr.bf16.mxu0 0
  %6115 = vmatpush1.bf16.msra.mxu0 %v6055
  %6116 = vmatprep.subr.bf16.mxu0 0
  %6117 = vmatpush1.bf16.msra.mxu0 %v6056
  %6118 = vmatprep.subr.bf16.mxu0 0
  %6119 = vmatpush1.bf16.msra.mxu0 %v6057
  %6120 = vmatprep.subr.bf16.mxu0 0
  %6121 = vmatpush1.bf16.msra.mxu0 %v6058
  %6122 = vmatprep.subr.bf16.mxu0 0
  %6123 = vmatpush1.bf16.msra.mxu0 %v6059
  %6124 = vmatprep.mubr.bf16.mxu0 %v5937
  %6125 = vmatmul.mubr.bf16.gmra.mrb[0].mxu0 %v5936
  %v6126 = vpop.f32.mrb[0].mxu0
  %v6127 = vadd.f32 0.0, %v6126
  %v6128 = vpop.f32.mrb[0].mxu0
  %v6129 = vpop.f32.mrb[0].mxu0
  %v6130 = vadd.f32 0.0, %v6129
  %v6131 = vpop.f32.mrb[0].mxu0
  %6132 = vmatprep.mubr.bf16.mxu0 %v5940
  %6133 = vmatmul.mubr.bf16.gmra.mrb[0].mxu0 %v5939
  %v6134 = vpop.f32.mrb[0].mxu0
  %v6135 = vadd.f32 0.0, %v6134
  %v6136 = vpop.f32.mrb[0].mxu0
  %v6137 = vpop.f32.mrb[0].mxu0
  %v6138 = vadd.f32 0.0, %v6137
  %v6139 = vpop.f32.mrb[0].mxu0
  %6140 = vmatprep.mubr.bf16.mxu0 %v5943
  %6141 = vmatmul.mubr.bf16.gmra.mrb[0].mxu0 %v5942
  %v6142 = vpop.f32.mrb[0].mxu0
  %v6143 = vadd.f32 0.0, %v6142
  %v6144 = vpop.f32.mrb[0].mxu0
  %v6145 = vpop.f32.mrb[0].mxu0
  %v6146 = vadd.f32 0.0, %v6145
  %v6147 = vpop.f32.mrb[0].mxu0
  %6148 = vmatprep.mubr.bf16.mxu0 %v5946
  %6149 = vmatmul.mubr.bf16.gmra.mrb[0].mxu0 %v5945
  %v6150 = vpop.f32.mrb[0].mxu0
  %v6151 = vadd.f32 0.0, %v6150
  %v6152 = vpop.f32.mrb[0].mxu0
  %v6153 = vpop.f32.mrb[0].mxu0
  %v6154 = vadd.f32 0.0, %v6153
  %v6155 = vpop.f32.mrb[0].mxu0
  %6156 = vdwg.mxu0
  %6157 = vmatprep.subr.bf16.mxu0 0
  %6158 = vmatpush1.bf16.msra.mxu0 %v6060
  %6159 = vmatprep.subr.bf16.mxu0 0
  %6160 = vmatpush1.bf16.msra.mxu0 %v6061
  %6161 = vmatprep.subr.bf16.mxu0 0
  %6162 = vmatpush1.bf16.msra.mxu0 %v6062
  %6163 = vmatprep.subr.bf16.mxu0 0
  %6164 = vmatpush1.bf16.msra.mxu0 %v6063
  %6165 = vmatprep.subr.bf16.mxu0 0
  %6166 = vmatpush1.bf16.msra.mxu0 %v6064
  %6167 = vmatprep.subr.bf16.mxu0 0
  %6168 = vmatpush1.bf16.msra.mxu0 %v6065
  %6169 = vmatprep.subr.bf16.mxu0 0
  %6170 = vmatpush1.bf16.msra.mxu0 %v6066
  %6171 = vmatprep.subr.bf16.mxu0 0
  %6172 = vmatpush1.bf16.msra.mxu0 %v6067
  %6173 = vmatprep.subr.bf16.mxu0 0
  %6174 = vmatpush1.bf16.msra.mxu0 0
  %6175 = vmatprep.subr.bf16.mxu0 0
  %6176 = vmatpush1.bf16.msra.mxu0 0
  %6177 = vmatprep.subr.bf16.mxu0 0
  %6178 = vmatpush1.bf16.msra.mxu0 0
  %6179 = vmatprep.subr.bf16.mxu0 0
  %6180 = vmatpush1.bf16.msra.mxu0 0
  %6181 = vmatprep.subr.bf16.mxu0 0
  %6182 = vmatpush1.bf16.msra.mxu0 0
  %6183 = vmatprep.subr.bf16.mxu0 0
  %6184 = vmatpush1.bf16.msra.mxu0 0
  %6185 = vmatprep.subr.bf16.mxu0 0
  %6186 = vmatpush1.bf16.msra.mxu0 0
  %6187 = vmatprep.subr.bf16.mxu0 0
  %6188 = vmatpush1.bf16.msra.mxu0 0
  %6189 = vmatprep.mubr.bf16.mxu0 0
  %6190 = vmatmul.mubr.bf16.gmra.mrb[0].mxu0 %v5938
  %v6191 = vpop.f32.mrb[0].mxu0
  %v6192 = vadd.f32 %v6127, %v6191
  %v6193 = vpop.f32.mrb[0].mxu0
  %v6194 = vpop.f32.mrb[0].mxu0
  %v6195 = vadd.f32 %v6130, %v6194
  %v6196 = vpop.f32.mrb[0].mxu0
  %6197 = vmatprep.mubr.bf16.mxu0 0
  %6198 = vmatmul.mubr.bf16.gmra.mrb[0].mxu0 %v5941
  %v6199 = vpop.f32.mrb[0].mxu0
  %v6200 = vadd.f32 %v6135, %v6199
  %v6201 = vpop.f32.mrb[0].mxu0
  %v6202 = vpop.f32.mrb[0].mxu0
  %v6203 = vadd.f32 %v6138, %v6202
  %v6204 = vpop.f32.mrb[0].mxu0
  %6205 = vmatprep.mubr.bf16.mxu0 0
  %6206 = vmatmul.mubr.bf16.gmra.mrb[0].mxu0 %v5944
  %v6207 = vpop.f32.mrb[0].mxu0
  %v6208 = vadd.f32 %v6143, %v6207
  %v6209 = vpop.f32.mrb[0].mxu0
  %v6210 = vpop.f32.mrb[0].mxu0
  %v6211 = vadd.f32 %v6146, %v6210
  %v6212 = vpop.f32.mrb[0].mxu0
  %6213 = vmatprep.mubr.bf16.mxu0 0
  %6214 = vmatmul.mubr.bf16.gmra.mrb[0].mxu0 %v5947
  %v6215 = vpop.f32.mrb[0].mxu0
  %v6216 = vadd.f32 %v6151, %v6215
  %v6217 = vpop.f32.mrb[0].mxu0
  %v6218 = vpop.f32.mrb[0].mxu0
  %v6219 = vadd.f32 %v6154, %v6218
  %v6220 = vpop.f32.mrb[0].mxu0
  %6221 = vdwg.mxu0
  %v6222 = vadd.f32 %v5879, %v6192
  %v6223 = vadd.f32 %v5880, %v6195
  %v6224 = vadd.f32 %v5881, %v6200
  %v6225 = vadd.f32 %v5882, %v6203
  %v6226 = vadd.f32 %v5883, %v6208
  %v6227 = vadd.f32 %v5884, %v6211
  %v6228 = vadd.f32 %v5885, %v6216
  %v6229 = vadd.f32 %v5886, %v6219
  %v6230 = vld [vmem:[%s6] sm:$0x1]
  %v6232 = vlaneseq
  %v6233 = vshrl.u32 %v6232, 7
  %v6234 = vsub.s32 0, %v6233
  %v6235 = vrot.slane %v6230, %v6234
  %v6237 = vadd.f32 %v6222, %v6235
  %v6238 = vadd.f32 %v6223, %v6235
  %v6239 = vadd.f32 %v6224, %v6235
  %v6240 = vadd.f32 %v6225, %v6235
  %v6241 = vadd.f32 %v6226, %v6235
  %v6242 = vadd.f32 %v6227, %v6235
  %v6243 = vadd.f32 %v6228, %v6235
  %v6244 = vadd.f32 %v6229, %v6235
  %v6245 = vmax.f32 %v6237, 0.0
  %v6246 = vmax.f32 %v6238, 0.0
  %v6247 = vmax.f32 %v6239, 0.0
  %v6248 = vmax.f32 %v6240, 0.0
  %v6249 = vmax.f32 %v6241, 0.0
  %v6250 = vmax.f32 %v6242, 0.0
  %v6251 = vmax.f32 %v6243, 0.0
  %v6252 = vmax.f32 %v6244, 0.0
  %v6253 = vld [vmem:[%s7] sm:$0xf]
  %v6254 = vld [vmem:[%s7 + $0x4] sm:$0xf]
  %v6255 = vld [vmem:[%s7 + $0x8] sm:$0xf]
  %v6256 = vld [vmem:[%s7 + $0xc] sm:$0xf]
  %v6257 = vpack.c.bf16 %v6246, %v6245
  %v6258 = vpack.c.bf16 %v6248, %v6247
  %v6259 = vpack.c.bf16 %v6250, %v6249
  %v6260 = vpack.c.bf16 %v6252, %v6251
  %v6265 = vunpack.c.l.b16 %v6253
  %v6266 = vunpack.c.l.b16 %v6254
  %v6267 = vunpack.c.l.b16 %v6255
  %v6268 = vunpack.c.l.b16 %v6256
  %v6269 = vpack.c.b16 %v6266, %v6265
  %v6270 = vpack.c.b16 %v6268, %v6267
  %v6272 = vsel %vm4045, %v6269, 0
  %v6275 = vsel %vm4045, %v6270, 0
  %6277 = vmatprep.subr.bf16.mxu0 0
  %6278 = vmatpush1.bf16.msra.mxu0 %v6257
  %6279 = vmatprep.subr.bf16.mxu0 0
  %6280 = vmatpush1.bf16.msra.mxu0 %v6258
  %6281 = vmatprep.subr.bf16.mxu0 0
  %6282 = vmatpush1.bf16.msra.mxu0 %v6259
  %6283 = vmatprep.subr.bf16.mxu0 0
  %6284 = vmatpush1.bf16.msra.mxu0 %v6260
  %6285 = vmatprep.subr.bf16.mxu0 0
  %6286 = vmatpush1.bf16.msra.mxu0 0
  %6287 = vmatprep.subr.bf16.mxu0 0
  %6288 = vmatpush1.bf16.msra.mxu0 0
  %6289 = vmatprep.subr.bf16.mxu0 0
  %6290 = vmatpush1.bf16.msra.mxu0 0
  %6291 = vmatprep.subr.bf16.mxu0 0
  %6292 = vmatpush1.bf16.msra.mxu0 0
  %6293 = vmatprep.subr.bf16.mxu0 0
  %6294 = vmatpush1.bf16.msra.mxu0 0
  %6295 = vmatprep.subr.bf16.mxu0 0
  %6296 = vmatpush1.bf16.msra.mxu0 0
  %6297 = vmatprep.subr.bf16.mxu0 0
  %6298 = vmatpush1.bf16.msra.mxu0 0
  %6299 = vmatprep.subr.bf16.mxu0 0
  %6300 = vmatpush1.bf16.msra.mxu0 0
  %6301 = vmatprep.subr.bf16.mxu0 0
  %6302 = vmatpush1.bf16.msra.mxu0 0
  %6303 = vmatprep.subr.bf16.mxu0 0
  %6304 = vmatpush1.bf16.msra.mxu0 0
  %6305 = vmatprep.subr.bf16.mxu0 0
  %6306 = vmatpush1.bf16.msra.mxu0 0
  %6307 = vmatprep.subr.bf16.mxu0 0
  %6308 = vmatpush1.bf16.msra.mxu0 0
  %6309 = vmatprep.mubr.bf16.mxu0 0
  %6310 = vmatmul.mubr.bf16.gmra.mrb[0].mxu0 %v6272
  %v6311 = vpop.f32.mrb[0].mxu0
  %v6312 = vadd.f32 0.0, %v6311
  %v6313 = vpop.f32.mrb[0].mxu0
  %v6314 = vpop.f32.mrb[0].mxu0
  %v6315 = vadd.f32 0.0, %v6314
  %v6316 = vpop.f32.mrb[0].mxu0
  %6317 = vmatprep.mubr.bf16.mxu0 0
  %6318 = vmatmul.mubr.bf16.gmra.mrb[0].mxu0 %v6275
  %v6319 = vpop.f32.mrb[0].mxu0
  %v6320 = vadd.f32 0.0, %v6319
  %v6321 = vpop.f32.mrb[0].mxu0
  %v6322 = vpop.f32.mrb[0].mxu0
  %v6323 = vadd.f32 0.0, %v6322
  %v6324 = vpop.f32.mrb[0].mxu0
  %6325 = vdwg.mxu0
  %v6326 = vld [vmem:[%s8] sm:$0xf]
  %v6327 = vld [vmem:[%s8 + $0x4] sm:$0xf]
  %v6328 = vld [vmem:[%s8 + $0x8] sm:$0xf]
  %v6329 = vld [vmem:[%s8 + $0xc] sm:$0xf]
  %v6330 = vld [vmem:[%s8 + $0x10] sm:$0xf]
  %v6331 = vld [vmem:[%s8 + $0x14] sm:$0xf]
  %v6332 = vld [vmem:[%s8 + $0x18] sm:$0xf]
  %v6333 = vld [vmem:[%s8 + $0x1c] sm:$0xf]
  %v6334 = vld [vmem:[%s8 + $0x20] sm:$0xf]
  %v6335 = vld [vmem:[%s8 + $0x24] sm:$0xf]
  %v6336 = vld [vmem:[%s8 + $0x28] sm:$0xf]
  %v6337 = vld [vmem:[%s8 + $0x2c] sm:$0xf]
  %v6338 = vld [vmem:[%s8 + $0x30] sm:$0xf]
  %v6339 = vld [vmem:[%s8 + $0x34] sm:$0xf]
  %v6340 = vld [vmem:[%s8 + $0x38] sm:$0xf]
  %v6341 = vld [vmem:[%s8 + $0x3c] sm:$0xf]
  %v6342 = vpack.c.bf16 %v6312, %v6312
  %s6343 = scalar_lea.vmem %s8, 64
  %v6344 = vld [vmem:[%s6343] sm:$0xf]
  %v6345 = vld [vmem:[%s6343 + $0x4] sm:$0xf]
  %v6346 = vld [vmem:[%s6343 + $0x8] sm:$0xf]
  %v6347 = vld [vmem:[%s6343 + $0xc] sm:$0xf]
  %v6348 = vld [vmem:[%s6343 + $0x10] sm:$0xf]
  %v6349 = vld [vmem:[%s6343 + $0x14] sm:$0xf]
  %v6350 = vld [vmem:[%s6343 + $0x18] sm:$0xf]
  %v6351 = vld [vmem:[%s6343 + $0x1c] sm:$0xf]
  %v6352 = vld [vmem:[%s6343 + $0x20] sm:$0xf]
  %v6353 = vld [vmem:[%s6343 + $0x24] sm:$0xf]
  %v6354 = vld [vmem:[%s6343 + $0x28] sm:$0xf]
  %v6355 = vld [vmem:[%s6343 + $0x2c] sm:$0xf]
  %v6356 = vld [vmem:[%s6343 + $0x30] sm:$0xf]
  %v6357 = vld [vmem:[%s6343 + $0x34] sm:$0xf]
  %v6358 = vld [vmem:[%s6343 + $0x38] sm:$0xf]
  %v6359 = vld [vmem:[%s6343 + $0x3c] sm:$0xf]
  %v6360 = vpack.c.bf16 %v6315, %v6315
  %v6377 = vunpack.c.l.b16 %v6344
  %v6378 = vunpack.c.l.b16 %v6345
  %v6379 = vunpack.c.l.b16 %v6346
  %v6380 = vunpack.c.l.b16 %v6347
  %v6381 = vunpack.c.l.b16 %v6348
  %v6382 = vunpack.c.l.b16 %v6349
  %v6383 = vunpack.c.l.b16 %v6350
  %v6384 = vunpack.c.l.b16 %v6351
  %v6385 = vunpack.c.l.b16 %v6352
  %v6386 = vunpack.c.l.b16 %v6353
  %v6387 = vunpack.c.l.b16 %v6354
  %v6388 = vunpack.c.l.b16 %v6355
  %v6389 = vunpack.c.l.b16 %v6356
  %v6390 = vunpack.c.l.b16 %v6357
  %v6391 = vunpack.c.l.b16 %v6358
  %v6392 = vunpack.c.l.b16 %v6359
  %v6393 = vpack.c.b16 %v6378, %v6377
  %v6394 = vpack.c.b16 %v6380, %v6379
  %v6395 = vpack.c.b16 %v6382, %v6381
  %v6396 = vpack.c.b16 %v6384, %v6383
  %v6397 = vpack.c.b16 %v6386, %v6385
  %v6398 = vpack.c.b16 %v6388, %v6387
  %v6399 = vpack.c.b16 %v6390, %v6389
  %v6400 = vpack.c.b16 %v6392, %v6391
  %6409 = vmatprep.subr.bf16.mxu0 0
  %6410 = vmatpush1.bf16.msra.mxu0 %v6393
  %6411 = vmatprep.subr.bf16.mxu0 0
  %6412 = vmatpush1.bf16.msra.mxu0 %v6394
  %6413 = vmatprep.subr.bf16.mxu0 0
  %6414 = vmatpush1.bf16.msra.mxu0 %v6395
  %6415 = vmatprep.subr.bf16.mxu0 0
  %6416 = vmatpush1.bf16.msra.mxu0 %v6396
  %6417 = vmatprep.subr.bf16.mxu0 0
  %6418 = vmatpush1.bf16.msra.mxu0 %v6397
  %6419 = vmatprep.subr.bf16.mxu0 0
  %6420 = vmatpush1.bf16.msra.mxu0 %v6398
  %6421 = vmatprep.subr.bf16.mxu0 0
  %6422 = vmatpush1.bf16.msra.mxu0 %v6399
  %6423 = vmatprep.subr.bf16.mxu0 0
  %6424 = vmatpush1.bf16.msra.mxu0 %v6400
  %6425 = vmatprep.subr.bf16.mxu0 0
  %6426 = vmatpush1.bf16.msra.mxu0 0
  %6427 = vmatprep.subr.bf16.mxu0 0
  %6428 = vmatpush1.bf16.msra.mxu0 0
  %6429 = vmatprep.subr.bf16.mxu0 0
  %6430 = vmatpush1.bf16.msra.mxu0 0
  %6431 = vmatprep.subr.bf16.mxu0 0
  %6432 = vmatpush1.bf16.msra.mxu0 0
  %6433 = vmatprep.subr.bf16.mxu0 0
  %6434 = vmatpush1.bf16.msra.mxu0 0
  %6435 = vmatprep.subr.bf16.mxu0 0
  %6436 = vmatpush1.bf16.msra.mxu0 0
  %6437 = vmatprep.subr.bf16.mxu0 0
  %6438 = vmatpush1.bf16.msra.mxu0 0
  %6439 = vmatprep.subr.bf16.mxu0 0
  %6440 = vmatpush1.bf16.msra.mxu0 0
  %6441 = vmatprep.mubr.bf16.mxu0 0
  %6442 = vmatmul.mubr.bf16.gmra.mrb[0].mxu0 %v6360
  %v6443 = vpop.f32.mrb[0].mxu0
  %v6444 = vadd.f32 0.0, %v6443
  %v6445 = vpop.f32.mrb[0].mxu0
  %v6446 = vpop.f32.mrb[0].mxu0
  %v6447 = vpop.f32.mrb[0].mxu0
  %6448 = vdwg.mxu0
  %v6465 = vunpack.c.l.b16 %v6326
  %v6466 = vunpack.c.l.b16 %v6327
  %v6467 = vunpack.c.l.b16 %v6328
  %v6468 = vunpack.c.l.b16 %v6329
  %v6469 = vunpack.c.l.b16 %v6330
  %v6470 = vunpack.c.l.b16 %v6331
  %v6471 = vunpack.c.l.b16 %v6332
  %v6472 = vunpack.c.l.b16 %v6333
  %v6473 = vunpack.c.l.b16 %v6334
  %v6474 = vunpack.c.l.b16 %v6335
  %v6475 = vunpack.c.l.b16 %v6336
  %v6476 = vunpack.c.l.b16 %v6337
  %v6477 = vunpack.c.l.b16 %v6338
  %v6478 = vunpack.c.l.b16 %v6339
  %v6479 = vunpack.c.l.b16 %v6340
  %v6480 = vunpack.c.l.b16 %v6341
  %v6481 = vpack.c.b16 %v6466, %v6465
  %v6482 = vpack.c.b16 %v6468, %v6467
  %v6483 = vpack.c.b16 %v6470, %v6469
  %v6484 = vpack.c.b16 %v6472, %v6471
  %v6485 = vpack.c.b16 %v6474, %v6473
  %v6486 = vpack.c.b16 %v6476, %v6475
  %v6487 = vpack.c.b16 %v6478, %v6477
  %v6488 = vpack.c.b16 %v6480, %v6479
  %6497 = vmatprep.subr.bf16.mxu0 0
  %6498 = vmatpush1.bf16.msra.mxu0 %v6481
  %6499 = vmatprep.subr.bf16.mxu0 0
  %6500 = vmatpush1.bf16.msra.mxu0 %v6482
  %6501 = vmatprep.subr.bf16.mxu0 0
  %6502 = vmatpush1.bf16.msra.mxu0 %v6483
  %6503 = vmatprep.subr.bf16.mxu0 0
  %6504 = vmatpush1.bf16.msra.mxu0 %v6484
  %6505 = vmatprep.subr.bf16.mxu0 0
  %6506 = vmatpush1.bf16.msra.mxu0 %v6485
  %6507 = vmatprep.subr.bf16.mxu0 0
  %6508 = vmatpush1.bf16.msra.mxu0 %v6486
  %6509 = vmatprep.subr.bf16.mxu0 0
  %6510 = vmatpush1.bf16.msra.mxu0 %v6487
  %6511 = vmatprep.subr.bf16.mxu0 0
  %6512 = vmatpush1.bf16.msra.mxu0 %v6488
  %6513 = vmatprep.subr.bf16.mxu0 0
  %6514 = vmatpush1.bf16.msra.mxu0 0
  %6515 = vmatprep.subr.bf16.mxu0 0
  %6516 = vmatpush1.bf16.msra.mxu0 0
  %6517 = vmatprep.subr.bf16.mxu0 0
  %6518 = vmatpush1.bf16.msra.mxu0 0
  %6519 = vmatprep.subr.bf16.mxu0 0
  %6520 = vmatpush1.bf16.msra.mxu0 0
  %6521 = vmatprep.subr.bf16.mxu0 0
  %6522 = vmatpush1.bf16.msra.mxu0 0
  %6523 = vmatprep.subr.bf16.mxu0 0
  %6524 = vmatpush1.bf16.msra.mxu0 0
  %6525 = vmatprep.subr.bf16.mxu0 0
  %6526 = vmatpush1.bf16.msra.mxu0 0
  %6527 = vmatprep.subr.bf16.mxu0 0
  %6528 = vmatpush1.bf16.msra.mxu0 0
  %6529 = vmatprep.mubr.bf16.mxu0 0
  %6530 = vmatmul.mubr.bf16.gmra.mrb[0].mxu0 %v6342
  %v6531 = vpop.f32.mrb[0].mxu0
  %v6532 = vadd.f32 %v6444, %v6531
  %v6533 = vpop.f32.mrb[0].mxu0
  %v6534 = vpop.f32.mrb[0].mxu0
  %v6535 = vpop.f32.mrb[0].mxu0
  %6536 = vdwg.mxu0
  %s6537 = scalar_lea.vmem %s8, 128
  %v6538 = vld [vmem:[%s6537] sm:$0xf]
  %v6539 = vld [vmem:[%s6537 + $0x4] sm:$0xf]
  %v6540 = vld [vmem:[%s6537 + $0x8] sm:$0xf]
  %v6541 = vld [vmem:[%s6537 + $0xc] sm:$0xf]
  %v6542 = vld [vmem:[%s6537 + $0x10] sm:$0xf]
  %v6543 = vld [vmem:[%s6537 + $0x14] sm:$0xf]
  %v6544 = vld [vmem:[%s6537 + $0x18] sm:$0xf]
  %v6545 = vld [vmem:[%s6537 + $0x1c] sm:$0xf]
  %v6546 = vld [vmem:[%s6537 + $0x20] sm:$0xf]
  %v6547 = vld [vmem:[%s6537 + $0x24] sm:$0xf]
  %v6548 = vld [vmem:[%s6537 + $0x28] sm:$0xf]
  %v6549 = vld [vmem:[%s6537 + $0x2c] sm:$0xf]
  %v6550 = vld [vmem:[%s6537 + $0x30] sm:$0xf]
  %v6551 = vld [vmem:[%s6537 + $0x34] sm:$0xf]
  %v6552 = vld [vmem:[%s6537 + $0x38] sm:$0xf]
  %v6553 = vld [vmem:[%s6537 + $0x3c] sm:$0xf]
  %v6554 = vpack.c.bf16 %v6320, %v6320
  %v6571 = vunpack.c.l.b16 %v6538
  %v6572 = vunpack.c.l.b16 %v6539
  %v6573 = vunpack.c.l.b16 %v6540
  %v6574 = vunpack.c.l.b16 %v6541
  %v6575 = vunpack.c.l.b16 %v6542
  %v6576 = vunpack.c.l.b16 %v6543
  %v6577 = vunpack.c.l.b16 %v6544
  %v6578 = vunpack.c.l.b16 %v6545
  %v6579 = vunpack.c.l.b16 %v6546
  %v6580 = vunpack.c.l.b16 %v6547
  %v6581 = vunpack.c.l.b16 %v6548
  %v6582 = vunpack.c.l.b16 %v6549
  %v6583 = vunpack.c.l.b16 %v6550
  %v6584 = vunpack.c.l.b16 %v6551
  %v6585 = vunpack.c.l.b16 %v6552
  %v6586 = vunpack.c.l.b16 %v6553
  %v6587 = vpack.c.b16 %v6572, %v6571
  %v6588 = vpack.c.b16 %v6574, %v6573
  %v6589 = vpack.c.b16 %v6576, %v6575
  %v6590 = vpack.c.b16 %v6578, %v6577
  %v6591 = vpack.c.b16 %v6580, %v6579
  %v6592 = vpack.c.b16 %v6582, %v6581
  %v6593 = vpack.c.b16 %v6584, %v6583
  %v6594 = vpack.c.b16 %v6586, %v6585
  %6603 = vmatprep.subr.bf16.mxu0 0
  %6604 = vmatpush1.bf16.msra.mxu0 %v6587
  %6605 = vmatprep.subr.bf16.mxu0 0
  %6606 = vmatpush1.bf16.msra.mxu0 %v6588
  %6607 = vmatprep.subr.bf16.mxu0 0
  %6608 = vmatpush1.bf16.msra.mxu0 %v6589
  %6609 = vmatprep.subr.bf16.mxu0 0
  %6610 = vmatpush1.bf16.msra.mxu0 %v6590
  %6611 = vmatprep.subr.bf16.mxu0 0
  %6612 = vmatpush1.bf16.msra.mxu0 %v6591
  %6613 = vmatprep.subr.bf16.mxu0 0
  %6614 = vmatpush1.bf16.msra.mxu0 %v6592
  %6615 = vmatprep.subr.bf16.mxu0 0
  %6616 = vmatpush1.bf16.msra.mxu0 %v6593
  %6617 = vmatprep.subr.bf16.mxu0 0
  %6618 = vmatpush1.bf16.msra.mxu0 %v6594
  %6619 = vmatprep.subr.bf16.mxu0 0
  %6620 = vmatpush1.bf16.msra.mxu0 0
  %6621 = vmatprep.subr.bf16.mxu0 0
  %6622 = vmatpush1.bf16.msra.mxu0 0
  %6623 = vmatprep.subr.bf16.mxu0 0
  %6624 = vmatpush1.bf16.msra.mxu0 0
  %6625 = vmatprep.subr.bf16.mxu0 0
  %6626 = vmatpush1.bf16.msra.mxu0 0
  %6627 = vmatprep.subr.bf16.mxu0 0
  %6628 = vmatpush1.bf16.msra.mxu0 0
  %6629 = vmatprep.subr.bf16.mxu0 0
  %6630 = vmatpush1.bf16.msra.mxu0 0
  %6631 = vmatprep.subr.bf16.mxu0 0
  %6632 = vmatpush1.bf16.msra.mxu0 0
  %6633 = vmatprep.subr.bf16.mxu0 0
  %6634 = vmatpush1.bf16.msra.mxu0 0
  %6635 = vmatprep.mubr.bf16.mxu0 0
  %6636 = vmatmul.mubr.bf16.gmra.mrb[0].mxu0 %v6554
  %v6637 = vpop.f32.mrb[0].mxu0
  %v6638 = vadd.f32 0.0, %v6637
  %v6639 = vpop.f32.mrb[0].mxu0
  %v6640 = vpop.f32.mrb[0].mxu0
  %v6641 = vpop.f32.mrb[0].mxu0
  %6642 = vdwg.mxu0
  %v6643 = vadd.f32 %v6532, %v6638
  %s6644 = scalar_lea.vmem %s8, 192
  %v6645 = vld [vmem:[%s6644] sm:$0xf]
  %v6646 = vld [vmem:[%s6644 + $0x4] sm:$0xf]
  %v6647 = vld [vmem:[%s6644 + $0x8] sm:$0xf]
  %v6648 = vld [vmem:[%s6644 + $0xc] sm:$0xf]
  %v6649 = vld [vmem:[%s6644 + $0x10] sm:$0xf]
  %v6650 = vld [vmem:[%s6644 + $0x14] sm:$0xf]
  %v6651 = vld [vmem:[%s6644 + $0x18] sm:$0xf]
  %v6652 = vld [vmem:[%s6644 + $0x1c] sm:$0xf]
  %v6653 = vld [vmem:[%s6644 + $0x20] sm:$0xf]
  %v6654 = vld [vmem:[%s6644 + $0x24] sm:$0xf]
  %v6655 = vld [vmem:[%s6644 + $0x28] sm:$0xf]
  %v6656 = vld [vmem:[%s6644 + $0x2c] sm:$0xf]
  %v6657 = vld [vmem:[%s6644 + $0x30] sm:$0xf]
  %v6658 = vld [vmem:[%s6644 + $0x34] sm:$0xf]
  %v6659 = vld [vmem:[%s6644 + $0x38] sm:$0xf]
  %v6660 = vld [vmem:[%s6644 + $0x3c] sm:$0xf]
  %v6661 = vpack.c.bf16 %v6323, %v6323
  %v6678 = vunpack.c.l.b16 %v6645
  %v6679 = vunpack.c.l.b16 %v6646
  %v6680 = vunpack.c.l.b16 %v6647
  %v6681 = vunpack.c.l.b16 %v6648
  %v6682 = vunpack.c.l.b16 %v6649
  %v6683 = vunpack.c.l.b16 %v6650
  %v6684 = vunpack.c.l.b16 %v6651
  %v6685 = vunpack.c.l.b16 %v6652
  %v6686 = vunpack.c.l.b16 %v6653
  %v6687 = vunpack.c.l.b16 %v6654
  %v6688 = vunpack.c.l.b16 %v6655
  %v6689 = vunpack.c.l.b16 %v6656
  %v6690 = vunpack.c.l.b16 %v6657
  %v6691 = vunpack.c.l.b16 %v6658
  %v6692 = vunpack.c.l.b16 %v6659
  %v6693 = vunpack.c.l.b16 %v6660
  %v6694 = vpack.c.b16 %v6679, %v6678
  %v6695 = vpack.c.b16 %v6681, %v6680
  %v6696 = vpack.c.b16 %v6683, %v6682
  %v6697 = vpack.c.b16 %v6685, %v6684
  %v6698 = vpack.c.b16 %v6687, %v6686
  %v6699 = vpack.c.b16 %v6689, %v6688
  %v6700 = vpack.c.b16 %v6691, %v6690
  %v6701 = vpack.c.b16 %v6693, %v6692
  %6710 = vmatprep.subr.bf16.mxu0 0
  %6711 = vmatpush1.bf16.msra.mxu0 %v6694
  %6712 = vmatprep.subr.bf16.mxu0 0
  %6713 = vmatpush1.bf16.msra.mxu0 %v6695
  %6714 = vmatprep.subr.bf16.mxu0 0
  %6715 = vmatpush1.bf16.msra.mxu0 %v6696
  %6716 = vmatprep.subr.bf16.mxu0 0
  %6717 = vmatpush1.bf16.msra.mxu0 %v6697
  %6718 = vmatprep.subr.bf16.mxu0 0
  %6719 = vmatpush1.bf16.msra.mxu0 %v6698
  %6720 = vmatprep.subr.bf16.mxu0 0
  %6721 = vmatpush1.bf16.msra.mxu0 %v6699
  %6722 = vmatprep.subr.bf16.mxu0 0
  %6723 = vmatpush1.bf16.msra.mxu0 %v6700
  %6724 = vmatprep.subr.bf16.mxu0 0
  %6725 = vmatpush1.bf16.msra.mxu0 %v6701
  %6726 = vmatprep.subr.bf16.mxu0 0
  %6727 = vmatpush1.bf16.msra.mxu0 0
  %6728 = vmatprep.subr.bf16.mxu0 0
  %6729 = vmatpush1.bf16.msra.mxu0 0
  %6730 = vmatprep.subr.bf16.mxu0 0
  %6731 = vmatpush1.bf16.msra.mxu0 0
  %6732 = vmatprep.subr.bf16.mxu0 0
  %6733 = vmatpush1.bf16.msra.mxu0 0
  %6734 = vmatprep.subr.bf16.mxu0 0
  %6735 = vmatpush1.bf16.msra.mxu0 0
  %6736 = vmatprep.subr.bf16.mxu0 0
  %6737 = vmatpush1.bf16.msra.mxu0 0
  %6738 = vmatprep.subr.bf16.mxu0 0
  %6739 = vmatpush1.bf16.msra.mxu0 0
  %6740 = vmatprep.subr.bf16.mxu0 0
  %6741 = vmatpush1.bf16.msra.mxu0 0
  %6742 = vmatprep.mubr.bf16.mxu0 0
  %6743 = vmatmul.mubr.bf16.gmra.mrb[0].mxu0 %v6661
  %v6744 = vpop.f32.mrb[0].mxu0
  %v6745 = vadd.f32 0.0, %v6744
  %v6746 = vpop.f32.mrb[0].mxu0
  %v6747 = vpop.f32.mrb[0].mxu0
  %v6748 = vpop.f32.mrb[0].mxu0
  %6749 = vdwg.mxu0
  %v6750 = vadd.f32 %v6643, %v6745
  %v6751 = vld [vmem:[%s9] sm:$0x1]
  %v6753 = vlaneseq
  %v6754 = vshrl.u32 %v6753, 7
  %v6755 = vsub.s32 0, %v6754
  %v6756 = vrot.slane %v6751, %v6755
  %v6758 = vadd.f32 %v6750, %v6756
  %v6759 = vmax.f32 %v6758, 0.0
  %v6760 = vld [vmem:[%s10] sm:$0xff]
  %v6761 = vld [vmem:[%s10 + $0x8] sm:$0xff]
  %v6762 = vld [vmem:[%s10 + $0x10] sm:$0xff]
  %v6763 = vld [vmem:[%s10 + $0x18] sm:$0xff]
  %v6764 = vld [vmem:[%s10 + $0x20] sm:$0xff]
  %v6765 = vld [vmem:[%s10 + $0x28] sm:$0xff]
  %v6766 = vld [vmem:[%s10 + $0x30] sm:$0xff]
  %v6767 = vld [vmem:[%s10 + $0x38] sm:$0xff]
  %v6768 = vpack.c.bf16 %v6759, %v6759
  %v6769 = vld [vmem:[%s11] sm:$0xf]
  %v6771 = vlaneseq
  %v6772 = vshrl.u32 %v6771, 7
  %v6773 = vsub.s32 0, %v6772
  %v6774 = vrot.slane %v6769, %v6773
  %v6775 = vlaneseq
  %v6776 = vshrl.u32 %v6775, 7
  %v6777 = vsub.s32 1, %v6776
  %v6778 = vrot.slane %v6769, %v6777
  %v6779 = vlaneseq
  %v6780 = vshrl.u32 %v6779, 7
  %v6781 = vsub.s32 2, %v6780
  %v6782 = vrot.slane %v6769, %v6781
  %v6783 = vlaneseq
  %v6784 = vshrl.u32 %v6783, 7
  %v6785 = vsub.s32 3, %v6784
  %v6786 = vrot.slane %v6769, %v6785
  %v6799 = vunpack.c.l.b16 %v6760
  %v6800 = vunpack.c.h.b16 %v6760
  %v6801 = vunpack.c.l.b16 %v6761
  %v6802 = vunpack.c.h.b16 %v6761
  %v6803 = vunpack.c.l.b16 %v6762
  %v6804 = vunpack.c.h.b16 %v6762
  %v6805 = vunpack.c.l.b16 %v6763
  %v6806 = vunpack.c.h.b16 %v6763
  %v6807 = vunpack.c.l.b16 %v6764
  %v6808 = vunpack.c.h.b16 %v6764
  %v6809 = vunpack.c.l.b16 %v6765
  %v6810 = vunpack.c.h.b16 %v6765
  %v6811 = vunpack.c.l.b16 %v6766
  %v6812 = vunpack.c.h.b16 %v6766
  %v6813 = vunpack.c.l.b16 %v6767
  %v6814 = vunpack.c.h.b16 %v6767
  %v6815 = vpack.c.b16 %v6803, %v6799
  %v6816 = vpack.c.b16 %v6804, %v6800
  %v6817 = vpack.c.b16 %v6805, %v6801
  %v6818 = vpack.c.b16 %v6806, %v6802
  %v6819 = vpack.c.b16 %v6811, %v6807
  %v6820 = vpack.c.b16 %v6812, %v6808
  %v6821 = vpack.c.b16 %v6813, %v6809
  %v6822 = vpack.c.b16 %v6814, %v6810
  %vm6831 = vcmask 261120
  %v6833 = vsel %vm6831, %v6768, 0
  %6835 = vmatprep.subr.bf16.mxu0 %v6816
  %6836 = vmatpush1.bf16.msra.mxu0 %v6815
  %6837 = vmatprep.subr.bf16.mxu0 %v6820
  %6838 = vmatpush1.bf16.msra.mxu0 %v6819
  %6839 = vmatprep.subr.bf16.mxu0 0
  %6840 = vmatpush1.bf16.msra.mxu0 0
  %6841 = vmatprep.subr.bf16.mxu0 0
  %6842 = vmatpush1.bf16.msra.mxu0 0
  %6843 = vmatprep.subr.bf16.mxu0 0
  %6844 = vmatpush1.bf16.msra.mxu0 0
  %6845 = vmatprep.subr.bf16.mxu0 0
  %6846 = vmatpush1.bf16.msra.mxu0 0
  %6847 = vmatprep.subr.bf16.mxu0 0
  %6848 = vmatpush1.bf16.msra.mxu0 0
  %6849 = vmatprep.subr.bf16.mxu0 0
  %6850 = vmatpush1.bf16.msra.mxu0 0
  %6851 = vmatprep.subr.bf16.mxu0 0
  %6852 = vmatpush1.bf16.msra.mxu0 0
  %6853 = vmatprep.subr.bf16.mxu0 0
  %6854 = vmatpush1.bf16.msra.mxu0 0
  %6855 = vmatprep.subr.bf16.mxu0 0
  %6856 = vmatpush1.bf16.msra.mxu0 0
  %6857 = vmatprep.subr.bf16.mxu0 0
  %6858 = vmatpush1.bf16.msra.mxu0 0
  %6859 = vmatprep.subr.bf16.mxu0 0
  %6860 = vmatpush1.bf16.msra.mxu0 0
  %6861 = vmatprep.subr.bf16.mxu0 0
  %6862 = vmatpush1.bf16.msra.mxu0 0
  %6863 = vmatprep.subr.bf16.mxu0 0
  %6864 = vmatpush1.bf16.msra.mxu0 0
  %6865 = vmatprep.subr.bf16.mxu0 0
  %6866 = vmatpush1.bf16.msra.mxu0 0
  %6867 = vmatprep.mubr.bf16.mxu0 0
  %6868 = vmatmul.mubr.bf16.gmra.mrb[0].mxu0 %v6833
  %v6869 = vpop.f32.mrb[0].mxu0
  %v6870 = vadd.f32 %v6774, %v6869
  %v6871 = vpop.f32.mrb[0].mxu0
  %v6872 = vadd.f32 %v6778, %v6871
  %v6873 = vpop.f32.mrb[0].mxu0
  %v6874 = vpop.f32.mrb[0].mxu0
  %6875 = vdwg.mxu0
  %6876 = vmatprep.subr.bf16.mxu0 %v6818
  %6877 = vmatpush1.bf16.msra.mxu0 %v6817
  %6878 = vmatprep.subr.bf16.mxu0 %v6822
  %6879 = vmatpush1.bf16.msra.mxu0 %v6821
  %6880 = vmatprep.subr.bf16.mxu0 0
  %6881 = vmatpush1.bf16.msra.mxu0 0
  %6882 = vmatprep.subr.bf16.mxu0 0
  %6883 = vmatpush1.bf16.msra.mxu0 0
  %6884 = vmatprep.subr.bf16.mxu0 0
  %6885 = vmatpush1.bf16.msra.mxu0 0
  %6886 = vmatprep.subr.bf16.mxu0 0
  %6887 = vmatpush1.bf16.msra.mxu0 0
  %6888 = vmatprep.subr.bf16.mxu0 0
  %6889 = vmatpush1.bf16.msra.mxu0 0
  %6890 = vmatprep.subr.bf16.mxu0 0
  %6891 = vmatpush1.bf16.msra.mxu0 0
  %6892 = vmatprep.subr.bf16.mxu0 0
  %6893 = vmatpush1.bf16.msra.mxu0 0
  %6894 = vmatprep.subr.bf16.mxu0 0
  %6895 = vmatpush1.bf16.msra.mxu0 0
  %6896 = vmatprep.subr.bf16.mxu0 0
  %6897 = vmatpush1.bf16.msra.mxu0 0
  %6898 = vmatprep.subr.bf16.mxu0 0
  %6899 = vmatpush1.bf16.msra.mxu0 0
  %6900 = vmatprep.subr.bf16.mxu0 0
  %6901 = vmatpush1.bf16.msra.mxu0 0
  %6902 = vmatprep.subr.bf16.mxu0 0
  %6903 = vmatpush1.bf16.msra.mxu0 0
  %6904 = vmatprep.subr.bf16.mxu0 0
  %6905 = vmatpush1.bf16.msra.mxu0 0
  %6906 = vmatprep.subr.bf16.mxu0 0
  %6907 = vmatpush1.bf16.msra.mxu0 0
  %6908 = vmatprep.mubr.bf16.mxu0 0
  %6909 = vmatmul.mubr.bf16.gmra.mrb[0].mxu0 %v6833
  %v6910 = vpop.f32.mrb[0].mxu0
  %v6911 = vadd.f32 %v6782, %v6910
  %v6912 = vpop.f32.mrb[0].mxu0
  %v6913 = vadd.f32 %v6786, %v6912
  %v6914 = vpop.f32.mrb[0].mxu0
  %v6915 = vpop.f32.mrb[0].mxu0
  %6916 = vdwg.mxu0
  %v6917 = vmax.f32 %v6870, 0.0
  %v6918 = vmax.f32 %v6872, 0.0
  %v6919 = vmax.f32 %v6911, 0.0
  %v6920 = vmax.f32 %v6913, 0.0
  %v6921 = vld [vmem:[%s12] sm:$0xff]
  %v6922 = vld [vmem:[%s12 + $0x8] sm:$0xff]
  %v6923 = vld [vmem:[%s12 + $0x10] sm:$0xff]
  %v6924 = vld [vmem:[%s12 + $0x18] sm:$0xff]
  %v6925 = vld [vmem:[%s12 + $0x20] sm:$0xff]
  %v6926 = vld [vmem:[%s12 + $0x28] sm:$0xff]
  %v6927 = vld [vmem:[%s12 + $0x30] sm:$0xff]
  %v6928 = vld [vmem:[%s12 + $0x38] sm:$0xff]
  %v6929 = vld [vmem:[%s12 + $0x40] sm:$0xff]
  %v6930 = vld [vmem:[%s12 + $0x48] sm:$0xff]
  %v6931 = vld [vmem:[%s12 + $0x50] sm:$0xff]
  %v6932 = vld [vmem:[%s12 + $0x58] sm:$0xff]
  %v6933 = vld [vmem:[%s12 + $0x60] sm:$0xff]
  %v6934 = vld [vmem:[%s12 + $0x68] sm:$0xff]
  %v6935 = vld [vmem:[%s12 + $0x70] sm:$0xff]
  %v6936 = vld [vmem:[%s12 + $0x78] sm:$0xff]
  %v6937 = vld [vmem:[%s12 + $0x80] sm:$0xff]
  %v6938 = vld [vmem:[%s12 + $0x88] sm:$0xff]
  %v6939 = vld [vmem:[%s12 + $0x90] sm:$0xff]
  %v6940 = vld [vmem:[%s12 + $0x98] sm:$0xff]
  %v6941 = vld [vmem:[%s12 + $0xa0] sm:$0xff]
  %v6942 = vld [vmem:[%s12 + $0xa8] sm:$0xff]
  %v6943 = vld [vmem:[%s12 + $0xb0] sm:$0xff]
  %v6944 = vld [vmem:[%s12 + $0xb8] sm:$0xff]
  %v6945 = vld [vmem:[%s12 + $0xc0] sm:$0xff]
  %v6946 = vld [vmem:[%s12 + $0xc8] sm:$0xff]
  %v6947 = vld [vmem:[%s12 + $0xd0] sm:$0xff]
  %v6948 = vld [vmem:[%s12 + $0xd8] sm:$0xff]
  %v6949 = vld [vmem:[%s12 + $0xe0] sm:$0xff]
  %v6950 = vld [vmem:[%s12 + $0xe8] sm:$0xff]
  %v6951 = vld [vmem:[%s12 + $0xf0] sm:$0xff]
  %v6952 = vld [vmem:[%s12 + $0xf8] sm:$0xff]
  %v6953 = vld [vmem:[%s12 + $0x100] sm:$0xff]
  %v6954 = vld [vmem:[%s12 + $0x108] sm:$0xff]
  %v6955 = vld [vmem:[%s12 + $0x110] sm:$0xff]
  %v6956 = vld [vmem:[%s12 + $0x118] sm:$0xff]
  %v6957 = vld [vmem:[%s12 + $0x120] sm:$0xff]
  %v6958 = vld [vmem:[%s12 + $0x128] sm:$0xff]
  %v6959 = vld [vmem:[%s12 + $0x130] sm:$0xff]
  %v6960 = vld [vmem:[%s12 + $0x138] sm:$0xff]
  %v6961 = vld [vmem:[%s12 + $0x140] sm:$0xff]
  %v6962 = vld [vmem:[%s12 + $0x148] sm:$0xff]
  %v6963 = vld [vmem:[%s12 + $0x150] sm:$0xff]
  %v6964 = vld [vmem:[%s12 + $0x158] sm:$0xff]
  %v6965 = vld [vmem:[%s12 + $0x160] sm:$0xff]
  %v6966 = vld [vmem:[%s12 + $0x168] sm:$0xff]
  %v6967 = vld [vmem:[%s12 + $0x170] sm:$0xff]
  %v6968 = vld [vmem:[%s12 + $0x178] sm:$0xff]
  %v6969 = vld [vmem:[%s12 + $0x180] sm:$0xff]
  %v6970 = vld [vmem:[%s12 + $0x188] sm:$0xff]
  %v6971 = vld [vmem:[%s12 + $0x190] sm:$0xff]
  %v6972 = vld [vmem:[%s12 + $0x198] sm:$0xff]
  %v6973 = vld [vmem:[%s12 + $0x1a0] sm:$0xff]
  %v6974 = vld [vmem:[%s12 + $0x1a8] sm:$0xff]
  %v6975 = vld [vmem:[%s12 + $0x1b0] sm:$0xff]
  %v6976 = vld [vmem:[%s12 + $0x1b8] sm:$0xff]
  %v6977 = vld [vmem:[%s12 + $0x1c0] sm:$0xff]
  %v6978 = vld [vmem:[%s12 + $0x1c8] sm:$0xff]
  %v6979 = vld [vmem:[%s12 + $0x1d0] sm:$0xff]
  %v6980 = vld [vmem:[%s12 + $0x1d8] sm:$0xff]
  %v6981 = vld [vmem:[%s12 + $0x1e0] sm:$0xff]
  %v6982 = vld [vmem:[%s12 + $0x1e8] sm:$0xff]
  %v6983 = vld [vmem:[%s12 + $0x1f0] sm:$0xff]
  %v6984 = vld [vmem:[%s12 + $0x1f8] sm:$0xff]
  %v6985 = vpack.c.bf16 %v6917, %v6917
  %v6986 = vpack.c.bf16 %v6918, %v6918
  %v6987 = vpack.c.bf16 %v6919, %v6919
  %v6988 = vpack.c.bf16 %v6920, %v6920
  %v6989 = vld [vmem:[%s13] sm:$0x3]
  %v6991 = vlaneseq
  %v6992 = vshrl.u32 %v6991, 7
  %v6993 = vsub.s32 0, %v6992
  %v6994 = vrot.slane %v6989, %v6993
  %v6995 = vlaneseq
  %v6996 = vshrl.u32 %v6995, 7
  %v6997 = vsub.s32 1, %v6996
  %v6998 = vrot.slane %v6989, %v6997
  %v7065 = vunpack.c.l.b16 %v6921
  %v7066 = vunpack.c.h.b16 %v6921
  %v7067 = vunpack.c.l.b16 %v6922
  %v7068 = vunpack.c.h.b16 %v6922
  %v7069 = vunpack.c.l.b16 %v6923
  %v7070 = vunpack.c.h.b16 %v6923
  %v7071 = vunpack.c.l.b16 %v6924
  %v7072 = vunpack.c.h.b16 %v6924
  %v7073 = vunpack.c.l.b16 %v6925
  %v7074 = vunpack.c.h.b16 %v6925
  %v7075 = vunpack.c.l.b16 %v6926
  %v7076 = vunpack.c.h.b16 %v6926
  %v7077 = vunpack.c.l.b16 %v6927
  %v7078 = vunpack.c.h.b16 %v6927
  %v7079 = vunpack.c.l.b16 %v6928
  %v7080 = vunpack.c.h.b16 %v6928
  %v7081 = vunpack.c.l.b16 %v6929
  %v7082 = vunpack.c.h.b16 %v6929
  %v7083 = vunpack.c.l.b16 %v6930
  %v7084 = vunpack.c.h.b16 %v6930
  %v7085 = vunpack.c.l.b16 %v6931
  %v7086 = vunpack.c.h.b16 %v6931
  %v7087 = vunpack.c.l.b16 %v6932
  %v7088 = vunpack.c.h.b16 %v6932
  %v7089 = vunpack.c.l.b16 %v6933
  %v7090 = vunpack.c.h.b16 %v6933
  %v7091 = vunpack.c.l.b16 %v6934
  %v7092 = vunpack.c.h.b16 %v6934
  %v7093 = vunpack.c.l.b16 %v6935
  %v7094 = vunpack.c.h.b16 %v6935
  %v7095 = vunpack.c.l.b16 %v6936
  %v7096 = vunpack.c.h.b16 %v6936
  %v7097 = vunpack.c.l.b16 %v6937
  %v7098 = vunpack.c.h.b16 %v6937
  %v7099 = vunpack.c.l.b16 %v6938
  %v7100 = vunpack.c.h.b16 %v6938
  %v7101 = vunpack.c.l.b16 %v6939
  %v7102 = vunpack.c.h.b16 %v6939
  %v7103 = vunpack.c.l.b16 %v6940
  %v7104 = vunpack.c.h.b16 %v6940
  %v7105 = vunpack.c.l.b16 %v6941
  %v7106 = vunpack.c.h.b16 %v6941
  %v7107 = vunpack.c.l.b16 %v6942
  %v7108 = vunpack.c.h.b16 %v6942
  %v7109 = vunpack.c.l.b16 %v6943
  %v7110 = vunpack.c.h.b16 %v6943
  %v7111 = vunpack.c.l.b16 %v6944
  %v7112 = vunpack.c.h.b16 %v6944
  %v7113 = vunpack.c.l.b16 %v6945
  %v7114 = vunpack.c.h.b16 %v6945
  %v7115 = vunpack.c.l.b16 %v6946
  %v7116 = vunpack.c.h.b16 %v6946
  %v7117 = vunpack.c.l.b16 %v6947
  %v7118 = vunpack.c.h.b16 %v6947
  %v7119 = vunpack.c.l.b16 %v6948
  %v7120 = vunpack.c.h.b16 %v6948
  %v7121 = vunpack.c.l.b16 %v6949
  %v7122 = vunpack.c.h.b16 %v6949
  %v7123 = vunpack.c.l.b16 %v6950
  %v7124 = vunpack.c.h.b16 %v6950
  %v7125 = vunpack.c.l.b16 %v6951
  %v7126 = vunpack.c.h.b16 %v6951
  %v7127 = vunpack.c.l.b16 %v6952
  %v7128 = vunpack.c.h.b16 %v6952
  %v7129 = vunpack.c.l.b16 %v6953
  %v7130 = vunpack.c.h.b16 %v6953
  %v7131 = vunpack.c.l.b16 %v6954
  %v7132 = vunpack.c.h.b16 %v6954
  %v7133 = vunpack.c.l.b16 %v6955
  %v7134 = vunpack.c.h.b16 %v6955
  %v7135 = vunpack.c.l.b16 %v6956
  %v7136 = vunpack.c.h.b16 %v6956
  %v7137 = vunpack.c.l.b16 %v6957
  %v7138 = vunpack.c.h.b16 %v6957
  %v7139 = vunpack.c.l.b16 %v6958
  %v7140 = vunpack.c.h.b16 %v6958
  %v7141 = vunpack.c.l.b16 %v6959
  %v7142 = vunpack.c.h.b16 %v6959
  %v7143 = vunpack.c.l.b16 %v6960
  %v7144 = vunpack.c.h.b16 %v6960
  %v7145 = vunpack.c.l.b16 %v6961
  %v7146 = vunpack.c.h.b16 %v6961
  %v7147 = vunpack.c.l.b16 %v6962
  %v7148 = vunpack.c.h.b16 %v6962
  %v7149 = vunpack.c.l.b16 %v6963
  %v7150 = vunpack.c.h.b16 %v6963
  %v7151 = vunpack.c.l.b16 %v6964
  %v7152 = vunpack.c.h.b16 %v6964
  %v7153 = vunpack.c.l.b16 %v6965
  %v7154 = vunpack.c.h.b16 %v6965
  %v7155 = vunpack.c.l.b16 %v6966
  %v7156 = vunpack.c.h.b16 %v6966
  %v7157 = vunpack.c.l.b16 %v6967
  %v7158 = vunpack.c.h.b16 %v6967
  %v7159 = vunpack.c.l.b16 %v6968
  %v7160 = vunpack.c.h.b16 %v6968
  %v7161 = vunpack.c.l.b16 %v6969
  %v7162 = vunpack.c.h.b16 %v6969
  %v7163 = vunpack.c.l.b16 %v6970
  %v7164 = vunpack.c.h.b16 %v6970
  %v7165 = vunpack.c.l.b16 %v6971
  %v7166 = vunpack.c.h.b16 %v6971
  %v7167 = vunpack.c.l.b16 %v6972
  %v7168 = vunpack.c.h.b16 %v6972
  %v7169 = vunpack.c.l.b16 %v6973
  %v7170 = vunpack.c.h.b16 %v6973
  %v7171 = vunpack.c.l.b16 %v6974
  %v7172 = vunpack.c.h.b16 %v6974
  %v7173 = vunpack.c.l.b16 %v6975
  %v7174 = vunpack.c.h.b16 %v6975
  %v7175 = vunpack.c.l.b16 %v6976
  %v7176 = vunpack.c.h.b16 %v6976
  %v7177 = vunpack.c.l.b16 %v6977
  %v7178 = vunpack.c.h.b16 %v6977
  %v7179 = vunpack.c.l.b16 %v6978
  %v7180 = vunpack.c.h.b16 %v6978
  %v7181 = vunpack.c.l.b16 %v6979
  %v7182 = vunpack.c.h.b16 %v6979
  %v7183 = vunpack.c.l.b16 %v6980
  %v7184 = vunpack.c.h.b16 %v6980
  %v7185 = vunpack.c.l.b16 %v6981
  %v7186 = vunpack.c.h.b16 %v6981
  %v7187 = vunpack.c.l.b16 %v6982
  %v7188 = vunpack.c.h.b16 %v6982
  %v7189 = vunpack.c.l.b16 %v6983
  %v7190 = vunpack.c.h.b16 %v6983
  %v7191 = vunpack.c.l.b16 %v6984
  %v7192 = vunpack.c.h.b16 %v6984
  %v7193 = vpack.c.b16 %v7067, %v7065
  %v7194 = vpack.c.b16 %v7068, %v7066
  %v7195 = vpack.c.b16 %v7071, %v7069
  %v7196 = vpack.c.b16 %v7072, %v7070
  %v7197 = vpack.c.b16 %v7075, %v7073
  %v7198 = vpack.c.b16 %v7076, %v7074
  %v7199 = vpack.c.b16 %v7079, %v7077
  %v7200 = vpack.c.b16 %v7080, %v7078
  %v7201 = vpack.c.b16 %v7083, %v7081
  %v7202 = vpack.c.b16 %v7084, %v7082
  %v7203 = vpack.c.b16 %v7087, %v7085
  %v7204 = vpack.c.b16 %v7088, %v7086
  %v7205 = vpack.c.b16 %v7091, %v7089
  %v7206 = vpack.c.b16 %v7092, %v7090
  %v7207 = vpack.c.b16 %v7095, %v7093
  %v7208 = vpack.c.b16 %v7096, %v7094
  %v7209 = vpack.c.b16 %v7099, %v7097
  %v7210 = vpack.c.b16 %v7100, %v7098
  %v7211 = vpack.c.b16 %v7103, %v7101
  %v7212 = vpack.c.b16 %v7104, %v7102
  %v7213 = vpack.c.b16 %v7107, %v7105
  %v7214 = vpack.c.b16 %v7108, %v7106
  %v7215 = vpack.c.b16 %v7111, %v7109
  %v7216 = vpack.c.b16 %v7112, %v7110
  %v7217 = vpack.c.b16 %v7115, %v7113
  %v7218 = vpack.c.b16 %v7116, %v7114
  %v7219 = vpack.c.b16 %v7119, %v7117
  %v7220 = vpack.c.b16 %v7120, %v7118
  %v7221 = vpack.c.b16 %v7123, %v7121
  %v7222 = vpack.c.b16 %v7124, %v7122
  %v7223 = vpack.c.b16 %v7127, %v7125
  %v7224 = vpack.c.b16 %v7128, %v7126
  %v7225 = vpack.c.b16 %v7131, %v7129
  %v7226 = vpack.c.b16 %v7132, %v7130
  %v7227 = vpack.c.b16 %v7135, %v7133
  %v7228 = vpack.c.b16 %v7136, %v7134
  %v7229 = vpack.c.b16 %v7139, %v7137
  %v7230 = vpack.c.b16 %v7140, %v7138
  %v7231 = vpack.c.b16 %v7143, %v7141
  %v7232 = vpack.c.b16 %v7144, %v7142
  %v7233 = vpack.c.b16 %v7147, %v7145
  %v7234 = vpack.c.b16 %v7148, %v7146
  %v7235 = vpack.c.b16 %v7151, %v7149
  %v7236 = vpack.c.b16 %v7152, %v7150
  %v7237 = vpack.c.b16 %v7155, %v7153
  %v7238 = vpack.c.b16 %v7156, %v7154
  %v7239 = vpack.c.b16 %v7159, %v7157
  %v7240 = vpack.c.b16 %v7160, %v7158
  %v7241 = vpack.c.b16 %v7163, %v7161
  %v7242 = vpack.c.b16 %v7164, %v7162
  %v7243 = vpack.c.b16 %v7167, %v7165
  %v7244 = vpack.c.b16 %v7168, %v7166
  %v7245 = vpack.c.b16 %v7171, %v7169
  %v7246 = vpack.c.b16 %v7172, %v7170
  %v7247 = vpack.c.b16 %v7175, %v7173
  %v7248 = vpack.c.b16 %v7176, %v7174
  %v7249 = vpack.c.b16 %v7179, %v7177
  %v7250 = vpack.c.b16 %v7180, %v7178
  %v7251 = vpack.c.b16 %v7183, %v7181
  %v7252 = vpack.c.b16 %v7184, %v7182
  %v7253 = vpack.c.b16 %v7187, %v7185
  %v7254 = vpack.c.b16 %v7188, %v7186
  %v7255 = vpack.c.b16 %v7191, %v7189
  %v7256 = vpack.c.b16 %v7192, %v7190
  %7321 = vmatprep.subr.bf16.mxu0 %v7194
  %7322 = vmatpush1.bf16.msra.mxu0 %v7193
  %7323 = vmatprep.subr.bf16.mxu0 %v7196
  %7324 = vmatpush1.bf16.msra.mxu0 %v7195
  %7325 = vmatprep.subr.bf16.mxu0 %v7198
  %7326 = vmatpush1.bf16.msra.mxu0 %v7197
  %7327 = vmatprep.subr.bf16.mxu0 %v7200
  %7328 = vmatpush1.bf16.msra.mxu0 %v7199
  %7329 = vmatprep.subr.bf16.mxu0 %v7202
  %7330 = vmatpush1.bf16.msra.mxu0 %v7201
  %7331 = vmatprep.subr.bf16.mxu0 %v7204
  %7332 = vmatpush1.bf16.msra.mxu0 %v7203
  %7333 = vmatprep.subr.bf16.mxu0 %v7206
  %7334 = vmatpush1.bf16.msra.mxu0 %v7205
  %7335 = vmatprep.subr.bf16.mxu0 %v7208
  %7336 = vmatpush1.bf16.msra.mxu0 %v7207
  %7337 = vmatprep.subr.bf16.mxu0 %v7210
  %7338 = vmatpush1.bf16.msra.mxu0 %v7209
  %7339 = vmatprep.subr.bf16.mxu0 %v7212
  %7340 = vmatpush1.bf16.msra.mxu0 %v7211
  %7341 = vmatprep.subr.bf16.mxu0 %v7214
  %7342 = vmatpush1.bf16.msra.mxu0 %v7213
  %7343 = vmatprep.subr.bf16.mxu0 %v7216
  %7344 = vmatpush1.bf16.msra.mxu0 %v7215
  %7345 = vmatprep.subr.bf16.mxu0 %v7218
  %7346 = vmatpush1.bf16.msra.mxu0 %v7217
  %7347 = vmatprep.subr.bf16.mxu0 %v7220
  %7348 = vmatpush1.bf16.msra.mxu0 %v7219
  %7349 = vmatprep.subr.bf16.mxu0 %v7222
  %7350 = vmatpush1.bf16.msra.mxu0 %v7221
  %7351 = vmatprep.subr.bf16.mxu0 %v7224
  %7352 = vmatpush1.bf16.msra.mxu0 %v7223
  %7353 = vmatprep.mubr.bf16.mxu0 %v6986
  %7354 = vmatmul.mubr.bf16.gmra.mrb[0].mxu0 %v6985
  %v7355 = vpop.f32.mrb[0].mxu0
  %v7356 = vadd.f32 %v6994, %v7355
  %v7357 = vpop.f32.mrb[0].mxu0
  %v7358 = vadd.f32 %v6998, %v7357
  %v7359 = vpop.f32.mrb[0].mxu0
  %v7360 = vpop.f32.mrb[0].mxu0
  %7361 = vdwg.mxu0
  %7362 = vmatprep.subr.bf16.mxu0 %v7226
  %7363 = vmatpush1.bf16.msra.mxu0 %v7225
  %7364 = vmatprep.subr.bf16.mxu0 %v7228
  %7365 = vmatpush1.bf16.msra.mxu0 %v7227
  %7366 = vmatprep.subr.bf16.mxu0 %v7230
  %7367 = vmatpush1.bf16.msra.mxu0 %v7229
  %7368 = vmatprep.subr.bf16.mxu0 %v7232
  %7369 = vmatpush1.bf16.msra.mxu0 %v7231
  %7370 = vmatprep.subr.bf16.mxu0 %v7234
  %7371 = vmatpush1.bf16.msra.mxu0 %v7233
  %7372 = vmatprep.subr.bf16.mxu0 %v7236
  %7373 = vmatpush1.bf16.msra.mxu0 %v7235
  %7374 = vmatprep.subr.bf16.mxu0 %v7238
  %7375 = vmatpush1.bf16.msra.mxu0 %v7237
  %7376 = vmatprep.subr.bf16.mxu0 %v7240
  %7377 = vmatpush1.bf16.msra.mxu0 %v7239
  %7378 = vmatprep.subr.bf16.mxu0 %v7242
  %7379 = vmatpush1.bf16.msra.mxu0 %v7241
  %7380 = vmatprep.subr.bf16.mxu0 %v7244
  %7381 = vmatpush1.bf16.msra.mxu0 %v7243
  %7382 = vmatprep.subr.bf16.mxu0 %v7246
  %7383 = vmatpush1.bf16.msra.mxu0 %v7245
  %7384 = vmatprep.subr.bf16.mxu0 %v7248
  %7385 = vmatpush1.bf16.msra.mxu0 %v7247
  %7386 = vmatprep.subr.bf16.mxu0 %v7250
  %7387 = vmatpush1.bf16.msra.mxu0 %v7249
  %7388 = vmatprep.subr.bf16.mxu0 %v7252
  %7389 = vmatpush1.bf16.msra.mxu0 %v7251
  %7390 = vmatprep.subr.bf16.mxu0 %v7254
  %7391 = vmatpush1.bf16.msra.mxu0 %v7253
  %7392 = vmatprep.subr.bf16.mxu0 %v7256
  %7393 = vmatpush1.bf16.msra.mxu0 %v7255
  %7394 = vmatprep.mubr.bf16.mxu0 %v6988
  %7395 = vmatmul.mubr.bf16.gmra.mrb[0].mxu0 %v6987
  %v7396 = vpop.f32.mrb[0].mxu0
  %v7397 = vadd.f32 %v7356, %v7396
  %v7398 = vpop.f32.mrb[0].mxu0
  %v7399 = vadd.f32 %v7358, %v7398
  %v7400 = vpop.f32.mrb[0].mxu0
  %v7401 = vpop.f32.mrb[0].mxu0
  %7402 = vdwg.mxu0
  %v7403 = vmax.f32 %v7397, 0.0
  %v7404 = vmax.f32 %v7399, 0.0
  %v7405 = vld [vmem:[%s14] sm:$0xf]
  %v7406 = vld [vmem:[%s14 + $0x4] sm:$0xf]
  %v7407 = vld [vmem:[%s14 + $0x8] sm:$0xf]
  %v7408 = vld [vmem:[%s14 + $0xc] sm:$0xf]
  %v7409 = vld [vmem:[%s14 + $0x10] sm:$0xf]
  %v7410 = vld [vmem:[%s14 + $0x14] sm:$0xf]
  %v7411 = vld [vmem:[%s14 + $0x18] sm:$0xf]
  %v7412 = vld [vmem:[%s14 + $0x1c] sm:$0xf]
  %v7413 = vld [vmem:[%s14 + $0x20] sm:$0xf]
  %v7414 = vld [vmem:[%s14 + $0x24] sm:$0xf]
  %v7415 = vld [vmem:[%s14 + $0x28] sm:$0xf]
  %v7416 = vld [vmem:[%s14 + $0x2c] sm:$0xf]
  %v7417 = vld [vmem:[%s14 + $0x30] sm:$0xf]
  %v7418 = vld [vmem:[%s14 + $0x34] sm:$0xf]
  %v7419 = vld [vmem:[%s14 + $0x38] sm:$0xf]
  %v7420 = vld [vmem:[%s14 + $0x3c] sm:$0xf]
  %v7421 = vld [vmem:[%s14 + $0x40] sm:$0xf]
  %v7422 = vld [vmem:[%s14 + $0x44] sm:$0xf]
  %v7423 = vld [vmem:[%s14 + $0x48] sm:$0xf]
  %v7424 = vld [vmem:[%s14 + $0x4c] sm:$0xf]
  %v7425 = vld [vmem:[%s14 + $0x50] sm:$0xf]
  %v7426 = vld [vmem:[%s14 + $0x54] sm:$0xf]
  %v7427 = vld [vmem:[%s14 + $0x58] sm:$0xf]
  %v7428 = vld [vmem:[%s14 + $0x5c] sm:$0xf]
  %v7429 = vld [vmem:[%s14 + $0x60] sm:$0xf]
  %v7430 = vld [vmem:[%s14 + $0x64] sm:$0xf]
  %v7431 = vld [vmem:[%s14 + $0x68] sm:$0xf]
  %v7432 = vld [vmem:[%s14 + $0x6c] sm:$0xf]
  %v7433 = vld [vmem:[%s14 + $0x70] sm:$0xf]
  %v7434 = vld [vmem:[%s14 + $0x74] sm:$0xf]
  %v7435 = vld [vmem:[%s14 + $0x78] sm:$0xf]
  %v7436 = vld [vmem:[%s14 + $0x7c] sm:$0xf]
  %v7437 = vpack.c.bf16 %v7403, %v7403
  %v7438 = vpack.c.bf16 %v7404, %v7404
  %v7439 = vld [vmem:[%s15] sm:$0x1]
  %v7441 = vlaneseq
  %v7442 = vshrl.u32 %v7441, 7
  %v7443 = vsub.s32 0, %v7442
  %v7444 = vrot.slane %v7439, %v7443
  %v7478 = vunpack.c.l.b16 %v7405
  %v7479 = vunpack.c.l.b16 %v7406
  %v7480 = vunpack.c.l.b16 %v7407
  %v7481 = vunpack.c.l.b16 %v7408
  %v7482 = vunpack.c.l.b16 %v7409
  %v7483 = vunpack.c.l.b16 %v7410
  %v7484 = vunpack.c.l.b16 %v7411
  %v7485 = vunpack.c.l.b16 %v7412
  %v7486 = vunpack.c.l.b16 %v7413
  %v7487 = vunpack.c.l.b16 %v7414
  %v7488 = vunpack.c.l.b16 %v7415
  %v7489 = vunpack.c.l.b16 %v7416
  %v7490 = vunpack.c.l.b16 %v7417
  %v7491 = vunpack.c.l.b16 %v7418
  %v7492 = vunpack.c.l.b16 %v7419
  %v7493 = vunpack.c.l.b16 %v7420
  %v7494 = vunpack.c.l.b16 %v7421
  %v7495 = vunpack.c.l.b16 %v7422
  %v7496 = vunpack.c.l.b16 %v7423
  %v7497 = vunpack.c.l.b16 %v7424
  %v7498 = vunpack.c.l.b16 %v7425
  %v7499 = vunpack.c.l.b16 %v7426
  %v7500 = vunpack.c.l.b16 %v7427
  %v7501 = vunpack.c.l.b16 %v7428
  %v7502 = vunpack.c.l.b16 %v7429
  %v7503 = vunpack.c.l.b16 %v7430
  %v7504 = vunpack.c.l.b16 %v7431
  %v7505 = vunpack.c.l.b16 %v7432
  %v7506 = vunpack.c.l.b16 %v7433
  %v7507 = vunpack.c.l.b16 %v7434
  %v7508 = vunpack.c.l.b16 %v7435
  %v7509 = vunpack.c.l.b16 %v7436
  %v7510 = vpack.c.b16 %v7479, %v7478
  %v7511 = vpack.c.b16 %v7481, %v7480
  %v7512 = vpack.c.b16 %v7483, %v7482
  %v7513 = vpack.c.b16 %v7485, %v7484
  %v7514 = vpack.c.b16 %v7487, %v7486
  %v7515 = vpack.c.b16 %v7489, %v7488
  %v7516 = vpack.c.b16 %v7491, %v7490
  %v7517 = vpack.c.b16 %v7493, %v7492
  %v7518 = vpack.c.b16 %v7495, %v7494
  %v7519 = vpack.c.b16 %v7497, %v7496
  %v7520 = vpack.c.b16 %v7499, %v7498
  %v7521 = vpack.c.b16 %v7501, %v7500
  %v7522 = vpack.c.b16 %v7503, %v7502
  %v7523 = vpack.c.b16 %v7505, %v7504
  %v7524 = vpack.c.b16 %v7507, %v7506
  %v7525 = vpack.c.b16 %v7509, %v7508
  %7542 = vmatprep.subr.bf16.mxu0 0
  %7543 = vmatpush1.bf16.msra.mxu0 %v7510
  %7544 = vmatprep.subr.bf16.mxu0 0
  %7545 = vmatpush1.bf16.msra.mxu0 %v7511
  %7546 = vmatprep.subr.bf16.mxu0 0
  %7547 = vmatpush1.bf16.msra.mxu0 %v7512
  %7548 = vmatprep.subr.bf16.mxu0 0
  %7549 = vmatpush1.bf16.msra.mxu0 %v7513
  %7550 = vmatprep.subr.bf16.mxu0 0
  %7551 = vmatpush1.bf16.msra.mxu0 %v7514
  %7552 = vmatprep.subr.bf16.mxu0 0
  %7553 = vmatpush1.bf16.msra.mxu0 %v7515
  %7554 = vmatprep.subr.bf16.mxu0 0
  %7555 = vmatpush1.bf16.msra.mxu0 %v7516
  %7556 = vmatprep.subr.bf16.mxu0 0
  %7557 = vmatpush1.bf16.msra.mxu0 %v7517
  %7558 = vmatprep.subr.bf16.mxu0 0
  %7559 = vmatpush1.bf16.msra.mxu0 %v7518
  %7560 = vmatprep.subr.bf16.mxu0 0
  %7561 = vmatpush1.bf16.msra.mxu0 %v7519
  %7562 = vmatprep.subr.bf16.mxu0 0
  %7563 = vmatpush1.bf16.msra.mxu0 %v7520
  %7564 = vmatprep.subr.bf16.mxu0 0
  %7565 = vmatpush1.bf16.msra.mxu0 %v7521
  %7566 = vmatprep.subr.bf16.mxu0 0
  %7567 = vmatpush1.bf16.msra.mxu0 %v7522
  %7568 = vmatprep.subr.bf16.mxu0 0
  %7569 = vmatpush1.bf16.msra.mxu0 %v7523
  %7570 = vmatprep.subr.bf16.mxu0 0
  %7571 = vmatpush1.bf16.msra.mxu0 %v7524
  %7572 = vmatprep.subr.bf16.mxu0 0
  %7573 = vmatpush1.bf16.msra.mxu0 %v7525
  %7574 = vmatprep.mubr.bf16.mxu0 %v7438
  %7575 = vmatmul.mubr.bf16.gmra.mrb[0].mxu0 %v7437
  %v7576 = vpop.f32.mrb[0].mxu0
  %v7577 = vadd.f32 %v7444, %v7576
  %v7578 = vpop.f32.mrb[0].mxu0
  %v7579 = vpop.f32.mrb[0].mxu0
  %v7580 = vpop.f32.mrb[0].mxu0
  %7581 = vdwg.mxu0
  %v7582 = vmax.f32 %v7577, 0.0
  %v7583 = vld [vmem:[%s16] sm:$0xf]
  %v7584 = vld [vmem:[%s16 + $0x4] sm:$0xf]
  %v7585 = vld [vmem:[%s16 + $0x8] sm:$0xf]
  %v7586 = vld [vmem:[%s16 + $0xc] sm:$0xf]
  %v7587 = vld [vmem:[%s16 + $0x10] sm:$0xf]
  %v7588 = vld [vmem:[%s16 + $0x14] sm:$0xf]
  %v7589 = vld [vmem:[%s16 + $0x18] sm:$0xf]
  %v7590 = vld [vmem:[%s16 + $0x1c] sm:$0xf]
  %v7591 = vpack.c.bf16 %v7582, %v7582
  %v7592 = vld [vmem:[%s17] sm:$0x1]
  %v7594 = vlaneseq
  %v7595 = vshrl.u32 %v7594, 7
  %v7596 = vsub.s32 0, %v7595
  %v7597 = vrot.slane %v7592, %v7596
  %v7607 = vunpack.c.l.b16 %v7583
  %v7608 = vunpack.c.l.b16 %v7584
  %v7609 = vunpack.c.l.b16 %v7585
  %v7610 = vunpack.c.l.b16 %v7586
  %v7611 = vunpack.c.l.b16 %v7587
  %v7612 = vunpack.c.l.b16 %v7588
  %v7613 = vunpack.c.l.b16 %v7589
  %v7614 = vunpack.c.l.b16 %v7590
  %v7615 = vpack.c.b16 %v7608, %v7607
  %v7616 = vpack.c.b16 %v7610, %v7609
  %v7617 = vpack.c.b16 %v7612, %v7611
  %v7618 = vpack.c.b16 %v7614, %v7613
  %v7624 = vsel %vm4045, %v7591, 0
  %7626 = vmatprep.subr.bf16.mxu0 0
  %7627 = vmatpush1.bf16.msra.mxu0 %v7615
  %7628 = vmatprep.subr.bf16.mxu0 0
  %7629 = vmatpush1.bf16.msra.mxu0 %v7616
  %7630 = vmatprep.subr.bf16.mxu0 0
  %7631 = vmatpush1.bf16.msra.mxu0 %v7617
  %7632 = vmatprep.subr.bf16.mxu0 0
  %7633 = vmatpush1.bf16.msra.mxu0 %v7618
  %7634 = vmatprep.subr.bf16.mxu0 0
  %7635 = vmatpush1.bf16.msra.mxu0 0
  %7636 = vmatprep.subr.bf16.mxu0 0
  %7637 = vmatpush1.bf16.msra.mxu0 0
  %7638 = vmatprep.subr.bf16.mxu0 0
  %7639 = vmatpush1.bf16.msra.mxu0 0
  %7640 = vmatprep.subr.bf16.mxu0 0
  %7641 = vmatpush1.bf16.msra.mxu0 0
  %7642 = vmatprep.subr.bf16.mxu0 0
  %7643 = vmatpush1.bf16.msra.mxu0 0
  %7644 = vmatprep.subr.bf16.mxu0 0
  %7645 = vmatpush1.bf16.msra.mxu0 0
  %7646 = vmatprep.subr.bf16.mxu0 0
  %7647 = vmatpush1.bf16.msra.mxu0 0
  %7648 = vmatprep.subr.bf16.mxu0 0
  %7649 = vmatpush1.bf16.msra.mxu0 0
  %7650 = vmatprep.subr.bf16.mxu0 0
  %7651 = vmatpush1.bf16.msra.mxu0 0
  %7652 = vmatprep.subr.bf16.mxu0 0
  %7653 = vmatpush1.bf16.msra.mxu0 0
  %7654 = vmatprep.subr.bf16.mxu0 0
  %7655 = vmatpush1.bf16.msra.mxu0 0
  %7656 = vmatprep.subr.bf16.mxu0 0
  %7657 = vmatpush1.bf16.msra.mxu0 0
  %7658 = vmatprep.mubr.bf16.mxu0 0
  %7659 = vmatmul.mubr.bf16.gmra.mrb[0].mxu0 %v7624
  %v7660 = vpop.f32.mrb[0].mxu0
  %v7661 = vadd.f32 %v7597, %v7660
  %v7662 = vpop.f32.mrb[0].mxu0
  %v7663 = vpop.f32.mrb[0].mxu0
  %v7664 = vpop.f32.mrb[0].mxu0
  %7665 = vdwg.mxu0
  %7666 = vst [vmem:[%s18] sm:$0xff] %v7661
  // Predicated region
  $region74: #{cat_nn_conv_forward.1} parent=0 // pred_check
    _
  $region75: #{cat_nn_conv_forward.1} parent=0 // pred_check_branch
    %7668 = sbr.rel (0) target = $region77
  $region76: #{cat_nn_conv_forward.1} parent=0 // pred_region
    _
  $region77: #{cat_nn_conv_forward.1} parent=0 // pred_fallthru
    _
  // Predicated region
  $region78: #{cat_nn_conv_forward.1} parent=0 // pred_check
    _
  $region79: #{cat_nn_conv_forward.1} parent=0 // pred_check_branch
    %7670 = sbr.rel (0) target = $region81
  $region80: #{cat_nn_conv_forward.1} parent=0 // pred_region
    _
  $region81: #{cat_nn_conv_forward.1} parent=0 // pred_fallthru
    _

</llo_original>
